<compile_context>
chip_gen: v6e
topology: v6e:2x2x1
jax: 0.10.0
libtpu: 0.0.40
codegen_flags: <defaults>
</compile_context>

<pallas_src>
import functools
import math

import jax
import jax.numpy as jnp
from jax.experimental import pallas as pl
from jax.experimental.pallas import tpu as pltpu


# ---------------------------------------------------------------------------
# Fused forward kernel: one grid step == one sample; everything stays in VMEM.
# ---------------------------------------------------------------------------
def _conv_block(window, w_ref, b_ref, relu):
    """Valid 1-D conv in (L, C) orientation as a sum of per-tap matmuls.

    window(t) -> (L_out, C_in) view of the source shifted by tap t.
    w_ref: (K, C_in, C_out) ref (pre-arranged on host), b_ref: (1, C_out) ref.
    """
    k = w_ref.shape[0]
    acc = jnp.dot(window(0), w_ref[0], preferred_element_type=jnp.float32)
    for t in range(1, k):
        acc = acc + jnp.dot(window(t), w_ref[t],
                            preferred_element_type=jnp.float32)
    acc = acc + b_ref[...]
    if relu:
        acc = jnp.maximum(acc, 0.0)
    return acc


def _store_padded(pad_ref, val, pad):
    """Write `val` into the middle rows of a padded VMEM scratch, zero pads."""
    n, c = val.shape
    z = jnp.zeros((pad, c), jnp.float32)
    pad_ref[0:pad, :] = z
    pad_ref[pad:pad + n, :] = val
    pad_ref[pad + n:, :] = z


def ladder_kernel(x_ref,
                  e1_w, e1_b, e2_w, e2_b, e3_w, e3_b,
                  pe, po, efc_w, efc_b, dfc_w, dfc_b, ue, uo,
                  d3_w, d3_b, d2_w, d2_b, d1_w, d1_b,
                  recon_ref, enc_ref,
                  dec_s, up_pad, d3_pad, d2_pad):
    k = e1_w.shape[0]
    pad = k - 1
    L = x_ref.shape[1]
    L1, L2, L3 = L - pad, L - 2 * pad, L - 3 * pad
    P = pe.shape[0]                              # pooled length

    # ------------------------------ encoder ------------------------------
    xv = x_ref[0]                                # (L, C_in)
    h1 = _conv_block(lambda t: xv[t:t + L1, :], e1_w, e1_b, relu=True)   # (L1,150)
    h2 = _conv_block(lambda t: h1[t:t + L2, :], e2_w, e2_b, relu=True)   # (L2,100)
    h3 = _conv_block(lambda t: h2[t:t + L3, :], e3_w, e3_b, relu=False)  # (L3, 30)

    # MaxPool1d(2, return_indices) along L as two 0/1 selector matmuls.
    even = jnp.dot(pe[...], h3, preferred_element_type=jnp.float32)      # (P, 30)
    odd = jnp.dot(po[...], h3, preferred_element_type=jnp.float32)       # (P, 30)
    pooled = jnp.maximum(even, odd)
    mask = (even >= odd).astype(jnp.float32)     # 1.0 -> max at the first slot

    # encodefc1 over the flattened bottleneck without materializing the
    # flatten: encoded = b + sum_p pooled[p] @ W[p]  (W permuted on the host).
    enc = efc_b[...]                             # (1, out)
    for p in range(P):
        enc = enc + jnp.dot(pooled[p:p + 1, :], efc_w[p],
                            preferred_element_type=jnp.float32)
    enc_ref[0] = enc

    # ------------------------------ decoder ------------------------------
    # decodefc1: row p of the (P, C3) bottleneck = encoded @ W[p]
    for p in range(P):
        dec_s[p:p + 1, :] = jnp.dot(enc, dfc_w[p],
                                    preferred_element_type=jnp.float32)
    dec = dec_s[...] + dfc_b[...]                # (P, 30)

    # MaxUnpool1d(2): scatter to the recorded slot via transposed selectors.
    vm = dec * mask
    vo = dec - vm                                # dec * (1 - mask)
    unpooled = (jnp.dot(ue[...], vm, preferred_element_type=jnp.float32)
                + jnp.dot(uo[...], vo, preferred_element_type=jnp.float32))

    # ConvTranspose1d(stride=1, pad=0) == valid conv over a zero-padded input
    # with flipped/transposed weights (baked into the host-side weight layout).
    _store_padded(up_pad, unpooled, pad)
    d3 = _conv_block(lambda t: up_pad[t:t + L2, :], d3_w, d3_b, relu=True)   # (L2,100)
    _store_padded(d3_pad, d3, pad)
    d2 = _conv_block(lambda t: d3_pad[t:t + L1, :], d2_w, d2_b, relu=True)   # (L1,150)
    _store_padded(d2_pad, d2, pad)
    recon = _conv_block(lambda t: d2_pad[t:t + L, :], d1_w, d1_b, relu=False)  # (L, C_in)

    recon_ref[0] = recon


# ---------------------------------------------------------------------------
# Wrapper: single pallas_call for the whole network.
# ---------------------------------------------------------------------------
_CONST_ORDER = ['e1_w', 'e1_b', 'e2_w', 'e2_b', 'e3_w', 'e3_b',
                'pe', 'po', 'efc_w', 'efc_b', 'dfc_w', 'dfc_b', 'ue', 'uo',
                'd3_w', 'd3_b', 'd2_w', 'd2_b', 'd1_w', 'd1_b']


def ladder_forward(params, x):
    # x: (B, L, C_in)  ->  (recon (B, L, C_in), encoded (B, out_size))
    B, L, c_in = x.shape
    k = params['e1_w'].shape[0]
    pad = k - 1
    L1, L2, L3 = L - pad, L - 2 * pad, L - 3 * pad
    P, c3 = params['dfc_b'].shape
    out_size = params['efc_b'].shape[1]
    c_d3 = params['d3_w'].shape[2]
    c_d2 = params['d2_w'].shape[2]

    consts = [params[n] for n in _CONST_ORDER]

    def _resident(a):                            # VMEM-resident, loaded once
        zero = (0,) * a.ndim
        return pl.BlockSpec(a.shape, lambda b, _z=zero: _z)

    recon, enc3 = pl.pallas_call(
        ladder_kernel,
        out_shape=(jax.ShapeDtypeStruct((B, L, c_in), jnp.float32),
                   jax.ShapeDtypeStruct((B, 1, out_size), jnp.float32)),
        grid=(B,),
        in_specs=[pl.BlockSpec((1, L, c_in), lambda b: (b, 0, 0))]
                 + [_resident(a) for a in consts],
        out_specs=(pl.BlockSpec((1, L, c_in), lambda b: (b, 0, 0)),
                   pl.BlockSpec((1, 1, out_size), lambda b: (b, 0, 0))),
        scratch_shapes=[
            pltpu.VMEM((P, c3), jnp.float32),                # dec assembly
            pltpu.VMEM((L3 + 2 * pad, c3), jnp.float32),     # padded unpooled
            pltpu.VMEM((L2 + 2 * pad, c_d3), jnp.float32),   # padded d3
            pltpu.VMEM((L1 + 2 * pad, c_d2), jnp.float32),   # padded d2
        ],
        compiler_params=pltpu.CompilerParams(
            dimension_semantics=("parallel",)),              # 1 sample / TC on v7x
    )(x, *consts)
    return recon, enc3[:, 0, :]


# ---------------------------------------------------------------------------
# Parameters (deterministic, PyTorch-style uniform init), pre-arranged on the
# host into the kernel layouts (tap-major conv weights, permuted FC weights,
# pool/unpool selector matrices).
# ---------------------------------------------------------------------------
def init_params(key, input_size, out_size, kernel_size, seq_len):
    k = kernel_size
    c3 = 30
    l3 = seq_len - 3 * (k - 1)
    P = l3 // 2
    assert l3 % 2 == 0 and c3 * P == 420        # must match nn.Linear(420, .)

    keys = iter(jax.random.split(key, 16))

    def conv_p(c_out, c_in):
        bnd = 1.0 / math.sqrt(c_in * k)
        w = jax.random.uniform(next(keys), (c_out, c_in, k), jnp.float32, -bnd, bnd)
        b = jax.random.uniform(next(keys), (c_out,), jnp.float32, -bnd, bnd)
        # forward layout: w_mat[t, i, o] = w[o, i, t]
        return jnp.transpose(w, (2, 1, 0)), b.reshape(1, c_out)

    def convT_p(c_in, c_out):
        bnd = 1.0 / math.sqrt(c_in * k)
        w = jax.random.uniform(next(keys), (c_in, c_out, k), jnp.float32, -bnd, bnd)
        b = jax.random.uniform(next(keys), (c_out,), jnp.float32, -bnd, bnd)
        # transposed conv == conv with flipped kernel: w_mat[t, i, o] = w[i, o, k-1-t]
        return jnp.transpose(jnp.flip(w, axis=2), (2, 0, 1)), b.reshape(1, c_out)

    p = {}
    p['e1_w'], p['e1_b'] = conv_p(150, input_size)
    p['e2_w'], p['e2_b'] = conv_p(100, 150)
    p['e3_w'], p['e3_b'] = conv_p(c3, 100)

    # encodefc1: Linear(420, out); PyTorch flattens (C3, P) channel-major.
    # Kernel layout: (P, C3, out) with efc_w[p, c, o] = W[o, c*P + p].
    bnd = 1.0 / math.sqrt(c3 * P)
    w = jax.random.uniform(next(keys), (out_size, c3 * P), jnp.float32, -bnd, bnd)
    b = jax.random.uniform(next(keys), (out_size,), jnp.float32, -bnd, bnd)
    p['efc_w'] = jnp.transpose(w.reshape(out_size, c3, P), (2, 1, 0))
    p['efc_b'] = b.reshape(1, out_size)

    # decodefc1: Linear(out, 420); kernel layout (P, out, C3), bias (P, C3),
    # with dfc_w[p, o, c] = W[c*P + p, o] and dfc_b[p, c] = b[c*P + p].
    bnd = 1.0 / math.sqrt(out_size)
    w = jax.random.uniform(next(keys), (c3 * P, out_size), jnp.float32, -bnd, bnd)
    b = jax.random.uniform(next(keys), (c3 * P,), jnp.float32, -bnd, bnd)
    p['dfc_w'] = jnp.transpose(w.reshape(c3, P, out_size), (1, 2, 0))
    p['dfc_b'] = b.reshape(c3, P).T

    p['d3_w'], p['d3_b'] = convT_p(c3, 100)
    p['d2_w'], p['d2_b'] = convT_p(100, 150)
    p['d1_w'], p['d1_b'] = convT_p(150, input_size)

    # MaxPool / MaxUnpool window selectors (kernel=stride=2) as 0/1 matrices,
    # so pooling/unpooling stay inside the fused kernel as matmuls.
    rows = jnp.arange(P)[:, None]
    cols = jnp.arange(l3)[None, :]
    pe = (cols == 2 * rows).astype(jnp.float32)          # picks even slots
    po = (cols == 2 * rows + 1).astype(jnp.float32)      # picks odd slots
    p['pe'], p['po'], p['ue'], p['uo'] = pe, po, pe.T, po.T
    return p


# ---------------------------------------------------------------------------
if __name__ == "__main__":
    # Shapes chosen so the flattened pooled features equal 420 (encodefc1):
    # L=34, k=3  ->  34 - 6 = 28 -> pool -> 14; 30 * 14 = 420.
    B, L, input_size, out_size, kernel_size = 2, 34, 8, 16, 3

    key = jax.random.PRNGKey(0)
    kp, kx = jax.random.split(key)
    params = init_params(kp, input_size, out_size, kernel_size, L)
    x = jax.random.normal(kx, (B, L, input_size), jnp.float32)

    fwd = jax.jit(functools.partial(ladder_forward, params))
    recon, encoded = fwd(x)
    jax.block_until_ready((recon, encoded))

    assert recon.shape == (B, L, input_size), recon.shape
    assert encoded.shape == (B, out_size), encoded.shape
    assert recon.dtype == jnp.float32 and encoded.dtype == jnp.float32
    assert bool(jnp.all(jnp.isfinite(recon))) and bool(jnp.all(jnp.isfinite(encoded)))

    print("KERNEL_OK")
</pallas_src>

<mosaic_0001>
module attributes {stable_mosaic.version = 11 : i64} {
  func.func @ladder_kernel(%arg0: i32, %arg1: memref<1x34x8xf32, #tpu.memory_space<vmem>>, %arg2: memref<3x8x150xf32, #tpu.memory_space<vmem>>, %arg3: memref<1x150xf32, #tpu.memory_space<vmem>>, %arg4: memref<3x150x100xf32, #tpu.memory_space<vmem>>, %arg5: memref<1x100xf32, #tpu.memory_space<vmem>>, %arg6: memref<3x100x30xf32, #tpu.memory_space<vmem>>, %arg7: memref<1x30xf32, #tpu.memory_space<vmem>>, %arg8: memref<14x28xf32, #tpu.memory_space<vmem>>, %arg9: memref<14x28xf32, #tpu.memory_space<vmem>>, %arg10: memref<14x30x16xf32, #tpu.memory_space<vmem>>, %arg11: memref<1x16xf32, #tpu.memory_space<vmem>>, %arg12: memref<14x16x30xf32, #tpu.memory_space<vmem>>, %arg13: memref<14x30xf32, #tpu.memory_space<vmem>>, %arg14: memref<28x14xf32, #tpu.memory_space<vmem>>, %arg15: memref<28x14xf32, #tpu.memory_space<vmem>>, %arg16: memref<3x30x100xf32, #tpu.memory_space<vmem>>, %arg17: memref<1x100xf32, #tpu.memory_space<vmem>>, %arg18: memref<3x100x150xf32, #tpu.memory_space<vmem>>, %arg19: memref<1x150xf32, #tpu.memory_space<vmem>>, %arg20: memref<3x150x8xf32, #tpu.memory_space<vmem>>, %arg21: memref<1x8xf32, #tpu.memory_space<vmem>>, %arg22: memref<1x34x8xf32, #tpu.memory_space<vmem>>, %arg23: memref<1x1x16xf32, #tpu.memory_space<vmem>>, %arg24: memref<14x30xf32, #tpu.memory_space<vmem>>, %arg25: memref<32x30xf32, #tpu.memory_space<vmem>>, %arg26: memref<34x100xf32, #tpu.memory_space<vmem>>, %arg27: memref<36x150xf32, #tpu.memory_space<vmem>>) attributes {dimension_semantics = [#tpu.dimension_semantics<parallel>], iteration_bounds = array<i64: 2>, scalar_prefetch = 0 : i64, scratch_operands = 4 : i64, tpu.core_type = #tpu.core_type<tc>, window_params = [{transform_indices = @transform_0, window_bounds = array<i64: 1, 34, 8>}, {pipeline_mode = #tpu.pipeline_mode<synchronous>, transform_indices = @transform_1, window_bounds = array<i64: 3, 8, 150>}, {pipeline_mode = #tpu.pipeline_mode<synchronous>, transform_indices = @transform_2, window_bounds = array<i64: 1, 150>}, {pipeline_mode = #tpu.pipeline_mode<synchronous>, transform_indices = @transform_3, window_bounds = array<i64: 3, 150, 100>}, {pipeline_mode = #tpu.pipeline_mode<synchronous>, transform_indices = @transform_4, window_bounds = array<i64: 1, 100>}, {pipeline_mode = #tpu.pipeline_mode<synchronous>, transform_indices = @transform_5, window_bounds = array<i64: 3, 100, 30>}, {pipeline_mode = #tpu.pipeline_mode<synchronous>, transform_indices = @transform_6, window_bounds = array<i64: 1, 30>}, {pipeline_mode = #tpu.pipeline_mode<synchronous>, transform_indices = @transform_7, window_bounds = array<i64: 14, 28>}, {pipeline_mode = #tpu.pipeline_mode<synchronous>, transform_indices = @transform_8, window_bounds = array<i64: 14, 28>}, {pipeline_mode = #tpu.pipeline_mode<synchronous>, transform_indices = @transform_9, window_bounds = array<i64: 14, 30, 16>}, {pipeline_mode = #tpu.pipeline_mode<synchronous>, transform_indices = @transform_10, window_bounds = array<i64: 1, 16>}, {pipeline_mode = #tpu.pipeline_mode<synchronous>, transform_indices = @transform_11, window_bounds = array<i64: 14, 16, 30>}, {pipeline_mode = #tpu.pipeline_mode<synchronous>, transform_indices = @transform_12, window_bounds = array<i64: 14, 30>}, {pipeline_mode = #tpu.pipeline_mode<synchronous>, transform_indices = @transform_13, window_bounds = array<i64: 28, 14>}, {pipeline_mode = #tpu.pipeline_mode<synchronous>, transform_indices = @transform_14, window_bounds = array<i64: 28, 14>}, {pipeline_mode = #tpu.pipeline_mode<synchronous>, transform_indices = @transform_15, window_bounds = array<i64: 3, 30, 100>}, {pipeline_mode = #tpu.pipeline_mode<synchronous>, transform_indices = @transform_16, window_bounds = array<i64: 1, 100>}, {pipeline_mode = #tpu.pipeline_mode<synchronous>, transform_indices = @transform_17, window_bounds = array<i64: 3, 100, 150>}, {pipeline_mode = #tpu.pipeline_mode<synchronous>, transform_indices = @transform_18, window_bounds = array<i64: 1, 150>}, {pipeline_mode = #tpu.pipeline_mode<synchronous>, transform_indices = @transform_19, window_bounds = array<i64: 3, 150, 8>}, {pipeline_mode = #tpu.pipeline_mode<synchronous>, transform_indices = @transform_20, window_bounds = array<i64: 1, 8>}, {transform_indices = @transform_21, window_bounds = array<i64: 1, 34, 8>}, {transform_indices = @transform_22, window_bounds = array<i64: 1, 1, 16>}]} {
    %c0 = arith.constant 0 : index
    %c0_0 = arith.constant 0 : index
    %c0_1 = arith.constant 0 : index
    %0 = vector.load %arg1[%c0, %c0_0, %c0_1] : memref<1x34x8xf32, #tpu.memory_space<vmem>>, vector<1x34x8xf32>
    %1 = vector.shape_cast %0 : vector<1x34x8xf32> to vector<34x8xf32>
    %2 = vector.extract_strided_slice %1 {offsets = [0, 0], sizes = [32, 8], strides = [1, 1]} : vector<34x8xf32> to vector<32x8xf32>
    %c0_2 = arith.constant 0 : index
    %c0_3 = arith.constant 0 : index
    %c0_4 = arith.constant 0 : index
    %3 = vector.load %arg2[%c0_2, %c0_3, %c0_4] : memref<3x8x150xf32, #tpu.memory_space<vmem>>, vector<1x8x150xf32>
    %4 = vector.shape_cast %3 : vector<1x8x150xf32> to vector<8x150xf32>
    %cst = arith.constant dense<0.000000e+00> : vector<32x150xf32>
    %5 = tpu.matmul %2, %4, %cst {dimension_numbers = #tpu.dot_dimension_numbers<[1], [0], [0], [1], [0, 0, 1, 1], [], []>} : vector<32x8xf32>, vector<8x150xf32>, vector<32x150xf32> -> vector<32x150xf32>
    %6 = vector.extract_strided_slice %1 {offsets = [1, 0], sizes = [32, 8], strides = [1, 1]} : vector<34x8xf32> to vector<32x8xf32>
    %c1 = arith.constant 1 : index
    %c0_5 = arith.constant 0 : index
    %c0_6 = arith.constant 0 : index
    %7 = vector.load %arg2[%c1, %c0_5, %c0_6] : memref<3x8x150xf32, #tpu.memory_space<vmem>>, vector<1x8x150xf32>
    %8 = vector.shape_cast %7 : vector<1x8x150xf32> to vector<8x150xf32>
    %cst_7 = arith.constant dense<0.000000e+00> : vector<32x150xf32>
    %9 = tpu.matmul %6, %8, %cst_7 {dimension_numbers = #tpu.dot_dimension_numbers<[1], [0], [0], [1], [0, 0, 1, 1], [], []>} : vector<32x8xf32>, vector<8x150xf32>, vector<32x150xf32> -> vector<32x150xf32>
    %10 = arith.addf %5, %9 : vector<32x150xf32>
    %11 = vector.extract_strided_slice %1 {offsets = [2, 0], sizes = [32, 8], strides = [1, 1]} : vector<34x8xf32> to vector<32x8xf32>
    %c2 = arith.constant 2 : index
    %c0_8 = arith.constant 0 : index
    %c0_9 = arith.constant 0 : index
    %12 = vector.load %arg2[%c2, %c0_8, %c0_9] : memref<3x8x150xf32, #tpu.memory_space<vmem>>, vector<1x8x150xf32>
    %13 = vector.shape_cast %12 : vector<1x8x150xf32> to vector<8x150xf32>
    %cst_10 = arith.constant dense<0.000000e+00> : vector<32x150xf32>
    %14 = tpu.matmul %11, %13, %cst_10 {dimension_numbers = #tpu.dot_dimension_numbers<[1], [0], [0], [1], [0, 0, 1, 1], [], []>} : vector<32x8xf32>, vector<8x150xf32>, vector<32x150xf32> -> vector<32x150xf32>
    %15 = arith.addf %10, %14 : vector<32x150xf32>
    %c0_11 = arith.constant 0 : index
    %c0_12 = arith.constant 0 : index
    %16 = vector.load %arg3[%c0_11, %c0_12] : memref<1x150xf32, #tpu.memory_space<vmem>>, vector<1x150xf32>
    %17 = vector.broadcast %16 : vector<1x150xf32> to vector<32x150xf32>
    %18 = arith.addf %15, %17 : vector<32x150xf32>
    %cst_13 = arith.constant 0.000000e+00 : f32
    %19 = vector.broadcast %cst_13 : f32 to vector<32x150xf32>
    %20 = arith.maximumf %18, %19 : vector<32x150xf32>
    %21 = vector.extract_strided_slice %20 {offsets = [0, 0], sizes = [30, 150], strides = [1, 1]} : vector<32x150xf32> to vector<30x150xf32>
    %c0_14 = arith.constant 0 : index
    %c0_15 = arith.constant 0 : index
    %c0_16 = arith.constant 0 : index
    %22 = vector.load %arg4[%c0_14, %c0_15, %c0_16] : memref<3x150x100xf32, #tpu.memory_space<vmem>>, vector<1x150x100xf32>
    %23 = vector.shape_cast %22 : vector<1x150x100xf32> to vector<150x100xf32>
    %cst_17 = arith.constant dense<0.000000e+00> : vector<30x100xf32>
    %24 = tpu.matmul %21, %23, %cst_17 {dimension_numbers = #tpu.dot_dimension_numbers<[1], [0], [0], [1], [0, 0, 1, 1], [], []>} : vector<30x150xf32>, vector<150x100xf32>, vector<30x100xf32> -> vector<30x100xf32>
    %25 = vector.extract_strided_slice %20 {offsets = [1, 0], sizes = [30, 150], strides = [1, 1]} : vector<32x150xf32> to vector<30x150xf32>
    %c1_18 = arith.constant 1 : index
    %c0_19 = arith.constant 0 : index
    %c0_20 = arith.constant 0 : index
    %26 = vector.load %arg4[%c1_18, %c0_19, %c0_20] : memref<3x150x100xf32, #tpu.memory_space<vmem>>, vector<1x150x100xf32>
    %27 = vector.shape_cast %26 : vector<1x150x100xf32> to vector<150x100xf32>
    %cst_21 = arith.constant dense<0.000000e+00> : vector<30x100xf32>
    %28 = tpu.matmul %25, %27, %cst_21 {dimension_numbers = #tpu.dot_dimension_numbers<[1], [0], [0], [1], [0, 0, 1, 1], [], []>} : vector<30x150xf32>, vector<150x100xf32>, vector<30x100xf32> -> vector<30x100xf32>
    %29 = arith.addf %24, %28 : vector<30x100xf32>
    %30 = vector.extract_strided_slice %20 {offsets = [2, 0], sizes = [30, 150], strides = [1, 1]} : vector<32x150xf32> to vector<30x150xf32>
    %c2_22 = arith.constant 2 : index
    %c0_23 = arith.constant 0 : index
    %c0_24 = arith.constant 0 : index
    %31 = vector.load %arg4[%c2_22, %c0_23, %c0_24] : memref<3x150x100xf32, #tpu.memory_space<vmem>>, vector<1x150x100xf32>
    %32 = vector.shape_cast %31 : vector<1x150x100xf32> to vector<150x100xf32>
    %cst_25 = arith.constant dense<0.000000e+00> : vector<30x100xf32>
    %33 = tpu.matmul %30, %32, %cst_25 {dimension_numbers = #tpu.dot_dimension_numbers<[1], [0], [0], [1], [0, 0, 1, 1], [], []>} : vector<30x150xf32>, vector<150x100xf32>, vector<30x100xf32> -> vector<30x100xf32>
    %34 = arith.addf %29, %33 : vector<30x100xf32>
    %c0_26 = arith.constant 0 : index
    %c0_27 = arith.constant 0 : index
    %35 = vector.load %arg5[%c0_26, %c0_27] : memref<1x100xf32, #tpu.memory_space<vmem>>, vector<1x100xf32>
    %36 = vector.broadcast %35 : vector<1x100xf32> to vector<30x100xf32>
    %37 = arith.addf %34, %36 : vector<30x100xf32>
    %cst_28 = arith.constant 0.000000e+00 : f32
    %38 = vector.broadcast %cst_28 : f32 to vector<30x100xf32>
    %39 = arith.maximumf %37, %38 : vector<30x100xf32>
    %40 = vector.extract_strided_slice %39 {offsets = [0, 0], sizes = [28, 100], strides = [1, 1]} : vector<30x100xf32> to vector<28x100xf32>
    %c0_29 = arith.constant 0 : index
    %c0_30 = arith.constant 0 : index
    %c0_31 = arith.constant 0 : index
    %41 = vector.load %arg6[%c0_29, %c0_30, %c0_31] : memref<3x100x30xf32, #tpu.memory_space<vmem>>, vector<1x100x30xf32>
    %42 = vector.shape_cast %41 : vector<1x100x30xf32> to vector<100x30xf32>
    %cst_32 = arith.constant dense<0.000000e+00> : vector<28x30xf32>
    %43 = tpu.matmul %40, %42, %cst_32 {dimension_numbers = #tpu.dot_dimension_numbers<[1], [0], [0], [1], [0, 0, 1, 1], [], []>} : vector<28x100xf32>, vector<100x30xf32>, vector<28x30xf32> -> vector<28x30xf32>
    %44 = vector.extract_strided_slice %39 {offsets = [1, 0], sizes = [28, 100], strides = [1, 1]} : vector<30x100xf32> to vector<28x100xf32>
    %c1_33 = arith.constant 1 : index
    %c0_34 = arith.constant 0 : index
    %c0_35 = arith.constant 0 : index
    %45 = vector.load %arg6[%c1_33, %c0_34, %c0_35] : memref<3x100x30xf32, #tpu.memory_space<vmem>>, vector<1x100x30xf32>
    %46 = vector.shape_cast %45 : vector<1x100x30xf32> to vector<100x30xf32>
    %cst_36 = arith.constant dense<0.000000e+00> : vector<28x30xf32>
    %47 = tpu.matmul %44, %46, %cst_36 {dimension_numbers = #tpu.dot_dimension_numbers<[1], [0], [0], [1], [0, 0, 1, 1], [], []>} : vector<28x100xf32>, vector<100x30xf32>, vector<28x30xf32> -> vector<28x30xf32>
    %48 = arith.addf %43, %47 : vector<28x30xf32>
    %49 = vector.extract_strided_slice %39 {offsets = [2, 0], sizes = [28, 100], strides = [1, 1]} : vector<30x100xf32> to vector<28x100xf32>
    %c2_37 = arith.constant 2 : index
    %c0_38 = arith.constant 0 : index
    %c0_39 = arith.constant 0 : index
    %50 = vector.load %arg6[%c2_37, %c0_38, %c0_39] : memref<3x100x30xf32, #tpu.memory_space<vmem>>, vector<1x100x30xf32>
    %51 = vector.shape_cast %50 : vector<1x100x30xf32> to vector<100x30xf32>
    %cst_40 = arith.constant dense<0.000000e+00> : vector<28x30xf32>
    %52 = tpu.matmul %49, %51, %cst_40 {dimension_numbers = #tpu.dot_dimension_numbers<[1], [0], [0], [1], [0, 0, 1, 1], [], []>} : vector<28x100xf32>, vector<100x30xf32>, vector<28x30xf32> -> vector<28x30xf32>
    %53 = arith.addf %48, %52 : vector<28x30xf32>
    %c0_41 = arith.constant 0 : index
    %c0_42 = arith.constant 0 : index
    %54 = vector.load %arg7[%c0_41, %c0_42] : memref<1x30xf32, #tpu.memory_space<vmem>>, vector<1x30xf32>
    %55 = vector.broadcast %54 : vector<1x30xf32> to vector<28x30xf32>
    %56 = arith.addf %53, %55 : vector<28x30xf32>
    %c0_43 = arith.constant 0 : index
    %c0_44 = arith.constant 0 : index
    %57 = vector.load %arg8[%c0_43, %c0_44] : memref<14x28xf32, #tpu.memory_space<vmem>>, vector<14x28xf32>
    %cst_45 = arith.constant dense<0.000000e+00> : vector<14x30xf32>
    %58 = tpu.matmul %57, %56, %cst_45 {dimension_numbers = #tpu.dot_dimension_numbers<[1], [0], [0], [1], [0, 0, 1, 1], [], []>} : vector<14x28xf32>, vector<28x30xf32>, vector<14x30xf32> -> vector<14x30xf32>
    %c0_46 = arith.constant 0 : index
    %c0_47 = arith.constant 0 : index
    %59 = vector.load %arg9[%c0_46, %c0_47] : memref<14x28xf32, #tpu.memory_space<vmem>>, vector<14x28xf32>
    %cst_48 = arith.constant dense<0.000000e+00> : vector<14x30xf32>
    %60 = tpu.matmul %59, %56, %cst_48 {dimension_numbers = #tpu.dot_dimension_numbers<[1], [0], [0], [1], [0, 0, 1, 1], [], []>} : vector<14x28xf32>, vector<28x30xf32>, vector<14x30xf32> -> vector<14x30xf32>
    %61 = arith.maximumf %58, %60 : vector<14x30xf32>
    %62 = arith.cmpf oge, %58, %60 : vector<14x30xf32>
    %63 = arith.extui %62 : vector<14x30xi1> to vector<14x30xi32>
    %64 = arith.sitofp %63 : vector<14x30xi32> to vector<14x30xf32>
    %c0_49 = arith.constant 0 : index
    %c0_50 = arith.constant 0 : index
    %65 = vector.load %arg11[%c0_49, %c0_50] : memref<1x16xf32, #tpu.memory_space<vmem>>, vector<1x16xf32>
    %66 = vector.extract_strided_slice %61 {offsets = [0, 0], sizes = [1, 30], strides = [1, 1]} : vector<14x30xf32> to vector<1x30xf32>
    %c0_51 = arith.constant 0 : index
    %c0_52 = arith.constant 0 : index
    %c0_53 = arith.constant 0 : index
    %67 = vector.load %arg10[%c0_51, %c0_52, %c0_53] : memref<14x30x16xf32, #tpu.memory_space<vmem>>, vector<1x30x16xf32>
    %68 = vector.shape_cast %67 : vector<1x30x16xf32> to vector<30x16xf32>
    %cst_54 = arith.constant dense<0.000000e+00> : vector<1x16xf32>
    %69 = tpu.matmul %66, %68, %cst_54 {dimension_numbers = #tpu.dot_dimension_numbers<[1], [0], [0], [1], [0, 0, 1, 1], [], []>} : vector<1x30xf32>, vector<30x16xf32>, vector<1x16xf32> -> vector<1x16xf32>
    %70 = arith.addf %65, %69 : vector<1x16xf32>
    %71 = vector.extract_strided_slice %61 {offsets = [1, 0], sizes = [1, 30], strides = [1, 1]} : vector<14x30xf32> to vector<1x30xf32>
    %c1_55 = arith.constant 1 : index
    %c0_56 = arith.constant 0 : index
    %c0_57 = arith.constant 0 : index
    %72 = vector.load %arg10[%c1_55, %c0_56, %c0_57] : memref<14x30x16xf32, #tpu.memory_space<vmem>>, vector<1x30x16xf32>
    %73 = vector.shape_cast %72 : vector<1x30x16xf32> to vector<30x16xf32>
    %cst_58 = arith.constant dense<0.000000e+00> : vector<1x16xf32>
    %74 = tpu.matmul %71, %73, %cst_58 {dimension_numbers = #tpu.dot_dimension_numbers<[1], [0], [0], [1], [0, 0, 1, 1], [], []>} : vector<1x30xf32>, vector<30x16xf32>, vector<1x16xf32> -> vector<1x16xf32>
    %75 = arith.addf %70, %74 : vector<1x16xf32>
    %76 = vector.extract_strided_slice %61 {offsets = [2, 0], sizes = [1, 30], strides = [1, 1]} : vector<14x30xf32> to vector<1x30xf32>
    %c2_59 = arith.constant 2 : index
    %c0_60 = arith.constant 0 : index
    %c0_61 = arith.constant 0 : index
    %77 = vector.load %arg10[%c2_59, %c0_60, %c0_61] : memref<14x30x16xf32, #tpu.memory_space<vmem>>, vector<1x30x16xf32>
    %78 = vector.shape_cast %77 : vector<1x30x16xf32> to vector<30x16xf32>
    %cst_62 = arith.constant dense<0.000000e+00> : vector<1x16xf32>
    %79 = tpu.matmul %76, %78, %cst_62 {dimension_numbers = #tpu.dot_dimension_numbers<[1], [0], [0], [1], [0, 0, 1, 1], [], []>} : vector<1x30xf32>, vector<30x16xf32>, vector<1x16xf32> -> vector<1x16xf32>
    %80 = arith.addf %75, %79 : vector<1x16xf32>
    %81 = vector.extract_strided_slice %61 {offsets = [3, 0], sizes = [1, 30], strides = [1, 1]} : vector<14x30xf32> to vector<1x30xf32>
    %c3 = arith.constant 3 : index
    %c0_63 = arith.constant 0 : index
    %c0_64 = arith.constant 0 : index
    %82 = vector.load %arg10[%c3, %c0_63, %c0_64] : memref<14x30x16xf32, #tpu.memory_space<vmem>>, vector<1x30x16xf32>
    %83 = vector.shape_cast %82 : vector<1x30x16xf32> to vector<30x16xf32>
    %cst_65 = arith.constant dense<0.000000e+00> : vector<1x16xf32>
    %84 = tpu.matmul %81, %83, %cst_65 {dimension_numbers = #tpu.dot_dimension_numbers<[1], [0], [0], [1], [0, 0, 1, 1], [], []>} : vector<1x30xf32>, vector<30x16xf32>, vector<1x16xf32> -> vector<1x16xf32>
    %85 = arith.addf %80, %84 : vector<1x16xf32>
    %86 = vector.extract_strided_slice %61 {offsets = [4, 0], sizes = [1, 30], strides = [1, 1]} : vector<14x30xf32> to vector<1x30xf32>
    %c4 = arith.constant 4 : index
    %c0_66 = arith.constant 0 : index
    %c0_67 = arith.constant 0 : index
    %87 = vector.load %arg10[%c4, %c0_66, %c0_67] : memref<14x30x16xf32, #tpu.memory_space<vmem>>, vector<1x30x16xf32>
    %88 = vector.shape_cast %87 : vector<1x30x16xf32> to vector<30x16xf32>
    %cst_68 = arith.constant dense<0.000000e+00> : vector<1x16xf32>
    %89 = tpu.matmul %86, %88, %cst_68 {dimension_numbers = #tpu.dot_dimension_numbers<[1], [0], [0], [1], [0, 0, 1, 1], [], []>} : vector<1x30xf32>, vector<30x16xf32>, vector<1x16xf32> -> vector<1x16xf32>
    %90 = arith.addf %85, %89 : vector<1x16xf32>
    %91 = vector.extract_strided_slice %61 {offsets = [5, 0], sizes = [1, 30], strides = [1, 1]} : vector<14x30xf32> to vector<1x30xf32>
    %c5 = arith.constant 5 : index
    %c0_69 = arith.constant 0 : index
    %c0_70 = arith.constant 0 : index
    %92 = vector.load %arg10[%c5, %c0_69, %c0_70] : memref<14x30x16xf32, #tpu.memory_space<vmem>>, vector<1x30x16xf32>
    %93 = vector.shape_cast %92 : vector<1x30x16xf32> to vector<30x16xf32>
    %cst_71 = arith.constant dense<0.000000e+00> : vector<1x16xf32>
    %94 = tpu.matmul %91, %93, %cst_71 {dimension_numbers = #tpu.dot_dimension_numbers<[1], [0], [0], [1], [0, 0, 1, 1], [], []>} : vector<1x30xf32>, vector<30x16xf32>, vector<1x16xf32> -> vector<1x16xf32>
    %95 = arith.addf %90, %94 : vector<1x16xf32>
    %96 = vector.extract_strided_slice %61 {offsets = [6, 0], sizes = [1, 30], strides = [1, 1]} : vector<14x30xf32> to vector<1x30xf32>
    %c6 = arith.constant 6 : index
    %c0_72 = arith.constant 0 : index
    %c0_73 = arith.constant 0 : index
    %97 = vector.load %arg10[%c6, %c0_72, %c0_73] : memref<14x30x16xf32, #tpu.memory_space<vmem>>, vector<1x30x16xf32>
    %98 = vector.shape_cast %97 : vector<1x30x16xf32> to vector<30x16xf32>
    %cst_74 = arith.constant dense<0.000000e+00> : vector<1x16xf32>
    %99 = tpu.matmul %96, %98, %cst_74 {dimension_numbers = #tpu.dot_dimension_numbers<[1], [0], [0], [1], [0, 0, 1, 1], [], []>} : vector<1x30xf32>, vector<30x16xf32>, vector<1x16xf32> -> vector<1x16xf32>
    %100 = arith.addf %95, %99 : vector<1x16xf32>
    %101 = vector.extract_strided_slice %61 {offsets = [7, 0], sizes = [1, 30], strides = [1, 1]} : vector<14x30xf32> to vector<1x30xf32>
    %c7 = arith.constant 7 : index
    %c0_75 = arith.constant 0 : index
    %c0_76 = arith.constant 0 : index
    %102 = vector.load %arg10[%c7, %c0_75, %c0_76] : memref<14x30x16xf32, #tpu.memory_space<vmem>>, vector<1x30x16xf32>
    %103 = vector.shape_cast %102 : vector<1x30x16xf32> to vector<30x16xf32>
    %cst_77 = arith.constant dense<0.000000e+00> : vector<1x16xf32>
    %104 = tpu.matmul %101, %103, %cst_77 {dimension_numbers = #tpu.dot_dimension_numbers<[1], [0], [0], [1], [0, 0, 1, 1], [], []>} : vector<1x30xf32>, vector<30x16xf32>, vector<1x16xf32> -> vector<1x16xf32>
    %105 = arith.addf %100, %104 : vector<1x16xf32>
    %106 = vector.extract_strided_slice %61 {offsets = [8, 0], sizes = [1, 30], strides = [1, 1]} : vector<14x30xf32> to vector<1x30xf32>
    %c8 = arith.constant 8 : index
    %c0_78 = arith.constant 0 : index
    %c0_79 = arith.constant 0 : index
    %107 = vector.load %arg10[%c8, %c0_78, %c0_79] : memref<14x30x16xf32, #tpu.memory_space<vmem>>, vector<1x30x16xf32>
    %108 = vector.shape_cast %107 : vector<1x30x16xf32> to vector<30x16xf32>
    %cst_80 = arith.constant dense<0.000000e+00> : vector<1x16xf32>
    %109 = tpu.matmul %106, %108, %cst_80 {dimension_numbers = #tpu.dot_dimension_numbers<[1], [0], [0], [1], [0, 0, 1, 1], [], []>} : vector<1x30xf32>, vector<30x16xf32>, vector<1x16xf32> -> vector<1x16xf32>
    %110 = arith.addf %105, %109 : vector<1x16xf32>
    %111 = vector.extract_strided_slice %61 {offsets = [9, 0], sizes = [1, 30], strides = [1, 1]} : vector<14x30xf32> to vector<1x30xf32>
    %c9 = arith.constant 9 : index
    %c0_81 = arith.constant 0 : index
    %c0_82 = arith.constant 0 : index
    %112 = vector.load %arg10[%c9, %c0_81, %c0_82] : memref<14x30x16xf32, #tpu.memory_space<vmem>>, vector<1x30x16xf32>
    %113 = vector.shape_cast %112 : vector<1x30x16xf32> to vector<30x16xf32>
    %cst_83 = arith.constant dense<0.000000e+00> : vector<1x16xf32>
    %114 = tpu.matmul %111, %113, %cst_83 {dimension_numbers = #tpu.dot_dimension_numbers<[1], [0], [0], [1], [0, 0, 1, 1], [], []>} : vector<1x30xf32>, vector<30x16xf32>, vector<1x16xf32> -> vector<1x16xf32>
    %115 = arith.addf %110, %114 : vector<1x16xf32>
    %116 = vector.extract_strided_slice %61 {offsets = [10, 0], sizes = [1, 30], strides = [1, 1]} : vector<14x30xf32> to vector<1x30xf32>
    %c10 = arith.constant 10 : index
    %c0_84 = arith.constant 0 : index
    %c0_85 = arith.constant 0 : index
    %117 = vector.load %arg10[%c10, %c0_84, %c0_85] : memref<14x30x16xf32, #tpu.memory_space<vmem>>, vector<1x30x16xf32>
    %118 = vector.shape_cast %117 : vector<1x30x16xf32> to vector<30x16xf32>
    %cst_86 = arith.constant dense<0.000000e+00> : vector<1x16xf32>
    %119 = tpu.matmul %116, %118, %cst_86 {dimension_numbers = #tpu.dot_dimension_numbers<[1], [0], [0], [1], [0, 0, 1, 1], [], []>} : vector<1x30xf32>, vector<30x16xf32>, vector<1x16xf32> -> vector<1x16xf32>
    %120 = arith.addf %115, %119 : vector<1x16xf32>
    %121 = vector.extract_strided_slice %61 {offsets = [11, 0], sizes = [1, 30], strides = [1, 1]} : vector<14x30xf32> to vector<1x30xf32>
    %c11 = arith.constant 11 : index
    %c0_87 = arith.constant 0 : index
    %c0_88 = arith.constant 0 : index
    %122 = vector.load %arg10[%c11, %c0_87, %c0_88] : memref<14x30x16xf32, #tpu.memory_space<vmem>>, vector<1x30x16xf32>
    %123 = vector.shape_cast %122 : vector<1x30x16xf32> to vector<30x16xf32>
    %cst_89 = arith.constant dense<0.000000e+00> : vector<1x16xf32>
    %124 = tpu.matmul %121, %123, %cst_89 {dimension_numbers = #tpu.dot_dimension_numbers<[1], [0], [0], [1], [0, 0, 1, 1], [], []>} : vector<1x30xf32>, vector<30x16xf32>, vector<1x16xf32> -> vector<1x16xf32>
    %125 = arith.addf %120, %124 : vector<1x16xf32>
    %126 = vector.extract_strided_slice %61 {offsets = [12, 0], sizes = [1, 30], strides = [1, 1]} : vector<14x30xf32> to vector<1x30xf32>
    %c12 = arith.constant 12 : index
    %c0_90 = arith.constant 0 : index
    %c0_91 = arith.constant 0 : index
    %127 = vector.load %arg10[%c12, %c0_90, %c0_91] : memref<14x30x16xf32, #tpu.memory_space<vmem>>, vector<1x30x16xf32>
    %128 = vector.shape_cast %127 : vector<1x30x16xf32> to vector<30x16xf32>
    %cst_92 = arith.constant dense<0.000000e+00> : vector<1x16xf32>
    %129 = tpu.matmul %126, %128, %cst_92 {dimension_numbers = #tpu.dot_dimension_numbers<[1], [0], [0], [1], [0, 0, 1, 1], [], []>} : vector<1x30xf32>, vector<30x16xf32>, vector<1x16xf32> -> vector<1x16xf32>
    %130 = arith.addf %125, %129 : vector<1x16xf32>
    %131 = vector.extract_strided_slice %61 {offsets = [13, 0], sizes = [1, 30], strides = [1, 1]} : vector<14x30xf32> to vector<1x30xf32>
    %c13 = arith.constant 13 : index
    %c0_93 = arith.constant 0 : index
    %c0_94 = arith.constant 0 : index
    %132 = vector.load %arg10[%c13, %c0_93, %c0_94] : memref<14x30x16xf32, #tpu.memory_space<vmem>>, vector<1x30x16xf32>
    %133 = vector.shape_cast %132 : vector<1x30x16xf32> to vector<30x16xf32>
    %cst_95 = arith.constant dense<0.000000e+00> : vector<1x16xf32>
    %134 = tpu.matmul %131, %133, %cst_95 {dimension_numbers = #tpu.dot_dimension_numbers<[1], [0], [0], [1], [0, 0, 1, 1], [], []>} : vector<1x30xf32>, vector<30x16xf32>, vector<1x16xf32> -> vector<1x16xf32>
    %135 = arith.addf %130, %134 : vector<1x16xf32>
    %c0_96 = arith.constant 0 : index
    %c0_97 = arith.constant 0 : index
    %c0_98 = arith.constant 0 : index
    %136 = vector.load %arg23[%c0_96, %c0_97, %c0_98] : memref<1x1x16xf32, #tpu.memory_space<vmem>>, vector<1x1x16xf32>
    %137 = vector.shape_cast %136 : vector<1x1x16xf32> to vector<1x16xf32>
    %138 = vector.shape_cast %135 : vector<1x16xf32> to vector<1x1x16xf32>
    tpu.vector_store %arg23[%c0_96, %c0_97, %c0_98], %138 {strides = array<i32>} : memref<1x1x16xf32, #tpu.memory_space<vmem>>, vector<1x1x16xf32>,
    %c0_99 = arith.constant 0 : index
    %c0_100 = arith.constant 0 : index
    %c0_101 = arith.constant 0 : index
    %139 = vector.load %arg12[%c0_99, %c0_100, %c0_101] : memref<14x16x30xf32, #tpu.memory_space<vmem>>, vector<1x16x30xf32>
    %140 = vector.shape_cast %139 : vector<1x16x30xf32> to vector<16x30xf32>
    %cst_102 = arith.constant dense<0.000000e+00> : vector<1x30xf32>
    %141 = tpu.matmul %135, %140, %cst_102 {dimension_numbers = #tpu.dot_dimension_numbers<[1], [0], [0], [1], [0, 0, 1, 1], [], []>} : vector<1x16xf32>, vector<16x30xf32>, vector<1x30xf32> -> vector<1x30xf32>
    %c0_103 = arith.constant 0 : index
    %c0_104 = arith.constant 0 : index
    %142 = vector.load %arg24[%c0_103, %c0_104] : memref<14x30xf32, #tpu.memory_space<vmem>>, vector<1x30xf32>
    tpu.vector_store %arg24[%c0_103, %c0_104], %141 {strides = array<i32>} : memref<14x30xf32, #tpu.memory_space<vmem>>, vector<1x30xf32>,
    %c1_105 = arith.constant 1 : index
    %c0_106 = arith.constant 0 : index
    %c0_107 = arith.constant 0 : index
    %143 = vector.load %arg12[%c1_105, %c0_106, %c0_107] : memref<14x16x30xf32, #tpu.memory_space<vmem>>, vector<1x16x30xf32>
    %144 = vector.shape_cast %143 : vector<1x16x30xf32> to vector<16x30xf32>
    %cst_108 = arith.constant dense<0.000000e+00> : vector<1x30xf32>
    %145 = tpu.matmul %135, %144, %cst_108 {dimension_numbers = #tpu.dot_dimension_numbers<[1], [0], [0], [1], [0, 0, 1, 1], [], []>} : vector<1x16xf32>, vector<16x30xf32>, vector<1x30xf32> -> vector<1x30xf32>
    %c1_109 = arith.constant 1 : index
    %c0_110 = arith.constant 0 : index
    %146 = vector.load %arg24[%c1_109, %c0_110] : memref<14x30xf32, #tpu.memory_space<vmem>>, vector<1x30xf32>
    tpu.vector_store %arg24[%c1_109, %c0_110], %145 {strides = array<i32>} : memref<14x30xf32, #tpu.memory_space<vmem>>, vector<1x30xf32>,
    %c2_111 = arith.constant 2 : index
    %c0_112 = arith.constant 0 : index
    %c0_113 = arith.constant 0 : index
    %147 = vector.load %arg12[%c2_111, %c0_112, %c0_113] : memref<14x16x30xf32, #tpu.memory_space<vmem>>, vector<1x16x30xf32>
    %148 = vector.shape_cast %147 : vector<1x16x30xf32> to vector<16x30xf32>
    %cst_114 = arith.constant dense<0.000000e+00> : vector<1x30xf32>
    %149 = tpu.matmul %135, %148, %cst_114 {dimension_numbers = #tpu.dot_dimension_numbers<[1], [0], [0], [1], [0, 0, 1, 1], [], []>} : vector<1x16xf32>, vector<16x30xf32>, vector<1x30xf32> -> vector<1x30xf32>
    %c2_115 = arith.constant 2 : index
    %c0_116 = arith.constant 0 : index
    %150 = vector.load %arg24[%c2_115, %c0_116] : memref<14x30xf32, #tpu.memory_space<vmem>>, vector<1x30xf32>
    tpu.vector_store %arg24[%c2_115, %c0_116], %149 {strides = array<i32>} : memref<14x30xf32, #tpu.memory_space<vmem>>, vector<1x30xf32>,
    %c3_117 = arith.constant 3 : index
    %c0_118 = arith.constant 0 : index
    %c0_119 = arith.constant 0 : index
    %151 = vector.load %arg12[%c3_117, %c0_118, %c0_119] : memref<14x16x30xf32, #tpu.memory_space<vmem>>, vector<1x16x30xf32>
    %152 = vector.shape_cast %151 : vector<1x16x30xf32> to vector<16x30xf32>
    %cst_120 = arith.constant dense<0.000000e+00> : vector<1x30xf32>
    %153 = tpu.matmul %135, %152, %cst_120 {dimension_numbers = #tpu.dot_dimension_numbers<[1], [0], [0], [1], [0, 0, 1, 1], [], []>} : vector<1x16xf32>, vector<16x30xf32>, vector<1x30xf32> -> vector<1x30xf32>
    %c3_121 = arith.constant 3 : index
    %c0_122 = arith.constant 0 : index
    %154 = vector.load %arg24[%c3_121, %c0_122] : memref<14x30xf32, #tpu.memory_space<vmem>>, vector<1x30xf32>
    tpu.vector_store %arg24[%c3_121, %c0_122], %153 {strides = array<i32>} : memref<14x30xf32, #tpu.memory_space<vmem>>, vector<1x30xf32>,
    %c4_123 = arith.constant 4 : index
    %c0_124 = arith.constant 0 : index
    %c0_125 = arith.constant 0 : index
    %155 = vector.load %arg12[%c4_123, %c0_124, %c0_125] : memref<14x16x30xf32, #tpu.memory_space<vmem>>, vector<1x16x30xf32>
    %156 = vector.shape_cast %155 : vector<1x16x30xf32> to vector<16x30xf32>
    %cst_126 = arith.constant dense<0.000000e+00> : vector<1x30xf32>
    %157 = tpu.matmul %135, %156, %cst_126 {dimension_numbers = #tpu.dot_dimension_numbers<[1], [0], [0], [1], [0, 0, 1, 1], [], []>} : vector<1x16xf32>, vector<16x30xf32>, vector<1x30xf32> -> vector<1x30xf32>
    %c4_127 = arith.constant 4 : index
    %c0_128 = arith.constant 0 : index
    %158 = vector.load %arg24[%c4_127, %c0_128] : memref<14x30xf32, #tpu.memory_space<vmem>>, vector<1x30xf32>
    tpu.vector_store %arg24[%c4_127, %c0_128], %157 {strides = array<i32>} : memref<14x30xf32, #tpu.memory_space<vmem>>, vector<1x30xf32>,
    %c5_129 = arith.constant 5 : index
    %c0_130 = arith.constant 0 : index
    %c0_131 = arith.constant 0 : index
    %159 = vector.load %arg12[%c5_129, %c0_130, %c0_131] : memref<14x16x30xf32, #tpu.memory_space<vmem>>, vector<1x16x30xf32>
    %160 = vector.shape_cast %159 : vector<1x16x30xf32> to vector<16x30xf32>
    %cst_132 = arith.constant dense<0.000000e+00> : vector<1x30xf32>
    %161 = tpu.matmul %135, %160, %cst_132 {dimension_numbers = #tpu.dot_dimension_numbers<[1], [0], [0], [1], [0, 0, 1, 1], [], []>} : vector<1x16xf32>, vector<16x30xf32>, vector<1x30xf32> -> vector<1x30xf32>
    %c5_133 = arith.constant 5 : index
    %c0_134 = arith.constant 0 : index
    %162 = vector.load %arg24[%c5_133, %c0_134] : memref<14x30xf32, #tpu.memory_space<vmem>>, vector<1x30xf32>
    tpu.vector_store %arg24[%c5_133, %c0_134], %161 {strides = array<i32>} : memref<14x30xf32, #tpu.memory_space<vmem>>, vector<1x30xf32>,
    %c6_135 = arith.constant 6 : index
    %c0_136 = arith.constant 0 : index
    %c0_137 = arith.constant 0 : index
    %163 = vector.load %arg12[%c6_135, %c0_136, %c0_137] : memref<14x16x30xf32, #tpu.memory_space<vmem>>, vector<1x16x30xf32>
    %164 = vector.shape_cast %163 : vector<1x16x30xf32> to vector<16x30xf32>
    %cst_138 = arith.constant dense<0.000000e+00> : vector<1x30xf32>
    %165 = tpu.matmul %135, %164, %cst_138 {dimension_numbers = #tpu.dot_dimension_numbers<[1], [0], [0], [1], [0, 0, 1, 1], [], []>} : vector<1x16xf32>, vector<16x30xf32>, vector<1x30xf32> -> vector<1x30xf32>
    %c6_139 = arith.constant 6 : index
    %c0_140 = arith.constant 0 : index
    %166 = vector.load %arg24[%c6_139, %c0_140] : memref<14x30xf32, #tpu.memory_space<vmem>>, vector<1x30xf32>
    tpu.vector_store %arg24[%c6_139, %c0_140], %165 {strides = array<i32>} : memref<14x30xf32, #tpu.memory_space<vmem>>, vector<1x30xf32>,
    %c7_141 = arith.constant 7 : index
    %c0_142 = arith.constant 0 : index
    %c0_143 = arith.constant 0 : index
    %167 = vector.load %arg12[%c7_141, %c0_142, %c0_143] : memref<14x16x30xf32, #tpu.memory_space<vmem>>, vector<1x16x30xf32>
    %168 = vector.shape_cast %167 : vector<1x16x30xf32> to vector<16x30xf32>
    %cst_144 = arith.constant dense<0.000000e+00> : vector<1x30xf32>
    %169 = tpu.matmul %135, %168, %cst_144 {dimension_numbers = #tpu.dot_dimension_numbers<[1], [0], [0], [1], [0, 0, 1, 1], [], []>} : vector<1x16xf32>, vector<16x30xf32>, vector<1x30xf32> -> vector<1x30xf32>
    %c7_145 = arith.constant 7 : index
    %c0_146 = arith.constant 0 : index
    %170 = vector.load %arg24[%c7_145, %c0_146] : memref<14x30xf32, #tpu.memory_space<vmem>>, vector<1x30xf32>
    tpu.vector_store %arg24[%c7_145, %c0_146], %169 {strides = array<i32>} : memref<14x30xf32, #tpu.memory_space<vmem>>, vector<1x30xf32>,
    %c8_147 = arith.constant 8 : index
    %c0_148 = arith.constant 0 : index
    %c0_149 = arith.constant 0 : index
    %171 = vector.load %arg12[%c8_147, %c0_148, %c0_149] : memref<14x16x30xf32, #tpu.memory_space<vmem>>, vector<1x16x30xf32>
    %172 = vector.shape_cast %171 : vector<1x16x30xf32> to vector<16x30xf32>
    %cst_150 = arith.constant dense<0.000000e+00> : vector<1x30xf32>
    %173 = tpu.matmul %135, %172, %cst_150 {dimension_numbers = #tpu.dot_dimension_numbers<[1], [0], [0], [1], [0, 0, 1, 1], [], []>} : vector<1x16xf32>, vector<16x30xf32>, vector<1x30xf32> -> vector<1x30xf32>
    %c8_151 = arith.constant 8 : index
    %c0_152 = arith.constant 0 : index
    %174 = vector.load %arg24[%c8_151, %c0_152] : memref<14x30xf32, #tpu.memory_space<vmem>>, vector<1x30xf32>
    tpu.vector_store %arg24[%c8_151, %c0_152], %173 {strides = array<i32>} : memref<14x30xf32, #tpu.memory_space<vmem>>, vector<1x30xf32>,
    %c9_153 = arith.constant 9 : index
    %c0_154 = arith.constant 0 : index
    %c0_155 = arith.constant 0 : index
    %175 = vector.load %arg12[%c9_153, %c0_154, %c0_155] : memref<14x16x30xf32, #tpu.memory_space<vmem>>, vector<1x16x30xf32>
    %176 = vector.shape_cast %175 : vector<1x16x30xf32> to vector<16x30xf32>
    %cst_156 = arith.constant dense<0.000000e+00> : vector<1x30xf32>
    %177 = tpu.matmul %135, %176, %cst_156 {dimension_numbers = #tpu.dot_dimension_numbers<[1], [0], [0], [1], [0, 0, 1, 1], [], []>} : vector<1x16xf32>, vector<16x30xf32>, vector<1x30xf32> -> vector<1x30xf32>
    %c9_157 = arith.constant 9 : index
    %c0_158 = arith.constant 0 : index
    %178 = vector.load %arg24[%c9_157, %c0_158] : memref<14x30xf32, #tpu.memory_space<vmem>>, vector<1x30xf32>
    tpu.vector_store %arg24[%c9_157, %c0_158], %177 {strides = array<i32>} : memref<14x30xf32, #tpu.memory_space<vmem>>, vector<1x30xf32>,
    %c10_159 = arith.constant 10 : index
    %c0_160 = arith.constant 0 : index
    %c0_161 = arith.constant 0 : index
    %179 = vector.load %arg12[%c10_159, %c0_160, %c0_161] : memref<14x16x30xf32, #tpu.memory_space<vmem>>, vector<1x16x30xf32>
    %180 = vector.shape_cast %179 : vector<1x16x30xf32> to vector<16x30xf32>
    %cst_162 = arith.constant dense<0.000000e+00> : vector<1x30xf32>
    %181 = tpu.matmul %135, %180, %cst_162 {dimension_numbers = #tpu.dot_dimension_numbers<[1], [0], [0], [1], [0, 0, 1, 1], [], []>} : vector<1x16xf32>, vector<16x30xf32>, vector<1x30xf32> -> vector<1x30xf32>
    %c10_163 = arith.constant 10 : index
    %c0_164 = arith.constant 0 : index
    %182 = vector.load %arg24[%c10_163, %c0_164] : memref<14x30xf32, #tpu.memory_space<vmem>>, vector<1x30xf32>
    tpu.vector_store %arg24[%c10_163, %c0_164], %181 {strides = array<i32>} : memref<14x30xf32, #tpu.memory_space<vmem>>, vector<1x30xf32>,
    %c11_165 = arith.constant 11 : index
    %c0_166 = arith.constant 0 : index
    %c0_167 = arith.constant 0 : index
    %183 = vector.load %arg12[%c11_165, %c0_166, %c0_167] : memref<14x16x30xf32, #tpu.memory_space<vmem>>, vector<1x16x30xf32>
    %184 = vector.shape_cast %183 : vector<1x16x30xf32> to vector<16x30xf32>
    %cst_168 = arith.constant dense<0.000000e+00> : vector<1x30xf32>
    %185 = tpu.matmul %135, %184, %cst_168 {dimension_numbers = #tpu.dot_dimension_numbers<[1], [0], [0], [1], [0, 0, 1, 1], [], []>} : vector<1x16xf32>, vector<16x30xf32>, vector<1x30xf32> -> vector<1x30xf32>
    %c11_169 = arith.constant 11 : index
    %c0_170 = arith.constant 0 : index
    %186 = vector.load %arg24[%c11_169, %c0_170] : memref<14x30xf32, #tpu.memory_space<vmem>>, vector<1x30xf32>
    tpu.vector_store %arg24[%c11_169, %c0_170], %185 {strides = array<i32>} : memref<14x30xf32, #tpu.memory_space<vmem>>, vector<1x30xf32>,
    %c12_171 = arith.constant 12 : index
    %c0_172 = arith.constant 0 : index
    %c0_173 = arith.constant 0 : index
    %187 = vector.load %arg12[%c12_171, %c0_172, %c0_173] : memref<14x16x30xf32, #tpu.memory_space<vmem>>, vector<1x16x30xf32>
    %188 = vector.shape_cast %187 : vector<1x16x30xf32> to vector<16x30xf32>
    %cst_174 = arith.constant dense<0.000000e+00> : vector<1x30xf32>
    %189 = tpu.matmul %135, %188, %cst_174 {dimension_numbers = #tpu.dot_dimension_numbers<[1], [0], [0], [1], [0, 0, 1, 1], [], []>} : vector<1x16xf32>, vector<16x30xf32>, vector<1x30xf32> -> vector<1x30xf32>
    %c12_175 = arith.constant 12 : index
    %c0_176 = arith.constant 0 : index
    %190 = vector.load %arg24[%c12_175, %c0_176] : memref<14x30xf32, #tpu.memory_space<vmem>>, vector<1x30xf32>
    tpu.vector_store %arg24[%c12_175, %c0_176], %189 {strides = array<i32>} : memref<14x30xf32, #tpu.memory_space<vmem>>, vector<1x30xf32>,
    %c13_177 = arith.constant 13 : index
    %c0_178 = arith.constant 0 : index
    %c0_179 = arith.constant 0 : index
    %191 = vector.load %arg12[%c13_177, %c0_178, %c0_179] : memref<14x16x30xf32, #tpu.memory_space<vmem>>, vector<1x16x30xf32>
    %192 = vector.shape_cast %191 : vector<1x16x30xf32> to vector<16x30xf32>
    %cst_180 = arith.constant dense<0.000000e+00> : vector<1x30xf32>
    %193 = tpu.matmul %135, %192, %cst_180 {dimension_numbers = #tpu.dot_dimension_numbers<[1], [0], [0], [1], [0, 0, 1, 1], [], []>} : vector<1x16xf32>, vector<16x30xf32>, vector<1x30xf32> -> vector<1x30xf32>
    %c13_181 = arith.constant 13 : index
    %c0_182 = arith.constant 0 : index
    %194 = vector.load %arg24[%c13_181, %c0_182] : memref<14x30xf32, #tpu.memory_space<vmem>>, vector<1x30xf32>
    tpu.vector_store %arg24[%c13_181, %c0_182], %193 {strides = array<i32>} : memref<14x30xf32, #tpu.memory_space<vmem>>, vector<1x30xf32>,
    %c0_183 = arith.constant 0 : index
    %c0_184 = arith.constant 0 : index
    %195 = vector.load %arg24[%c0_183, %c0_184] : memref<14x30xf32, #tpu.memory_space<vmem>>, vector<14x30xf32>
    %c0_185 = arith.constant 0 : index
    %c0_186 = arith.constant 0 : index
    %196 = vector.load %arg13[%c0_185, %c0_186] : memref<14x30xf32, #tpu.memory_space<vmem>>, vector<14x30xf32>
    %197 = arith.addf %195, %196 : vector<14x30xf32>
    %198 = arith.mulf %197, %64 : vector<14x30xf32>
    %199 = arith.subf %197, %198 : vector<14x30xf32>
    %c0_187 = arith.constant 0 : index
    %c0_188 = arith.constant 0 : index
    %200 = vector.load %arg14[%c0_187, %c0_188] : memref<28x14xf32, #tpu.memory_space<vmem>>, vector<28x14xf32>
    %cst_189 = arith.constant dense<0.000000e+00> : vector<28x30xf32>
    %201 = tpu.matmul %200, %198, %cst_189 {dimension_numbers = #tpu.dot_dimension_numbers<[1], [0], [0], [1], [0, 0, 1, 1], [], []>} : vector<28x14xf32>, vector<14x30xf32>, vector<28x30xf32> -> vector<28x30xf32>
    %c0_190 = arith.constant 0 : index
    %c0_191 = arith.constant 0 : index
    %202 = vector.load %arg15[%c0_190, %c0_191] : memref<28x14xf32, #tpu.memory_space<vmem>>, vector<28x14xf32>
    %cst_192 = arith.constant dense<0.000000e+00> : vector<28x30xf32>
    %203 = tpu.matmul %202, %199, %cst_192 {dimension_numbers = #tpu.dot_dimension_numbers<[1], [0], [0], [1], [0, 0, 1, 1], [], []>} : vector<28x14xf32>, vector<14x30xf32>, vector<28x30xf32> -> vector<28x30xf32>
    %204 = arith.addf %201, %203 : vector<28x30xf32>
    %cst_193 = arith.constant 0.000000e+00 : f32
    %205 = vector.broadcast %cst_193 : f32 to vector<2x30xf32>
    %c0_194 = arith.constant 0 : index
    %c0_195 = arith.constant 0 : index
    %206 = vector.load %arg25[%c0_194, %c0_195] : memref<32x30xf32, #tpu.memory_space<vmem>>, vector<2x30xf32>
    tpu.vector_store %arg25[%c0_194, %c0_195], %205 {strides = array<i32>} : memref<32x30xf32, #tpu.memory_space<vmem>>, vector<2x30xf32>,
    %c2_196 = arith.constant 2 : index
    %c0_197 = arith.constant 0 : index
    %207 = vector.load %arg25[%c2_196, %c0_197] : memref<32x30xf32, #tpu.memory_space<vmem>>, vector<28x30xf32>
    tpu.vector_store %arg25[%c2_196, %c0_197], %204 {strides = array<i32>} : memref<32x30xf32, #tpu.memory_space<vmem>>, vector<28x30xf32>,
    %c30 = arith.constant 30 : index
    %c0_198 = arith.constant 0 : index
    %208 = vector.load %arg25[%c30, %c0_198] : memref<32x30xf32, #tpu.memory_space<vmem>>, vector<2x30xf32>
    tpu.vector_store %arg25[%c30, %c0_198], %205 {strides = array<i32>} : memref<32x30xf32, #tpu.memory_space<vmem>>, vector<2x30xf32>,
    %c0_199 = arith.constant 0 : index
    %c0_200 = arith.constant 0 : index
    %209 = vector.load %arg25[%c0_199, %c0_200] : memref<32x30xf32, #tpu.memory_space<vmem>>, vector<30x30xf32>
    %c0_201 = arith.constant 0 : index
    %c0_202 = arith.constant 0 : index
    %c0_203 = arith.constant 0 : index
    %210 = vector.load %arg16[%c0_201, %c0_202, %c0_203] : memref<3x30x100xf32, #tpu.memory_space<vmem>>, vector<1x30x100xf32>
    %211 = vector.shape_cast %210 : vector<1x30x100xf32> to vector<30x100xf32>
    %cst_204 = arith.constant dense<0.000000e+00> : vector<30x100xf32>
    %212 = tpu.matmul %209, %211, %cst_204 {dimension_numbers = #tpu.dot_dimension_numbers<[1], [0], [0], [1], [0, 0, 1, 1], [], []>} : vector<30x30xf32>, vector<30x100xf32>, vector<30x100xf32> -> vector<30x100xf32>
    %c1_205 = arith.constant 1 : index
    %c0_206 = arith.constant 0 : index
    %213 = vector.load %arg25[%c1_205, %c0_206] : memref<32x30xf32, #tpu.memory_space<vmem>>, vector<30x30xf32>
    %c1_207 = arith.constant 1 : index
    %c0_208 = arith.constant 0 : index
    %c0_209 = arith.constant 0 : index
    %214 = vector.load %arg16[%c1_207, %c0_208, %c0_209] : memref<3x30x100xf32, #tpu.memory_space<vmem>>, vector<1x30x100xf32>
    %215 = vector.shape_cast %214 : vector<1x30x100xf32> to vector<30x100xf32>
    %cst_210 = arith.constant dense<0.000000e+00> : vector<30x100xf32>
    %216 = tpu.matmul %213, %215, %cst_210 {dimension_numbers = #tpu.dot_dimension_numbers<[1], [0], [0], [1], [0, 0, 1, 1], [], []>} : vector<30x30xf32>, vector<30x100xf32>, vector<30x100xf32> -> vector<30x100xf32>
    %217 = arith.addf %212, %216 : vector<30x100xf32>
    %c2_211 = arith.constant 2 : index
    %c0_212 = arith.constant 0 : index
    %218 = vector.load %arg25[%c2_211, %c0_212] : memref<32x30xf32, #tpu.memory_space<vmem>>, vector<30x30xf32>
    %c2_213 = arith.constant 2 : index
    %c0_214 = arith.constant 0 : index
    %c0_215 = arith.constant 0 : index
    %219 = vector.load %arg16[%c2_213, %c0_214, %c0_215] : memref<3x30x100xf32, #tpu.memory_space<vmem>>, vector<1x30x100xf32>
    %220 = vector.shape_cast %219 : vector<1x30x100xf32> to vector<30x100xf32>
    %cst_216 = arith.constant dense<0.000000e+00> : vector<30x100xf32>
    %221 = tpu.matmul %218, %220, %cst_216 {dimension_numbers = #tpu.dot_dimension_numbers<[1], [0], [0], [1], [0, 0, 1, 1], [], []>} : vector<30x30xf32>, vector<30x100xf32>, vector<30x100xf32> -> vector<30x100xf32>
    %222 = arith.addf %217, %221 : vector<30x100xf32>
    %c0_217 = arith.constant 0 : index
    %c0_218 = arith.constant 0 : index
    %223 = vector.load %arg17[%c0_217, %c0_218] : memref<1x100xf32, #tpu.memory_space<vmem>>, vector<1x100xf32>
    %224 = vector.broadcast %223 : vector<1x100xf32> to vector<30x100xf32>
    %225 = arith.addf %222, %224 : vector<30x100xf32>
    %cst_219 = arith.constant 0.000000e+00 : f32
    %226 = vector.broadcast %cst_219 : f32 to vector<30x100xf32>
    %227 = arith.maximumf %225, %226 : vector<30x100xf32>
    %cst_220 = arith.constant 0.000000e+00 : f32
    %228 = vector.broadcast %cst_220 : f32 to vector<2x100xf32>
    %c0_221 = arith.constant 0 : index
    %c0_222 = arith.constant 0 : index
    %229 = vector.load %arg26[%c0_221, %c0_222] : memref<34x100xf32, #tpu.memory_space<vmem>>, vector<2x100xf32>
    tpu.vector_store %arg26[%c0_221, %c0_222], %228 {strides = array<i32>} : memref<34x100xf32, #tpu.memory_space<vmem>>, vector<2x100xf32>,
    %c2_223 = arith.constant 2 : index
    %c0_224 = arith.constant 0 : index
    %230 = vector.load %arg26[%c2_223, %c0_224] : memref<34x100xf32, #tpu.memory_space<vmem>>, vector<30x100xf32>
    tpu.vector_store %arg26[%c2_223, %c0_224], %227 {strides = array<i32>} : memref<34x100xf32, #tpu.memory_space<vmem>>, vector<30x100xf32>,
    %c32 = arith.constant 32 : index
    %c0_225 = arith.constant 0 : index
    %231 = vector.load %arg26[%c32, %c0_225] : memref<34x100xf32, #tpu.memory_space<vmem>>, vector<2x100xf32>
    tpu.vector_store %arg26[%c32, %c0_225], %228 {strides = array<i32>} : memref<34x100xf32, #tpu.memory_space<vmem>>, vector<2x100xf32>,
    %c0_226 = arith.constant 0 : index
    %c0_227 = arith.constant 0 : index
    %232 = vector.load %arg26[%c0_226, %c0_227] : memref<34x100xf32, #tpu.memory_space<vmem>>, vector<32x100xf32>
    %c0_228 = arith.constant 0 : index
    %c0_229 = arith.constant 0 : index
    %c0_230 = arith.constant 0 : index
    %233 = vector.load %arg18[%c0_228, %c0_229, %c0_230] : memref<3x100x150xf32, #tpu.memory_space<vmem>>, vector<1x100x150xf32>
    %234 = vector.shape_cast %233 : vector<1x100x150xf32> to vector<100x150xf32>
    %cst_231 = arith.constant dense<0.000000e+00> : vector<32x150xf32>
    %235 = tpu.matmul %232, %234, %cst_231 {dimension_numbers = #tpu.dot_dimension_numbers<[1], [0], [0], [1], [0, 0, 1, 1], [], []>} : vector<32x100xf32>, vector<100x150xf32>, vector<32x150xf32> -> vector<32x150xf32>
    %c1_232 = arith.constant 1 : index
    %c0_233 = arith.constant 0 : index
    %236 = vector.load %arg26[%c1_232, %c0_233] : memref<34x100xf32, #tpu.memory_space<vmem>>, vector<32x100xf32>
    %c1_234 = arith.constant 1 : index
    %c0_235 = arith.constant 0 : index
    %c0_236 = arith.constant 0 : index
    %237 = vector.load %arg18[%c1_234, %c0_235, %c0_236] : memref<3x100x150xf32, #tpu.memory_space<vmem>>, vector<1x100x150xf32>
    %238 = vector.shape_cast %237 : vector<1x100x150xf32> to vector<100x150xf32>
    %cst_237 = arith.constant dense<0.000000e+00> : vector<32x150xf32>
    %239 = tpu.matmul %236, %238, %cst_237 {dimension_numbers = #tpu.dot_dimension_numbers<[1], [0], [0], [1], [0, 0, 1, 1], [], []>} : vector<32x100xf32>, vector<100x150xf32>, vector<32x150xf32> -> vector<32x150xf32>
    %240 = arith.addf %235, %239 : vector<32x150xf32>
    %c2_238 = arith.constant 2 : index
    %c0_239 = arith.constant 0 : index
    %241 = vector.load %arg26[%c2_238, %c0_239] : memref<34x100xf32, #tpu.memory_space<vmem>>, vector<32x100xf32>
    %c2_240 = arith.constant 2 : index
    %c0_241 = arith.constant 0 : index
    %c0_242 = arith.constant 0 : index
    %242 = vector.load %arg18[%c2_240, %c0_241, %c0_242] : memref<3x100x150xf32, #tpu.memory_space<vmem>>, vector<1x100x150xf32>
    %243 = vector.shape_cast %242 : vector<1x100x150xf32> to vector<100x150xf32>
    %cst_243 = arith.constant dense<0.000000e+00> : vector<32x150xf32>
    %244 = tpu.matmul %241, %243, %cst_243 {dimension_numbers = #tpu.dot_dimension_numbers<[1], [0], [0], [1], [0, 0, 1, 1], [], []>} : vector<32x100xf32>, vector<100x150xf32>, vector<32x150xf32> -> vector<32x150xf32>
    %245 = arith.addf %240, %244 : vector<32x150xf32>
    %c0_244 = arith.constant 0 : index
    %c0_245 = arith.constant 0 : index
    %246 = vector.load %arg19[%c0_244, %c0_245] : memref<1x150xf32, #tpu.memory_space<vmem>>, vector<1x150xf32>
    %247 = vector.broadcast %246 : vector<1x150xf32> to vector<32x150xf32>
    %248 = arith.addf %245, %247 : vector<32x150xf32>
    %cst_246 = arith.constant 0.000000e+00 : f32
    %249 = vector.broadcast %cst_246 : f32 to vector<32x150xf32>
    %250 = arith.maximumf %248, %249 : vector<32x150xf32>
    %cst_247 = arith.constant 0.000000e+00 : f32
    %251 = vector.broadcast %cst_247 : f32 to vector<2x150xf32>
    %c0_248 = arith.constant 0 : index
    %c0_249 = arith.constant 0 : index
    %252 = vector.load %arg27[%c0_248, %c0_249] : memref<36x150xf32, #tpu.memory_space<vmem>>, vector<2x150xf32>
    tpu.vector_store %arg27[%c0_248, %c0_249], %251 {strides = array<i32>} : memref<36x150xf32, #tpu.memory_space<vmem>>, vector<2x150xf32>,
    %c2_250 = arith.constant 2 : index
    %c0_251 = arith.constant 0 : index
    %253 = vector.load %arg27[%c2_250, %c0_251] : memref<36x150xf32, #tpu.memory_space<vmem>>, vector<32x150xf32>
    tpu.vector_store %arg27[%c2_250, %c0_251], %250 {strides = array<i32>} : memref<36x150xf32, #tpu.memory_space<vmem>>, vector<32x150xf32>,
    %c34 = arith.constant 34 : index
    %c0_252 = arith.constant 0 : index
    %254 = vector.load %arg27[%c34, %c0_252] : memref<36x150xf32, #tpu.memory_space<vmem>>, vector<2x150xf32>
    tpu.vector_store %arg27[%c34, %c0_252], %251 {strides = array<i32>} : memref<36x150xf32, #tpu.memory_space<vmem>>, vector<2x150xf32>,
    %c0_253 = arith.constant 0 : index
    %c0_254 = arith.constant 0 : index
    %255 = vector.load %arg27[%c0_253, %c0_254] : memref<36x150xf32, #tpu.memory_space<vmem>>, vector<34x150xf32>
    %c0_255 = arith.constant 0 : index
    %c0_256 = arith.constant 0 : index
    %c0_257 = arith.constant 0 : index
    %256 = vector.load %arg20[%c0_255, %c0_256, %c0_257] : memref<3x150x8xf32, #tpu.memory_space<vmem>>, vector<1x150x8xf32>
    %257 = vector.shape_cast %256 : vector<1x150x8xf32> to vector<150x8xf32>
    %cst_258 = arith.constant dense<0.000000e+00> : vector<34x8xf32>
    %258 = tpu.matmul %255, %257, %cst_258 {dimension_numbers = #tpu.dot_dimension_numbers<[1], [0], [0], [1], [0, 0, 1, 1], [], []>} : vector<34x150xf32>, vector<150x8xf32>, vector<34x8xf32> -> vector<34x8xf32>
    %c1_259 = arith.constant 1 : index
    %c0_260 = arith.constant 0 : index
    %259 = vector.load %arg27[%c1_259, %c0_260] : memref<36x150xf32, #tpu.memory_space<vmem>>, vector<34x150xf32>
    %c1_261 = arith.constant 1 : index
    %c0_262 = arith.constant 0 : index
    %c0_263 = arith.constant 0 : index
    %260 = vector.load %arg20[%c1_261, %c0_262, %c0_263] : memref<3x150x8xf32, #tpu.memory_space<vmem>>, vector<1x150x8xf32>
    %261 = vector.shape_cast %260 : vector<1x150x8xf32> to vector<150x8xf32>
    %cst_264 = arith.constant dense<0.000000e+00> : vector<34x8xf32>
    %262 = tpu.matmul %259, %261, %cst_264 {dimension_numbers = #tpu.dot_dimension_numbers<[1], [0], [0], [1], [0, 0, 1, 1], [], []>} : vector<34x150xf32>, vector<150x8xf32>, vector<34x8xf32> -> vector<34x8xf32>
    %263 = arith.addf %258, %262 : vector<34x8xf32>
    %c2_265 = arith.constant 2 : index
    %c0_266 = arith.constant 0 : index
    %264 = vector.load %arg27[%c2_265, %c0_266] : memref<36x150xf32, #tpu.memory_space<vmem>>, vector<34x150xf32>
    %c2_267 = arith.constant 2 : index
    %c0_268 = arith.constant 0 : index
    %c0_269 = arith.constant 0 : index
    %265 = vector.load %arg20[%c2_267, %c0_268, %c0_269] : memref<3x150x8xf32, #tpu.memory_space<vmem>>, vector<1x150x8xf32>
    %266 = vector.shape_cast %265 : vector<1x150x8xf32> to vector<150x8xf32>
    %cst_270 = arith.constant dense<0.000000e+00> : vector<34x8xf32>
    %267 = tpu.matmul %264, %266, %cst_270 {dimension_numbers = #tpu.dot_dimension_numbers<[1], [0], [0], [1], [0, 0, 1, 1], [], []>} : vector<34x150xf32>, vector<150x8xf32>, vector<34x8xf32> -> vector<34x8xf32>
    %268 = arith.addf %263, %267 : vector<34x8xf32>
    %c0_271 = arith.constant 0 : index
    %c0_272 = arith.constant 0 : index
    %269 = vector.load %arg21[%c0_271, %c0_272] : memref<1x8xf32, #tpu.memory_space<vmem>>, vector<1x8xf32>
    %270 = vector.broadcast %269 : vector<1x8xf32> to vector<34x8xf32>
    %271 = arith.addf %268, %270 : vector<34x8xf32>
    %c0_273 = arith.constant 0 : index
    %c0_274 = arith.constant 0 : index
    %c0_275 = arith.constant 0 : index
    %272 = vector.load %arg22[%c0_273, %c0_274, %c0_275] : memref<1x34x8xf32, #tpu.memory_space<vmem>>, vector<1x34x8xf32>
    %273 = vector.shape_cast %272 : vector<1x34x8xf32> to vector<34x8xf32>
    %274 = vector.shape_cast %271 : vector<34x8xf32> to vector<1x34x8xf32>
    tpu.vector_store %arg22[%c0_273, %c0_274, %c0_275], %274 {strides = array<i32>} : memref<1x34x8xf32, #tpu.memory_space<vmem>>, vector<1x34x8xf32>,
    return
  }
  func.func @transform_0(%arg0: i32) -> (i32, i32, i32) {
    %c0_i32 = arith.constant 0 : i32
    %c0_i32_0 = arith.constant 0 : i32
    %c0_i32_1 = arith.constant 0 : i32
    return %arg0, %c0_i32, %c0_i32_0 : i32, i32, i32
  }
  func.func @transform_1(%arg0: i32) -> (i32, i32, i32) {
    %c0_i32 = arith.constant 0 : i32
    %c0_i32_0 = arith.constant 0 : i32
    %c0_i32_1 = arith.constant 0 : i32
    %c0_i32_2 = arith.constant 0 : i32
    return %c0_i32, %c0_i32_0, %c0_i32_1 : i32, i32, i32
  }
  func.func @transform_2(%arg0: i32) -> (i32, i32) {
    %c0_i32 = arith.constant 0 : i32
    %c0_i32_0 = arith.constant 0 : i32
    %c0_i32_1 = arith.constant 0 : i32
    return %c0_i32, %c0_i32_0 : i32, i32
  }
  func.func @transform_3(%arg0: i32) -> (i32, i32, i32) {
    %c0_i32 = arith.constant 0 : i32
    %c0_i32_0 = arith.constant 0 : i32
    %c0_i32_1 = arith.constant 0 : i32
    %c0_i32_2 = arith.constant 0 : i32
    return %c0_i32, %c0_i32_0, %c0_i32_1 : i32, i32, i32
  }
  func.func @transform_4(%arg0: i32) -> (i32, i32) {
    %c0_i32 = arith.constant 0 : i32
    %c0_i32_0 = arith.constant 0 : i32
    %c0_i32_1 = arith.constant 0 : i32
    return %c0_i32, %c0_i32_0 : i32, i32
  }
  func.func @transform_5(%arg0: i32) -> (i32, i32, i32) {
    %c0_i32 = arith.constant 0 : i32
    %c0_i32_0 = arith.constant 0 : i32
    %c0_i32_1 = arith.constant 0 : i32
    %c0_i32_2 = arith.constant 0 : i32
    return %c0_i32, %c0_i32_0, %c0_i32_1 : i32, i32, i32
  }
  func.func @transform_6(%arg0: i32) -> (i32, i32) {
    %c0_i32 = arith.constant 0 : i32
    %c0_i32_0 = arith.constant 0 : i32
    %c0_i32_1 = arith.constant 0 : i32
    return %c0_i32, %c0_i32_0 : i32, i32
  }
  func.func @transform_7(%arg0: i32) -> (i32, i32) {
    %c0_i32 = arith.constant 0 : i32
    %c0_i32_0 = arith.constant 0 : i32
    %c0_i32_1 = arith.constant 0 : i32
    return %c0_i32, %c0_i32_0 : i32, i32
  }
  func.func @transform_8(%arg0: i32) -> (i32, i32) {
    %c0_i32 = arith.constant 0 : i32
    %c0_i32_0 = arith.constant 0 : i32
    %c0_i32_1 = arith.constant 0 : i32
    return %c0_i32, %c0_i32_0 : i32, i32
  }
  func.func @transform_9(%arg0: i32) -> (i32, i32, i32) {
    %c0_i32 = arith.constant 0 : i32
    %c0_i32_0 = arith.constant 0 : i32
    %c0_i32_1 = arith.constant 0 : i32
    %c0_i32_2 = arith.constant 0 : i32
    return %c0_i32, %c0_i32_0, %c0_i32_1 : i32, i32, i32
  }
  func.func @transform_10(%arg0: i32) -> (i32, i32) {
    %c0_i32 = arith.constant 0 : i32
    %c0_i32_0 = arith.constant 0 : i32
    %c0_i32_1 = arith.constant 0 : i32
    return %c0_i32, %c0_i32_0 : i32, i32
  }
  func.func @transform_11(%arg0: i32) -> (i32, i32, i32) {
    %c0_i32 = arith.constant 0 : i32
    %c0_i32_0 = arith.constant 0 : i32
    %c0_i32_1 = arith.constant 0 : i32
    %c0_i32_2 = arith.constant 0 : i32
    return %c0_i32, %c0_i32_0, %c0_i32_1 : i32, i32, i32
  }
  func.func @transform_12(%arg0: i32) -> (i32, i32) {
    %c0_i32 = arith.constant 0 : i32
    %c0_i32_0 = arith.constant 0 : i32
    %c0_i32_1 = arith.constant 0 : i32
    return %c0_i32, %c0_i32_0 : i32, i32
  }
  func.func @transform_13(%arg0: i32) -> (i32, i32) {
    %c0_i32 = arith.constant 0 : i32
    %c0_i32_0 = arith.constant 0 : i32
    %c0_i32_1 = arith.constant 0 : i32
    return %c0_i32, %c0_i32_0 : i32, i32
  }
  func.func @transform_14(%arg0: i32) -> (i32, i32) {
    %c0_i32 = arith.constant 0 : i32
    %c0_i32_0 = arith.constant 0 : i32
    %c0_i32_1 = arith.constant 0 : i32
    return %c0_i32, %c0_i32_0 : i32, i32
  }
  func.func @transform_15(%arg0: i32) -> (i32, i32, i32) {
    %c0_i32 = arith.constant 0 : i32
    %c0_i32_0 = arith.constant 0 : i32
    %c0_i32_1 = arith.constant 0 : i32
    %c0_i32_2 = arith.constant 0 : i32
    return %c0_i32, %c0_i32_0, %c0_i32_1 : i32, i32, i32
  }
  func.func @transform_16(%arg0: i32) -> (i32, i32) {
    %c0_i32 = arith.constant 0 : i32
    %c0_i32_0 = arith.constant 0 : i32
    %c0_i32_1 = arith.constant 0 : i32
    return %c0_i32, %c0_i32_0 : i32, i32
  }
  func.func @transform_17(%arg0: i32) -> (i32, i32, i32) {
    %c0_i32 = arith.constant 0 : i32
    %c0_i32_0 = arith.constant 0 : i32
    %c0_i32_1 = arith.constant 0 : i32
    %c0_i32_2 = arith.constant 0 : i32
    return %c0_i32, %c0_i32_0, %c0_i32_1 : i32, i32, i32
  }
  func.func @transform_18(%arg0: i32) -> (i32, i32) {
    %c0_i32 = arith.constant 0 : i32
    %c0_i32_0 = arith.constant 0 : i32
    %c0_i32_1 = arith.constant 0 : i32
    return %c0_i32, %c0_i32_0 : i32, i32
  }
  func.func @transform_19(%arg0: i32) -> (i32, i32, i32) {
    %c0_i32 = arith.constant 0 : i32
    %c0_i32_0 = arith.constant 0 : i32
    %c0_i32_1 = arith.constant 0 : i32
    %c0_i32_2 = arith.constant 0 : i32
    return %c0_i32, %c0_i32_0, %c0_i32_1 : i32, i32, i32
  }
  func.func @transform_20(%arg0: i32) -> (i32, i32) {
    %c0_i32 = arith.constant 0 : i32
    %c0_i32_0 = arith.constant 0 : i32
    %c0_i32_1 = arith.constant 0 : i32
    return %c0_i32, %c0_i32_0 : i32, i32
  }
  func.func @transform_21(%arg0: i32) -> (i32, i32, i32) {
    %c0_i32 = arith.constant 0 : i32
    %c0_i32_0 = arith.constant 0 : i32
    %c0_i32_1 = arith.constant 0 : i32
    return %arg0, %c0_i32, %c0_i32_0 : i32, i32, i32
  }
  func.func @transform_22(%arg0: i32) -> (i32, i32, i32) {
    %c0_i32 = arith.constant 0 : i32
    %c0_i32_0 = arith.constant 0 : i32
    %c0_i32_1 = arith.constant 0 : i32
    return %arg0, %c0_i32, %c0_i32_0 : i32, i32, i32
  }
}

</mosaic_0001>

<llo_original>
// kernel: ladder_forward.1
$region0: #{ladder_forward.1}
  #allocation0 [shape = 'u32[]', space=smem, size = 0x4, offset = 0x4, fixed_abs, tag = 'smem constant byte address 0x4 - core index']
  #allocation1 [shape = 'u32[144,128]{1,0:T(1,128)}', space=vmem, size = 0x12000, scoped, tag = 'internal scratch']
  #allocation2 [shape = 'f32[14,30]{1,0:T(8,128)}', space=vmem, size = 0x2000, scoped, tag = 'scratch operand']
  #allocation3 [shape = 'f32[32,30]{1,0:T(8,128)}', space=vmem, size = 0x4000, scoped, tag = 'scratch operand']
  #allocation4 [shape = 'f32[34,100]{1,0:T(8,128)}', space=vmem, size = 0x5000, scoped, tag = 'scratch operand']
  #allocation5 [shape = 'f32[36,150]{1,0:T(8,128)}', space=vmem, size = 0xa000, scoped, tag = 'scratch operand']
  %s0 = inlined_call_operand.vmem [shape: f32[2,34,8], index: 0, kind: input, shape index: {}]
  %s1 = inlined_call_operand.hbm [shape: f32[3,8,150], index: 1, kind: input, shape index: {}]
  %s2 = inlined_call_operand.vmem [shape: f32[1,150], index: 2, kind: input, shape index: {}]
  %s3 = inlined_call_operand.hbm [shape: f32[3,150,100], index: 3, kind: input, shape index: {}]
  %s4 = inlined_call_operand.vmem [shape: f32[1,100], index: 4, kind: input, shape index: {}]
  %s5 = inlined_call_operand.hbm [shape: f32[3,100,30], index: 5, kind: input, shape index: {}]
  %s6 = inlined_call_operand.vmem [shape: f32[1,30], index: 6, kind: input, shape index: {}]
  %s7 = inlined_call_operand.hbm [shape: f32[14,28], index: 7, kind: input, shape index: {}]
  %s8 = inlined_call_operand.hbm [shape: f32[14,28], index: 8, kind: input, shape index: {}]
  %s9 = inlined_call_operand.hbm [shape: f32[14,30,16], index: 9, kind: input, shape index: {}]
  %s10 = inlined_call_operand.vmem [shape: f32[1,16], index: 10, kind: input, shape index: {}]
  %s11 = inlined_call_operand.hbm [shape: f32[14,16,30], index: 11, kind: input, shape index: {}]
  %s12 = inlined_call_operand.vmem [shape: f32[14,30], index: 12, kind: input, shape index: {}]
  %s13 = inlined_call_operand.hbm [shape: f32[28,14], index: 13, kind: input, shape index: {}]
  %s14 = inlined_call_operand.hbm [shape: f32[28,14], index: 14, kind: input, shape index: {}]
  %s15 = inlined_call_operand.vmem [shape: f32[3,30,100], index: 15, kind: input, shape index: {}]
  %s16 = inlined_call_operand.vmem [shape: f32[1,100], index: 16, kind: input, shape index: {}]
  %s17 = inlined_call_operand.hbm [shape: f32[3,100,150], index: 17, kind: input, shape index: {}]
  %s18 = inlined_call_operand.vmem [shape: f32[1,150], index: 18, kind: input, shape index: {}]
  %s19 = inlined_call_operand.hbm [shape: f32[3,150,8], index: 19, kind: input, shape index: {}]
  %s20 = inlined_call_operand.vmem [shape: f32[1,8], index: 20, kind: input, shape index: {}]
  %s21 = inlined_call_operand.vmem [shape: f32[2,34,8], index: 21, kind: output, shape index: {0}]
  %s22 = inlined_call_operand.hbm [shape: f32[2,1,16], index: 22, kind: output, shape index: {1}]
  %23 = xla_tuple %s21, %s22
  %s24 = sld [smem:[#allocation0]]
  $region169: #{ladder_forward.1} parent=0
    _
  %s26 = ssub.s32 1, %s24
  %s27 = scalar_select 0, %s26, %s24
  $region1: #{ladder_forward.1} parent=0
    #allocation6 [shape = 'u8[24576]{0}', space=vmem, size = 0x6000, scoped, tag = 'input window, operand 1, single buffered']
    #allocation7 [shape = 's32[2]{0}', space=sflag, size = 0x8, scoped, tag = 'scoped memory for ladder_forward.1']
    #allocation8 [shape = 's32[2]{0}', space=sflag, size = 0x8, scoped, tag = 'scoped memory for ladder_forward.1']
    #allocation9 [shape = 'u8[233472]{0}', space=vmem, size = 0x39000, scoped, tag = 'input window, operand 3, single buffered']
    #allocation10 [shape = 's32[1]{0}', space=sflag, size = 0x4, scoped, tag = 'scoped memory for ladder_forward.1']
    #allocation11 [shape = 'u8[159744]{0}', space=vmem, size = 0x27000, scoped, tag = 'input window, operand 5, single buffered']
    #allocation12 [shape = 'u8[8192]{0}', space=vmem, size = 0x2000, scoped, tag = 'input window, operand 7, single buffered']
    #allocation13 [shape = 's32[1]{0}', space=sflag, size = 0x4, scoped, tag = 'scoped memory for ladder_forward.1']
    #allocation14 [shape = 'u8[8192]{0}', space=vmem, size = 0x2000, scoped, tag = 'input window, operand 8, single buffered']
    #allocation15 [shape = 'u8[229376]{0}', space=vmem, size = 0x38000, scoped, tag = 'input window, operand 9, single buffered']
    #allocation16 [shape = 's32[1]{0}', space=sflag, size = 0x4, scoped, tag = 'scoped memory for ladder_forward.1']
    #allocation17 [shape = 'u8[114688]{0}', space=vmem, size = 0x1c000, scoped, tag = 'input window, operand 11, single buffered']
    #allocation18 [shape = 'u8[16384]{0}', space=vmem, size = 0x4000, scoped, tag = 'input window, operand 13, single buffered']
    #allocation19 [shape = 's32[1]{0}', space=sflag, size = 0x4, scoped, tag = 'scoped memory for ladder_forward.1']
    #allocation20 [shape = 'u8[16384]{0}', space=vmem, size = 0x4000, scoped, tag = 'input window, operand 14, single buffered']
    #allocation21 [shape = 'u8[319488]{0}', space=vmem, size = 0x4e000, scoped, tag = 'input window, operand 17, single buffered']
    #allocation22 [shape = 's32[1]{0}', space=sflag, size = 0x4, scoped, tag = 'scoped memory for ladder_forward.1']
    #allocation23 [shape = 'u8[233472]{0}', space=vmem, size = 0x39000, scoped, tag = 'input window, operand 19, single buffered']
    #allocation24 [shape = 'u8[1024]{0}', space=vmem, size = 0x400, scoped, tag = 'output window, operand 1']
    %28 = vsyncpa [#allocation7], 0
    %29 = vsyncpa [#allocation10], 0
    %30 = vsyncpa [#allocation13], 0
    %31 = vsyncpa [#allocation16], 0
    %32 = vsyncpa [#allocation19], 0
    %33 = vsyncpa [#allocation22], 0
    %34 = vsyncpa [#allocation8], 0
    %s35 = scalar_lea.sflag [#allocation8], 1
    %36 = vsyncpa %s35, 0
    loop: start=0, step=1, limit=4
    $region2: #{ladder_forward.1} parent=1 // loop_pre_header
      _
    $region3: #{ladder_forward.1} parent=1 // loop_header
      %s38 = sphi 0, %s42
      %p39 = scmp.ge.s32.totalorder %s38, 4
      %s48 = sphi 0, %s50
      %s51 = sphi 0, %s48
      %s52 = sphi 0, %s51
      %s68 = sphi 0, %s52
      %s72 = sphi 0, %s72
      %s74 = sphi 0, %s72
      %s75 = sphi 0, %s74
      %s89 = sphi 0, %s75
      %s93 = sphi 0, %s93
      %s95 = sphi 0, %s93
      %s96 = sphi 0, %s95
      %s110 = sphi 0, %s96
      %s114 = sphi 0, %s114
      %s116 = sphi 0, %s114
      %s117 = sphi 0, %s116
      %s131 = sphi 0, %s117
      %s135 = sphi 0, %s135
      %s137 = sphi 0, %s135
      %s138 = sphi 0, %s137
      %s152 = sphi 0, %s138
      %s156 = sphi 0, %s156
      %s158 = sphi 0, %s156
      %s159 = sphi 0, %s158
      %s173 = sphi 0, %s159
      %s177 = sphi 0, %s177
      %s179 = sphi 0, %s177
      %s180 = sphi 0, %s179
      %s194 = sphi 0, %s180
      %s198 = sphi 0, %s198
      %s200 = sphi 0, %s198
      %s201 = sphi 0, %s200
      %s215 = sphi 0, %s201
      %s219 = sphi 0, %s219
      %s221 = sphi 0, %s219
      %s222 = sphi 0, %s221
      %s236 = sphi 0, %s222
      %s240 = sphi 0, %s240
      %s242 = sphi 0, %s240
      %s243 = sphi 0, %s242
      %s257 = sphi 0, %s243
      %s261 = sphi 0, %s261
      %s263 = sphi 0, %s261
      %s264 = sphi 0, %s263
      %s278 = sphi 0, %s264
      %s282 = sphi 0, %s282
      %s284 = sphi 0, %s282
      %s285 = sphi 0, %s284
      %s299 = sphi 0, %s285
      %s303 = sphi 0, %s303
      %s305 = sphi 0, %s303
      %s306 = sphi 0, %s305
      %s320 = sphi 0, %s306
      %s324 = sphi 0, %s324
      %s326 = sphi 0, %s324
      %s327 = sphi 0, %s326
      %s341 = sphi 0, %s327
      %s345 = sphi 0, %s345
      %s347 = sphi 0, %s345
      %s348 = sphi 0, %s347
      %s362 = sphi 0, %s348
      %s366 = sphi 0, %s366
      %s368 = sphi 0, %s366
      %s369 = sphi 0, %s368
      %s383 = sphi 0, %s369
      %s387 = sphi 0, %s387
      %s389 = sphi 0, %s387
      %s390 = sphi 0, %s389
      %s404 = sphi 0, %s390
      %s408 = sphi 0, %s408
      %s410 = sphi 0, %s408
      %s411 = sphi 0, %s410
      %s425 = sphi 0, %s411
      %s429 = sphi 0, %s429
      %s431 = sphi 0, %s429
      %s432 = sphi 0, %s431
      %s446 = sphi 0, %s432
      %s450 = sphi 0, %s450
      %s452 = sphi 0, %s450
      %s453 = sphi 0, %s452
      %s467 = sphi 0, %s453
      %s471 = sphi 0, %s471
      %s473 = sphi 0, %s471
      %s474 = sphi 0, %s473
      %s488 = sphi 0, %s474
      %s494 = sphi 0, %s496
      %s497 = sphi 0, %s494
      %s498 = sphi 0, %s497
      %s514 = sphi 0, %s498
      %s520 = sphi 0, %s522
      %s523 = sphi 0, %s520
      %s524 = sphi 0, %s523
      %s540 = sphi 0, %s524
    $region4: #{ladder_forward.1} parent=1 // loop_header_branch
      %41 = sbr.rel (%p39) target = $region8
    $region5: #{ladder_forward.1} parent=1 // loop_body
      %s43 = ssub.s32 %s38, 1
      %s44 = ssub.s32 %s38, 2
      %s45 = sadd.s32 %s38, 1
      %s46 = ssub.s32 %s38, %s45
      %p47 = scmp.eq.s32.totalorder %s46, 0
      %s49 = sadd.s32 %s48, 1
      %s50 = scalar_select %p47, %s48, %s49
      %p53 = pneg %p47
      %p54 = scmp.eq.s32.totalorder %s38, 1
      %p55 = por %p53, %p54
      %p56 = scmp.ne.s32.totalorder %s48, %s51
      %p57 = scmp.eq.s32.totalorder %s38, 0
      %p58 = por %p56, %p57
      %p59 = scmp.ne.s32.totalorder %s48, %s51
      %p60 = scmp.eq.s32.totalorder %s43, 1
      %p61 = por %p59, %p60
      %p62 = scmp.ne.s32.totalorder %s51, %s52
      %p63 = scmp.eq.s32.totalorder %s43, 0
      %p64 = por %p62, %p63
      %p65 = scmp.ne.s32.totalorder %s51, %s52
      %p66 = scmp.eq.s32.totalorder %s44, 1
      %p67 = por %p65, %p66
      %p69 = scmp.ne.s32.totalorder %s52, %s68
      %p70 = scmp.eq.s32.totalorder %s44, 0
      %p71 = por %p69, %p70
      %s73 = sadd.s32 %s72, 1
      %p76 = scmp.eq.s32.totalorder %s38, 1
      %p77 = scmp.ne.s32.totalorder %s72, %s74
      %p78 = scmp.eq.s32.totalorder %s38, 0
      %p79 = por %p77, %p78
      %p80 = scmp.ne.s32.totalorder %s72, %s74
      %p81 = scmp.eq.s32.totalorder %s43, 1
      %p82 = por %p80, %p81
      %p83 = scmp.ne.s32.totalorder %s74, %s75
      %p84 = scmp.eq.s32.totalorder %s43, 0
      %p85 = por %p83, %p84
      %p86 = scmp.ne.s32.totalorder %s74, %s75
      %p87 = scmp.eq.s32.totalorder %s44, 1
      %p88 = por %p86, %p87
      %p90 = scmp.ne.s32.totalorder %s75, %s89
      %p91 = scmp.eq.s32.totalorder %s44, 0
      %p92 = por %p90, %p91
      %s94 = sadd.s32 %s93, 1
      %p97 = scmp.eq.s32.totalorder %s38, 1
      %p98 = scmp.ne.s32.totalorder %s93, %s95
      %p99 = scmp.eq.s32.totalorder %s38, 0
      %p100 = por %p98, %p99
      %p101 = scmp.ne.s32.totalorder %s93, %s95
      %p102 = scmp.eq.s32.totalorder %s43, 1
      %p103 = por %p101, %p102
      %p104 = scmp.ne.s32.totalorder %s95, %s96
      %p105 = scmp.eq.s32.totalorder %s43, 0
      %p106 = por %p104, %p105
      %p107 = scmp.ne.s32.totalorder %s95, %s96
      %p108 = scmp.eq.s32.totalorder %s44, 1
      %p109 = por %p107, %p108
      %p111 = scmp.ne.s32.totalorder %s96, %s110
      %p112 = scmp.eq.s32.totalorder %s44, 0
      %p113 = por %p111, %p112
      %s115 = sadd.s32 %s114, 1
      %p118 = scmp.eq.s32.totalorder %s38, 1
      %p119 = scmp.ne.s32.totalorder %s114, %s116
      %p120 = scmp.eq.s32.totalorder %s38, 0
      %p121 = por %p119, %p120
      %p122 = scmp.ne.s32.totalorder %s114, %s116
      %p123 = scmp.eq.s32.totalorder %s43, 1
      %p124 = por %p122, %p123
      %p125 = scmp.ne.s32.totalorder %s116, %s117
      %p126 = scmp.eq.s32.totalorder %s43, 0
      %p127 = por %p125, %p126
      %p128 = scmp.ne.s32.totalorder %s116, %s117
      %p129 = scmp.eq.s32.totalorder %s44, 1
      %p130 = por %p128, %p129
      %p132 = scmp.ne.s32.totalorder %s117, %s131
      %p133 = scmp.eq.s32.totalorder %s44, 0
      %p134 = por %p132, %p133
      %s136 = sadd.s32 %s135, 1
      %p139 = scmp.eq.s32.totalorder %s38, 1
      %p140 = scmp.ne.s32.totalorder %s135, %s137
      %p141 = scmp.eq.s32.totalorder %s38, 0
      %p142 = por %p140, %p141
      %p143 = scmp.ne.s32.totalorder %s135, %s137
      %p144 = scmp.eq.s32.totalorder %s43, 1
      %p145 = por %p143, %p144
      %p146 = scmp.ne.s32.totalorder %s137, %s138
      %p147 = scmp.eq.s32.totalorder %s43, 0
      %p148 = por %p146, %p147
      %p149 = scmp.ne.s32.totalorder %s137, %s138
      %p150 = scmp.eq.s32.totalorder %s44, 1
      %p151 = por %p149, %p150
      %p153 = scmp.ne.s32.totalorder %s138, %s152
      %p154 = scmp.eq.s32.totalorder %s44, 0
      %p155 = por %p153, %p154
      %s157 = sadd.s32 %s156, 1
      %p160 = scmp.eq.s32.totalorder %s38, 1
      %p161 = scmp.ne.s32.totalorder %s156, %s158
      %p162 = scmp.eq.s32.totalorder %s38, 0
      %p163 = por %p161, %p162
      %p164 = scmp.ne.s32.totalorder %s156, %s158
      %p165 = scmp.eq.s32.totalorder %s43, 1
      %p166 = por %p164, %p165
      %p167 = scmp.ne.s32.totalorder %s158, %s159
      %p168 = scmp.eq.s32.totalorder %s43, 0
      %p169 = por %p167, %p168
      %p170 = scmp.ne.s32.totalorder %s158, %s159
      %p171 = scmp.eq.s32.totalorder %s44, 1
      %p172 = por %p170, %p171
      %p174 = scmp.ne.s32.totalorder %s159, %s173
      %p175 = scmp.eq.s32.totalorder %s44, 0
      %p176 = por %p174, %p175
      %s178 = sadd.s32 %s177, 1
      %p181 = scmp.eq.s32.totalorder %s38, 1
      %p182 = scmp.ne.s32.totalorder %s177, %s179
      %p183 = scmp.eq.s32.totalorder %s38, 0
      %p184 = por %p182, %p183
      %p185 = scmp.ne.s32.totalorder %s177, %s179
      %p186 = scmp.eq.s32.totalorder %s43, 1
      %p187 = por %p185, %p186
      %p188 = scmp.ne.s32.totalorder %s179, %s180
      %p189 = scmp.eq.s32.totalorder %s43, 0
      %p190 = por %p188, %p189
      %p191 = scmp.ne.s32.totalorder %s179, %s180
      %p192 = scmp.eq.s32.totalorder %s44, 1
      %p193 = por %p191, %p192
      %p195 = scmp.ne.s32.totalorder %s180, %s194
      %p196 = scmp.eq.s32.totalorder %s44, 0
      %p197 = por %p195, %p196
      %s199 = sadd.s32 %s198, 1
      %p202 = scmp.eq.s32.totalorder %s38, 1
      %p203 = scmp.ne.s32.totalorder %s198, %s200
      %p204 = scmp.eq.s32.totalorder %s38, 0
      %p205 = por %p203, %p204
      %p206 = scmp.ne.s32.totalorder %s198, %s200
      %p207 = scmp.eq.s32.totalorder %s43, 1
      %p208 = por %p206, %p207
      %p209 = scmp.ne.s32.totalorder %s200, %s201
      %p210 = scmp.eq.s32.totalorder %s43, 0
      %p211 = por %p209, %p210
      %p212 = scmp.ne.s32.totalorder %s200, %s201
      %p213 = scmp.eq.s32.totalorder %s44, 1
      %p214 = por %p212, %p213
      %p216 = scmp.ne.s32.totalorder %s201, %s215
      %p217 = scmp.eq.s32.totalorder %s44, 0
      %p218 = por %p216, %p217
      %s220 = sadd.s32 %s219, 1
      %p223 = scmp.eq.s32.totalorder %s38, 1
      %p224 = scmp.ne.s32.totalorder %s219, %s221
      %p225 = scmp.eq.s32.totalorder %s38, 0
      %p226 = por %p224, %p225
      %p227 = scmp.ne.s32.totalorder %s219, %s221
      %p228 = scmp.eq.s32.totalorder %s43, 1
      %p229 = por %p227, %p228
      %p230 = scmp.ne.s32.totalorder %s221, %s222
      %p231 = scmp.eq.s32.totalorder %s43, 0
      %p232 = por %p230, %p231
      %p233 = scmp.ne.s32.totalorder %s221, %s222
      %p234 = scmp.eq.s32.totalorder %s44, 1
      %p235 = por %p233, %p234
      %p237 = scmp.ne.s32.totalorder %s222, %s236
      %p238 = scmp.eq.s32.totalorder %s44, 0
      %p239 = por %p237, %p238
      %s241 = sadd.s32 %s240, 1
      %p244 = scmp.eq.s32.totalorder %s38, 1
      %p245 = scmp.ne.s32.totalorder %s240, %s242
      %p246 = scmp.eq.s32.totalorder %s38, 0
      %p247 = por %p245, %p246
      %p248 = scmp.ne.s32.totalorder %s240, %s242
      %p249 = scmp.eq.s32.totalorder %s43, 1
      %p250 = por %p248, %p249
      %p251 = scmp.ne.s32.totalorder %s242, %s243
      %p252 = scmp.eq.s32.totalorder %s43, 0
      %p253 = por %p251, %p252
      %p254 = scmp.ne.s32.totalorder %s242, %s243
      %p255 = scmp.eq.s32.totalorder %s44, 1
      %p256 = por %p254, %p255
      %p258 = scmp.ne.s32.totalorder %s243, %s257
      %p259 = scmp.eq.s32.totalorder %s44, 0
      %p260 = por %p258, %p259
      %s262 = sadd.s32 %s261, 1
      %p265 = scmp.eq.s32.totalorder %s38, 1
      %p266 = scmp.ne.s32.totalorder %s261, %s263
      %p267 = scmp.eq.s32.totalorder %s38, 0
      %p268 = por %p266, %p267
      %p269 = scmp.ne.s32.totalorder %s261, %s263
      %p270 = scmp.eq.s32.totalorder %s43, 1
      %p271 = por %p269, %p270
      %p272 = scmp.ne.s32.totalorder %s263, %s264
      %p273 = scmp.eq.s32.totalorder %s43, 0
      %p274 = por %p272, %p273
      %p275 = scmp.ne.s32.totalorder %s263, %s264
      %p276 = scmp.eq.s32.totalorder %s44, 1
      %p277 = por %p275, %p276
      %p279 = scmp.ne.s32.totalorder %s264, %s278
      %p280 = scmp.eq.s32.totalorder %s44, 0
      %p281 = por %p279, %p280
      %s283 = sadd.s32 %s282, 1
      %p286 = scmp.eq.s32.totalorder %s38, 1
      %p287 = scmp.ne.s32.totalorder %s282, %s284
      %p288 = scmp.eq.s32.totalorder %s38, 0
      %p289 = por %p287, %p288
      %p290 = scmp.ne.s32.totalorder %s282, %s284
      %p291 = scmp.eq.s32.totalorder %s43, 1
      %p292 = por %p290, %p291
      %p293 = scmp.ne.s32.totalorder %s284, %s285
      %p294 = scmp.eq.s32.totalorder %s43, 0
      %p295 = por %p293, %p294
      %p296 = scmp.ne.s32.totalorder %s284, %s285
      %p297 = scmp.eq.s32.totalorder %s44, 1
      %p298 = por %p296, %p297
      %p300 = scmp.ne.s32.totalorder %s285, %s299
      %p301 = scmp.eq.s32.totalorder %s44, 0
      %p302 = por %p300, %p301
      %s304 = sadd.s32 %s303, 1
      %p307 = scmp.eq.s32.totalorder %s38, 1
      %p308 = scmp.ne.s32.totalorder %s303, %s305
      %p309 = scmp.eq.s32.totalorder %s38, 0
      %p310 = por %p308, %p309
      %p311 = scmp.ne.s32.totalorder %s303, %s305
      %p312 = scmp.eq.s32.totalorder %s43, 1
      %p313 = por %p311, %p312
      %p314 = scmp.ne.s32.totalorder %s305, %s306
      %p315 = scmp.eq.s32.totalorder %s43, 0
      %p316 = por %p314, %p315
      %p317 = scmp.ne.s32.totalorder %s305, %s306
      %p318 = scmp.eq.s32.totalorder %s44, 1
      %p319 = por %p317, %p318
      %p321 = scmp.ne.s32.totalorder %s306, %s320
      %p322 = scmp.eq.s32.totalorder %s44, 0
      %p323 = por %p321, %p322
      %s325 = sadd.s32 %s324, 1
      %p328 = scmp.eq.s32.totalorder %s38, 1
      %p329 = scmp.ne.s32.totalorder %s324, %s326
      %p330 = scmp.eq.s32.totalorder %s38, 0
      %p331 = por %p329, %p330
      %p332 = scmp.ne.s32.totalorder %s324, %s326
      %p333 = scmp.eq.s32.totalorder %s43, 1
      %p334 = por %p332, %p333
      %p335 = scmp.ne.s32.totalorder %s326, %s327
      %p336 = scmp.eq.s32.totalorder %s43, 0
      %p337 = por %p335, %p336
      %p338 = scmp.ne.s32.totalorder %s326, %s327
      %p339 = scmp.eq.s32.totalorder %s44, 1
      %p340 = por %p338, %p339
      %p342 = scmp.ne.s32.totalorder %s327, %s341
      %p343 = scmp.eq.s32.totalorder %s44, 0
      %p344 = por %p342, %p343
      %s346 = sadd.s32 %s345, 1
      %p349 = scmp.eq.s32.totalorder %s38, 1
      %p350 = scmp.ne.s32.totalorder %s345, %s347
      %p351 = scmp.eq.s32.totalorder %s38, 0
      %p352 = por %p350, %p351
      %p353 = scmp.ne.s32.totalorder %s345, %s347
      %p354 = scmp.eq.s32.totalorder %s43, 1
      %p355 = por %p353, %p354
      %p356 = scmp.ne.s32.totalorder %s347, %s348
      %p357 = scmp.eq.s32.totalorder %s43, 0
      %p358 = por %p356, %p357
      %p359 = scmp.ne.s32.totalorder %s347, %s348
      %p360 = scmp.eq.s32.totalorder %s44, 1
      %p361 = por %p359, %p360
      %p363 = scmp.ne.s32.totalorder %s348, %s362
      %p364 = scmp.eq.s32.totalorder %s44, 0
      %p365 = por %p363, %p364
      %s367 = sadd.s32 %s366, 1
      %p370 = scmp.eq.s32.totalorder %s38, 1
      %p371 = scmp.ne.s32.totalorder %s366, %s368
      %p372 = scmp.eq.s32.totalorder %s38, 0
      %p373 = por %p371, %p372
      %p374 = scmp.ne.s32.totalorder %s366, %s368
      %p375 = scmp.eq.s32.totalorder %s43, 1
      %p376 = por %p374, %p375
      %p377 = scmp.ne.s32.totalorder %s368, %s369
      %p378 = scmp.eq.s32.totalorder %s43, 0
      %p379 = por %p377, %p378
      %p380 = scmp.ne.s32.totalorder %s368, %s369
      %p381 = scmp.eq.s32.totalorder %s44, 1
      %p382 = por %p380, %p381
      %p384 = scmp.ne.s32.totalorder %s369, %s383
      %p385 = scmp.eq.s32.totalorder %s44, 0
      %p386 = por %p384, %p385
      %s388 = sadd.s32 %s387, 1
      %p391 = scmp.eq.s32.totalorder %s38, 1
      %p392 = scmp.ne.s32.totalorder %s387, %s389
      %p393 = scmp.eq.s32.totalorder %s38, 0
      %p394 = por %p392, %p393
      %p395 = scmp.ne.s32.totalorder %s387, %s389
      %p396 = scmp.eq.s32.totalorder %s43, 1
      %p397 = por %p395, %p396
      %p398 = scmp.ne.s32.totalorder %s389, %s390
      %p399 = scmp.eq.s32.totalorder %s43, 0
      %p400 = por %p398, %p399
      %p401 = scmp.ne.s32.totalorder %s389, %s390
      %p402 = scmp.eq.s32.totalorder %s44, 1
      %p403 = por %p401, %p402
      %p405 = scmp.ne.s32.totalorder %s390, %s404
      %p406 = scmp.eq.s32.totalorder %s44, 0
      %p407 = por %p405, %p406
      %s409 = sadd.s32 %s408, 1
      %p412 = scmp.eq.s32.totalorder %s38, 1
      %p413 = scmp.ne.s32.totalorder %s408, %s410
      %p414 = scmp.eq.s32.totalorder %s38, 0
      %p415 = por %p413, %p414
      %p416 = scmp.ne.s32.totalorder %s408, %s410
      %p417 = scmp.eq.s32.totalorder %s43, 1
      %p418 = por %p416, %p417
      %p419 = scmp.ne.s32.totalorder %s410, %s411
      %p420 = scmp.eq.s32.totalorder %s43, 0
      %p421 = por %p419, %p420
      %p422 = scmp.ne.s32.totalorder %s410, %s411
      %p423 = scmp.eq.s32.totalorder %s44, 1
      %p424 = por %p422, %p423
      %p426 = scmp.ne.s32.totalorder %s411, %s425
      %p427 = scmp.eq.s32.totalorder %s44, 0
      %p428 = por %p426, %p427
      %s430 = sadd.s32 %s429, 1
      %p433 = scmp.eq.s32.totalorder %s38, 1
      %p434 = scmp.ne.s32.totalorder %s429, %s431
      %p435 = scmp.eq.s32.totalorder %s38, 0
      %p436 = por %p434, %p435
      %p437 = scmp.ne.s32.totalorder %s429, %s431
      %p438 = scmp.eq.s32.totalorder %s43, 1
      %p439 = por %p437, %p438
      %p440 = scmp.ne.s32.totalorder %s431, %s432
      %p441 = scmp.eq.s32.totalorder %s43, 0
      %p442 = por %p440, %p441
      %p443 = scmp.ne.s32.totalorder %s431, %s432
      %p444 = scmp.eq.s32.totalorder %s44, 1
      %p445 = por %p443, %p444
      %p447 = scmp.ne.s32.totalorder %s432, %s446
      %p448 = scmp.eq.s32.totalorder %s44, 0
      %p449 = por %p447, %p448
      %s451 = sadd.s32 %s450, 1
      %p454 = scmp.eq.s32.totalorder %s38, 1
      %p455 = scmp.ne.s32.totalorder %s450, %s452
      %p456 = scmp.eq.s32.totalorder %s38, 0
      %p457 = por %p455, %p456
      %p458 = scmp.ne.s32.totalorder %s450, %s452
      %p459 = scmp.eq.s32.totalorder %s43, 1
      %p460 = por %p458, %p459
      %p461 = scmp.ne.s32.totalorder %s452, %s453
      %p462 = scmp.eq.s32.totalorder %s43, 0
      %p463 = por %p461, %p462
      %p464 = scmp.ne.s32.totalorder %s452, %s453
      %p465 = scmp.eq.s32.totalorder %s44, 1
      %p466 = por %p464, %p465
      %p468 = scmp.ne.s32.totalorder %s453, %s467
      %p469 = scmp.eq.s32.totalorder %s44, 0
      %p470 = por %p468, %p469
      %s472 = sadd.s32 %s471, 1
      %p475 = scmp.eq.s32.totalorder %s38, 1
      %p476 = scmp.ne.s32.totalorder %s471, %s473
      %p477 = scmp.eq.s32.totalorder %s38, 0
      %p478 = por %p476, %p477
      %p479 = scmp.ne.s32.totalorder %s471, %s473
      %p480 = scmp.eq.s32.totalorder %s43, 1
      %p481 = por %p479, %p480
      %p482 = scmp.ne.s32.totalorder %s473, %s474
      %p483 = scmp.eq.s32.totalorder %s43, 0
      %p484 = por %p482, %p483
      %p485 = scmp.ne.s32.totalorder %s473, %s474
      %p486 = scmp.eq.s32.totalorder %s44, 1
      %p487 = por %p485, %p486
      %p489 = scmp.ne.s32.totalorder %s474, %s488
      %p490 = scmp.eq.s32.totalorder %s44, 0
      %p491 = por %p489, %p490
      %s492 = ssub.s32 %s38, %s45
      %p493 = scmp.eq.s32.totalorder %s492, 0
      %s495 = sadd.s32 %s494, 1
      %s496 = scalar_select %p493, %s494, %s495
      %p499 = pneg %p493
      %p500 = scmp.eq.s32.totalorder %s38, 1
      %p501 = por %p499, %p500
      %p502 = scmp.ne.s32.totalorder %s494, %s497
      %p503 = scmp.eq.s32.totalorder %s38, 0
      %p504 = por %p502, %p503
      %p505 = scmp.ne.s32.totalorder %s494, %s497
      %p506 = scmp.eq.s32.totalorder %s43, 1
      %p507 = por %p505, %p506
      %p508 = scmp.ne.s32.totalorder %s497, %s498
      %p509 = scmp.eq.s32.totalorder %s43, 0
      %p510 = por %p508, %p509
      %p511 = scmp.ne.s32.totalorder %s497, %s498
      %p512 = scmp.eq.s32.totalorder %s44, 1
      %p513 = por %p511, %p512
      %p515 = scmp.ne.s32.totalorder %s498, %s514
      %p516 = scmp.eq.s32.totalorder %s44, 0
      %p517 = por %p515, %p516
      %s518 = ssub.s32 %s38, %s45
      %p519 = scmp.eq.s32.totalorder %s518, 0
      %s521 = sadd.s32 %s520, 1
      %s522 = scalar_select %p519, %s520, %s521
      %p525 = pneg %p519
      %p526 = scmp.eq.s32.totalorder %s38, 1
      %p527 = por %p525, %p526
      %p528 = scmp.ne.s32.totalorder %s520, %s523
      %p529 = scmp.eq.s32.totalorder %s38, 0
      %p530 = por %p528, %p529
      %p531 = scmp.ne.s32.totalorder %s520, %s523
      %p532 = scmp.eq.s32.totalorder %s43, 1
      %p533 = por %p531, %p532
      %p534 = scmp.ne.s32.totalorder %s523, %s524
      %p535 = scmp.eq.s32.totalorder %s43, 0
      %p536 = por %p534, %p535
      %p537 = scmp.ne.s32.totalorder %s523, %s524
      %p538 = scmp.eq.s32.totalorder %s44, 1
      %p539 = por %p537, %p538
      %p541 = scmp.ne.s32.totalorder %s524, %s540
      %p542 = scmp.eq.s32.totalorder %s44, 0
      %p543 = por %p541, %p542
      %p544 = scmp.le.s32.totalorder 1, %s38
      %p545 = scmp.lt.s32.totalorder %s38, 3
      %p546 = pnand %p544, %p545
      %p547 = pneg %p546
      // Predicated region
      $region9: #{ladder_forward.1} parent=5 // pred_check
        _
      $region10: #{ladder_forward.1} parent=5 // pred_check_branch
        %549 = sbr.rel (%p546) target = $region12
      $region11: #{ladder_forward.1} parent=5 // pred_region
        %s550 = ssub.s32 %s38, 1
        // Predicated region
        $region13: #{ladder_forward.1} parent=11 // pred_check
          %p551 = pneg %p85
        $region14: #{ladder_forward.1} parent=11 // pred_check_branch
          %553 = sbr.rel (%p551) target = $region16
        $region15: #{ladder_forward.1} parent=11 // pred_region
          %s555 = ssub.s32 768, 768
          %556 = vsyncadd [#allocation7], %s555
          %s557 = sshll.u32 [#allocation6], 4
          %s558 = int_to_ptr.vmem [resolvable:$true] %s557
          %563 = dma.hbm_to_vmem [thread:$0]  %s1, 768, %s558, [#allocation7], 256, 256, 16
        $region16: #{ladder_forward.1} parent=11 // pred_fallthru
          _
        // Predicated region
        $region17: #{ladder_forward.1} parent=11 // pred_check
          %p564 = pneg %p106
        $region18: #{ladder_forward.1} parent=11 // pred_check_branch
          %566 = sbr.rel (%p564) target = $region20
        $region19: #{ladder_forward.1} parent=11 // pred_region
          _
        $region20: #{ladder_forward.1} parent=11 // pred_fallthru
          _
        // Predicated region
        $region21: #{ladder_forward.1} parent=11 // pred_check
          %p567 = pneg %p127
        $region22: #{ladder_forward.1} parent=11 // pred_check_branch
          %569 = sbr.rel (%p567) target = $region24
        $region23: #{ladder_forward.1} parent=11 // pred_region
          %s571 = ssub.s32 7296, 7296
          %572 = vsyncadd [#allocation10], %s571
          %s573 = sshll.u32 [#allocation9], 4
          %s574 = int_to_ptr.vmem [resolvable:$true] %s573
          %579 = dma.hbm_to_vmem [thread:$0]  %s3, 7296, %s574, [#allocation10], 128, 128, 8
        $region24: #{ladder_forward.1} parent=11 // pred_fallthru
          _
        // Predicated region
        $region25: #{ladder_forward.1} parent=11 // pred_check
          %p580 = pneg %p148
        $region26: #{ladder_forward.1} parent=11 // pred_check_branch
          %582 = sbr.rel (%p580) target = $region28
        $region27: #{ladder_forward.1} parent=11 // pred_region
          _
        $region28: #{ladder_forward.1} parent=11 // pred_fallthru
          _
        // Predicated region
        $region29: #{ladder_forward.1} parent=11 // pred_check
          %p583 = pneg %p169
        $region30: #{ladder_forward.1} parent=11 // pred_check_branch
          %585 = sbr.rel (%p583) target = $region32
        $region31: #{ladder_forward.1} parent=11 // pred_region
          %s587 = ssub.s32 4992, 4992
          %588 = vsyncadd [#allocation10], %s587
          %s589 = sshll.u32 [#allocation11], 4
          %s590 = int_to_ptr.vmem [resolvable:$true] %s589
          %595 = dma.hbm_to_vmem [thread:$0]  %s5, 4992, %s590, [#allocation10], 128, 128, 8
        $region32: #{ladder_forward.1} parent=11 // pred_fallthru
          _
        // Predicated region
        $region33: #{ladder_forward.1} parent=11 // pred_check
          %p596 = pneg %p190
        $region34: #{ladder_forward.1} parent=11 // pred_check_branch
          %598 = sbr.rel (%p596) target = $region36
        $region35: #{ladder_forward.1} parent=11 // pred_region
          _
        $region36: #{ladder_forward.1} parent=11 // pred_fallthru
          _
        // Predicated region
        $region37: #{ladder_forward.1} parent=11 // pred_check
          %p599 = pneg %p211
        $region38: #{ladder_forward.1} parent=11 // pred_check_branch
          %601 = sbr.rel (%p599) target = $region40
        $region39: #{ladder_forward.1} parent=11 // pred_region
          %s603 = ssub.s32 256, 256
          %604 = vsyncadd [#allocation13], %s603
          %s605 = sshll.u32 [#allocation12], 4
          %s606 = int_to_ptr.vmem [resolvable:$true] %s605
          %611 = dma.hbm_to_vmem [thread:$0]  %s7, 256, %s606, [#allocation13], 128, 128, 8
        $region40: #{ladder_forward.1} parent=11 // pred_fallthru
          _
        // Predicated region
        $region41: #{ladder_forward.1} parent=11 // pred_check
          %p612 = pneg %p232
        $region42: #{ladder_forward.1} parent=11 // pred_check_branch
          %614 = sbr.rel (%p612) target = $region44
        $region43: #{ladder_forward.1} parent=11 // pred_region
          %s616 = ssub.s32 256, 256
          %617 = vsyncadd [#allocation13], %s616
          %s618 = sshll.u32 [#allocation14], 4
          %s619 = int_to_ptr.vmem [resolvable:$true] %s618
          %624 = dma.hbm_to_vmem [thread:$0]  %s8, 256, %s619, [#allocation13], 128, 128, 8
        $region44: #{ladder_forward.1} parent=11 // pred_fallthru
          _
        // Predicated region
        $region45: #{ladder_forward.1} parent=11 // pred_check
          %p625 = pneg %p253
        $region46: #{ladder_forward.1} parent=11 // pred_check_branch
          %627 = sbr.rel (%p625) target = $region48
        $region47: #{ladder_forward.1} parent=11 // pred_region
          %s629 = ssub.s32 7168, 7168
          %630 = vsyncadd [#allocation16], %s629
          %s631 = sshll.u32 [#allocation15], 4
          %s632 = int_to_ptr.vmem [resolvable:$true] %s631
          %637 = dma.hbm_to_vmem [thread:$0]  %s9, 7168, %s632, [#allocation16], 128, 128, 8
        $region48: #{ladder_forward.1} parent=11 // pred_fallthru
          _
        // Predicated region
        $region49: #{ladder_forward.1} parent=11 // pred_check
          %p638 = pneg %p274
        $region50: #{ladder_forward.1} parent=11 // pred_check_branch
          %640 = sbr.rel (%p638) target = $region52
        $region51: #{ladder_forward.1} parent=11 // pred_region
          _
        $region52: #{ladder_forward.1} parent=11 // pred_fallthru
          _
        // Predicated region
        $region53: #{ladder_forward.1} parent=11 // pred_check
          %p641 = pneg %p295
        $region54: #{ladder_forward.1} parent=11 // pred_check_branch
          %643 = sbr.rel (%p641) target = $region56
        $region55: #{ladder_forward.1} parent=11 // pred_region
          %s645 = ssub.s32 3584, 3584
          %646 = vsyncadd [#allocation16], %s645
          %s647 = sshll.u32 [#allocation17], 4
          %s648 = int_to_ptr.vmem [resolvable:$true] %s647
          %653 = dma.hbm_to_vmem [thread:$0]  %s11, 3584, %s648, [#allocation16], 128, 128, 8
        $region56: #{ladder_forward.1} parent=11 // pred_fallthru
          _
        // Predicated region
        $region57: #{ladder_forward.1} parent=11 // pred_check
          %p654 = pneg %p316
        $region58: #{ladder_forward.1} parent=11 // pred_check_branch
          %656 = sbr.rel (%p654) target = $region60
        $region59: #{ladder_forward.1} parent=11 // pred_region
          _
        $region60: #{ladder_forward.1} parent=11 // pred_fallthru
          _
        // Predicated region
        $region61: #{ladder_forward.1} parent=11 // pred_check
          %p657 = pneg %p337
        $region62: #{ladder_forward.1} parent=11 // pred_check_branch
          %659 = sbr.rel (%p657) target = $region64
        $region63: #{ladder_forward.1} parent=11 // pred_region
          %s661 = ssub.s32 512, 512
          %662 = vsyncadd [#allocation19], %s661
          %s663 = sshll.u32 [#allocation18], 4
          %s664 = int_to_ptr.vmem [resolvable:$true] %s663
          %669 = dma.hbm_to_vmem [thread:$0]  %s13, 512, %s664, [#allocation19], 128, 128, 8
        $region64: #{ladder_forward.1} parent=11 // pred_fallthru
          _
        // Predicated region
        $region65: #{ladder_forward.1} parent=11 // pred_check
          %p670 = pneg %p358
        $region66: #{ladder_forward.1} parent=11 // pred_check_branch
          %672 = sbr.rel (%p670) target = $region68
        $region67: #{ladder_forward.1} parent=11 // pred_region
          %s674 = ssub.s32 512, 512
          %675 = vsyncadd [#allocation19], %s674
          %s676 = sshll.u32 [#allocation20], 4
          %s677 = int_to_ptr.vmem [resolvable:$true] %s676
          %682 = dma.hbm_to_vmem [thread:$0]  %s14, 512, %s677, [#allocation19], 128, 128, 8
        $region68: #{ladder_forward.1} parent=11 // pred_fallthru
          _
        // Predicated region
        $region69: #{ladder_forward.1} parent=11 // pred_check
          %p683 = pneg %p379
        $region70: #{ladder_forward.1} parent=11 // pred_check_branch
          %685 = sbr.rel (%p683) target = $region72
        $region71: #{ladder_forward.1} parent=11 // pred_region
          _
        $region72: #{ladder_forward.1} parent=11 // pred_fallthru
          _
        // Predicated region
        $region73: #{ladder_forward.1} parent=11 // pred_check
          %p686 = pneg %p400
        $region74: #{ladder_forward.1} parent=11 // pred_check_branch
          %688 = sbr.rel (%p686) target = $region76
        $region75: #{ladder_forward.1} parent=11 // pred_region
          _
        $region76: #{ladder_forward.1} parent=11 // pred_fallthru
          _
        // Predicated region
        $region77: #{ladder_forward.1} parent=11 // pred_check
          %p689 = pneg %p421
        $region78: #{ladder_forward.1} parent=11 // pred_check_branch
          %691 = sbr.rel (%p689) target = $region80
        $region79: #{ladder_forward.1} parent=11 // pred_region
          %s693 = ssub.s32 9984, 9984
          %694 = vsyncadd [#allocation22], %s693
          %s695 = sshll.u32 [#allocation21], 4
          %s696 = int_to_ptr.vmem [resolvable:$true] %s695
          %701 = dma.hbm_to_vmem [thread:$0]  %s17, 9984, %s696, [#allocation22], 256, 256, 16
        $region80: #{ladder_forward.1} parent=11 // pred_fallthru
          _
        // Predicated region
        $region81: #{ladder_forward.1} parent=11 // pred_check
          %p702 = pneg %p442
        $region82: #{ladder_forward.1} parent=11 // pred_check_branch
          %704 = sbr.rel (%p702) target = $region84
        $region83: #{ladder_forward.1} parent=11 // pred_region
          _
        $region84: #{ladder_forward.1} parent=11 // pred_fallthru
          _
        // Predicated region
        $region85: #{ladder_forward.1} parent=11 // pred_check
          %p705 = pneg %p463
        $region86: #{ladder_forward.1} parent=11 // pred_check_branch
          %707 = sbr.rel (%p705) target = $region88
        $region87: #{ladder_forward.1} parent=11 // pred_region
          %s709 = ssub.s32 7296, 7296
          %710 = vsyncadd [#allocation22], %s709
          %s711 = sshll.u32 [#allocation23], 4
          %s712 = int_to_ptr.vmem [resolvable:$true] %s711
          %717 = dma.hbm_to_vmem [thread:$0]  %s19, 7296, %s712, [#allocation22], 128, 128, 8
        $region88: #{ladder_forward.1} parent=11 // pred_fallthru
          _
        // Predicated region
        $region89: #{ladder_forward.1} parent=11 // pred_check
          %p718 = pneg %p484
        $region90: #{ladder_forward.1} parent=11 // pred_check_branch
          %720 = sbr.rel (%p718) target = $region92
        $region91: #{ladder_forward.1} parent=11 // pred_region
          _
        $region92: #{ladder_forward.1} parent=11 // pred_fallthru
          _
      $region12: #{ladder_forward.1} parent=5 // pred_fallthru
        _
      %p721 = scmp.lt.s32.totalorder %s38, 2
      // Predicated region
      $region93: #{ladder_forward.1} parent=5 // pred_check
        %p722 = pneg %p721
      $region94: #{ladder_forward.1} parent=5 // pred_check_branch
        %724 = sbr.rel (%p722) target = $region96
      $region95: #{ladder_forward.1} parent=5 // pred_region
        // Predicated region
        $region97: #{ladder_forward.1} parent=95 // pred_check
          %p725 = pneg %p58
        $region98: #{ladder_forward.1} parent=95 // pred_check_branch
          %727 = sbr.rel (%p725) target = $region100
        $region99: #{ladder_forward.1} parent=95 // pred_region
          %p728 = scmp.lt.s32.totalorder %s38, 1
          %s729 = scalar_select %p728, %s38, 1
          %s730 = smul.addr %s729, 5
          %s731 = smul.addr %s730, 8
          %s732 = scalar_lea.vmem %s0, %s731
        $region100: #{ladder_forward.1} parent=95 // pred_fallthru
          _
      $region96: #{ladder_forward.1} parent=5 // pred_fallthru
        _
      %p733 = scmp.le.s32.totalorder 1, %s38
      %p734 = scmp.lt.s32.totalorder %s38, 3
      %p735 = pnand %p733, %p734
      %p736 = pneg %p735
      // Predicated region
      $region101: #{ladder_forward.1} parent=5 // pred_check
        _
      $region102: #{ladder_forward.1} parent=5 // pred_check_branch
        %738 = sbr.rel (%p735) target = $region104
      $region103: #{ladder_forward.1} parent=5 // pred_region
        %s739 = ssub.s32 %s38, 1
        // Predicated region
        $region105: #{ladder_forward.1} parent=103 // pred_check
          %p740 = pneg %p85
        $region106: #{ladder_forward.1} parent=103 // pred_check_branch
          %742 = sbr.rel (%p740) target = $region108
        $region107: #{ladder_forward.1} parent=103 // pred_region
          %743 = dma.done [#allocation7], 768
        $region108: #{ladder_forward.1} parent=103 // pred_fallthru
          _
        // Predicated region
        $region109: #{ladder_forward.1} parent=103 // pred_check
          %p744 = pneg %p127
        $region110: #{ladder_forward.1} parent=103 // pred_check_branch
          %746 = sbr.rel (%p744) target = $region112
        $region111: #{ladder_forward.1} parent=103 // pred_region
          %747 = dma.done [#allocation10], 7296
        $region112: #{ladder_forward.1} parent=103 // pred_fallthru
          _
        // Predicated region
        $region113: #{ladder_forward.1} parent=103 // pred_check
          %p748 = pneg %p169
        $region114: #{ladder_forward.1} parent=103 // pred_check_branch
          %750 = sbr.rel (%p748) target = $region116
        $region115: #{ladder_forward.1} parent=103 // pred_region
          %751 = dma.done [#allocation10], 4992
        $region116: #{ladder_forward.1} parent=103 // pred_fallthru
          _
        // Predicated region
        $region117: #{ladder_forward.1} parent=103 // pred_check
          %p752 = pneg %p211
        $region118: #{ladder_forward.1} parent=103 // pred_check_branch
          %754 = sbr.rel (%p752) target = $region120
        $region119: #{ladder_forward.1} parent=103 // pred_region
          %755 = dma.done [#allocation13], 256
        $region120: #{ladder_forward.1} parent=103 // pred_fallthru
          _
        // Predicated region
        $region121: #{ladder_forward.1} parent=103 // pred_check
          %p756 = pneg %p232
        $region122: #{ladder_forward.1} parent=103 // pred_check_branch
          %758 = sbr.rel (%p756) target = $region124
        $region123: #{ladder_forward.1} parent=103 // pred_region
          %759 = dma.done [#allocation13], 256
        $region124: #{ladder_forward.1} parent=103 // pred_fallthru
          _
        // Predicated region
        $region125: #{ladder_forward.1} parent=103 // pred_check
          %p760 = pneg %p253
        $region126: #{ladder_forward.1} parent=103 // pred_check_branch
          %762 = sbr.rel (%p760) target = $region128
        $region127: #{ladder_forward.1} parent=103 // pred_region
          %763 = dma.done [#allocation16], 7168
        $region128: #{ladder_forward.1} parent=103 // pred_fallthru
          _
        // Predicated region
        $region129: #{ladder_forward.1} parent=103 // pred_check
          %p764 = pneg %p295
        $region130: #{ladder_forward.1} parent=103 // pred_check_branch
          %766 = sbr.rel (%p764) target = $region132
        $region131: #{ladder_forward.1} parent=103 // pred_region
          %767 = dma.done [#allocation16], 3584
        $region132: #{ladder_forward.1} parent=103 // pred_fallthru
          _
        // Predicated region
        $region133: #{ladder_forward.1} parent=103 // pred_check
          %p768 = pneg %p337
        $region134: #{ladder_forward.1} parent=103 // pred_check_branch
          %770 = sbr.rel (%p768) target = $region136
        $region135: #{ladder_forward.1} parent=103 // pred_region
          %771 = dma.done [#allocation19], 512
        $region136: #{ladder_forward.1} parent=103 // pred_fallthru
          _
        // Predicated region
        $region137: #{ladder_forward.1} parent=103 // pred_check
          %p772 = pneg %p358
        $region138: #{ladder_forward.1} parent=103 // pred_check_branch
          %774 = sbr.rel (%p772) target = $region140
        $region139: #{ladder_forward.1} parent=103 // pred_region
          %775 = dma.done [#allocation19], 512
        $region140: #{ladder_forward.1} parent=103 // pred_fallthru
          _
        // Predicated region
        $region141: #{ladder_forward.1} parent=103 // pred_check
          %p776 = pneg %p421
        $region142: #{ladder_forward.1} parent=103 // pred_check_branch
          %778 = sbr.rel (%p776) target = $region144
        $region143: #{ladder_forward.1} parent=103 // pred_region
          %779 = dma.done [#allocation22], 9984
        $region144: #{ladder_forward.1} parent=103 // pred_fallthru
          _
        // Predicated region
        $region145: #{ladder_forward.1} parent=103 // pred_check
          %p780 = pneg %p463
        $region146: #{ladder_forward.1} parent=103 // pred_check_branch
          %782 = sbr.rel (%p780) target = $region148
        $region147: #{ladder_forward.1} parent=103 // pred_region
          %783 = dma.done [#allocation22], 7296
        $region148: #{ladder_forward.1} parent=103 // pred_fallthru
          _
        %p784 = scmp.lt.s32.totalorder %s43, 1
        %s785 = scalar_select %p784, %s43, 1
        %s786 = smul.addr %s785, 5
        %s787 = smul.addr %s786, 8
        %s788 = scalar_lea.vmem %s0, %s787
        %p789 = pneg %p64
        %p790 = pneg %p61
        %p791 = pneg %p85
        %p792 = pneg %p82
        %p793 = pneg %p106
        %p794 = pneg %p103
        %p795 = pneg %p127
        %p796 = pneg %p124
        %p797 = pneg %p148
        %p798 = pneg %p145
        %p799 = pneg %p169
        %p800 = pneg %p166
        %p801 = pneg %p190
        %p802 = pneg %p187
        %p803 = pneg %p211
        %p804 = pneg %p208
        %p805 = pneg %p232
        %p806 = pneg %p229
        %p807 = pneg %p253
        %p808 = pneg %p250
        %p809 = pneg %p274
        %p810 = pneg %p271
        %p811 = pneg %p295
        %p812 = pneg %p292
        %p813 = pneg %p316
        %p814 = pneg %p313
        %p815 = pneg %p337
        %p816 = pneg %p334
        %p817 = pneg %p358
        %p818 = pneg %p355
        %p819 = pneg %p379
        %p820 = pneg %p376
        %p821 = pneg %p400
        %p822 = pneg %p397
        %p823 = pneg %p421
        %p824 = pneg %p418
        %p825 = pneg %p442
        %p826 = pneg %p439
        %p827 = pneg %p463
        %p828 = pneg %p460
        %p829 = pneg %p484
        %p830 = pneg %p481
        %p831 = pneg %p510
        %p832 = pneg %p507
        %p833 = scmp.lt.s32.totalorder %s43, 1
        %s834 = scalar_select %p833, %s43, 1
        %s835 = smul.addr %s834, 5
        %s836 = smul.addr %s835, 8
        %s837 = scalar_lea.vmem %s21, %s836
        %p838 = pneg %p536
        %p839 = pneg %p533
        %s840 = sand.u32 %s523, 1
        %s841 = scalar_lea.sflag [#allocation8], %s840
        %s842 = sand.u32 %s523, 1
        %s843 = scalar_lea.vmem [#allocation24], %s842
        %p844 = scmp.lt.s32.totalorder %s43, 1
        %s845 = scalar_select %p844, %s43, 1
        %s846 = smul.addr %s845, 5
        %s847 = smul.addr %s846, 8
        %s848 = scalar_lea.vmem %s0, %s847
        %p849 = scmp.lt.s32.totalorder %s43, 1
        %s850 = scalar_select %p849, %s43, 1
        %s851 = smul.addr %s850, 5
        %s852 = smul.addr %s851, 8
        %s853 = scalar_lea.vmem %s21, %s852
        %v854 = vld [vmem:[%s848] sm:$0xff]
        %v855 = vld [vmem:[%s848 + $0x8] sm:$0xff]
        %v856 = vld [vmem:[%s848 + $0x10] sm:$0xff]
        %v857 = vld [vmem:[%s848 + $0x18] sm:$0xff]
        %v858 = vld [vmem:[%s848 + $0x20] sm:$0x3]
        %v859 = vld [vmem:[#allocation6] sm:$0xff]
        %v860 = vld [vmem:[#allocation6 + $0x8] sm:$0xff]
        %s861 = scalar_lea.vmem [#allocation6], 16
        %v862 = vld [vmem:[%s861] sm:$0xff]
        %v863 = vld [vmem:[%s861 + $0x8] sm:$0xff]
        %vm869 = vcmask 1046528
        %v870 = vrot.slane %v854, 1
        %v871 = vrot.slane %v855, 1
        %v872 = vsel %vm869, %v870, %v871
        %v873 = vrot.slane %v856, 1
        %v874 = vsel %vm869, %v871, %v873
        %v875 = vrot.slane %v857, 1
        %v876 = vsel %vm869, %v873, %v875
        %v877 = vrot.slane %v858, 1
        %v878 = vsel %vm869, %v875, %v877
        %vm879 = vcmask 64512
        %v880 = vsel %vm879, %v872, 0
        %v882 = vsel %vm879, %v874, 0
        %v884 = vsel %vm879, %v876, 0
        %v886 = vsel %vm879, %v878, 0
        %888 = vmatprep.subr.mxu0 0.0
        %889 = vmatpush1.msra.mxu0 0.0
        %890 = vmatprep.subr.mxu0 0.0
        %891 = vmatpush1.msra.mxu0 0.0
        %892 = vmatprep.subr.mxu0 0.0
        %893 = vmatpush1.msra.mxu0 0.0
        %894 = vmatprep.subr.mxu0 0.0
        %895 = vmatpush1.msra.mxu0 0.0
        %896 = vmatprep.subr.mxu0 0.0
        %897 = vmatpush1.msra.mxu0 0.0
        %898 = vmatprep.subr.mxu0 0.0
        %899 = vmatpush1.msra.mxu0 0.0
        %900 = vmatprep.subr.mxu0 0.0
        %901 = vmatpush1.msra.mxu0 0.0
        %902 = vmatprep.subr.mxu0 0.0
        %903 = vmatpush1.msra.mxu0 0.0
        %904 = vmatprep.subr.mxu0 0.0
        %905 = vmatpush1.msra.mxu0 0.0
        %906 = vmatprep.subr.mxu0 0.0
        %907 = vmatpush1.msra.mxu0 0.0
        %908 = vmatprep.subr.mxu0 0.0
        %909 = vmatpush1.msra.mxu0 0.0
        %910 = vmatprep.subr.mxu0 0.0
        %911 = vmatpush1.msra.mxu0 0.0
        %912 = vmatprep.subr.mxu0 0.0
        %913 = vmatpush1.msra.mxu0 0.0
        %914 = vmatprep.subr.mxu0 0.0
        %915 = vmatpush1.msra.mxu0 0.0
        %916 = vmatprep.subr.mxu0 0.0
        %917 = vmatpush1.msra.mxu0 0.0
        %918 = vmatprep.subr.mxu0 %v863
        %919 = vmatpush1.msra.mxu0 %v862
        %920 = vmatprep.subr.mxu0 0.0
        %921 = vmatpush2.msra.mxu0 0.0
        %922 = vmatprep.subr.mxu0 0.0
        %923 = vmatpush2.msra.mxu0 0.0
        %924 = vmatprep.subr.mxu0 0.0
        %925 = vmatpush2.msra.mxu0 0.0
        %926 = vmatprep.subr.mxu0 0.0
        %927 = vmatpush2.msra.mxu0 0.0
        %928 = vmatprep.subr.mxu0 0.0
        %929 = vmatpush2.msra.mxu0 0.0
        %930 = vmatprep.subr.mxu0 0.0
        %931 = vmatpush2.msra.mxu0 0.0
        %932 = vmatprep.subr.mxu0 0.0
        %933 = vmatpush2.msra.mxu0 0.0
        %934 = vmatprep.subr.mxu0 0.0
        %935 = vmatpush2.msra.mxu0 0.0
        %936 = vmatprep.subr.mxu0 0.0
        %937 = vmatpush2.msra.mxu0 0.0
        %938 = vmatprep.subr.mxu0 0.0
        %939 = vmatpush2.msra.mxu0 0.0
        %940 = vmatprep.subr.mxu0 0.0
        %941 = vmatpush2.msra.mxu0 0.0
        %942 = vmatprep.subr.mxu0 0.0
        %943 = vmatpush2.msra.mxu0 0.0
        %944 = vmatprep.subr.mxu0 0.0
        %945 = vmatpush2.msra.mxu0 0.0
        %946 = vmatprep.subr.mxu0 0.0
        %947 = vmatpush2.msra.mxu0 0.0
        %948 = vmatprep.subr.mxu0 0.0
        %949 = vmatpush2.msra.mxu0 0.0
        %950 = vmatprep.subr.mxu0 0.0
        %951 = vmatpush2.msra.mxu0 0.0
        %952 = vmatprep.mubr.f32.mxu0 0.0
        %953 = vmatmul.mubr.f32.gmra.mxu0 %v880
        %v954 = vpop.f32.mrf.mxu0
        %v955 = vadd.f32 0.0, %v954
        %v956 = vpop.f32.mrf.mxu0
        %v957 = vadd.f32 0.0, %v956
        %958 = vmatprep.mubr.f32.mxu0 0.0
        %959 = vmatmul.mubr.f32.gmra.mxu0 %v882
        %v960 = vpop.f32.mrf.mxu0
        %v961 = vadd.f32 0.0, %v960
        %v962 = vpop.f32.mrf.mxu0
        %v963 = vadd.f32 0.0, %v962
        %964 = vmatprep.mubr.f32.mxu0 0.0
        %965 = vmatmul.mubr.f32.gmra.mxu0 %v884
        %v966 = vpop.f32.mrf.mxu0
        %v967 = vadd.f32 0.0, %v966
        %v968 = vpop.f32.mrf.mxu0
        %v969 = vadd.f32 0.0, %v968
        %970 = vmatprep.mubr.f32.mxu0 0.0
        %971 = vmatmul.mubr.f32.gmra.mxu0 %v886
        %v972 = vpop.f32.mrf.mxu0
        %v973 = vadd.f32 0.0, %v972
        %v974 = vpop.f32.mrf.mxu0
        %v975 = vadd.f32 0.0, %v974
        %976 = vdwg.mxu0
        %v977 = vsel %vm879, %v854, 0
        %v979 = vsel %vm879, %v855, 0
        %v981 = vsel %vm879, %v856, 0
        %v983 = vsel %vm879, %v857, 0
        %985 = vmatprep.subr.mxu0 0.0
        %986 = vmatpush1.msra.mxu0 0.0
        %987 = vmatprep.subr.mxu0 0.0
        %988 = vmatpush1.msra.mxu0 0.0
        %989 = vmatprep.subr.mxu0 0.0
        %990 = vmatpush1.msra.mxu0 0.0
        %991 = vmatprep.subr.mxu0 0.0
        %992 = vmatpush1.msra.mxu0 0.0
        %993 = vmatprep.subr.mxu0 0.0
        %994 = vmatpush1.msra.mxu0 0.0
        %995 = vmatprep.subr.mxu0 0.0
        %996 = vmatpush1.msra.mxu0 0.0
        %997 = vmatprep.subr.mxu0 0.0
        %998 = vmatpush1.msra.mxu0 0.0
        %999 = vmatprep.subr.mxu0 0.0
        %1000 = vmatpush1.msra.mxu0 0.0
        %1001 = vmatprep.subr.mxu0 0.0
        %1002 = vmatpush1.msra.mxu0 0.0
        %1003 = vmatprep.subr.mxu0 0.0
        %1004 = vmatpush1.msra.mxu0 0.0
        %1005 = vmatprep.subr.mxu0 0.0
        %1006 = vmatpush1.msra.mxu0 0.0
        %1007 = vmatprep.subr.mxu0 0.0
        %1008 = vmatpush1.msra.mxu0 0.0
        %1009 = vmatprep.subr.mxu0 0.0
        %1010 = vmatpush1.msra.mxu0 0.0
        %1011 = vmatprep.subr.mxu0 0.0
        %1012 = vmatpush1.msra.mxu0 0.0
        %1013 = vmatprep.subr.mxu0 0.0
        %1014 = vmatpush1.msra.mxu0 0.0
        %1015 = vmatprep.subr.mxu0 %v860
        %1016 = vmatpush1.msra.mxu0 %v859
        %1017 = vmatprep.subr.mxu0 0.0
        %1018 = vmatpush2.msra.mxu0 0.0
        %1019 = vmatprep.subr.mxu0 0.0
        %1020 = vmatpush2.msra.mxu0 0.0
        %1021 = vmatprep.subr.mxu0 0.0
        %1022 = vmatpush2.msra.mxu0 0.0
        %1023 = vmatprep.subr.mxu0 0.0
        %1024 = vmatpush2.msra.mxu0 0.0
        %1025 = vmatprep.subr.mxu0 0.0
        %1026 = vmatpush2.msra.mxu0 0.0
        %1027 = vmatprep.subr.mxu0 0.0
        %1028 = vmatpush2.msra.mxu0 0.0
        %1029 = vmatprep.subr.mxu0 0.0
        %1030 = vmatpush2.msra.mxu0 0.0
        %1031 = vmatprep.subr.mxu0 0.0
        %1032 = vmatpush2.msra.mxu0 0.0
        %1033 = vmatprep.subr.mxu0 0.0
        %1034 = vmatpush2.msra.mxu0 0.0
        %1035 = vmatprep.subr.mxu0 0.0
        %1036 = vmatpush2.msra.mxu0 0.0
        %1037 = vmatprep.subr.mxu0 0.0
        %1038 = vmatpush2.msra.mxu0 0.0
        %1039 = vmatprep.subr.mxu0 0.0
        %1040 = vmatpush2.msra.mxu0 0.0
        %1041 = vmatprep.subr.mxu0 0.0
        %1042 = vmatpush2.msra.mxu0 0.0
        %1043 = vmatprep.subr.mxu0 0.0
        %1044 = vmatpush2.msra.mxu0 0.0
        %1045 = vmatprep.subr.mxu0 0.0
        %1046 = vmatpush2.msra.mxu0 0.0
        %1047 = vmatprep.subr.mxu0 0.0
        %1048 = vmatpush2.msra.mxu0 0.0
        %1049 = vmatprep.mubr.f32.mxu0 0.0
        %1050 = vmatmul.mubr.f32.gmra.mxu0 %v977
        %v1051 = vpop.f32.mrf.mxu0
        %v1052 = vadd.f32 %v955, %v1051
        %v1053 = vpop.f32.mrf.mxu0
        %v1054 = vadd.f32 %v957, %v1053
        %1055 = vmatprep.mubr.f32.mxu0 0.0
        %1056 = vmatmul.mubr.f32.gmra.mxu0 %v979
        %v1057 = vpop.f32.mrf.mxu0
        %v1058 = vadd.f32 %v961, %v1057
        %v1059 = vpop.f32.mrf.mxu0
        %v1060 = vadd.f32 %v963, %v1059
        %1061 = vmatprep.mubr.f32.mxu0 0.0
        %1062 = vmatmul.mubr.f32.gmra.mxu0 %v981
        %v1063 = vpop.f32.mrf.mxu0
        %v1064 = vadd.f32 %v967, %v1063
        %v1065 = vpop.f32.mrf.mxu0
        %v1066 = vadd.f32 %v969, %v1065
        %1067 = vmatprep.mubr.f32.mxu0 0.0
        %1068 = vmatmul.mubr.f32.gmra.mxu0 %v983
        %v1069 = vpop.f32.mrf.mxu0
        %v1070 = vadd.f32 %v973, %v1069
        %v1071 = vpop.f32.mrf.mxu0
        %v1072 = vadd.f32 %v975, %v1071
        %1073 = vdwg.mxu0
        %s1074 = scalar_lea.vmem [#allocation6], 32
        %v1075 = vld [vmem:[%s1074] sm:$0xff]
        %v1076 = vld [vmem:[%s1074 + $0x8] sm:$0xff]
        %vm1077 = vcmask 1045504
        %v1078 = vrot.slane %v854, 2
        %v1079 = vrot.slane %v855, 2
        %v1080 = vsel %vm1077, %v1078, %v1079
        %v1081 = vrot.slane %v856, 2
        %v1082 = vsel %vm1077, %v1079, %v1081
        %v1083 = vrot.slane %v857, 2
        %v1084 = vsel %vm1077, %v1081, %v1083
        %v1085 = vrot.slane %v858, 2
        %v1086 = vsel %vm1077, %v1083, %v1085
        %v1087 = vsel %vm879, %v1080, 0
        %v1089 = vsel %vm879, %v1082, 0
        %v1091 = vsel %vm879, %v1084, 0
        %v1093 = vsel %vm879, %v1086, 0
        %1095 = vmatprep.subr.mxu0 0.0
        %1096 = vmatpush1.msra.mxu0 0.0
        %1097 = vmatprep.subr.mxu0 0.0
        %1098 = vmatpush1.msra.mxu0 0.0
        %1099 = vmatprep.subr.mxu0 0.0
        %1100 = vmatpush1.msra.mxu0 0.0
        %1101 = vmatprep.subr.mxu0 0.0
        %1102 = vmatpush1.msra.mxu0 0.0
        %1103 = vmatprep.subr.mxu0 0.0
        %1104 = vmatpush1.msra.mxu0 0.0
        %1105 = vmatprep.subr.mxu0 0.0
        %1106 = vmatpush1.msra.mxu0 0.0
        %1107 = vmatprep.subr.mxu0 0.0
        %1108 = vmatpush1.msra.mxu0 0.0
        %1109 = vmatprep.subr.mxu0 0.0
        %1110 = vmatpush1.msra.mxu0 0.0
        %1111 = vmatprep.subr.mxu0 0.0
        %1112 = vmatpush1.msra.mxu0 0.0
        %1113 = vmatprep.subr.mxu0 0.0
        %1114 = vmatpush1.msra.mxu0 0.0
        %1115 = vmatprep.subr.mxu0 0.0
        %1116 = vmatpush1.msra.mxu0 0.0
        %1117 = vmatprep.subr.mxu0 0.0
        %1118 = vmatpush1.msra.mxu0 0.0
        %1119 = vmatprep.subr.mxu0 0.0
        %1120 = vmatpush1.msra.mxu0 0.0
        %1121 = vmatprep.subr.mxu0 0.0
        %1122 = vmatpush1.msra.mxu0 0.0
        %1123 = vmatprep.subr.mxu0 0.0
        %1124 = vmatpush1.msra.mxu0 0.0
        %1125 = vmatprep.subr.mxu0 %v1076
        %1126 = vmatpush1.msra.mxu0 %v1075
        %1127 = vmatprep.subr.mxu0 0.0
        %1128 = vmatpush2.msra.mxu0 0.0
        %1129 = vmatprep.subr.mxu0 0.0
        %1130 = vmatpush2.msra.mxu0 0.0
        %1131 = vmatprep.subr.mxu0 0.0
        %1132 = vmatpush2.msra.mxu0 0.0
        %1133 = vmatprep.subr.mxu0 0.0
        %1134 = vmatpush2.msra.mxu0 0.0
        %1135 = vmatprep.subr.mxu0 0.0
        %1136 = vmatpush2.msra.mxu0 0.0
        %1137 = vmatprep.subr.mxu0 0.0
        %1138 = vmatpush2.msra.mxu0 0.0
        %1139 = vmatprep.subr.mxu0 0.0
        %1140 = vmatpush2.msra.mxu0 0.0
        %1141 = vmatprep.subr.mxu0 0.0
        %1142 = vmatpush2.msra.mxu0 0.0
        %1143 = vmatprep.subr.mxu0 0.0
        %1144 = vmatpush2.msra.mxu0 0.0
        %1145 = vmatprep.subr.mxu0 0.0
        %1146 = vmatpush2.msra.mxu0 0.0
        %1147 = vmatprep.subr.mxu0 0.0
        %1148 = vmatpush2.msra.mxu0 0.0
        %1149 = vmatprep.subr.mxu0 0.0
        %1150 = vmatpush2.msra.mxu0 0.0
        %1151 = vmatprep.subr.mxu0 0.0
        %1152 = vmatpush2.msra.mxu0 0.0
        %1153 = vmatprep.subr.mxu0 0.0
        %1154 = vmatpush2.msra.mxu0 0.0
        %1155 = vmatprep.subr.mxu0 0.0
        %1156 = vmatpush2.msra.mxu0 0.0
        %1157 = vmatprep.subr.mxu0 0.0
        %1158 = vmatpush2.msra.mxu0 0.0
        %1159 = vmatprep.mubr.f32.mxu0 0.0
        %1160 = vmatmul.mubr.f32.gmra.mxu0 %v1087
        %v1161 = vpop.f32.mrf.mxu0
        %v1162 = vadd.f32 0.0, %v1161
        %v1163 = vpop.f32.mrf.mxu0
        %v1164 = vadd.f32 0.0, %v1163
        %1165 = vmatprep.mubr.f32.mxu0 0.0
        %1166 = vmatmul.mubr.f32.gmra.mxu0 %v1089
        %v1167 = vpop.f32.mrf.mxu0
        %v1168 = vadd.f32 0.0, %v1167
        %v1169 = vpop.f32.mrf.mxu0
        %v1170 = vadd.f32 0.0, %v1169
        %1171 = vmatprep.mubr.f32.mxu0 0.0
        %1172 = vmatmul.mubr.f32.gmra.mxu0 %v1091
        %v1173 = vpop.f32.mrf.mxu0
        %v1174 = vadd.f32 0.0, %v1173
        %v1175 = vpop.f32.mrf.mxu0
        %v1176 = vadd.f32 0.0, %v1175
        %1177 = vmatprep.mubr.f32.mxu0 0.0
        %1178 = vmatmul.mubr.f32.gmra.mxu0 %v1093
        %v1179 = vpop.f32.mrf.mxu0
        %v1180 = vadd.f32 0.0, %v1179
        %v1181 = vpop.f32.mrf.mxu0
        %v1182 = vadd.f32 0.0, %v1181
        %1183 = vdwg.mxu0
        %v1184 = vadd.f32 %v1052, %v1162
        %v1185 = vadd.f32 %v1054, %v1164
        %v1186 = vadd.f32 %v1058, %v1168
        %v1187 = vadd.f32 %v1060, %v1170
        %v1188 = vadd.f32 %v1064, %v1174
        %v1189 = vadd.f32 %v1066, %v1176
        %v1190 = vadd.f32 %v1070, %v1180
        %v1191 = vadd.f32 %v1072, %v1182
        %v1192 = vld [vmem:[%s2] sm:$0x3]
        %v1194 = vlaneseq
        %v1195 = vshrl.u32 %v1194, 7
        %v1196 = vsub.s32 0, %v1195
        %v1197 = vrot.slane %v1192, %v1196
        %v1198 = vlaneseq
        %v1199 = vshrl.u32 %v1198, 7
        %v1200 = vsub.s32 1, %v1199
        %v1201 = vrot.slane %v1192, %v1200
        %v1204 = vadd.f32 %v1184, %v1197
        %v1205 = vadd.f32 %v1185, %v1201
        %v1206 = vadd.f32 %v1186, %v1197
        %v1207 = vadd.f32 %v1187, %v1201
        %v1208 = vadd.f32 %v1188, %v1197
        %v1209 = vadd.f32 %v1189, %v1201
        %v1210 = vadd.f32 %v1190, %v1197
        %v1211 = vadd.f32 %v1191, %v1201
        %v1212 = vmax.f32 %v1204, 0.0
        %v1213 = vmax.f32 %v1205, 0.0
        %v1214 = vmax.f32 %v1206, 0.0
        %v1215 = vmax.f32 %v1207, 0.0
        %v1216 = vmax.f32 %v1208, 0.0
        %v1217 = vmax.f32 %v1209, 0.0
        %v1218 = vmax.f32 %v1210, 0.0
        %v1219 = vmax.f32 %v1211, 0.0
        %v1220 = vld [vmem:[#allocation9] sm:$0xff]
        %v1221 = vld [vmem:[#allocation9 + $0x8] sm:$0xff]
        %v1222 = vld [vmem:[#allocation9 + $0x10] sm:$0xff]
        %v1223 = vld [vmem:[#allocation9 + $0x18] sm:$0xff]
        %v1224 = vld [vmem:[#allocation9 + $0x20] sm:$0xff]
        %v1225 = vld [vmem:[#allocation9 + $0x28] sm:$0xff]
        %v1226 = vld [vmem:[#allocation9 + $0x30] sm:$0xff]
        %v1227 = vld [vmem:[#allocation9 + $0x38] sm:$0xff]
        %v1228 = vld [vmem:[#allocation9 + $0x40] sm:$0xff]
        %v1229 = vld [vmem:[#allocation9 + $0x48] sm:$0xff]
        %v1230 = vld [vmem:[#allocation9 + $0x50] sm:$0xff]
        %v1231 = vld [vmem:[#allocation9 + $0x58] sm:$0xff]
        %v1232 = vld [vmem:[#allocation9 + $0x60] sm:$0xff]
        %v1233 = vld [vmem:[#allocation9 + $0x68] sm:$0xff]
        %v1234 = vld [vmem:[#allocation9 + $0x70] sm:$0xff]
        %v1235 = vld [vmem:[#allocation9 + $0x78] sm:$0xff]
        %v1236 = vld [vmem:[#allocation9 + $0x80] sm:$0xff]
        %v1237 = vld [vmem:[#allocation9 + $0x88] sm:$0xff]
        %v1238 = vld [vmem:[#allocation9 + $0x90] sm:$0x3f]
        %s1239 = scalar_lea.vmem [#allocation9], 152
        %v1240 = vld [vmem:[%s1239] sm:$0xff]
        %v1241 = vld [vmem:[%s1239 + $0x8] sm:$0xff]
        %v1242 = vld [vmem:[%s1239 + $0x10] sm:$0xff]
        %v1243 = vld [vmem:[%s1239 + $0x18] sm:$0xff]
        %v1244 = vld [vmem:[%s1239 + $0x20] sm:$0xff]
        %v1245 = vld [vmem:[%s1239 + $0x28] sm:$0xff]
        %v1246 = vld [vmem:[%s1239 + $0x30] sm:$0xff]
        %v1247 = vld [vmem:[%s1239 + $0x38] sm:$0xff]
        %v1248 = vld [vmem:[%s1239 + $0x40] sm:$0xff]
        %v1249 = vld [vmem:[%s1239 + $0x48] sm:$0xff]
        %v1250 = vld [vmem:[%s1239 + $0x50] sm:$0xff]
        %v1251 = vld [vmem:[%s1239 + $0x58] sm:$0xff]
        %v1252 = vld [vmem:[%s1239 + $0x60] sm:$0xff]
        %v1253 = vld [vmem:[%s1239 + $0x68] sm:$0xff]
        %v1254 = vld [vmem:[%s1239 + $0x70] sm:$0xff]
        %v1255 = vld [vmem:[%s1239 + $0x78] sm:$0xff]
        %v1256 = vld [vmem:[%s1239 + $0x80] sm:$0xff]
        %v1257 = vld [vmem:[%s1239 + $0x88] sm:$0xff]
        %v1258 = vld [vmem:[%s1239 + $0x90] sm:$0x3f]
        %v1267 = vrot.slane %v1212, 1
        %v1268 = vrot.slane %v1214, 1
        %v1269 = vsel %vm869, %v1267, %v1268
        %v1270 = vrot.slane %v1213, 1
        %v1271 = vrot.slane %v1215, 1
        %v1272 = vsel %vm869, %v1270, %v1271
        %v1273 = vrot.slane %v1216, 1
        %v1274 = vsel %vm869, %v1268, %v1273
        %v1275 = vrot.slane %v1217, 1
        %v1276 = vsel %vm869, %v1271, %v1275
        %v1277 = vrot.slane %v1218, 1
        %v1278 = vsel %vm869, %v1273, %v1277
        %v1279 = vrot.slane %v1219, 1
        %v1280 = vsel %vm869, %v1275, %v1279
        %vm1285 = vcmask 179200
        %v1286 = vsel %vm1285, %v1272, 0
        %v1288 = vsel %vm1285, %v1276, 0
        %v1290 = vsel %vm1285, %v1280, 0
        %v1292 = vsel %vm1285, %v1279, 0
        %v1295 = vsel %vm1077, %v1258, 0
        %1297 = vmatprep.subr.mxu0 0.0
        %1298 = vmatpush1.msra.mxu0 %v1255
        %1299 = vmatprep.subr.mxu0 0.0
        %1300 = vmatpush1.msra.mxu0 %v1254
        %1301 = vmatprep.subr.mxu0 0.0
        %1302 = vmatpush1.msra.mxu0 %v1253
        %1303 = vmatprep.subr.mxu0 0.0
        %1304 = vmatpush1.msra.mxu0 %v1252
        %1305 = vmatprep.subr.mxu0 0.0
        %1306 = vmatpush1.msra.mxu0 %v1251
        %1307 = vmatprep.subr.mxu0 0.0
        %1308 = vmatpush1.msra.mxu0 %v1250
        %1309 = vmatprep.subr.mxu0 0.0
        %1310 = vmatpush1.msra.mxu0 %v1249
        %1311 = vmatprep.subr.mxu0 0.0
        %1312 = vmatpush1.msra.mxu0 %v1248
        %1313 = vmatprep.subr.mxu0 0.0
        %1314 = vmatpush1.msra.mxu0 %v1247
        %1315 = vmatprep.subr.mxu0 0.0
        %1316 = vmatpush1.msra.mxu0 %v1246
        %1317 = vmatprep.subr.mxu0 0.0
        %1318 = vmatpush1.msra.mxu0 %v1245
        %1319 = vmatprep.subr.mxu0 0.0
        %1320 = vmatpush1.msra.mxu0 %v1244
        %1321 = vmatprep.subr.mxu0 0.0
        %1322 = vmatpush1.msra.mxu0 %v1243
        %1323 = vmatprep.subr.mxu0 0.0
        %1324 = vmatpush1.msra.mxu0 %v1242
        %1325 = vmatprep.subr.mxu0 0.0
        %1326 = vmatpush1.msra.mxu0 %v1241
        %1327 = vmatprep.subr.mxu0 0.0
        %1328 = vmatpush1.msra.mxu0 %v1240
        %1329 = vmatprep.subr.mxu0 0.0
        %1330 = vmatpush2.msra.mxu0 0.0
        %1331 = vmatprep.subr.mxu0 0.0
        %1332 = vmatpush2.msra.mxu0 0.0
        %1333 = vmatprep.subr.mxu0 0.0
        %1334 = vmatpush2.msra.mxu0 0.0
        %1335 = vmatprep.subr.mxu0 0.0
        %1336 = vmatpush2.msra.mxu0 0.0
        %1337 = vmatprep.subr.mxu0 0.0
        %1338 = vmatpush2.msra.mxu0 0.0
        %1339 = vmatprep.subr.mxu0 0.0
        %1340 = vmatpush2.msra.mxu0 0.0
        %1341 = vmatprep.subr.mxu0 0.0
        %1342 = vmatpush2.msra.mxu0 0.0
        %1343 = vmatprep.subr.mxu0 0.0
        %1344 = vmatpush2.msra.mxu0 0.0
        %1345 = vmatprep.subr.mxu0 0.0
        %1346 = vmatpush2.msra.mxu0 0.0
        %1347 = vmatprep.subr.mxu0 0.0
        %1348 = vmatpush2.msra.mxu0 0.0
        %1349 = vmatprep.subr.mxu0 0.0
        %1350 = vmatpush2.msra.mxu0 0.0
        %1351 = vmatprep.subr.mxu0 0.0
        %1352 = vmatpush2.msra.mxu0 0.0
        %1353 = vmatprep.subr.mxu0 0.0
        %1354 = vmatpush2.msra.mxu0 0.0
        %1355 = vmatprep.subr.mxu0 0.0
        %1356 = vmatpush2.msra.mxu0 %v1295
        %1357 = vmatprep.subr.mxu0 0.0
        %1358 = vmatpush2.msra.mxu0 %v1257
        %1359 = vmatprep.subr.mxu0 0.0
        %1360 = vmatpush2.msra.mxu0 %v1256
        %1361 = vmatprep.mubr.f32.mxu0 %v1286
        %1362 = vmatmul.mubr.f32.gmra.mxu0 %v1269
        %v1363 = vpop.f32.mrf.mxu0
        %v1364 = vadd.f32 0.0, %v1363
        %v1365 = vpop.f32.mrf.mxu0
        %1366 = vmatprep.mubr.f32.mxu0 %v1288
        %1367 = vmatmul.mubr.f32.gmra.mxu0 %v1274
        %v1368 = vpop.f32.mrf.mxu0
        %v1369 = vadd.f32 0.0, %v1368
        %v1370 = vpop.f32.mrf.mxu0
        %1371 = vmatprep.mubr.f32.mxu0 %v1290
        %1372 = vmatmul.mubr.f32.gmra.mxu0 %v1278
        %v1373 = vpop.f32.mrf.mxu0
        %v1374 = vadd.f32 0.0, %v1373
        %v1375 = vpop.f32.mrf.mxu0
        %1376 = vmatprep.mubr.f32.mxu0 %v1292
        %1377 = vmatmul.mubr.f32.gmra.mxu0 %v1277
        %v1378 = vpop.f32.mrf.mxu0
        %v1379 = vadd.f32 0.0, %v1378
        %v1380 = vpop.f32.mrf.mxu0
        %1381 = vdwg.mxu0
        %v1382 = vsel %vm1285, %v1213, 0
        %v1384 = vsel %vm1285, %v1215, 0
        %v1386 = vsel %vm1285, %v1217, 0
        %v1388 = vsel %vm1285, %v1219, 0
        %v1391 = vsel %vm1077, %v1238, 0
        %1393 = vmatprep.subr.mxu0 0.0
        %1394 = vmatpush1.msra.mxu0 %v1235
        %1395 = vmatprep.subr.mxu0 0.0
        %1396 = vmatpush1.msra.mxu0 %v1234
        %1397 = vmatprep.subr.mxu0 0.0
        %1398 = vmatpush1.msra.mxu0 %v1233
        %1399 = vmatprep.subr.mxu0 0.0
        %1400 = vmatpush1.msra.mxu0 %v1232
        %1401 = vmatprep.subr.mxu0 0.0
        %1402 = vmatpush1.msra.mxu0 %v1231
        %1403 = vmatprep.subr.mxu0 0.0
        %1404 = vmatpush1.msra.mxu0 %v1230
        %1405 = vmatprep.subr.mxu0 0.0
        %1406 = vmatpush1.msra.mxu0 %v1229
        %1407 = vmatprep.subr.mxu0 0.0
        %1408 = vmatpush1.msra.mxu0 %v1228
        %1409 = vmatprep.subr.mxu0 0.0
        %1410 = vmatpush1.msra.mxu0 %v1227
        %1411 = vmatprep.subr.mxu0 0.0
        %1412 = vmatpush1.msra.mxu0 %v1226
        %1413 = vmatprep.subr.mxu0 0.0
        %1414 = vmatpush1.msra.mxu0 %v1225
        %1415 = vmatprep.subr.mxu0 0.0
        %1416 = vmatpush1.msra.mxu0 %v1224
        %1417 = vmatprep.subr.mxu0 0.0
        %1418 = vmatpush1.msra.mxu0 %v1223
        %1419 = vmatprep.subr.mxu0 0.0
        %1420 = vmatpush1.msra.mxu0 %v1222
        %1421 = vmatprep.subr.mxu0 0.0
        %1422 = vmatpush1.msra.mxu0 %v1221
        %1423 = vmatprep.subr.mxu0 0.0
        %1424 = vmatpush1.msra.mxu0 %v1220
        %1425 = vmatprep.subr.mxu0 0.0
        %1426 = vmatpush2.msra.mxu0 0.0
        %1427 = vmatprep.subr.mxu0 0.0
        %1428 = vmatpush2.msra.mxu0 0.0
        %1429 = vmatprep.subr.mxu0 0.0
        %1430 = vmatpush2.msra.mxu0 0.0
        %1431 = vmatprep.subr.mxu0 0.0
        %1432 = vmatpush2.msra.mxu0 0.0
        %1433 = vmatprep.subr.mxu0 0.0
        %1434 = vmatpush2.msra.mxu0 0.0
        %1435 = vmatprep.subr.mxu0 0.0
        %1436 = vmatpush2.msra.mxu0 0.0
        %1437 = vmatprep.subr.mxu0 0.0
        %1438 = vmatpush2.msra.mxu0 0.0
        %1439 = vmatprep.subr.mxu0 0.0
        %1440 = vmatpush2.msra.mxu0 0.0
        %1441 = vmatprep.subr.mxu0 0.0
        %1442 = vmatpush2.msra.mxu0 0.0
        %1443 = vmatprep.subr.mxu0 0.0
        %1444 = vmatpush2.msra.mxu0 0.0
        %1445 = vmatprep.subr.mxu0 0.0
        %1446 = vmatpush2.msra.mxu0 0.0
        %1447 = vmatprep.subr.mxu0 0.0
        %1448 = vmatpush2.msra.mxu0 0.0
        %1449 = vmatprep.subr.mxu0 0.0
        %1450 = vmatpush2.msra.mxu0 0.0
        %1451 = vmatprep.subr.mxu0 0.0
        %1452 = vmatpush2.msra.mxu0 %v1391
        %1453 = vmatprep.subr.mxu0 0.0
        %1454 = vmatpush2.msra.mxu0 %v1237
        %1455 = vmatprep.subr.mxu0 0.0
        %1456 = vmatpush2.msra.mxu0 %v1236
        %1457 = vmatprep.mubr.f32.mxu0 %v1382
        %1458 = vmatmul.mubr.f32.gmra.mxu0 %v1212
        %v1459 = vpop.f32.mrf.mxu0
        %v1460 = vadd.f32 %v1364, %v1459
        %v1461 = vpop.f32.mrf.mxu0
        %1462 = vmatprep.mubr.f32.mxu0 %v1384
        %1463 = vmatmul.mubr.f32.gmra.mxu0 %v1214
        %v1464 = vpop.f32.mrf.mxu0
        %v1465 = vadd.f32 %v1369, %v1464
        %v1466 = vpop.f32.mrf.mxu0
        %1467 = vmatprep.mubr.f32.mxu0 %v1386
        %1468 = vmatmul.mubr.f32.gmra.mxu0 %v1216
        %v1469 = vpop.f32.mrf.mxu0
        %v1470 = vadd.f32 %v1374, %v1469
        %v1471 = vpop.f32.mrf.mxu0
        %1472 = vmatprep.mubr.f32.mxu0 %v1388
        %1473 = vmatmul.mubr.f32.gmra.mxu0 %v1218
        %v1474 = vpop.f32.mrf.mxu0
        %v1475 = vadd.f32 %v1379, %v1474
        %v1476 = vpop.f32.mrf.mxu0
        %1477 = vdwg.mxu0
        %s1478 = scalar_lea.vmem [#allocation9], 304
        %v1479 = vld [vmem:[%s1478] sm:$0xff]
        %v1480 = vld [vmem:[%s1478 + $0x8] sm:$0xff]
        %v1481 = vld [vmem:[%s1478 + $0x10] sm:$0xff]
        %v1482 = vld [vmem:[%s1478 + $0x18] sm:$0xff]
        %v1483 = vld [vmem:[%s1478 + $0x20] sm:$0xff]
        %v1484 = vld [vmem:[%s1478 + $0x28] sm:$0xff]
        %v1485 = vld [vmem:[%s1478 + $0x30] sm:$0xff]
        %v1486 = vld [vmem:[%s1478 + $0x38] sm:$0xff]
        %v1487 = vld [vmem:[%s1478 + $0x40] sm:$0xff]
        %v1488 = vld [vmem:[%s1478 + $0x48] sm:$0xff]
        %v1489 = vld [vmem:[%s1478 + $0x50] sm:$0xff]
        %v1490 = vld [vmem:[%s1478 + $0x58] sm:$0xff]
        %v1491 = vld [vmem:[%s1478 + $0x60] sm:$0xff]
        %v1492 = vld [vmem:[%s1478 + $0x68] sm:$0xff]
        %v1493 = vld [vmem:[%s1478 + $0x70] sm:$0xff]
        %v1494 = vld [vmem:[%s1478 + $0x78] sm:$0xff]
        %v1495 = vld [vmem:[%s1478 + $0x80] sm:$0xff]
        %v1496 = vld [vmem:[%s1478 + $0x88] sm:$0xff]
        %v1497 = vld [vmem:[%s1478 + $0x90] sm:$0x3f]
        %v1498 = vrot.slane %v1212, 2
        %v1499 = vrot.slane %v1214, 2
        %v1500 = vsel %vm1077, %v1498, %v1499
        %v1501 = vrot.slane %v1213, 2
        %v1502 = vrot.slane %v1215, 2
        %v1503 = vsel %vm1077, %v1501, %v1502
        %v1504 = vrot.slane %v1216, 2
        %v1505 = vsel %vm1077, %v1499, %v1504
        %v1506 = vrot.slane %v1217, 2
        %v1507 = vsel %vm1077, %v1502, %v1506
        %v1508 = vrot.slane %v1218, 2
        %v1509 = vsel %vm1077, %v1504, %v1508
        %v1510 = vrot.slane %v1219, 2
        %v1511 = vsel %vm1077, %v1506, %v1510
        %v1516 = vsel %vm1285, %v1503, 0
        %v1518 = vsel %vm1285, %v1507, 0
        %v1520 = vsel %vm1285, %v1511, 0
        %v1522 = vsel %vm1285, %v1510, 0
        %v1525 = vsel %vm1077, %v1497, 0
        %1527 = vmatprep.subr.mxu0 0.0
        %1528 = vmatpush1.msra.mxu0 %v1494
        %1529 = vmatprep.subr.mxu0 0.0
        %1530 = vmatpush1.msra.mxu0 %v1493
        %1531 = vmatprep.subr.mxu0 0.0
        %1532 = vmatpush1.msra.mxu0 %v1492
        %1533 = vmatprep.subr.mxu0 0.0
        %1534 = vmatpush1.msra.mxu0 %v1491
        %1535 = vmatprep.subr.mxu0 0.0
        %1536 = vmatpush1.msra.mxu0 %v1490
        %1537 = vmatprep.subr.mxu0 0.0
        %1538 = vmatpush1.msra.mxu0 %v1489
        %1539 = vmatprep.subr.mxu0 0.0
        %1540 = vmatpush1.msra.mxu0 %v1488
        %1541 = vmatprep.subr.mxu0 0.0
        %1542 = vmatpush1.msra.mxu0 %v1487
        %1543 = vmatprep.subr.mxu0 0.0
        %1544 = vmatpush1.msra.mxu0 %v1486
        %1545 = vmatprep.subr.mxu0 0.0
        %1546 = vmatpush1.msra.mxu0 %v1485
        %1547 = vmatprep.subr.mxu0 0.0
        %1548 = vmatpush1.msra.mxu0 %v1484
        %1549 = vmatprep.subr.mxu0 0.0
        %1550 = vmatpush1.msra.mxu0 %v1483
        %1551 = vmatprep.subr.mxu0 0.0
        %1552 = vmatpush1.msra.mxu0 %v1482
        %1553 = vmatprep.subr.mxu0 0.0
        %1554 = vmatpush1.msra.mxu0 %v1481
        %1555 = vmatprep.subr.mxu0 0.0
        %1556 = vmatpush1.msra.mxu0 %v1480
        %1557 = vmatprep.subr.mxu0 0.0
        %1558 = vmatpush1.msra.mxu0 %v1479
        %1559 = vmatprep.subr.mxu0 0.0
        %1560 = vmatpush2.msra.mxu0 0.0
        %1561 = vmatprep.subr.mxu0 0.0
        %1562 = vmatpush2.msra.mxu0 0.0
        %1563 = vmatprep.subr.mxu0 0.0
        %1564 = vmatpush2.msra.mxu0 0.0
        %1565 = vmatprep.subr.mxu0 0.0
        %1566 = vmatpush2.msra.mxu0 0.0
        %1567 = vmatprep.subr.mxu0 0.0
        %1568 = vmatpush2.msra.mxu0 0.0
        %1569 = vmatprep.subr.mxu0 0.0
        %1570 = vmatpush2.msra.mxu0 0.0
        %1571 = vmatprep.subr.mxu0 0.0
        %1572 = vmatpush2.msra.mxu0 0.0
        %1573 = vmatprep.subr.mxu0 0.0
        %1574 = vmatpush2.msra.mxu0 0.0
        %1575 = vmatprep.subr.mxu0 0.0
        %1576 = vmatpush2.msra.mxu0 0.0
        %1577 = vmatprep.subr.mxu0 0.0
        %1578 = vmatpush2.msra.mxu0 0.0
        %1579 = vmatprep.subr.mxu0 0.0
        %1580 = vmatpush2.msra.mxu0 0.0
        %1581 = vmatprep.subr.mxu0 0.0
        %1582 = vmatpush2.msra.mxu0 0.0
        %1583 = vmatprep.subr.mxu0 0.0
        %1584 = vmatpush2.msra.mxu0 0.0
        %1585 = vmatprep.subr.mxu0 0.0
        %1586 = vmatpush2.msra.mxu0 %v1525
        %1587 = vmatprep.subr.mxu0 0.0
        %1588 = vmatpush2.msra.mxu0 %v1496
        %1589 = vmatprep.subr.mxu0 0.0
        %1590 = vmatpush2.msra.mxu0 %v1495
        %1591 = vmatprep.mubr.f32.mxu0 %v1516
        %1592 = vmatmul.mubr.f32.gmra.mxu0 %v1500
        %v1593 = vpop.f32.mrf.mxu0
        %v1594 = vadd.f32 0.0, %v1593
        %v1595 = vpop.f32.mrf.mxu0
        %1596 = vmatprep.mubr.f32.mxu0 %v1518
        %1597 = vmatmul.mubr.f32.gmra.mxu0 %v1505
        %v1598 = vpop.f32.mrf.mxu0
        %v1599 = vadd.f32 0.0, %v1598
        %v1600 = vpop.f32.mrf.mxu0
        %1601 = vmatprep.mubr.f32.mxu0 %v1520
        %1602 = vmatmul.mubr.f32.gmra.mxu0 %v1509
        %v1603 = vpop.f32.mrf.mxu0
        %v1604 = vadd.f32 0.0, %v1603
        %v1605 = vpop.f32.mrf.mxu0
        %1606 = vmatprep.mubr.f32.mxu0 %v1522
        %1607 = vmatmul.mubr.f32.gmra.mxu0 %v1508
        %v1608 = vpop.f32.mrf.mxu0
        %v1609 = vadd.f32 0.0, %v1608
        %v1610 = vpop.f32.mrf.mxu0
        %1611 = vdwg.mxu0
        %v1612 = vadd.f32 %v1460, %v1594
        %v1613 = vadd.f32 %v1465, %v1599
        %v1614 = vadd.f32 %v1470, %v1604
        %v1615 = vadd.f32 %v1475, %v1609
        %v1616 = vld [vmem:[%s4] sm:$0x1]
        %v1618 = vlaneseq
        %v1619 = vshrl.u32 %v1618, 7
        %v1620 = vsub.s32 0, %v1619
        %v1621 = vrot.slane %v1616, %v1620
        %v1623 = vadd.f32 %v1612, %v1621
        %v1624 = vadd.f32 %v1613, %v1621
        %v1625 = vadd.f32 %v1614, %v1621
        %v1626 = vadd.f32 %v1615, %v1621
        %v1627 = vmax.f32 %v1623, 0.0
        %v1628 = vmax.f32 %v1624, 0.0
        %v1629 = vmax.f32 %v1625, 0.0
        %v1630 = vmax.f32 %v1626, 0.0
        %v1631 = vld [vmem:[#allocation11] sm:$0xff]
        %v1632 = vld [vmem:[#allocation11 + $0x8] sm:$0xff]
        %v1633 = vld [vmem:[#allocation11 + $0x10] sm:$0xff]
        %v1634 = vld [vmem:[#allocation11 + $0x18] sm:$0xff]
        %v1635 = vld [vmem:[#allocation11 + $0x20] sm:$0xff]
        %v1636 = vld [vmem:[#allocation11 + $0x28] sm:$0xff]
        %v1637 = vld [vmem:[#allocation11 + $0x30] sm:$0xff]
        %v1638 = vld [vmem:[#allocation11 + $0x38] sm:$0xff]
        %v1639 = vld [vmem:[#allocation11 + $0x40] sm:$0xff]
        %v1640 = vld [vmem:[#allocation11 + $0x48] sm:$0xff]
        %v1641 = vld [vmem:[#allocation11 + $0x50] sm:$0xff]
        %v1642 = vld [vmem:[#allocation11 + $0x58] sm:$0xff]
        %v1643 = vld [vmem:[#allocation11 + $0x60] sm:$0xf]
        %s1644 = scalar_lea.vmem [#allocation11], 104
        %v1645 = vld [vmem:[%s1644] sm:$0xff]
        %v1646 = vld [vmem:[%s1644 + $0x8] sm:$0xff]
        %v1647 = vld [vmem:[%s1644 + $0x10] sm:$0xff]
        %v1648 = vld [vmem:[%s1644 + $0x18] sm:$0xff]
        %v1649 = vld [vmem:[%s1644 + $0x20] sm:$0xff]
        %v1650 = vld [vmem:[%s1644 + $0x28] sm:$0xff]
        %v1651 = vld [vmem:[%s1644 + $0x30] sm:$0xff]
        %v1652 = vld [vmem:[%s1644 + $0x38] sm:$0xff]
        %v1653 = vld [vmem:[%s1644 + $0x40] sm:$0xff]
        %v1654 = vld [vmem:[%s1644 + $0x48] sm:$0xff]
        %v1655 = vld [vmem:[%s1644 + $0x50] sm:$0xff]
        %v1656 = vld [vmem:[%s1644 + $0x58] sm:$0xff]
        %v1657 = vld [vmem:[%s1644 + $0x60] sm:$0xf]
        %v1662 = vrot.slane %v1627, 1
        %v1663 = vrot.slane %v1628, 1
        %v1664 = vsel %vm869, %v1662, %v1663
        %v1665 = vrot.slane %v1629, 1
        %v1666 = vsel %vm869, %v1663, %v1665
        %v1667 = vrot.slane %v1630, 1
        %v1668 = vsel %vm869, %v1665, %v1667
        %vm1669 = vcmask 818176
        %v1670 = vsel %vm1669, %v1664, 0
        %v1672 = vsel %vm1669, %v1666, 0
        %v1674 = vsel %vm1669, %v1668, 0
        %v1676 = vsel %vm1669, %v1667, 0
        %vm1678 = vcmask 1043456
        %v1680 = vsel %vm1678, %v1657, 0
        %1682 = vmatprep.subr.mxu0 0.0
        %1683 = vmatpush1.msra.mxu0 0.0
        %1684 = vmatprep.subr.mxu0 0.0
        %1685 = vmatpush1.msra.mxu0 0.0
        %1686 = vmatprep.subr.mxu0 0.0
        %1687 = vmatpush1.msra.mxu0 0.0
        %1688 = vmatprep.subr.mxu0 0.0
        %1689 = vmatpush1.msra.mxu0 %v1680
        %1690 = vmatprep.subr.mxu0 0.0
        %1691 = vmatpush1.msra.mxu0 %v1656
        %1692 = vmatprep.subr.mxu0 0.0
        %1693 = vmatpush1.msra.mxu0 %v1655
        %1694 = vmatprep.subr.mxu0 0.0
        %1695 = vmatpush1.msra.mxu0 %v1654
        %1696 = vmatprep.subr.mxu0 0.0
        %1697 = vmatpush1.msra.mxu0 %v1653
        %1698 = vmatprep.subr.mxu0 0.0
        %1699 = vmatpush1.msra.mxu0 %v1652
        %1700 = vmatprep.subr.mxu0 0.0
        %1701 = vmatpush1.msra.mxu0 %v1651
        %1702 = vmatprep.subr.mxu0 0.0
        %1703 = vmatpush1.msra.mxu0 %v1650
        %1704 = vmatprep.subr.mxu0 0.0
        %1705 = vmatpush1.msra.mxu0 %v1649
        %1706 = vmatprep.subr.mxu0 0.0
        %1707 = vmatpush1.msra.mxu0 %v1648
        %1708 = vmatprep.subr.mxu0 0.0
        %1709 = vmatpush1.msra.mxu0 %v1647
        %1710 = vmatprep.subr.mxu0 0.0
        %1711 = vmatpush1.msra.mxu0 %v1646
        %1712 = vmatprep.subr.mxu0 0.0
        %1713 = vmatpush1.msra.mxu0 %v1645
        %1714 = vmatprep.subr.mxu0 0.0
        %1715 = vmatpush2.msra.mxu0 0.0
        %1716 = vmatprep.subr.mxu0 0.0
        %1717 = vmatpush2.msra.mxu0 0.0
        %1718 = vmatprep.subr.mxu0 0.0
        %1719 = vmatpush2.msra.mxu0 0.0
        %1720 = vmatprep.subr.mxu0 0.0
        %1721 = vmatpush2.msra.mxu0 0.0
        %1722 = vmatprep.subr.mxu0 0.0
        %1723 = vmatpush2.msra.mxu0 0.0
        %1724 = vmatprep.subr.mxu0 0.0
        %1725 = vmatpush2.msra.mxu0 0.0
        %1726 = vmatprep.subr.mxu0 0.0
        %1727 = vmatpush2.msra.mxu0 0.0
        %1728 = vmatprep.subr.mxu0 0.0
        %1729 = vmatpush2.msra.mxu0 0.0
        %1730 = vmatprep.subr.mxu0 0.0
        %1731 = vmatpush2.msra.mxu0 0.0
        %1732 = vmatprep.subr.mxu0 0.0
        %1733 = vmatpush2.msra.mxu0 0.0
        %1734 = vmatprep.subr.mxu0 0.0
        %1735 = vmatpush2.msra.mxu0 0.0
        %1736 = vmatprep.subr.mxu0 0.0
        %1737 = vmatpush2.msra.mxu0 0.0
        %1738 = vmatprep.subr.mxu0 0.0
        %1739 = vmatpush2.msra.mxu0 0.0
        %1740 = vmatprep.subr.mxu0 0.0
        %1741 = vmatpush2.msra.mxu0 0.0
        %1742 = vmatprep.subr.mxu0 0.0
        %1743 = vmatpush2.msra.mxu0 0.0
        %1744 = vmatprep.subr.mxu0 0.0
        %1745 = vmatpush2.msra.mxu0 0.0
        %1746 = vmatprep.mubr.f32.mxu0 0.0
        %1747 = vmatmul.mubr.f32.gmra.mxu0 %v1670
        %v1748 = vpop.f32.mrf.mxu0
        %v1749 = vadd.f32 0.0, %v1748
        %v1750 = vpop.f32.mrf.mxu0
        %1751 = vmatprep.mubr.f32.mxu0 0.0
        %1752 = vmatmul.mubr.f32.gmra.mxu0 %v1672
        %v1753 = vpop.f32.mrf.mxu0
        %v1754 = vadd.f32 0.0, %v1753
        %v1755 = vpop.f32.mrf.mxu0
        %1756 = vmatprep.mubr.f32.mxu0 0.0
        %1757 = vmatmul.mubr.f32.gmra.mxu0 %v1674
        %v1758 = vpop.f32.mrf.mxu0
        %v1759 = vadd.f32 0.0, %v1758
        %v1760 = vpop.f32.mrf.mxu0
        %1761 = vmatprep.mubr.f32.mxu0 0.0
        %1762 = vmatmul.mubr.f32.gmra.mxu0 %v1676
        %v1763 = vpop.f32.mrf.mxu0
        %v1764 = vadd.f32 0.0, %v1763
        %v1765 = vpop.f32.mrf.mxu0
        %1766 = vdwg.mxu0
        %v1767 = vsel %vm1669, %v1627, 0
        %v1769 = vsel %vm1669, %v1628, 0
        %v1771 = vsel %vm1669, %v1629, 0
        %v1773 = vsel %vm1669, %v1630, 0
        %v1776 = vsel %vm1678, %v1643, 0
        %1778 = vmatprep.subr.mxu0 0.0
        %1779 = vmatpush1.msra.mxu0 0.0
        %1780 = vmatprep.subr.mxu0 0.0
        %1781 = vmatpush1.msra.mxu0 0.0
        %1782 = vmatprep.subr.mxu0 0.0
        %1783 = vmatpush1.msra.mxu0 0.0
        %1784 = vmatprep.subr.mxu0 0.0
        %1785 = vmatpush1.msra.mxu0 %v1776
        %1786 = vmatprep.subr.mxu0 0.0
        %1787 = vmatpush1.msra.mxu0 %v1642
        %1788 = vmatprep.subr.mxu0 0.0
        %1789 = vmatpush1.msra.mxu0 %v1641
        %1790 = vmatprep.subr.mxu0 0.0
        %1791 = vmatpush1.msra.mxu0 %v1640
        %1792 = vmatprep.subr.mxu0 0.0
        %1793 = vmatpush1.msra.mxu0 %v1639
        %1794 = vmatprep.subr.mxu0 0.0
        %1795 = vmatpush1.msra.mxu0 %v1638
        %1796 = vmatprep.subr.mxu0 0.0
        %1797 = vmatpush1.msra.mxu0 %v1637
        %1798 = vmatprep.subr.mxu0 0.0
        %1799 = vmatpush1.msra.mxu0 %v1636
        %1800 = vmatprep.subr.mxu0 0.0
        %1801 = vmatpush1.msra.mxu0 %v1635
        %1802 = vmatprep.subr.mxu0 0.0
        %1803 = vmatpush1.msra.mxu0 %v1634
        %1804 = vmatprep.subr.mxu0 0.0
        %1805 = vmatpush1.msra.mxu0 %v1633
        %1806 = vmatprep.subr.mxu0 0.0
        %1807 = vmatpush1.msra.mxu0 %v1632
        %1808 = vmatprep.subr.mxu0 0.0
        %1809 = vmatpush1.msra.mxu0 %v1631
        %1810 = vmatprep.subr.mxu0 0.0
        %1811 = vmatpush2.msra.mxu0 0.0
        %1812 = vmatprep.subr.mxu0 0.0
        %1813 = vmatpush2.msra.mxu0 0.0
        %1814 = vmatprep.subr.mxu0 0.0
        %1815 = vmatpush2.msra.mxu0 0.0
        %1816 = vmatprep.subr.mxu0 0.0
        %1817 = vmatpush2.msra.mxu0 0.0
        %1818 = vmatprep.subr.mxu0 0.0
        %1819 = vmatpush2.msra.mxu0 0.0
        %1820 = vmatprep.subr.mxu0 0.0
        %1821 = vmatpush2.msra.mxu0 0.0
        %1822 = vmatprep.subr.mxu0 0.0
        %1823 = vmatpush2.msra.mxu0 0.0
        %1824 = vmatprep.subr.mxu0 0.0
        %1825 = vmatpush2.msra.mxu0 0.0
        %1826 = vmatprep.subr.mxu0 0.0
        %1827 = vmatpush2.msra.mxu0 0.0
        %1828 = vmatprep.subr.mxu0 0.0
        %1829 = vmatpush2.msra.mxu0 0.0
        %1830 = vmatprep.subr.mxu0 0.0
        %1831 = vmatpush2.msra.mxu0 0.0
        %1832 = vmatprep.subr.mxu0 0.0
        %1833 = vmatpush2.msra.mxu0 0.0
        %1834 = vmatprep.subr.mxu0 0.0
        %1835 = vmatpush2.msra.mxu0 0.0
        %1836 = vmatprep.subr.mxu0 0.0
        %1837 = vmatpush2.msra.mxu0 0.0
        %1838 = vmatprep.subr.mxu0 0.0
        %1839 = vmatpush2.msra.mxu0 0.0
        %1840 = vmatprep.subr.mxu0 0.0
        %1841 = vmatpush2.msra.mxu0 0.0
        %1842 = vmatprep.mubr.f32.mxu0 0.0
        %1843 = vmatmul.mubr.f32.gmra.mxu0 %v1767
        %v1844 = vpop.f32.mrf.mxu0
        %v1845 = vadd.f32 %v1749, %v1844
        %v1846 = vpop.f32.mrf.mxu0
        %1847 = vmatprep.mubr.f32.mxu0 0.0
        %1848 = vmatmul.mubr.f32.gmra.mxu0 %v1769
        %v1849 = vpop.f32.mrf.mxu0
        %v1850 = vadd.f32 %v1754, %v1849
        %v1851 = vpop.f32.mrf.mxu0
        %1852 = vmatprep.mubr.f32.mxu0 0.0
        %1853 = vmatmul.mubr.f32.gmra.mxu0 %v1771
        %v1854 = vpop.f32.mrf.mxu0
        %v1855 = vadd.f32 %v1759, %v1854
        %v1856 = vpop.f32.mrf.mxu0
        %1857 = vmatprep.mubr.f32.mxu0 0.0
        %1858 = vmatmul.mubr.f32.gmra.mxu0 %v1773
        %v1859 = vpop.f32.mrf.mxu0
        %v1860 = vadd.f32 %v1764, %v1859
        %v1861 = vpop.f32.mrf.mxu0
        %1862 = vdwg.mxu0
        %s1863 = scalar_lea.vmem [#allocation11], 208
        %v1864 = vld [vmem:[%s1863] sm:$0xff]
        %v1865 = vld [vmem:[%s1863 + $0x8] sm:$0xff]
        %v1866 = vld [vmem:[%s1863 + $0x10] sm:$0xff]
        %v1867 = vld [vmem:[%s1863 + $0x18] sm:$0xff]
        %v1868 = vld [vmem:[%s1863 + $0x20] sm:$0xff]
        %v1869 = vld [vmem:[%s1863 + $0x28] sm:$0xff]
        %v1870 = vld [vmem:[%s1863 + $0x30] sm:$0xff]
        %v1871 = vld [vmem:[%s1863 + $0x38] sm:$0xff]
        %v1872 = vld [vmem:[%s1863 + $0x40] sm:$0xff]
        %v1873 = vld [vmem:[%s1863 + $0x48] sm:$0xff]
        %v1874 = vld [vmem:[%s1863 + $0x50] sm:$0xff]
        %v1875 = vld [vmem:[%s1863 + $0x58] sm:$0xff]
        %v1876 = vld [vmem:[%s1863 + $0x60] sm:$0xf]
        %v1877 = vrot.slane %v1627, 2
        %v1878 = vrot.slane %v1628, 2
        %v1879 = vsel %vm1077, %v1877, %v1878
        %v1880 = vrot.slane %v1629, 2
        %v1881 = vsel %vm1077, %v1878, %v1880
        %v1882 = vrot.slane %v1630, 2
        %v1883 = vsel %vm1077, %v1880, %v1882
        %v1884 = vsel %vm1669, %v1879, 0
        %v1886 = vsel %vm1669, %v1881, 0
        %v1888 = vsel %vm1669, %v1883, 0
        %v1890 = vsel %vm1669, %v1882, 0
        %v1893 = vsel %vm1678, %v1876, 0
        %1895 = vmatprep.subr.mxu0 0.0
        %1896 = vmatpush1.msra.mxu0 0.0
        %1897 = vmatprep.subr.mxu0 0.0
        %1898 = vmatpush1.msra.mxu0 0.0
        %1899 = vmatprep.subr.mxu0 0.0
        %1900 = vmatpush1.msra.mxu0 0.0
        %1901 = vmatprep.subr.mxu0 0.0
        %1902 = vmatpush1.msra.mxu0 %v1893
        %1903 = vmatprep.subr.mxu0 0.0
        %1904 = vmatpush1.msra.mxu0 %v1875
        %1905 = vmatprep.subr.mxu0 0.0
        %1906 = vmatpush1.msra.mxu0 %v1874
        %1907 = vmatprep.subr.mxu0 0.0
        %1908 = vmatpush1.msra.mxu0 %v1873
        %1909 = vmatprep.subr.mxu0 0.0
        %1910 = vmatpush1.msra.mxu0 %v1872
        %1911 = vmatprep.subr.mxu0 0.0
        %1912 = vmatpush1.msra.mxu0 %v1871
        %1913 = vmatprep.subr.mxu0 0.0
        %1914 = vmatpush1.msra.mxu0 %v1870
        %1915 = vmatprep.subr.mxu0 0.0
        %1916 = vmatpush1.msra.mxu0 %v1869
        %1917 = vmatprep.subr.mxu0 0.0
        %1918 = vmatpush1.msra.mxu0 %v1868
        %1919 = vmatprep.subr.mxu0 0.0
        %1920 = vmatpush1.msra.mxu0 %v1867
        %1921 = vmatprep.subr.mxu0 0.0
        %1922 = vmatpush1.msra.mxu0 %v1866
        %1923 = vmatprep.subr.mxu0 0.0
        %1924 = vmatpush1.msra.mxu0 %v1865
        %1925 = vmatprep.subr.mxu0 0.0
        %1926 = vmatpush1.msra.mxu0 %v1864
        %1927 = vmatprep.subr.mxu0 0.0
        %1928 = vmatpush2.msra.mxu0 0.0
        %1929 = vmatprep.subr.mxu0 0.0
        %1930 = vmatpush2.msra.mxu0 0.0
        %1931 = vmatprep.subr.mxu0 0.0
        %1932 = vmatpush2.msra.mxu0 0.0
        %1933 = vmatprep.subr.mxu0 0.0
        %1934 = vmatpush2.msra.mxu0 0.0
        %1935 = vmatprep.subr.mxu0 0.0
        %1936 = vmatpush2.msra.mxu0 0.0
        %1937 = vmatprep.subr.mxu0 0.0
        %1938 = vmatpush2.msra.mxu0 0.0
        %1939 = vmatprep.subr.mxu0 0.0
        %1940 = vmatpush2.msra.mxu0 0.0
        %1941 = vmatprep.subr.mxu0 0.0
        %1942 = vmatpush2.msra.mxu0 0.0
        %1943 = vmatprep.subr.mxu0 0.0
        %1944 = vmatpush2.msra.mxu0 0.0
        %1945 = vmatprep.subr.mxu0 0.0
        %1946 = vmatpush2.msra.mxu0 0.0
        %1947 = vmatprep.subr.mxu0 0.0
        %1948 = vmatpush2.msra.mxu0 0.0
        %1949 = vmatprep.subr.mxu0 0.0
        %1950 = vmatpush2.msra.mxu0 0.0
        %1951 = vmatprep.subr.mxu0 0.0
        %1952 = vmatpush2.msra.mxu0 0.0
        %1953 = vmatprep.subr.mxu0 0.0
        %1954 = vmatpush2.msra.mxu0 0.0
        %1955 = vmatprep.subr.mxu0 0.0
        %1956 = vmatpush2.msra.mxu0 0.0
        %1957 = vmatprep.subr.mxu0 0.0
        %1958 = vmatpush2.msra.mxu0 0.0
        %1959 = vmatprep.mubr.f32.mxu0 0.0
        %1960 = vmatmul.mubr.f32.gmra.mxu0 %v1884
        %v1961 = vpop.f32.mrf.mxu0
        %v1962 = vadd.f32 0.0, %v1961
        %v1963 = vpop.f32.mrf.mxu0
        %1964 = vmatprep.mubr.f32.mxu0 0.0
        %1965 = vmatmul.mubr.f32.gmra.mxu0 %v1886
        %v1966 = vpop.f32.mrf.mxu0
        %v1967 = vadd.f32 0.0, %v1966
        %v1968 = vpop.f32.mrf.mxu0
        %1969 = vmatprep.mubr.f32.mxu0 0.0
        %1970 = vmatmul.mubr.f32.gmra.mxu0 %v1888
        %v1971 = vpop.f32.mrf.mxu0
        %v1972 = vadd.f32 0.0, %v1971
        %v1973 = vpop.f32.mrf.mxu0
        %1974 = vmatprep.mubr.f32.mxu0 0.0
        %1975 = vmatmul.mubr.f32.gmra.mxu0 %v1890
        %v1976 = vpop.f32.mrf.mxu0
        %v1977 = vadd.f32 0.0, %v1976
        %v1978 = vpop.f32.mrf.mxu0
        %1979 = vdwg.mxu0
        %v1980 = vadd.f32 %v1845, %v1962
        %v1981 = vadd.f32 %v1850, %v1967
        %v1982 = vadd.f32 %v1855, %v1972
        %v1983 = vadd.f32 %v1860, %v1977
        %v1984 = vld [vmem:[%s6] sm:$0x1]
        %v1986 = vlaneseq
        %v1987 = vshrl.u32 %v1986, 7
        %v1988 = vsub.s32 0, %v1987
        %v1989 = vrot.slane %v1984, %v1988
        %v1991 = vadd.f32 %v1980, %v1989
        %v1992 = vadd.f32 %v1981, %v1989
        %v1993 = vadd.f32 %v1982, %v1989
        %v1994 = vadd.f32 %v1983, %v1989
        %v1995 = vld [vmem:[#allocation12] sm:$0xff]
        %v1996 = vld [vmem:[#allocation12 + $0x8] sm:$0x3f]
        %vm1997 = vcmask 228352
        %v1999 = vsel %vm1997, %v1995, 0
        %v2002 = vsel %vm1997, %v1996, 0
        %v2005 = vsel %vm1678, %v1994, 0
        %2007 = vmatprep.subr.mxu0 0.0
        %2008 = vmatpush1.msra.mxu0 0.0
        %2009 = vmatprep.subr.mxu0 0.0
        %2010 = vmatpush1.msra.mxu0 0.0
        %2011 = vmatprep.subr.mxu0 0.0
        %2012 = vmatpush1.msra.mxu0 0.0
        %2013 = vmatprep.subr.mxu0 0.0
        %2014 = vmatpush1.msra.mxu0 0.0
        %2015 = vmatprep.subr.mxu0 0.0
        %2016 = vmatpush1.msra.mxu0 0.0
        %2017 = vmatprep.subr.mxu0 0.0
        %2018 = vmatpush1.msra.mxu0 0.0
        %2019 = vmatprep.subr.mxu0 0.0
        %2020 = vmatpush1.msra.mxu0 0.0
        %2021 = vmatprep.subr.mxu0 0.0
        %2022 = vmatpush1.msra.mxu0 0.0
        %2023 = vmatprep.subr.mxu0 0.0
        %2024 = vmatpush1.msra.mxu0 0.0
        %2025 = vmatprep.subr.mxu0 0.0
        %2026 = vmatpush1.msra.mxu0 0.0
        %2027 = vmatprep.subr.mxu0 0.0
        %2028 = vmatpush1.msra.mxu0 0.0
        %2029 = vmatprep.subr.mxu0 0.0
        %2030 = vmatpush1.msra.mxu0 0.0
        %2031 = vmatprep.subr.mxu0 0.0
        %2032 = vmatpush1.msra.mxu0 %v2005
        %2033 = vmatprep.subr.mxu0 0.0
        %2034 = vmatpush1.msra.mxu0 %v1993
        %2035 = vmatprep.subr.mxu0 0.0
        %2036 = vmatpush1.msra.mxu0 %v1992
        %2037 = vmatprep.subr.mxu0 0.0
        %2038 = vmatpush1.msra.mxu0 %v1991
        %2039 = vmatprep.subr.mxu0 0.0
        %2040 = vmatpush2.msra.mxu0 0.0
        %2041 = vmatprep.subr.mxu0 0.0
        %2042 = vmatpush2.msra.mxu0 0.0
        %2043 = vmatprep.subr.mxu0 0.0
        %2044 = vmatpush2.msra.mxu0 0.0
        %2045 = vmatprep.subr.mxu0 0.0
        %2046 = vmatpush2.msra.mxu0 0.0
        %2047 = vmatprep.subr.mxu0 0.0
        %2048 = vmatpush2.msra.mxu0 0.0
        %2049 = vmatprep.subr.mxu0 0.0
        %2050 = vmatpush2.msra.mxu0 0.0
        %2051 = vmatprep.subr.mxu0 0.0
        %2052 = vmatpush2.msra.mxu0 0.0
        %2053 = vmatprep.subr.mxu0 0.0
        %2054 = vmatpush2.msra.mxu0 0.0
        %2055 = vmatprep.subr.mxu0 0.0
        %2056 = vmatpush2.msra.mxu0 0.0
        %2057 = vmatprep.subr.mxu0 0.0
        %2058 = vmatpush2.msra.mxu0 0.0
        %2059 = vmatprep.subr.mxu0 0.0
        %2060 = vmatpush2.msra.mxu0 0.0
        %2061 = vmatprep.subr.mxu0 0.0
        %2062 = vmatpush2.msra.mxu0 0.0
        %2063 = vmatprep.subr.mxu0 0.0
        %2064 = vmatpush2.msra.mxu0 0.0
        %2065 = vmatprep.subr.mxu0 0.0
        %2066 = vmatpush2.msra.mxu0 0.0
        %2067 = vmatprep.subr.mxu0 0.0
        %2068 = vmatpush2.msra.mxu0 0.0
        %2069 = vmatprep.subr.mxu0 0.0
        %2070 = vmatpush2.msra.mxu0 0.0
        %2071 = vmatprep.mubr.f32.mxu0 0.0
        %2072 = vmatmul.mubr.f32.gmra.mxu0 %v1999
        %v2073 = vpop.f32.mrf.mxu0
        %v2074 = vadd.f32 0.0, %v2073
        %v2075 = vpop.f32.mrf.mxu0
        %2076 = vmatprep.mubr.f32.mxu0 0.0
        %2077 = vmatmul.mubr.f32.gmra.mxu0 %v2002
        %v2078 = vpop.f32.mrf.mxu0
        %v2079 = vadd.f32 0.0, %v2078
        %v2080 = vpop.f32.mrf.mxu0
        %2081 = vdwg.mxu0
        %v2082 = vld [vmem:[#allocation14] sm:$0xff]
        %v2083 = vld [vmem:[#allocation14 + $0x8] sm:$0x3f]
        %v2085 = vsel %vm1997, %v2082, 0
        %v2088 = vsel %vm1997, %v2083, 0
        %2090 = vmatprep.subr.mxu0 0.0
        %2091 = vmatpush1.msra.mxu0 0.0
        %2092 = vmatprep.subr.mxu0 0.0
        %2093 = vmatpush1.msra.mxu0 0.0
        %2094 = vmatprep.subr.mxu0 0.0
        %2095 = vmatpush1.msra.mxu0 0.0
        %2096 = vmatprep.subr.mxu0 0.0
        %2097 = vmatpush1.msra.mxu0 0.0
        %2098 = vmatprep.subr.mxu0 0.0
        %2099 = vmatpush1.msra.mxu0 0.0
        %2100 = vmatprep.subr.mxu0 0.0
        %2101 = vmatpush1.msra.mxu0 0.0
        %2102 = vmatprep.subr.mxu0 0.0
        %2103 = vmatpush1.msra.mxu0 0.0
        %2104 = vmatprep.subr.mxu0 0.0
        %2105 = vmatpush1.msra.mxu0 0.0
        %2106 = vmatprep.subr.mxu0 0.0
        %2107 = vmatpush1.msra.mxu0 0.0
        %2108 = vmatprep.subr.mxu0 0.0
        %2109 = vmatpush1.msra.mxu0 0.0
        %2110 = vmatprep.subr.mxu0 0.0
        %2111 = vmatpush1.msra.mxu0 0.0
        %2112 = vmatprep.subr.mxu0 0.0
        %2113 = vmatpush1.msra.mxu0 0.0
        %2114 = vmatprep.subr.mxu0 0.0
        %2115 = vmatpush1.msra.mxu0 %v2005
        %2116 = vmatprep.subr.mxu0 0.0
        %2117 = vmatpush1.msra.mxu0 %v1993
        %2118 = vmatprep.subr.mxu0 0.0
        %2119 = vmatpush1.msra.mxu0 %v1992
        %2120 = vmatprep.subr.mxu0 0.0
        %2121 = vmatpush1.msra.mxu0 %v1991
        %2122 = vmatprep.subr.mxu0 0.0
        %2123 = vmatpush2.msra.mxu0 0.0
        %2124 = vmatprep.subr.mxu0 0.0
        %2125 = vmatpush2.msra.mxu0 0.0
        %2126 = vmatprep.subr.mxu0 0.0
        %2127 = vmatpush2.msra.mxu0 0.0
        %2128 = vmatprep.subr.mxu0 0.0
        %2129 = vmatpush2.msra.mxu0 0.0
        %2130 = vmatprep.subr.mxu0 0.0
        %2131 = vmatpush2.msra.mxu0 0.0
        %2132 = vmatprep.subr.mxu0 0.0
        %2133 = vmatpush2.msra.mxu0 0.0
        %2134 = vmatprep.subr.mxu0 0.0
        %2135 = vmatpush2.msra.mxu0 0.0
        %2136 = vmatprep.subr.mxu0 0.0
        %2137 = vmatpush2.msra.mxu0 0.0
        %2138 = vmatprep.subr.mxu0 0.0
        %2139 = vmatpush2.msra.mxu0 0.0
        %2140 = vmatprep.subr.mxu0 0.0
        %2141 = vmatpush2.msra.mxu0 0.0
        %2142 = vmatprep.subr.mxu0 0.0
        %2143 = vmatpush2.msra.mxu0 0.0
        %2144 = vmatprep.subr.mxu0 0.0
        %2145 = vmatpush2.msra.mxu0 0.0
        %2146 = vmatprep.subr.mxu0 0.0
        %2147 = vmatpush2.msra.mxu0 0.0
        %2148 = vmatprep.subr.mxu0 0.0
        %2149 = vmatpush2.msra.mxu0 0.0
        %2150 = vmatprep.subr.mxu0 0.0
        %2151 = vmatpush2.msra.mxu0 0.0
        %2152 = vmatprep.subr.mxu0 0.0
        %2153 = vmatpush2.msra.mxu0 0.0
        %2154 = vmatprep.mubr.f32.mxu0 0.0
        %2155 = vmatmul.mubr.f32.gmra.mxu0 %v2085
        %v2156 = vpop.f32.mrf.mxu0
        %v2157 = vadd.f32 0.0, %v2156
        %v2158 = vpop.f32.mrf.mxu0
        %2159 = vmatprep.mubr.f32.mxu0 0.0
        %2160 = vmatmul.mubr.f32.gmra.mxu0 %v2088
        %v2161 = vpop.f32.mrf.mxu0
        %v2162 = vadd.f32 0.0, %v2161
        %v2163 = vpop.f32.mrf.mxu0
        %2164 = vdwg.mxu0
        %v2165 = vmax.f32 %v2074, %v2157
        %v2166 = vmax.f32 %v2079, %v2162
        %vm2167 = vcmp.ge.f32.partialorder %v2074, %v2157
        %vm2168 = vcmp.ge.f32.partialorder %v2079, %v2162
        %v2169 = vsel %vm2167, 1, 0
        %v2170 = vsel %vm2168, 1, 0
        %v2171 = vcvt.s32.f32 %v2169
        %v2172 = vcvt.s32.f32 %v2170
        %v2173 = vld [vmem:[%s10] sm:$0x1]
        %v2174 = vld [vmem:[#allocation15] sm:$0xff]
        %v2175 = vld [vmem:[#allocation15 + $0x8] sm:$0xff]
        %v2176 = vld [vmem:[#allocation15 + $0x10] sm:$0xff]
        %v2177 = vld [vmem:[#allocation15 + $0x18] sm:$0x3f]
        %vm2178 = vcmask 244736
        %v2180 = vsel %vm2178, %v2165, 0
        %v2183 = vsel %vm1077, %v2177, 0
        %2185 = vmatprep.subr.mxu0 0.0
        %2186 = vmatpush1.msra.mxu0 0.0
        %2187 = vmatprep.subr.mxu0 0.0
        %2188 = vmatpush1.msra.mxu0 0.0
        %2189 = vmatprep.subr.mxu0 0.0
        %2190 = vmatpush1.msra.mxu0 0.0
        %2191 = vmatprep.subr.mxu0 0.0
        %2192 = vmatpush1.msra.mxu0 0.0
        %2193 = vmatprep.subr.mxu0 0.0
        %2194 = vmatpush1.msra.mxu0 0.0
        %2195 = vmatprep.subr.mxu0 0.0
        %2196 = vmatpush1.msra.mxu0 0.0
        %2197 = vmatprep.subr.mxu0 0.0
        %2198 = vmatpush1.msra.mxu0 0.0
        %2199 = vmatprep.subr.mxu0 0.0
        %2200 = vmatpush1.msra.mxu0 0.0
        %2201 = vmatprep.subr.mxu0 0.0
        %2202 = vmatpush1.msra.mxu0 0.0
        %2203 = vmatprep.subr.mxu0 0.0
        %2204 = vmatpush1.msra.mxu0 0.0
        %2205 = vmatprep.subr.mxu0 0.0
        %2206 = vmatpush1.msra.mxu0 0.0
        %2207 = vmatprep.subr.mxu0 0.0
        %2208 = vmatpush1.msra.mxu0 0.0
        %2209 = vmatprep.subr.mxu0 0.0
        %2210 = vmatpush1.msra.mxu0 %v2183
        %2211 = vmatprep.subr.mxu0 0.0
        %2212 = vmatpush1.msra.mxu0 %v2176
        %2213 = vmatprep.subr.mxu0 0.0
        %2214 = vmatpush1.msra.mxu0 %v2175
        %2215 = vmatprep.subr.mxu0 0.0
        %2216 = vmatpush1.msra.mxu0 %v2174
        %2217 = vmatprep.subr.mxu0 0.0
        %2218 = vmatpush2.msra.mxu0 0.0
        %2219 = vmatprep.subr.mxu0 0.0
        %2220 = vmatpush2.msra.mxu0 0.0
        %2221 = vmatprep.subr.mxu0 0.0
        %2222 = vmatpush2.msra.mxu0 0.0
        %2223 = vmatprep.subr.mxu0 0.0
        %2224 = vmatpush2.msra.mxu0 0.0
        %2225 = vmatprep.subr.mxu0 0.0
        %2226 = vmatpush2.msra.mxu0 0.0
        %2227 = vmatprep.subr.mxu0 0.0
        %2228 = vmatpush2.msra.mxu0 0.0
        %2229 = vmatprep.subr.mxu0 0.0
        %2230 = vmatpush2.msra.mxu0 0.0
        %2231 = vmatprep.subr.mxu0 0.0
        %2232 = vmatpush2.msra.mxu0 0.0
        %2233 = vmatprep.subr.mxu0 0.0
        %2234 = vmatpush2.msra.mxu0 0.0
        %2235 = vmatprep.subr.mxu0 0.0
        %2236 = vmatpush2.msra.mxu0 0.0
        %2237 = vmatprep.subr.mxu0 0.0
        %2238 = vmatpush2.msra.mxu0 0.0
        %2239 = vmatprep.subr.mxu0 0.0
        %2240 = vmatpush2.msra.mxu0 0.0
        %2241 = vmatprep.subr.mxu0 0.0
        %2242 = vmatpush2.msra.mxu0 0.0
        %2243 = vmatprep.subr.mxu0 0.0
        %2244 = vmatpush2.msra.mxu0 0.0
        %2245 = vmatprep.subr.mxu0 0.0
        %2246 = vmatpush2.msra.mxu0 0.0
        %2247 = vmatprep.subr.mxu0 0.0
        %2248 = vmatpush2.msra.mxu0 0.0
        %2249 = vmatprep.mubr.f32.mxu0 0.0
        %2250 = vmatmul.mubr.f32.gmra.mxu0 %v2180
        %v2251 = vpop.f32.mrf.mxu0
        %v2252 = vadd.f32 0.0, %v2251
        %v2253 = vpop.f32.mrf.mxu0
        %2254 = vdwg.mxu0
        %v2255 = vadd.f32 %v2173, %v2252
        %s2256 = scalar_lea.vmem [#allocation15], 32
        %v2257 = vld [vmem:[%s2256] sm:$0xff]
        %v2258 = vld [vmem:[%s2256 + $0x8] sm:$0xff]
        %v2259 = vld [vmem:[%s2256 + $0x10] sm:$0xff]
        %v2260 = vld [vmem:[%s2256 + $0x18] sm:$0x3f]
        %v2261 = vrot.slane %v2165, 1
        %v2262 = vsel %vm2178, %v2261, 0
        %v2265 = vsel %vm1077, %v2260, 0
        %2267 = vmatprep.subr.mxu0 0.0
        %2268 = vmatpush1.msra.mxu0 0.0
        %2269 = vmatprep.subr.mxu0 0.0
        %2270 = vmatpush1.msra.mxu0 0.0
        %2271 = vmatprep.subr.mxu0 0.0
        %2272 = vmatpush1.msra.mxu0 0.0
        %2273 = vmatprep.subr.mxu0 0.0
        %2274 = vmatpush1.msra.mxu0 0.0
        %2275 = vmatprep.subr.mxu0 0.0
        %2276 = vmatpush1.msra.mxu0 0.0
        %2277 = vmatprep.subr.mxu0 0.0
        %2278 = vmatpush1.msra.mxu0 0.0
        %2279 = vmatprep.subr.mxu0 0.0
        %2280 = vmatpush1.msra.mxu0 0.0
        %2281 = vmatprep.subr.mxu0 0.0
        %2282 = vmatpush1.msra.mxu0 0.0
        %2283 = vmatprep.subr.mxu0 0.0
        %2284 = vmatpush1.msra.mxu0 0.0
        %2285 = vmatprep.subr.mxu0 0.0
        %2286 = vmatpush1.msra.mxu0 0.0
        %2287 = vmatprep.subr.mxu0 0.0
        %2288 = vmatpush1.msra.mxu0 0.0
        %2289 = vmatprep.subr.mxu0 0.0
        %2290 = vmatpush1.msra.mxu0 0.0
        %2291 = vmatprep.subr.mxu0 0.0
        %2292 = vmatpush1.msra.mxu0 %v2265
        %2293 = vmatprep.subr.mxu0 0.0
        %2294 = vmatpush1.msra.mxu0 %v2259
        %2295 = vmatprep.subr.mxu0 0.0
        %2296 = vmatpush1.msra.mxu0 %v2258
        %2297 = vmatprep.subr.mxu0 0.0
        %2298 = vmatpush1.msra.mxu0 %v2257
        %2299 = vmatprep.subr.mxu0 0.0
        %2300 = vmatpush2.msra.mxu0 0.0
        %2301 = vmatprep.subr.mxu0 0.0
        %2302 = vmatpush2.msra.mxu0 0.0
        %2303 = vmatprep.subr.mxu0 0.0
        %2304 = vmatpush2.msra.mxu0 0.0
        %2305 = vmatprep.subr.mxu0 0.0
        %2306 = vmatpush2.msra.mxu0 0.0
        %2307 = vmatprep.subr.mxu0 0.0
        %2308 = vmatpush2.msra.mxu0 0.0
        %2309 = vmatprep.subr.mxu0 0.0
        %2310 = vmatpush2.msra.mxu0 0.0
        %2311 = vmatprep.subr.mxu0 0.0
        %2312 = vmatpush2.msra.mxu0 0.0
        %2313 = vmatprep.subr.mxu0 0.0
        %2314 = vmatpush2.msra.mxu0 0.0
        %2315 = vmatprep.subr.mxu0 0.0
        %2316 = vmatpush2.msra.mxu0 0.0
        %2317 = vmatprep.subr.mxu0 0.0
        %2318 = vmatpush2.msra.mxu0 0.0
        %2319 = vmatprep.subr.mxu0 0.0
        %2320 = vmatpush2.msra.mxu0 0.0
        %2321 = vmatprep.subr.mxu0 0.0
        %2322 = vmatpush2.msra.mxu0 0.0
        %2323 = vmatprep.subr.mxu0 0.0
        %2324 = vmatpush2.msra.mxu0 0.0
        %2325 = vmatprep.subr.mxu0 0.0
        %2326 = vmatpush2.msra.mxu0 0.0
        %2327 = vmatprep.subr.mxu0 0.0
        %2328 = vmatpush2.msra.mxu0 0.0
        %2329 = vmatprep.subr.mxu0 0.0
        %2330 = vmatpush2.msra.mxu0 0.0
        %2331 = vmatprep.mubr.f32.mxu0 0.0
        %2332 = vmatmul.mubr.f32.gmra.mxu0 %v2262
        %v2333 = vpop.f32.mrf.mxu0
        %v2334 = vadd.f32 0.0, %v2333
        %v2335 = vpop.f32.mrf.mxu0
        %2336 = vdwg.mxu0
        %v2337 = vadd.f32 %v2255, %v2334
        %s2338 = scalar_lea.vmem [#allocation15], 64
        %v2339 = vld [vmem:[%s2338] sm:$0xff]
        %v2340 = vld [vmem:[%s2338 + $0x8] sm:$0xff]
        %v2341 = vld [vmem:[%s2338 + $0x10] sm:$0xff]
        %v2342 = vld [vmem:[%s2338 + $0x18] sm:$0x3f]
        %v2343 = vrot.slane %v2165, 2
        %v2344 = vsel %vm2178, %v2343, 0
        %v2347 = vsel %vm1077, %v2342, 0
        %2349 = vmatprep.subr.mxu0 0.0
        %2350 = vmatpush1.msra.mxu0 0.0
        %2351 = vmatprep.subr.mxu0 0.0
        %2352 = vmatpush1.msra.mxu0 0.0
        %2353 = vmatprep.subr.mxu0 0.0
        %2354 = vmatpush1.msra.mxu0 0.0
        %2355 = vmatprep.subr.mxu0 0.0
        %2356 = vmatpush1.msra.mxu0 0.0
        %2357 = vmatprep.subr.mxu0 0.0
        %2358 = vmatpush1.msra.mxu0 0.0
        %2359 = vmatprep.subr.mxu0 0.0
        %2360 = vmatpush1.msra.mxu0 0.0
        %2361 = vmatprep.subr.mxu0 0.0
        %2362 = vmatpush1.msra.mxu0 0.0
        %2363 = vmatprep.subr.mxu0 0.0
        %2364 = vmatpush1.msra.mxu0 0.0
        %2365 = vmatprep.subr.mxu0 0.0
        %2366 = vmatpush1.msra.mxu0 0.0
        %2367 = vmatprep.subr.mxu0 0.0
        %2368 = vmatpush1.msra.mxu0 0.0
        %2369 = vmatprep.subr.mxu0 0.0
        %2370 = vmatpush1.msra.mxu0 0.0
        %2371 = vmatprep.subr.mxu0 0.0
        %2372 = vmatpush1.msra.mxu0 0.0
        %2373 = vmatprep.subr.mxu0 0.0
        %2374 = vmatpush1.msra.mxu0 %v2347
        %2375 = vmatprep.subr.mxu0 0.0
        %2376 = vmatpush1.msra.mxu0 %v2341
        %2377 = vmatprep.subr.mxu0 0.0
        %2378 = vmatpush1.msra.mxu0 %v2340
        %2379 = vmatprep.subr.mxu0 0.0
        %2380 = vmatpush1.msra.mxu0 %v2339
        %2381 = vmatprep.subr.mxu0 0.0
        %2382 = vmatpush2.msra.mxu0 0.0
        %2383 = vmatprep.subr.mxu0 0.0
        %2384 = vmatpush2.msra.mxu0 0.0
        %2385 = vmatprep.subr.mxu0 0.0
        %2386 = vmatpush2.msra.mxu0 0.0
        %2387 = vmatprep.subr.mxu0 0.0
        %2388 = vmatpush2.msra.mxu0 0.0
        %2389 = vmatprep.subr.mxu0 0.0
        %2390 = vmatpush2.msra.mxu0 0.0
        %2391 = vmatprep.subr.mxu0 0.0
        %2392 = vmatpush2.msra.mxu0 0.0
        %2393 = vmatprep.subr.mxu0 0.0
        %2394 = vmatpush2.msra.mxu0 0.0
        %2395 = vmatprep.subr.mxu0 0.0
        %2396 = vmatpush2.msra.mxu0 0.0
        %2397 = vmatprep.subr.mxu0 0.0
        %2398 = vmatpush2.msra.mxu0 0.0
        %2399 = vmatprep.subr.mxu0 0.0
        %2400 = vmatpush2.msra.mxu0 0.0
        %2401 = vmatprep.subr.mxu0 0.0
        %2402 = vmatpush2.msra.mxu0 0.0
        %2403 = vmatprep.subr.mxu0 0.0
        %2404 = vmatpush2.msra.mxu0 0.0
        %2405 = vmatprep.subr.mxu0 0.0
        %2406 = vmatpush2.msra.mxu0 0.0
        %2407 = vmatprep.subr.mxu0 0.0
        %2408 = vmatpush2.msra.mxu0 0.0
        %2409 = vmatprep.subr.mxu0 0.0
        %2410 = vmatpush2.msra.mxu0 0.0
        %2411 = vmatprep.subr.mxu0 0.0
        %2412 = vmatpush2.msra.mxu0 0.0
        %2413 = vmatprep.mubr.f32.mxu0 0.0
        %2414 = vmatmul.mubr.f32.gmra.mxu0 %v2344
        %v2415 = vpop.f32.mrf.mxu0
        %v2416 = vadd.f32 0.0, %v2415
        %v2417 = vpop.f32.mrf.mxu0
        %2418 = vdwg.mxu0
        %v2419 = vadd.f32 %v2337, %v2416
        %s2420 = scalar_lea.vmem [#allocation15], 96
        %v2421 = vld [vmem:[%s2420] sm:$0xff]
        %v2422 = vld [vmem:[%s2420 + $0x8] sm:$0xff]
        %v2423 = vld [vmem:[%s2420 + $0x10] sm:$0xff]
        %v2424 = vld [vmem:[%s2420 + $0x18] sm:$0x3f]
        %v2425 = vrot.slane %v2165, 3
        %v2426 = vsel %vm2178, %v2425, 0
        %v2429 = vsel %vm1077, %v2424, 0
        %2431 = vmatprep.subr.mxu0 0.0
        %2432 = vmatpush1.msra.mxu0 0.0
        %2433 = vmatprep.subr.mxu0 0.0
        %2434 = vmatpush1.msra.mxu0 0.0
        %2435 = vmatprep.subr.mxu0 0.0
        %2436 = vmatpush1.msra.mxu0 0.0
        %2437 = vmatprep.subr.mxu0 0.0
        %2438 = vmatpush1.msra.mxu0 0.0
        %2439 = vmatprep.subr.mxu0 0.0
        %2440 = vmatpush1.msra.mxu0 0.0
        %2441 = vmatprep.subr.mxu0 0.0
        %2442 = vmatpush1.msra.mxu0 0.0
        %2443 = vmatprep.subr.mxu0 0.0
        %2444 = vmatpush1.msra.mxu0 0.0
        %2445 = vmatprep.subr.mxu0 0.0
        %2446 = vmatpush1.msra.mxu0 0.0
        %2447 = vmatprep.subr.mxu0 0.0
        %2448 = vmatpush1.msra.mxu0 0.0
        %2449 = vmatprep.subr.mxu0 0.0
        %2450 = vmatpush1.msra.mxu0 0.0
        %2451 = vmatprep.subr.mxu0 0.0
        %2452 = vmatpush1.msra.mxu0 0.0
        %2453 = vmatprep.subr.mxu0 0.0
        %2454 = vmatpush1.msra.mxu0 0.0
        %2455 = vmatprep.subr.mxu0 0.0
        %2456 = vmatpush1.msra.mxu0 %v2429
        %2457 = vmatprep.subr.mxu0 0.0
        %2458 = vmatpush1.msra.mxu0 %v2423
        %2459 = vmatprep.subr.mxu0 0.0
        %2460 = vmatpush1.msra.mxu0 %v2422
        %2461 = vmatprep.subr.mxu0 0.0
        %2462 = vmatpush1.msra.mxu0 %v2421
        %2463 = vmatprep.subr.mxu0 0.0
        %2464 = vmatpush2.msra.mxu0 0.0
        %2465 = vmatprep.subr.mxu0 0.0
        %2466 = vmatpush2.msra.mxu0 0.0
        %2467 = vmatprep.subr.mxu0 0.0
        %2468 = vmatpush2.msra.mxu0 0.0
        %2469 = vmatprep.subr.mxu0 0.0
        %2470 = vmatpush2.msra.mxu0 0.0
        %2471 = vmatprep.subr.mxu0 0.0
        %2472 = vmatpush2.msra.mxu0 0.0
        %2473 = vmatprep.subr.mxu0 0.0
        %2474 = vmatpush2.msra.mxu0 0.0
        %2475 = vmatprep.subr.mxu0 0.0
        %2476 = vmatpush2.msra.mxu0 0.0
        %2477 = vmatprep.subr.mxu0 0.0
        %2478 = vmatpush2.msra.mxu0 0.0
        %2479 = vmatprep.subr.mxu0 0.0
        %2480 = vmatpush2.msra.mxu0 0.0
        %2481 = vmatprep.subr.mxu0 0.0
        %2482 = vmatpush2.msra.mxu0 0.0
        %2483 = vmatprep.subr.mxu0 0.0
        %2484 = vmatpush2.msra.mxu0 0.0
        %2485 = vmatprep.subr.mxu0 0.0
        %2486 = vmatpush2.msra.mxu0 0.0
        %2487 = vmatprep.subr.mxu0 0.0
        %2488 = vmatpush2.msra.mxu0 0.0
        %2489 = vmatprep.subr.mxu0 0.0
        %2490 = vmatpush2.msra.mxu0 0.0
        %2491 = vmatprep.subr.mxu0 0.0
        %2492 = vmatpush2.msra.mxu0 0.0
        %2493 = vmatprep.subr.mxu0 0.0
        %2494 = vmatpush2.msra.mxu0 0.0
        %2495 = vmatprep.mubr.f32.mxu0 0.0
        %2496 = vmatmul.mubr.f32.gmra.mxu0 %v2426
        %v2497 = vpop.f32.mrf.mxu0
        %v2498 = vadd.f32 0.0, %v2497
        %v2499 = vpop.f32.mrf.mxu0
        %2500 = vdwg.mxu0
        %v2501 = vadd.f32 %v2419, %v2498
        %s2502 = scalar_lea.vmem [#allocation15], 128
        %v2503 = vld [vmem:[%s2502] sm:$0xff]
        %v2504 = vld [vmem:[%s2502 + $0x8] sm:$0xff]
        %v2505 = vld [vmem:[%s2502 + $0x10] sm:$0xff]
        %v2506 = vld [vmem:[%s2502 + $0x18] sm:$0x3f]
        %v2507 = vrot.slane %v2165, 4
        %v2508 = vsel %vm2178, %v2507, 0
        %v2511 = vsel %vm1077, %v2506, 0
        %2513 = vmatprep.subr.mxu0 0.0
        %2514 = vmatpush1.msra.mxu0 0.0
        %2515 = vmatprep.subr.mxu0 0.0
        %2516 = vmatpush1.msra.mxu0 0.0
        %2517 = vmatprep.subr.mxu0 0.0
        %2518 = vmatpush1.msra.mxu0 0.0
        %2519 = vmatprep.subr.mxu0 0.0
        %2520 = vmatpush1.msra.mxu0 0.0
        %2521 = vmatprep.subr.mxu0 0.0
        %2522 = vmatpush1.msra.mxu0 0.0
        %2523 = vmatprep.subr.mxu0 0.0
        %2524 = vmatpush1.msra.mxu0 0.0
        %2525 = vmatprep.subr.mxu0 0.0
        %2526 = vmatpush1.msra.mxu0 0.0
        %2527 = vmatprep.subr.mxu0 0.0
        %2528 = vmatpush1.msra.mxu0 0.0
        %2529 = vmatprep.subr.mxu0 0.0
        %2530 = vmatpush1.msra.mxu0 0.0
        %2531 = vmatprep.subr.mxu0 0.0
        %2532 = vmatpush1.msra.mxu0 0.0
        %2533 = vmatprep.subr.mxu0 0.0
        %2534 = vmatpush1.msra.mxu0 0.0
        %2535 = vmatprep.subr.mxu0 0.0
        %2536 = vmatpush1.msra.mxu0 0.0
        %2537 = vmatprep.subr.mxu0 0.0
        %2538 = vmatpush1.msra.mxu0 %v2511
        %2539 = vmatprep.subr.mxu0 0.0
        %2540 = vmatpush1.msra.mxu0 %v2505
        %2541 = vmatprep.subr.mxu0 0.0
        %2542 = vmatpush1.msra.mxu0 %v2504
        %2543 = vmatprep.subr.mxu0 0.0
        %2544 = vmatpush1.msra.mxu0 %v2503
        %2545 = vmatprep.subr.mxu0 0.0
        %2546 = vmatpush2.msra.mxu0 0.0
        %2547 = vmatprep.subr.mxu0 0.0
        %2548 = vmatpush2.msra.mxu0 0.0
        %2549 = vmatprep.subr.mxu0 0.0
        %2550 = vmatpush2.msra.mxu0 0.0
        %2551 = vmatprep.subr.mxu0 0.0
        %2552 = vmatpush2.msra.mxu0 0.0
        %2553 = vmatprep.subr.mxu0 0.0
        %2554 = vmatpush2.msra.mxu0 0.0
        %2555 = vmatprep.subr.mxu0 0.0
        %2556 = vmatpush2.msra.mxu0 0.0
        %2557 = vmatprep.subr.mxu0 0.0
        %2558 = vmatpush2.msra.mxu0 0.0
        %2559 = vmatprep.subr.mxu0 0.0
        %2560 = vmatpush2.msra.mxu0 0.0
        %2561 = vmatprep.subr.mxu0 0.0
        %2562 = vmatpush2.msra.mxu0 0.0
        %2563 = vmatprep.subr.mxu0 0.0
        %2564 = vmatpush2.msra.mxu0 0.0
        %2565 = vmatprep.subr.mxu0 0.0
        %2566 = vmatpush2.msra.mxu0 0.0
        %2567 = vmatprep.subr.mxu0 0.0
        %2568 = vmatpush2.msra.mxu0 0.0
        %2569 = vmatprep.subr.mxu0 0.0
        %2570 = vmatpush2.msra.mxu0 0.0
        %2571 = vmatprep.subr.mxu0 0.0
        %2572 = vmatpush2.msra.mxu0 0.0
        %2573 = vmatprep.subr.mxu0 0.0
        %2574 = vmatpush2.msra.mxu0 0.0
        %2575 = vmatprep.subr.mxu0 0.0
        %2576 = vmatpush2.msra.mxu0 0.0
        %2577 = vmatprep.mubr.f32.mxu0 0.0
        %2578 = vmatmul.mubr.f32.gmra.mxu0 %v2508
        %v2579 = vpop.f32.mrf.mxu0
        %v2580 = vadd.f32 0.0, %v2579
        %v2581 = vpop.f32.mrf.mxu0
        %2582 = vdwg.mxu0
        %v2583 = vadd.f32 %v2501, %v2580
        %s2584 = scalar_lea.vmem [#allocation15], 160
        %v2585 = vld [vmem:[%s2584] sm:$0xff]
        %v2586 = vld [vmem:[%s2584 + $0x8] sm:$0xff]
        %v2587 = vld [vmem:[%s2584 + $0x10] sm:$0xff]
        %v2588 = vld [vmem:[%s2584 + $0x18] sm:$0x3f]
        %v2589 = vrot.slane %v2165, 5
        %v2590 = vsel %vm2178, %v2589, 0
        %v2593 = vsel %vm1077, %v2588, 0
        %2595 = vmatprep.subr.mxu0 0.0
        %2596 = vmatpush1.msra.mxu0 0.0
        %2597 = vmatprep.subr.mxu0 0.0
        %2598 = vmatpush1.msra.mxu0 0.0
        %2599 = vmatprep.subr.mxu0 0.0
        %2600 = vmatpush1.msra.mxu0 0.0
        %2601 = vmatprep.subr.mxu0 0.0
        %2602 = vmatpush1.msra.mxu0 0.0
        %2603 = vmatprep.subr.mxu0 0.0
        %2604 = vmatpush1.msra.mxu0 0.0
        %2605 = vmatprep.subr.mxu0 0.0
        %2606 = vmatpush1.msra.mxu0 0.0
        %2607 = vmatprep.subr.mxu0 0.0
        %2608 = vmatpush1.msra.mxu0 0.0
        %2609 = vmatprep.subr.mxu0 0.0
        %2610 = vmatpush1.msra.mxu0 0.0
        %2611 = vmatprep.subr.mxu0 0.0
        %2612 = vmatpush1.msra.mxu0 0.0
        %2613 = vmatprep.subr.mxu0 0.0
        %2614 = vmatpush1.msra.mxu0 0.0
        %2615 = vmatprep.subr.mxu0 0.0
        %2616 = vmatpush1.msra.mxu0 0.0
        %2617 = vmatprep.subr.mxu0 0.0
        %2618 = vmatpush1.msra.mxu0 0.0
        %2619 = vmatprep.subr.mxu0 0.0
        %2620 = vmatpush1.msra.mxu0 %v2593
        %2621 = vmatprep.subr.mxu0 0.0
        %2622 = vmatpush1.msra.mxu0 %v2587
        %2623 = vmatprep.subr.mxu0 0.0
        %2624 = vmatpush1.msra.mxu0 %v2586
        %2625 = vmatprep.subr.mxu0 0.0
        %2626 = vmatpush1.msra.mxu0 %v2585
        %2627 = vmatprep.subr.mxu0 0.0
        %2628 = vmatpush2.msra.mxu0 0.0
        %2629 = vmatprep.subr.mxu0 0.0
        %2630 = vmatpush2.msra.mxu0 0.0
        %2631 = vmatprep.subr.mxu0 0.0
        %2632 = vmatpush2.msra.mxu0 0.0
        %2633 = vmatprep.subr.mxu0 0.0
        %2634 = vmatpush2.msra.mxu0 0.0
        %2635 = vmatprep.subr.mxu0 0.0
        %2636 = vmatpush2.msra.mxu0 0.0
        %2637 = vmatprep.subr.mxu0 0.0
        %2638 = vmatpush2.msra.mxu0 0.0
        %2639 = vmatprep.subr.mxu0 0.0
        %2640 = vmatpush2.msra.mxu0 0.0
        %2641 = vmatprep.subr.mxu0 0.0
        %2642 = vmatpush2.msra.mxu0 0.0
        %2643 = vmatprep.subr.mxu0 0.0
        %2644 = vmatpush2.msra.mxu0 0.0
        %2645 = vmatprep.subr.mxu0 0.0
        %2646 = vmatpush2.msra.mxu0 0.0
        %2647 = vmatprep.subr.mxu0 0.0
        %2648 = vmatpush2.msra.mxu0 0.0
        %2649 = vmatprep.subr.mxu0 0.0
        %2650 = vmatpush2.msra.mxu0 0.0
        %2651 = vmatprep.subr.mxu0 0.0
        %2652 = vmatpush2.msra.mxu0 0.0
        %2653 = vmatprep.subr.mxu0 0.0
        %2654 = vmatpush2.msra.mxu0 0.0
        %2655 = vmatprep.subr.mxu0 0.0
        %2656 = vmatpush2.msra.mxu0 0.0
        %2657 = vmatprep.subr.mxu0 0.0
        %2658 = vmatpush2.msra.mxu0 0.0
        %2659 = vmatprep.mubr.f32.mxu0 0.0
        %2660 = vmatmul.mubr.f32.gmra.mxu0 %v2590
        %v2661 = vpop.f32.mrf.mxu0
        %v2662 = vadd.f32 0.0, %v2661
        %v2663 = vpop.f32.mrf.mxu0
        %2664 = vdwg.mxu0
        %v2665 = vadd.f32 %v2583, %v2662
        %s2666 = scalar_lea.vmem [#allocation15], 192
        %v2667 = vld [vmem:[%s2666] sm:$0xff]
        %v2668 = vld [vmem:[%s2666 + $0x8] sm:$0xff]
        %v2669 = vld [vmem:[%s2666 + $0x10] sm:$0xff]
        %v2670 = vld [vmem:[%s2666 + $0x18] sm:$0x3f]
        %v2671 = vrot.slane %v2165, 6
        %v2672 = vsel %vm2178, %v2671, 0
        %v2675 = vsel %vm1077, %v2670, 0
        %2677 = vmatprep.subr.mxu0 0.0
        %2678 = vmatpush1.msra.mxu0 0.0
        %2679 = vmatprep.subr.mxu0 0.0
        %2680 = vmatpush1.msra.mxu0 0.0
        %2681 = vmatprep.subr.mxu0 0.0
        %2682 = vmatpush1.msra.mxu0 0.0
        %2683 = vmatprep.subr.mxu0 0.0
        %2684 = vmatpush1.msra.mxu0 0.0
        %2685 = vmatprep.subr.mxu0 0.0
        %2686 = vmatpush1.msra.mxu0 0.0
        %2687 = vmatprep.subr.mxu0 0.0
        %2688 = vmatpush1.msra.mxu0 0.0
        %2689 = vmatprep.subr.mxu0 0.0
        %2690 = vmatpush1.msra.mxu0 0.0
        %2691 = vmatprep.subr.mxu0 0.0
        %2692 = vmatpush1.msra.mxu0 0.0
        %2693 = vmatprep.subr.mxu0 0.0
        %2694 = vmatpush1.msra.mxu0 0.0
        %2695 = vmatprep.subr.mxu0 0.0
        %2696 = vmatpush1.msra.mxu0 0.0
        %2697 = vmatprep.subr.mxu0 0.0
        %2698 = vmatpush1.msra.mxu0 0.0
        %2699 = vmatprep.subr.mxu0 0.0
        %2700 = vmatpush1.msra.mxu0 0.0
        %2701 = vmatprep.subr.mxu0 0.0
        %2702 = vmatpush1.msra.mxu0 %v2675
        %2703 = vmatprep.subr.mxu0 0.0
        %2704 = vmatpush1.msra.mxu0 %v2669
        %2705 = vmatprep.subr.mxu0 0.0
        %2706 = vmatpush1.msra.mxu0 %v2668
        %2707 = vmatprep.subr.mxu0 0.0
        %2708 = vmatpush1.msra.mxu0 %v2667
        %2709 = vmatprep.subr.mxu0 0.0
        %2710 = vmatpush2.msra.mxu0 0.0
        %2711 = vmatprep.subr.mxu0 0.0
        %2712 = vmatpush2.msra.mxu0 0.0
        %2713 = vmatprep.subr.mxu0 0.0
        %2714 = vmatpush2.msra.mxu0 0.0
        %2715 = vmatprep.subr.mxu0 0.0
        %2716 = vmatpush2.msra.mxu0 0.0
        %2717 = vmatprep.subr.mxu0 0.0
        %2718 = vmatpush2.msra.mxu0 0.0
        %2719 = vmatprep.subr.mxu0 0.0
        %2720 = vmatpush2.msra.mxu0 0.0
        %2721 = vmatprep.subr.mxu0 0.0
        %2722 = vmatpush2.msra.mxu0 0.0
        %2723 = vmatprep.subr.mxu0 0.0
        %2724 = vmatpush2.msra.mxu0 0.0
        %2725 = vmatprep.subr.mxu0 0.0
        %2726 = vmatpush2.msra.mxu0 0.0
        %2727 = vmatprep.subr.mxu0 0.0
        %2728 = vmatpush2.msra.mxu0 0.0
        %2729 = vmatprep.subr.mxu0 0.0
        %2730 = vmatpush2.msra.mxu0 0.0
        %2731 = vmatprep.subr.mxu0 0.0
        %2732 = vmatpush2.msra.mxu0 0.0
        %2733 = vmatprep.subr.mxu0 0.0
        %2734 = vmatpush2.msra.mxu0 0.0
        %2735 = vmatprep.subr.mxu0 0.0
        %2736 = vmatpush2.msra.mxu0 0.0
        %2737 = vmatprep.subr.mxu0 0.0
        %2738 = vmatpush2.msra.mxu0 0.0
        %2739 = vmatprep.subr.mxu0 0.0
        %2740 = vmatpush2.msra.mxu0 0.0
        %2741 = vmatprep.mubr.f32.mxu0 0.0
        %2742 = vmatmul.mubr.f32.gmra.mxu0 %v2672
        %v2743 = vpop.f32.mrf.mxu0
        %v2744 = vadd.f32 0.0, %v2743
        %v2745 = vpop.f32.mrf.mxu0
        %2746 = vdwg.mxu0
        %v2747 = vadd.f32 %v2665, %v2744
        %s2748 = scalar_lea.vmem [#allocation15], 224
        %v2749 = vld [vmem:[%s2748] sm:$0xff]
        %v2750 = vld [vmem:[%s2748 + $0x8] sm:$0xff]
        %v2751 = vld [vmem:[%s2748 + $0x10] sm:$0xff]
        %v2752 = vld [vmem:[%s2748 + $0x18] sm:$0x3f]
        %v2753 = vrot.slane %v2165, 7
        %v2754 = vsel %vm2178, %v2753, 0
        %v2757 = vsel %vm1077, %v2752, 0
        %2759 = vmatprep.subr.mxu0 0.0
        %2760 = vmatpush1.msra.mxu0 0.0
        %2761 = vmatprep.subr.mxu0 0.0
        %2762 = vmatpush1.msra.mxu0 0.0
        %2763 = vmatprep.subr.mxu0 0.0
        %2764 = vmatpush1.msra.mxu0 0.0
        %2765 = vmatprep.subr.mxu0 0.0
        %2766 = vmatpush1.msra.mxu0 0.0
        %2767 = vmatprep.subr.mxu0 0.0
        %2768 = vmatpush1.msra.mxu0 0.0
        %2769 = vmatprep.subr.mxu0 0.0
        %2770 = vmatpush1.msra.mxu0 0.0
        %2771 = vmatprep.subr.mxu0 0.0
        %2772 = vmatpush1.msra.mxu0 0.0
        %2773 = vmatprep.subr.mxu0 0.0
        %2774 = vmatpush1.msra.mxu0 0.0
        %2775 = vmatprep.subr.mxu0 0.0
        %2776 = vmatpush1.msra.mxu0 0.0
        %2777 = vmatprep.subr.mxu0 0.0
        %2778 = vmatpush1.msra.mxu0 0.0
        %2779 = vmatprep.subr.mxu0 0.0
        %2780 = vmatpush1.msra.mxu0 0.0
        %2781 = vmatprep.subr.mxu0 0.0
        %2782 = vmatpush1.msra.mxu0 0.0
        %2783 = vmatprep.subr.mxu0 0.0
        %2784 = vmatpush1.msra.mxu0 %v2757
        %2785 = vmatprep.subr.mxu0 0.0
        %2786 = vmatpush1.msra.mxu0 %v2751
        %2787 = vmatprep.subr.mxu0 0.0
        %2788 = vmatpush1.msra.mxu0 %v2750
        %2789 = vmatprep.subr.mxu0 0.0
        %2790 = vmatpush1.msra.mxu0 %v2749
        %2791 = vmatprep.subr.mxu0 0.0
        %2792 = vmatpush2.msra.mxu0 0.0
        %2793 = vmatprep.subr.mxu0 0.0
        %2794 = vmatpush2.msra.mxu0 0.0
        %2795 = vmatprep.subr.mxu0 0.0
        %2796 = vmatpush2.msra.mxu0 0.0
        %2797 = vmatprep.subr.mxu0 0.0
        %2798 = vmatpush2.msra.mxu0 0.0
        %2799 = vmatprep.subr.mxu0 0.0
        %2800 = vmatpush2.msra.mxu0 0.0
        %2801 = vmatprep.subr.mxu0 0.0
        %2802 = vmatpush2.msra.mxu0 0.0
        %2803 = vmatprep.subr.mxu0 0.0
        %2804 = vmatpush2.msra.mxu0 0.0
        %2805 = vmatprep.subr.mxu0 0.0
        %2806 = vmatpush2.msra.mxu0 0.0
        %2807 = vmatprep.subr.mxu0 0.0
        %2808 = vmatpush2.msra.mxu0 0.0
        %2809 = vmatprep.subr.mxu0 0.0
        %2810 = vmatpush2.msra.mxu0 0.0
        %2811 = vmatprep.subr.mxu0 0.0
        %2812 = vmatpush2.msra.mxu0 0.0
        %2813 = vmatprep.subr.mxu0 0.0
        %2814 = vmatpush2.msra.mxu0 0.0
        %2815 = vmatprep.subr.mxu0 0.0
        %2816 = vmatpush2.msra.mxu0 0.0
        %2817 = vmatprep.subr.mxu0 0.0
        %2818 = vmatpush2.msra.mxu0 0.0
        %2819 = vmatprep.subr.mxu0 0.0
        %2820 = vmatpush2.msra.mxu0 0.0
        %2821 = vmatprep.subr.mxu0 0.0
        %2822 = vmatpush2.msra.mxu0 0.0
        %2823 = vmatprep.mubr.f32.mxu0 0.0
        %2824 = vmatmul.mubr.f32.gmra.mxu0 %v2754
        %v2825 = vpop.f32.mrf.mxu0
        %v2826 = vadd.f32 0.0, %v2825
        %v2827 = vpop.f32.mrf.mxu0
        %2828 = vdwg.mxu0
        %v2829 = vadd.f32 %v2747, %v2826
        %s2830 = scalar_lea.vmem [#allocation15], 256
        %v2831 = vld [vmem:[%s2830] sm:$0xff]
        %v2832 = vld [vmem:[%s2830 + $0x8] sm:$0xff]
        %v2833 = vld [vmem:[%s2830 + $0x10] sm:$0xff]
        %v2834 = vld [vmem:[%s2830 + $0x18] sm:$0x3f]
        %v2836 = vsel %vm2178, %v2166, 0
        %v2839 = vsel %vm1077, %v2834, 0
        %2841 = vmatprep.subr.mxu0 0.0
        %2842 = vmatpush1.msra.mxu0 0.0
        %2843 = vmatprep.subr.mxu0 0.0
        %2844 = vmatpush1.msra.mxu0 0.0
        %2845 = vmatprep.subr.mxu0 0.0
        %2846 = vmatpush1.msra.mxu0 0.0
        %2847 = vmatprep.subr.mxu0 0.0
        %2848 = vmatpush1.msra.mxu0 0.0
        %2849 = vmatprep.subr.mxu0 0.0
        %2850 = vmatpush1.msra.mxu0 0.0
        %2851 = vmatprep.subr.mxu0 0.0
        %2852 = vmatpush1.msra.mxu0 0.0
        %2853 = vmatprep.subr.mxu0 0.0
        %2854 = vmatpush1.msra.mxu0 0.0
        %2855 = vmatprep.subr.mxu0 0.0
        %2856 = vmatpush1.msra.mxu0 0.0
        %2857 = vmatprep.subr.mxu0 0.0
        %2858 = vmatpush1.msra.mxu0 0.0
        %2859 = vmatprep.subr.mxu0 0.0
        %2860 = vmatpush1.msra.mxu0 0.0
        %2861 = vmatprep.subr.mxu0 0.0
        %2862 = vmatpush1.msra.mxu0 0.0
        %2863 = vmatprep.subr.mxu0 0.0
        %2864 = vmatpush1.msra.mxu0 0.0
        %2865 = vmatprep.subr.mxu0 0.0
        %2866 = vmatpush1.msra.mxu0 %v2839
        %2867 = vmatprep.subr.mxu0 0.0
        %2868 = vmatpush1.msra.mxu0 %v2833
        %2869 = vmatprep.subr.mxu0 0.0
        %2870 = vmatpush1.msra.mxu0 %v2832
        %2871 = vmatprep.subr.mxu0 0.0
        %2872 = vmatpush1.msra.mxu0 %v2831
        %2873 = vmatprep.subr.mxu0 0.0
        %2874 = vmatpush2.msra.mxu0 0.0
        %2875 = vmatprep.subr.mxu0 0.0
        %2876 = vmatpush2.msra.mxu0 0.0
        %2877 = vmatprep.subr.mxu0 0.0
        %2878 = vmatpush2.msra.mxu0 0.0
        %2879 = vmatprep.subr.mxu0 0.0
        %2880 = vmatpush2.msra.mxu0 0.0
        %2881 = vmatprep.subr.mxu0 0.0
        %2882 = vmatpush2.msra.mxu0 0.0
        %2883 = vmatprep.subr.mxu0 0.0
        %2884 = vmatpush2.msra.mxu0 0.0
        %2885 = vmatprep.subr.mxu0 0.0
        %2886 = vmatpush2.msra.mxu0 0.0
        %2887 = vmatprep.subr.mxu0 0.0
        %2888 = vmatpush2.msra.mxu0 0.0
        %2889 = vmatprep.subr.mxu0 0.0
        %2890 = vmatpush2.msra.mxu0 0.0
        %2891 = vmatprep.subr.mxu0 0.0
        %2892 = vmatpush2.msra.mxu0 0.0
        %2893 = vmatprep.subr.mxu0 0.0
        %2894 = vmatpush2.msra.mxu0 0.0
        %2895 = vmatprep.subr.mxu0 0.0
        %2896 = vmatpush2.msra.mxu0 0.0
        %2897 = vmatprep.subr.mxu0 0.0
        %2898 = vmatpush2.msra.mxu0 0.0
        %2899 = vmatprep.subr.mxu0 0.0
        %2900 = vmatpush2.msra.mxu0 0.0
        %2901 = vmatprep.subr.mxu0 0.0
        %2902 = vmatpush2.msra.mxu0 0.0
        %2903 = vmatprep.subr.mxu0 0.0
        %2904 = vmatpush2.msra.mxu0 0.0
        %2905 = vmatprep.mubr.f32.mxu0 0.0
        %2906 = vmatmul.mubr.f32.gmra.mxu0 %v2836
        %v2907 = vpop.f32.mrf.mxu0
        %v2908 = vadd.f32 0.0, %v2907
        %v2909 = vpop.f32.mrf.mxu0
        %2910 = vdwg.mxu0
        %v2911 = vadd.f32 %v2829, %v2908
        %s2912 = scalar_lea.vmem [#allocation15], 288
        %v2913 = vld [vmem:[%s2912] sm:$0xff]
        %v2914 = vld [vmem:[%s2912 + $0x8] sm:$0xff]
        %v2915 = vld [vmem:[%s2912 + $0x10] sm:$0xff]
        %v2916 = vld [vmem:[%s2912 + $0x18] sm:$0x3f]
        %v2917 = vrot.slane %v2166, 1
        %v2918 = vsel %vm2178, %v2917, 0
        %v2921 = vsel %vm1077, %v2916, 0
        %2923 = vmatprep.subr.mxu0 0.0
        %2924 = vmatpush1.msra.mxu0 0.0
        %2925 = vmatprep.subr.mxu0 0.0
        %2926 = vmatpush1.msra.mxu0 0.0
        %2927 = vmatprep.subr.mxu0 0.0
        %2928 = vmatpush1.msra.mxu0 0.0
        %2929 = vmatprep.subr.mxu0 0.0
        %2930 = vmatpush1.msra.mxu0 0.0
        %2931 = vmatprep.subr.mxu0 0.0
        %2932 = vmatpush1.msra.mxu0 0.0
        %2933 = vmatprep.subr.mxu0 0.0
        %2934 = vmatpush1.msra.mxu0 0.0
        %2935 = vmatprep.subr.mxu0 0.0
        %2936 = vmatpush1.msra.mxu0 0.0
        %2937 = vmatprep.subr.mxu0 0.0
        %2938 = vmatpush1.msra.mxu0 0.0
        %2939 = vmatprep.subr.mxu0 0.0
        %2940 = vmatpush1.msra.mxu0 0.0
        %2941 = vmatprep.subr.mxu0 0.0
        %2942 = vmatpush1.msra.mxu0 0.0
        %2943 = vmatprep.subr.mxu0 0.0
        %2944 = vmatpush1.msra.mxu0 0.0
        %2945 = vmatprep.subr.mxu0 0.0
        %2946 = vmatpush1.msra.mxu0 0.0
        %2947 = vmatprep.subr.mxu0 0.0
        %2948 = vmatpush1.msra.mxu0 %v2921
        %2949 = vmatprep.subr.mxu0 0.0
        %2950 = vmatpush1.msra.mxu0 %v2915
        %2951 = vmatprep.subr.mxu0 0.0
        %2952 = vmatpush1.msra.mxu0 %v2914
        %2953 = vmatprep.subr.mxu0 0.0
        %2954 = vmatpush1.msra.mxu0 %v2913
        %2955 = vmatprep.subr.mxu0 0.0
        %2956 = vmatpush2.msra.mxu0 0.0
        %2957 = vmatprep.subr.mxu0 0.0
        %2958 = vmatpush2.msra.mxu0 0.0
        %2959 = vmatprep.subr.mxu0 0.0
        %2960 = vmatpush2.msra.mxu0 0.0
        %2961 = vmatprep.subr.mxu0 0.0
        %2962 = vmatpush2.msra.mxu0 0.0
        %2963 = vmatprep.subr.mxu0 0.0
        %2964 = vmatpush2.msra.mxu0 0.0
        %2965 = vmatprep.subr.mxu0 0.0
        %2966 = vmatpush2.msra.mxu0 0.0
        %2967 = vmatprep.subr.mxu0 0.0
        %2968 = vmatpush2.msra.mxu0 0.0
        %2969 = vmatprep.subr.mxu0 0.0
        %2970 = vmatpush2.msra.mxu0 0.0
        %2971 = vmatprep.subr.mxu0 0.0
        %2972 = vmatpush2.msra.mxu0 0.0
        %2973 = vmatprep.subr.mxu0 0.0
        %2974 = vmatpush2.msra.mxu0 0.0
        %2975 = vmatprep.subr.mxu0 0.0
        %2976 = vmatpush2.msra.mxu0 0.0
        %2977 = vmatprep.subr.mxu0 0.0
        %2978 = vmatpush2.msra.mxu0 0.0
        %2979 = vmatprep.subr.mxu0 0.0
        %2980 = vmatpush2.msra.mxu0 0.0
        %2981 = vmatprep.subr.mxu0 0.0
        %2982 = vmatpush2.msra.mxu0 0.0
        %2983 = vmatprep.subr.mxu0 0.0
        %2984 = vmatpush2.msra.mxu0 0.0
        %2985 = vmatprep.subr.mxu0 0.0
        %2986 = vmatpush2.msra.mxu0 0.0
        %2987 = vmatprep.mubr.f32.mxu0 0.0
        %2988 = vmatmul.mubr.f32.gmra.mxu0 %v2918
        %v2989 = vpop.f32.mrf.mxu0
        %v2990 = vadd.f32 0.0, %v2989
        %v2991 = vpop.f32.mrf.mxu0
        %2992 = vdwg.mxu0
        %v2993 = vadd.f32 %v2911, %v2990
        %s2994 = scalar_lea.vmem [#allocation15], 320
        %v2995 = vld [vmem:[%s2994] sm:$0xff]
        %v2996 = vld [vmem:[%s2994 + $0x8] sm:$0xff]
        %v2997 = vld [vmem:[%s2994 + $0x10] sm:$0xff]
        %v2998 = vld [vmem:[%s2994 + $0x18] sm:$0x3f]
        %v2999 = vrot.slane %v2166, 2
        %v3000 = vsel %vm2178, %v2999, 0
        %v3003 = vsel %vm1077, %v2998, 0
        %3005 = vmatprep.subr.mxu0 0.0
        %3006 = vmatpush1.msra.mxu0 0.0
        %3007 = vmatprep.subr.mxu0 0.0
        %3008 = vmatpush1.msra.mxu0 0.0
        %3009 = vmatprep.subr.mxu0 0.0
        %3010 = vmatpush1.msra.mxu0 0.0
        %3011 = vmatprep.subr.mxu0 0.0
        %3012 = vmatpush1.msra.mxu0 0.0
        %3013 = vmatprep.subr.mxu0 0.0
        %3014 = vmatpush1.msra.mxu0 0.0
        %3015 = vmatprep.subr.mxu0 0.0
        %3016 = vmatpush1.msra.mxu0 0.0
        %3017 = vmatprep.subr.mxu0 0.0
        %3018 = vmatpush1.msra.mxu0 0.0
        %3019 = vmatprep.subr.mxu0 0.0
        %3020 = vmatpush1.msra.mxu0 0.0
        %3021 = vmatprep.subr.mxu0 0.0
        %3022 = vmatpush1.msra.mxu0 0.0
        %3023 = vmatprep.subr.mxu0 0.0
        %3024 = vmatpush1.msra.mxu0 0.0
        %3025 = vmatprep.subr.mxu0 0.0
        %3026 = vmatpush1.msra.mxu0 0.0
        %3027 = vmatprep.subr.mxu0 0.0
        %3028 = vmatpush1.msra.mxu0 0.0
        %3029 = vmatprep.subr.mxu0 0.0
        %3030 = vmatpush1.msra.mxu0 %v3003
        %3031 = vmatprep.subr.mxu0 0.0
        %3032 = vmatpush1.msra.mxu0 %v2997
        %3033 = vmatprep.subr.mxu0 0.0
        %3034 = vmatpush1.msra.mxu0 %v2996
        %3035 = vmatprep.subr.mxu0 0.0
        %3036 = vmatpush1.msra.mxu0 %v2995
        %3037 = vmatprep.subr.mxu0 0.0
        %3038 = vmatpush2.msra.mxu0 0.0
        %3039 = vmatprep.subr.mxu0 0.0
        %3040 = vmatpush2.msra.mxu0 0.0
        %3041 = vmatprep.subr.mxu0 0.0
        %3042 = vmatpush2.msra.mxu0 0.0
        %3043 = vmatprep.subr.mxu0 0.0
        %3044 = vmatpush2.msra.mxu0 0.0
        %3045 = vmatprep.subr.mxu0 0.0
        %3046 = vmatpush2.msra.mxu0 0.0
        %3047 = vmatprep.subr.mxu0 0.0
        %3048 = vmatpush2.msra.mxu0 0.0
        %3049 = vmatprep.subr.mxu0 0.0
        %3050 = vmatpush2.msra.mxu0 0.0
        %3051 = vmatprep.subr.mxu0 0.0
        %3052 = vmatpush2.msra.mxu0 0.0
        %3053 = vmatprep.subr.mxu0 0.0
        %3054 = vmatpush2.msra.mxu0 0.0
        %3055 = vmatprep.subr.mxu0 0.0
        %3056 = vmatpush2.msra.mxu0 0.0
        %3057 = vmatprep.subr.mxu0 0.0
        %3058 = vmatpush2.msra.mxu0 0.0
        %3059 = vmatprep.subr.mxu0 0.0
        %3060 = vmatpush2.msra.mxu0 0.0
        %3061 = vmatprep.subr.mxu0 0.0
        %3062 = vmatpush2.msra.mxu0 0.0
        %3063 = vmatprep.subr.mxu0 0.0
        %3064 = vmatpush2.msra.mxu0 0.0
        %3065 = vmatprep.subr.mxu0 0.0
        %3066 = vmatpush2.msra.mxu0 0.0
        %3067 = vmatprep.subr.mxu0 0.0
        %3068 = vmatpush2.msra.mxu0 0.0
        %3069 = vmatprep.mubr.f32.mxu0 0.0
        %3070 = vmatmul.mubr.f32.gmra.mxu0 %v3000
        %v3071 = vpop.f32.mrf.mxu0
        %v3072 = vadd.f32 0.0, %v3071
        %v3073 = vpop.f32.mrf.mxu0
        %3074 = vdwg.mxu0
        %v3075 = vadd.f32 %v2993, %v3072
        %s3076 = scalar_lea.vmem [#allocation15], 352
        %v3077 = vld [vmem:[%s3076] sm:$0xff]
        %v3078 = vld [vmem:[%s3076 + $0x8] sm:$0xff]
        %v3079 = vld [vmem:[%s3076 + $0x10] sm:$0xff]
        %v3080 = vld [vmem:[%s3076 + $0x18] sm:$0x3f]
        %v3081 = vrot.slane %v2166, 3
        %v3082 = vsel %vm2178, %v3081, 0
        %v3085 = vsel %vm1077, %v3080, 0
        %3087 = vmatprep.subr.mxu0 0.0
        %3088 = vmatpush1.msra.mxu0 0.0
        %3089 = vmatprep.subr.mxu0 0.0
        %3090 = vmatpush1.msra.mxu0 0.0
        %3091 = vmatprep.subr.mxu0 0.0
        %3092 = vmatpush1.msra.mxu0 0.0
        %3093 = vmatprep.subr.mxu0 0.0
        %3094 = vmatpush1.msra.mxu0 0.0
        %3095 = vmatprep.subr.mxu0 0.0
        %3096 = vmatpush1.msra.mxu0 0.0
        %3097 = vmatprep.subr.mxu0 0.0
        %3098 = vmatpush1.msra.mxu0 0.0
        %3099 = vmatprep.subr.mxu0 0.0
        %3100 = vmatpush1.msra.mxu0 0.0
        %3101 = vmatprep.subr.mxu0 0.0
        %3102 = vmatpush1.msra.mxu0 0.0
        %3103 = vmatprep.subr.mxu0 0.0
        %3104 = vmatpush1.msra.mxu0 0.0
        %3105 = vmatprep.subr.mxu0 0.0
        %3106 = vmatpush1.msra.mxu0 0.0
        %3107 = vmatprep.subr.mxu0 0.0
        %3108 = vmatpush1.msra.mxu0 0.0
        %3109 = vmatprep.subr.mxu0 0.0
        %3110 = vmatpush1.msra.mxu0 0.0
        %3111 = vmatprep.subr.mxu0 0.0
        %3112 = vmatpush1.msra.mxu0 %v3085
        %3113 = vmatprep.subr.mxu0 0.0
        %3114 = vmatpush1.msra.mxu0 %v3079
        %3115 = vmatprep.subr.mxu0 0.0
        %3116 = vmatpush1.msra.mxu0 %v3078
        %3117 = vmatprep.subr.mxu0 0.0
        %3118 = vmatpush1.msra.mxu0 %v3077
        %3119 = vmatprep.subr.mxu0 0.0
        %3120 = vmatpush2.msra.mxu0 0.0
        %3121 = vmatprep.subr.mxu0 0.0
        %3122 = vmatpush2.msra.mxu0 0.0
        %3123 = vmatprep.subr.mxu0 0.0
        %3124 = vmatpush2.msra.mxu0 0.0
        %3125 = vmatprep.subr.mxu0 0.0
        %3126 = vmatpush2.msra.mxu0 0.0
        %3127 = vmatprep.subr.mxu0 0.0
        %3128 = vmatpush2.msra.mxu0 0.0
        %3129 = vmatprep.subr.mxu0 0.0
        %3130 = vmatpush2.msra.mxu0 0.0
        %3131 = vmatprep.subr.mxu0 0.0
        %3132 = vmatpush2.msra.mxu0 0.0
        %3133 = vmatprep.subr.mxu0 0.0
        %3134 = vmatpush2.msra.mxu0 0.0
        %3135 = vmatprep.subr.mxu0 0.0
        %3136 = vmatpush2.msra.mxu0 0.0
        %3137 = vmatprep.subr.mxu0 0.0
        %3138 = vmatpush2.msra.mxu0 0.0
        %3139 = vmatprep.subr.mxu0 0.0
        %3140 = vmatpush2.msra.mxu0 0.0
        %3141 = vmatprep.subr.mxu0 0.0
        %3142 = vmatpush2.msra.mxu0 0.0
        %3143 = vmatprep.subr.mxu0 0.0
        %3144 = vmatpush2.msra.mxu0 0.0
        %3145 = vmatprep.subr.mxu0 0.0
        %3146 = vmatpush2.msra.mxu0 0.0
        %3147 = vmatprep.subr.mxu0 0.0
        %3148 = vmatpush2.msra.mxu0 0.0
        %3149 = vmatprep.subr.mxu0 0.0
        %3150 = vmatpush2.msra.mxu0 0.0
        %3151 = vmatprep.mubr.f32.mxu0 0.0
        %3152 = vmatmul.mubr.f32.gmra.mxu0 %v3082
        %v3153 = vpop.f32.mrf.mxu0
        %v3154 = vadd.f32 0.0, %v3153
        %v3155 = vpop.f32.mrf.mxu0
        %3156 = vdwg.mxu0
        %v3157 = vadd.f32 %v3075, %v3154
        %s3158 = scalar_lea.vmem [#allocation15], 384
        %v3159 = vld [vmem:[%s3158] sm:$0xff]
        %v3160 = vld [vmem:[%s3158 + $0x8] sm:$0xff]
        %v3161 = vld [vmem:[%s3158 + $0x10] sm:$0xff]
        %v3162 = vld [vmem:[%s3158 + $0x18] sm:$0x3f]
        %v3163 = vrot.slane %v2166, 4
        %v3164 = vsel %vm2178, %v3163, 0
        %v3167 = vsel %vm1077, %v3162, 0
        %3169 = vmatprep.subr.mxu0 0.0
        %3170 = vmatpush1.msra.mxu0 0.0
        %3171 = vmatprep.subr.mxu0 0.0
        %3172 = vmatpush1.msra.mxu0 0.0
        %3173 = vmatprep.subr.mxu0 0.0
        %3174 = vmatpush1.msra.mxu0 0.0
        %3175 = vmatprep.subr.mxu0 0.0
        %3176 = vmatpush1.msra.mxu0 0.0
        %3177 = vmatprep.subr.mxu0 0.0
        %3178 = vmatpush1.msra.mxu0 0.0
        %3179 = vmatprep.subr.mxu0 0.0
        %3180 = vmatpush1.msra.mxu0 0.0
        %3181 = vmatprep.subr.mxu0 0.0
        %3182 = vmatpush1.msra.mxu0 0.0
        %3183 = vmatprep.subr.mxu0 0.0
        %3184 = vmatpush1.msra.mxu0 0.0
        %3185 = vmatprep.subr.mxu0 0.0
        %3186 = vmatpush1.msra.mxu0 0.0
        %3187 = vmatprep.subr.mxu0 0.0
        %3188 = vmatpush1.msra.mxu0 0.0
        %3189 = vmatprep.subr.mxu0 0.0
        %3190 = vmatpush1.msra.mxu0 0.0
        %3191 = vmatprep.subr.mxu0 0.0
        %3192 = vmatpush1.msra.mxu0 0.0
        %3193 = vmatprep.subr.mxu0 0.0
        %3194 = vmatpush1.msra.mxu0 %v3167
        %3195 = vmatprep.subr.mxu0 0.0
        %3196 = vmatpush1.msra.mxu0 %v3161
        %3197 = vmatprep.subr.mxu0 0.0
        %3198 = vmatpush1.msra.mxu0 %v3160
        %3199 = vmatprep.subr.mxu0 0.0
        %3200 = vmatpush1.msra.mxu0 %v3159
        %3201 = vmatprep.subr.mxu0 0.0
        %3202 = vmatpush2.msra.mxu0 0.0
        %3203 = vmatprep.subr.mxu0 0.0
        %3204 = vmatpush2.msra.mxu0 0.0
        %3205 = vmatprep.subr.mxu0 0.0
        %3206 = vmatpush2.msra.mxu0 0.0
        %3207 = vmatprep.subr.mxu0 0.0
        %3208 = vmatpush2.msra.mxu0 0.0
        %3209 = vmatprep.subr.mxu0 0.0
        %3210 = vmatpush2.msra.mxu0 0.0
        %3211 = vmatprep.subr.mxu0 0.0
        %3212 = vmatpush2.msra.mxu0 0.0
        %3213 = vmatprep.subr.mxu0 0.0
        %3214 = vmatpush2.msra.mxu0 0.0
        %3215 = vmatprep.subr.mxu0 0.0
        %3216 = vmatpush2.msra.mxu0 0.0
        %3217 = vmatprep.subr.mxu0 0.0
        %3218 = vmatpush2.msra.mxu0 0.0
        %3219 = vmatprep.subr.mxu0 0.0
        %3220 = vmatpush2.msra.mxu0 0.0
        %3221 = vmatprep.subr.mxu0 0.0
        %3222 = vmatpush2.msra.mxu0 0.0
        %3223 = vmatprep.subr.mxu0 0.0
        %3224 = vmatpush2.msra.mxu0 0.0
        %3225 = vmatprep.subr.mxu0 0.0
        %3226 = vmatpush2.msra.mxu0 0.0
        %3227 = vmatprep.subr.mxu0 0.0
        %3228 = vmatpush2.msra.mxu0 0.0
        %3229 = vmatprep.subr.mxu0 0.0
        %3230 = vmatpush2.msra.mxu0 0.0
        %3231 = vmatprep.subr.mxu0 0.0
        %3232 = vmatpush2.msra.mxu0 0.0
        %3233 = vmatprep.mubr.f32.mxu0 0.0
        %3234 = vmatmul.mubr.f32.gmra.mxu0 %v3164
        %v3235 = vpop.f32.mrf.mxu0
        %v3236 = vadd.f32 0.0, %v3235
        %v3237 = vpop.f32.mrf.mxu0
        %3238 = vdwg.mxu0
        %v3239 = vadd.f32 %v3157, %v3236
        %s3240 = scalar_lea.vmem [#allocation15], 416
        %v3241 = vld [vmem:[%s3240] sm:$0xff]
        %v3242 = vld [vmem:[%s3240 + $0x8] sm:$0xff]
        %v3243 = vld [vmem:[%s3240 + $0x10] sm:$0xff]
        %v3244 = vld [vmem:[%s3240 + $0x18] sm:$0x3f]
        %v3245 = vrot.slane %v2166, 5
        %v3246 = vsel %vm2178, %v3245, 0
        %v3249 = vsel %vm1077, %v3244, 0
        %3251 = vmatprep.subr.mxu0 0.0
        %3252 = vmatpush1.msra.mxu0 0.0
        %3253 = vmatprep.subr.mxu0 0.0
        %3254 = vmatpush1.msra.mxu0 0.0
        %3255 = vmatprep.subr.mxu0 0.0
        %3256 = vmatpush1.msra.mxu0 0.0
        %3257 = vmatprep.subr.mxu0 0.0
        %3258 = vmatpush1.msra.mxu0 0.0
        %3259 = vmatprep.subr.mxu0 0.0
        %3260 = vmatpush1.msra.mxu0 0.0
        %3261 = vmatprep.subr.mxu0 0.0
        %3262 = vmatpush1.msra.mxu0 0.0
        %3263 = vmatprep.subr.mxu0 0.0
        %3264 = vmatpush1.msra.mxu0 0.0
        %3265 = vmatprep.subr.mxu0 0.0
        %3266 = vmatpush1.msra.mxu0 0.0
        %3267 = vmatprep.subr.mxu0 0.0
        %3268 = vmatpush1.msra.mxu0 0.0
        %3269 = vmatprep.subr.mxu0 0.0
        %3270 = vmatpush1.msra.mxu0 0.0
        %3271 = vmatprep.subr.mxu0 0.0
        %3272 = vmatpush1.msra.mxu0 0.0
        %3273 = vmatprep.subr.mxu0 0.0
        %3274 = vmatpush1.msra.mxu0 0.0
        %3275 = vmatprep.subr.mxu0 0.0
        %3276 = vmatpush1.msra.mxu0 %v3249
        %3277 = vmatprep.subr.mxu0 0.0
        %3278 = vmatpush1.msra.mxu0 %v3243
        %3279 = vmatprep.subr.mxu0 0.0
        %3280 = vmatpush1.msra.mxu0 %v3242
        %3281 = vmatprep.subr.mxu0 0.0
        %3282 = vmatpush1.msra.mxu0 %v3241
        %3283 = vmatprep.subr.mxu0 0.0
        %3284 = vmatpush2.msra.mxu0 0.0
        %3285 = vmatprep.subr.mxu0 0.0
        %3286 = vmatpush2.msra.mxu0 0.0
        %3287 = vmatprep.subr.mxu0 0.0
        %3288 = vmatpush2.msra.mxu0 0.0
        %3289 = vmatprep.subr.mxu0 0.0
        %3290 = vmatpush2.msra.mxu0 0.0
        %3291 = vmatprep.subr.mxu0 0.0
        %3292 = vmatpush2.msra.mxu0 0.0
        %3293 = vmatprep.subr.mxu0 0.0
        %3294 = vmatpush2.msra.mxu0 0.0
        %3295 = vmatprep.subr.mxu0 0.0
        %3296 = vmatpush2.msra.mxu0 0.0
        %3297 = vmatprep.subr.mxu0 0.0
        %3298 = vmatpush2.msra.mxu0 0.0
        %3299 = vmatprep.subr.mxu0 0.0
        %3300 = vmatpush2.msra.mxu0 0.0
        %3301 = vmatprep.subr.mxu0 0.0
        %3302 = vmatpush2.msra.mxu0 0.0
        %3303 = vmatprep.subr.mxu0 0.0
        %3304 = vmatpush2.msra.mxu0 0.0
        %3305 = vmatprep.subr.mxu0 0.0
        %3306 = vmatpush2.msra.mxu0 0.0
        %3307 = vmatprep.subr.mxu0 0.0
        %3308 = vmatpush2.msra.mxu0 0.0
        %3309 = vmatprep.subr.mxu0 0.0
        %3310 = vmatpush2.msra.mxu0 0.0
        %3311 = vmatprep.subr.mxu0 0.0
        %3312 = vmatpush2.msra.mxu0 0.0
        %3313 = vmatprep.subr.mxu0 0.0
        %3314 = vmatpush2.msra.mxu0 0.0
        %3315 = vmatprep.mubr.f32.mxu0 0.0
        %3316 = vmatmul.mubr.f32.gmra.mxu0 %v3246
        %v3317 = vpop.f32.mrf.mxu0
        %v3318 = vadd.f32 0.0, %v3317
        %v3319 = vpop.f32.mrf.mxu0
        %3320 = vdwg.mxu0
        %v3321 = vadd.f32 %v3239, %v3318
        %vm3322 = vcmask 122880
        %3323 = vst.msk [vmem:[%s843] sm:$0x1] %vm3322, %v3321
        %v3324 = vld [vmem:[#allocation17] sm:$0xff]
        %v3325 = vld [vmem:[#allocation17 + $0x8] sm:$0xff]
        %vm3326 = vcmask 130048
        %v3328 = vsel %vm3326, %v3321, 0
        %3330 = vmatprep.subr.mxu0 0.0
        %3331 = vmatpush1.msra.mxu0 0.0
        %3332 = vmatprep.subr.mxu0 0.0
        %3333 = vmatpush1.msra.mxu0 0.0
        %3334 = vmatprep.subr.mxu0 0.0
        %3335 = vmatpush1.msra.mxu0 0.0
        %3336 = vmatprep.subr.mxu0 0.0
        %3337 = vmatpush1.msra.mxu0 0.0
        %3338 = vmatprep.subr.mxu0 0.0
        %3339 = vmatpush1.msra.mxu0 0.0
        %3340 = vmatprep.subr.mxu0 0.0
        %3341 = vmatpush1.msra.mxu0 0.0
        %3342 = vmatprep.subr.mxu0 0.0
        %3343 = vmatpush1.msra.mxu0 0.0
        %3344 = vmatprep.subr.mxu0 0.0
        %3345 = vmatpush1.msra.mxu0 0.0
        %3346 = vmatprep.subr.mxu0 0.0
        %3347 = vmatpush1.msra.mxu0 0.0
        %3348 = vmatprep.subr.mxu0 0.0
        %3349 = vmatpush1.msra.mxu0 0.0
        %3350 = vmatprep.subr.mxu0 0.0
        %3351 = vmatpush1.msra.mxu0 0.0
        %3352 = vmatprep.subr.mxu0 0.0
        %3353 = vmatpush1.msra.mxu0 0.0
        %3354 = vmatprep.subr.mxu0 0.0
        %3355 = vmatpush1.msra.mxu0 0.0
        %3356 = vmatprep.subr.mxu0 0.0
        %3357 = vmatpush1.msra.mxu0 0.0
        %3358 = vmatprep.subr.mxu0 0.0
        %3359 = vmatpush1.msra.mxu0 %v3325
        %3360 = vmatprep.subr.mxu0 0.0
        %3361 = vmatpush1.msra.mxu0 %v3324
        %3362 = vmatprep.subr.mxu0 0.0
        %3363 = vmatpush2.msra.mxu0 0.0
        %3364 = vmatprep.subr.mxu0 0.0
        %3365 = vmatpush2.msra.mxu0 0.0
        %3366 = vmatprep.subr.mxu0 0.0
        %3367 = vmatpush2.msra.mxu0 0.0
        %3368 = vmatprep.subr.mxu0 0.0
        %3369 = vmatpush2.msra.mxu0 0.0
        %3370 = vmatprep.subr.mxu0 0.0
        %3371 = vmatpush2.msra.mxu0 0.0
        %3372 = vmatprep.subr.mxu0 0.0
        %3373 = vmatpush2.msra.mxu0 0.0
        %3374 = vmatprep.subr.mxu0 0.0
        %3375 = vmatpush2.msra.mxu0 0.0
        %3376 = vmatprep.subr.mxu0 0.0
        %3377 = vmatpush2.msra.mxu0 0.0
        %3378 = vmatprep.subr.mxu0 0.0
        %3379 = vmatpush2.msra.mxu0 0.0
        %3380 = vmatprep.subr.mxu0 0.0
        %3381 = vmatpush2.msra.mxu0 0.0
        %3382 = vmatprep.subr.mxu0 0.0
        %3383 = vmatpush2.msra.mxu0 0.0
        %3384 = vmatprep.subr.mxu0 0.0
        %3385 = vmatpush2.msra.mxu0 0.0
        %3386 = vmatprep.subr.mxu0 0.0
        %3387 = vmatpush2.msra.mxu0 0.0
        %3388 = vmatprep.subr.mxu0 0.0
        %3389 = vmatpush2.msra.mxu0 0.0
        %3390 = vmatprep.subr.mxu0 0.0
        %3391 = vmatpush2.msra.mxu0 0.0
        %3392 = vmatprep.subr.mxu0 0.0
        %3393 = vmatpush2.msra.mxu0 0.0
        %3394 = vmatprep.mubr.f32.mxu0 0.0
        %3395 = vmatmul.mubr.f32.gmra.mxu0 %v3328
        %v3396 = vpop.f32.mrf.mxu0
        %v3397 = vadd.f32 0.0, %v3396
        %v3398 = vpop.f32.mrf.mxu0
        %3399 = vdwg.mxu0
        %vm3400 = vcmask 237568
        %3401 = vst.msk [vmem:[#allocation2] sm:$0x1] %vm3400, %v3397
        %s3402 = scalar_lea.vmem [#allocation17], 16
        %v3403 = vld [vmem:[%s3402] sm:$0xff]
        %v3404 = vld [vmem:[%s3402 + $0x8] sm:$0xff]
        %3405 = vmatprep.subr.mxu0 0.0
        %3406 = vmatpush1.msra.mxu0 0.0
        %3407 = vmatprep.subr.mxu0 0.0
        %3408 = vmatpush1.msra.mxu0 0.0
        %3409 = vmatprep.subr.mxu0 0.0
        %3410 = vmatpush1.msra.mxu0 0.0
        %3411 = vmatprep.subr.mxu0 0.0
        %3412 = vmatpush1.msra.mxu0 0.0
        %3413 = vmatprep.subr.mxu0 0.0
        %3414 = vmatpush1.msra.mxu0 0.0
        %3415 = vmatprep.subr.mxu0 0.0
        %3416 = vmatpush1.msra.mxu0 0.0
        %3417 = vmatprep.subr.mxu0 0.0
        %3418 = vmatpush1.msra.mxu0 0.0
        %3419 = vmatprep.subr.mxu0 0.0
        %3420 = vmatpush1.msra.mxu0 0.0
        %3421 = vmatprep.subr.mxu0 0.0
        %3422 = vmatpush1.msra.mxu0 0.0
        %3423 = vmatprep.subr.mxu0 0.0
        %3424 = vmatpush1.msra.mxu0 0.0
        %3425 = vmatprep.subr.mxu0 0.0
        %3426 = vmatpush1.msra.mxu0 0.0
        %3427 = vmatprep.subr.mxu0 0.0
        %3428 = vmatpush1.msra.mxu0 0.0
        %3429 = vmatprep.subr.mxu0 0.0
        %3430 = vmatpush1.msra.mxu0 0.0
        %3431 = vmatprep.subr.mxu0 0.0
        %3432 = vmatpush1.msra.mxu0 0.0
        %3433 = vmatprep.subr.mxu0 0.0
        %3434 = vmatpush1.msra.mxu0 %v3404
        %3435 = vmatprep.subr.mxu0 0.0
        %3436 = vmatpush1.msra.mxu0 %v3403
        %3437 = vmatprep.subr.mxu0 0.0
        %3438 = vmatpush2.msra.mxu0 0.0
        %3439 = vmatprep.subr.mxu0 0.0
        %3440 = vmatpush2.msra.mxu0 0.0
        %3441 = vmatprep.subr.mxu0 0.0
        %3442 = vmatpush2.msra.mxu0 0.0
        %3443 = vmatprep.subr.mxu0 0.0
        %3444 = vmatpush2.msra.mxu0 0.0
        %3445 = vmatprep.subr.mxu0 0.0
        %3446 = vmatpush2.msra.mxu0 0.0
        %3447 = vmatprep.subr.mxu0 0.0
        %3448 = vmatpush2.msra.mxu0 0.0
        %3449 = vmatprep.subr.mxu0 0.0
        %3450 = vmatpush2.msra.mxu0 0.0
        %3451 = vmatprep.subr.mxu0 0.0
        %3452 = vmatpush2.msra.mxu0 0.0
        %3453 = vmatprep.subr.mxu0 0.0
        %3454 = vmatpush2.msra.mxu0 0.0
        %3455 = vmatprep.subr.mxu0 0.0
        %3456 = vmatpush2.msra.mxu0 0.0
        %3457 = vmatprep.subr.mxu0 0.0
        %3458 = vmatpush2.msra.mxu0 0.0
        %3459 = vmatprep.subr.mxu0 0.0
        %3460 = vmatpush2.msra.mxu0 0.0
        %3461 = vmatprep.subr.mxu0 0.0
        %3462 = vmatpush2.msra.mxu0 0.0
        %3463 = vmatprep.subr.mxu0 0.0
        %3464 = vmatpush2.msra.mxu0 0.0
        %3465 = vmatprep.subr.mxu0 0.0
        %3466 = vmatpush2.msra.mxu0 0.0
        %3467 = vmatprep.subr.mxu0 0.0
        %3468 = vmatpush2.msra.mxu0 0.0
        %3469 = vmatprep.mubr.f32.mxu0 0.0
        %3470 = vmatmul.mubr.f32.gmra.mxu0 %v3328
        %v3471 = vpop.f32.mrf.mxu0
        %v3472 = vadd.f32 0.0, %v3471
        %v3473 = vpop.f32.mrf.mxu0
        %3474 = vdwg.mxu0
        %3475 = vst.msk [vmem:[#allocation2 + $0x1] sm:$0x1] %vm3400, %v3472
        %s3476 = scalar_lea.vmem [#allocation17], 32
        %v3477 = vld [vmem:[%s3476] sm:$0xff]
        %v3478 = vld [vmem:[%s3476 + $0x8] sm:$0xff]
        %3479 = vmatprep.subr.mxu0 0.0
        %3480 = vmatpush1.msra.mxu0 0.0
        %3481 = vmatprep.subr.mxu0 0.0
        %3482 = vmatpush1.msra.mxu0 0.0
        %3483 = vmatprep.subr.mxu0 0.0
        %3484 = vmatpush1.msra.mxu0 0.0
        %3485 = vmatprep.subr.mxu0 0.0
        %3486 = vmatpush1.msra.mxu0 0.0
        %3487 = vmatprep.subr.mxu0 0.0
        %3488 = vmatpush1.msra.mxu0 0.0
        %3489 = vmatprep.subr.mxu0 0.0
        %3490 = vmatpush1.msra.mxu0 0.0
        %3491 = vmatprep.subr.mxu0 0.0
        %3492 = vmatpush1.msra.mxu0 0.0
        %3493 = vmatprep.subr.mxu0 0.0
        %3494 = vmatpush1.msra.mxu0 0.0
        %3495 = vmatprep.subr.mxu0 0.0
        %3496 = vmatpush1.msra.mxu0 0.0
        %3497 = vmatprep.subr.mxu0 0.0
        %3498 = vmatpush1.msra.mxu0 0.0
        %3499 = vmatprep.subr.mxu0 0.0
        %3500 = vmatpush1.msra.mxu0 0.0
        %3501 = vmatprep.subr.mxu0 0.0
        %3502 = vmatpush1.msra.mxu0 0.0
        %3503 = vmatprep.subr.mxu0 0.0
        %3504 = vmatpush1.msra.mxu0 0.0
        %3505 = vmatprep.subr.mxu0 0.0
        %3506 = vmatpush1.msra.mxu0 0.0
        %3507 = vmatprep.subr.mxu0 0.0
        %3508 = vmatpush1.msra.mxu0 %v3478
        %3509 = vmatprep.subr.mxu0 0.0
        %3510 = vmatpush1.msra.mxu0 %v3477
        %3511 = vmatprep.subr.mxu0 0.0
        %3512 = vmatpush2.msra.mxu0 0.0
        %3513 = vmatprep.subr.mxu0 0.0
        %3514 = vmatpush2.msra.mxu0 0.0
        %3515 = vmatprep.subr.mxu0 0.0
        %3516 = vmatpush2.msra.mxu0 0.0
        %3517 = vmatprep.subr.mxu0 0.0
        %3518 = vmatpush2.msra.mxu0 0.0
        %3519 = vmatprep.subr.mxu0 0.0
        %3520 = vmatpush2.msra.mxu0 0.0
        %3521 = vmatprep.subr.mxu0 0.0
        %3522 = vmatpush2.msra.mxu0 0.0
        %3523 = vmatprep.subr.mxu0 0.0
        %3524 = vmatpush2.msra.mxu0 0.0
        %3525 = vmatprep.subr.mxu0 0.0
        %3526 = vmatpush2.msra.mxu0 0.0
        %3527 = vmatprep.subr.mxu0 0.0
        %3528 = vmatpush2.msra.mxu0 0.0
        %3529 = vmatprep.subr.mxu0 0.0
        %3530 = vmatpush2.msra.mxu0 0.0
        %3531 = vmatprep.subr.mxu0 0.0
        %3532 = vmatpush2.msra.mxu0 0.0
        %3533 = vmatprep.subr.mxu0 0.0
        %3534 = vmatpush2.msra.mxu0 0.0
        %3535 = vmatprep.subr.mxu0 0.0
        %3536 = vmatpush2.msra.mxu0 0.0
        %3537 = vmatprep.subr.mxu0 0.0
        %3538 = vmatpush2.msra.mxu0 0.0
        %3539 = vmatprep.subr.mxu0 0.0
        %3540 = vmatpush2.msra.mxu0 0.0
        %3541 = vmatprep.subr.mxu0 0.0
        %3542 = vmatpush2.msra.mxu0 0.0
        %3543 = vmatprep.mubr.f32.mxu0 0.0
        %3544 = vmatmul.mubr.f32.gmra.mxu0 %v3328
        %v3545 = vpop.f32.mrf.mxu0
        %v3546 = vadd.f32 0.0, %v3545
        %v3547 = vpop.f32.mrf.mxu0
        %3548 = vdwg.mxu0
        %3549 = vst.msk [vmem:[#allocation2 + $0x2] sm:$0x1] %vm3400, %v3546
        %s3550 = scalar_lea.vmem [#allocation17], 48
        %v3551 = vld [vmem:[%s3550] sm:$0xff]
        %v3552 = vld [vmem:[%s3550 + $0x8] sm:$0xff]
        %3553 = vmatprep.subr.mxu0 0.0
        %3554 = vmatpush1.msra.mxu0 0.0
        %3555 = vmatprep.subr.mxu0 0.0
        %3556 = vmatpush1.msra.mxu0 0.0
        %3557 = vmatprep.subr.mxu0 0.0
        %3558 = vmatpush1.msra.mxu0 0.0
        %3559 = vmatprep.subr.mxu0 0.0
        %3560 = vmatpush1.msra.mxu0 0.0
        %3561 = vmatprep.subr.mxu0 0.0
        %3562 = vmatpush1.msra.mxu0 0.0
        %3563 = vmatprep.subr.mxu0 0.0
        %3564 = vmatpush1.msra.mxu0 0.0
        %3565 = vmatprep.subr.mxu0 0.0
        %3566 = vmatpush1.msra.mxu0 0.0
        %3567 = vmatprep.subr.mxu0 0.0
        %3568 = vmatpush1.msra.mxu0 0.0
        %3569 = vmatprep.subr.mxu0 0.0
        %3570 = vmatpush1.msra.mxu0 0.0
        %3571 = vmatprep.subr.mxu0 0.0
        %3572 = vmatpush1.msra.mxu0 0.0
        %3573 = vmatprep.subr.mxu0 0.0
        %3574 = vmatpush1.msra.mxu0 0.0
        %3575 = vmatprep.subr.mxu0 0.0
        %3576 = vmatpush1.msra.mxu0 0.0
        %3577 = vmatprep.subr.mxu0 0.0
        %3578 = vmatpush1.msra.mxu0 0.0
        %3579 = vmatprep.subr.mxu0 0.0
        %3580 = vmatpush1.msra.mxu0 0.0
        %3581 = vmatprep.subr.mxu0 0.0
        %3582 = vmatpush1.msra.mxu0 %v3552
        %3583 = vmatprep.subr.mxu0 0.0
        %3584 = vmatpush1.msra.mxu0 %v3551
        %3585 = vmatprep.subr.mxu0 0.0
        %3586 = vmatpush2.msra.mxu0 0.0
        %3587 = vmatprep.subr.mxu0 0.0
        %3588 = vmatpush2.msra.mxu0 0.0
        %3589 = vmatprep.subr.mxu0 0.0
        %3590 = vmatpush2.msra.mxu0 0.0
        %3591 = vmatprep.subr.mxu0 0.0
        %3592 = vmatpush2.msra.mxu0 0.0
        %3593 = vmatprep.subr.mxu0 0.0
        %3594 = vmatpush2.msra.mxu0 0.0
        %3595 = vmatprep.subr.mxu0 0.0
        %3596 = vmatpush2.msra.mxu0 0.0
        %3597 = vmatprep.subr.mxu0 0.0
        %3598 = vmatpush2.msra.mxu0 0.0
        %3599 = vmatprep.subr.mxu0 0.0
        %3600 = vmatpush2.msra.mxu0 0.0
        %3601 = vmatprep.subr.mxu0 0.0
        %3602 = vmatpush2.msra.mxu0 0.0
        %3603 = vmatprep.subr.mxu0 0.0
        %3604 = vmatpush2.msra.mxu0 0.0
        %3605 = vmatprep.subr.mxu0 0.0
        %3606 = vmatpush2.msra.mxu0 0.0
        %3607 = vmatprep.subr.mxu0 0.0
        %3608 = vmatpush2.msra.mxu0 0.0
        %3609 = vmatprep.subr.mxu0 0.0
        %3610 = vmatpush2.msra.mxu0 0.0
        %3611 = vmatprep.subr.mxu0 0.0
        %3612 = vmatpush2.msra.mxu0 0.0
        %3613 = vmatprep.subr.mxu0 0.0
        %3614 = vmatpush2.msra.mxu0 0.0
        %3615 = vmatprep.subr.mxu0 0.0
        %3616 = vmatpush2.msra.mxu0 0.0
        %3617 = vmatprep.mubr.f32.mxu0 0.0
        %3618 = vmatmul.mubr.f32.gmra.mxu0 %v3328
        %v3619 = vpop.f32.mrf.mxu0
        %v3620 = vadd.f32 0.0, %v3619
        %v3621 = vpop.f32.mrf.mxu0
        %3622 = vdwg.mxu0
        %3623 = vst.msk [vmem:[#allocation2 + $0x3] sm:$0x1] %vm3400, %v3620
        %s3624 = scalar_lea.vmem [#allocation17], 64
        %v3625 = vld [vmem:[%s3624] sm:$0xff]
        %v3626 = vld [vmem:[%s3624 + $0x8] sm:$0xff]
        %3627 = vmatprep.subr.mxu0 0.0
        %3628 = vmatpush1.msra.mxu0 0.0
        %3629 = vmatprep.subr.mxu0 0.0
        %3630 = vmatpush1.msra.mxu0 0.0
        %3631 = vmatprep.subr.mxu0 0.0
        %3632 = vmatpush1.msra.mxu0 0.0
        %3633 = vmatprep.subr.mxu0 0.0
        %3634 = vmatpush1.msra.mxu0 0.0
        %3635 = vmatprep.subr.mxu0 0.0
        %3636 = vmatpush1.msra.mxu0 0.0
        %3637 = vmatprep.subr.mxu0 0.0
        %3638 = vmatpush1.msra.mxu0 0.0
        %3639 = vmatprep.subr.mxu0 0.0
        %3640 = vmatpush1.msra.mxu0 0.0
        %3641 = vmatprep.subr.mxu0 0.0
        %3642 = vmatpush1.msra.mxu0 0.0
        %3643 = vmatprep.subr.mxu0 0.0
        %3644 = vmatpush1.msra.mxu0 0.0
        %3645 = vmatprep.subr.mxu0 0.0
        %3646 = vmatpush1.msra.mxu0 0.0
        %3647 = vmatprep.subr.mxu0 0.0
        %3648 = vmatpush1.msra.mxu0 0.0
        %3649 = vmatprep.subr.mxu0 0.0
        %3650 = vmatpush1.msra.mxu0 0.0
        %3651 = vmatprep.subr.mxu0 0.0
        %3652 = vmatpush1.msra.mxu0 0.0
        %3653 = vmatprep.subr.mxu0 0.0
        %3654 = vmatpush1.msra.mxu0 0.0
        %3655 = vmatprep.subr.mxu0 0.0
        %3656 = vmatpush1.msra.mxu0 %v3626
        %3657 = vmatprep.subr.mxu0 0.0
        %3658 = vmatpush1.msra.mxu0 %v3625
        %3659 = vmatprep.subr.mxu0 0.0
        %3660 = vmatpush2.msra.mxu0 0.0
        %3661 = vmatprep.subr.mxu0 0.0
        %3662 = vmatpush2.msra.mxu0 0.0
        %3663 = vmatprep.subr.mxu0 0.0
        %3664 = vmatpush2.msra.mxu0 0.0
        %3665 = vmatprep.subr.mxu0 0.0
        %3666 = vmatpush2.msra.mxu0 0.0
        %3667 = vmatprep.subr.mxu0 0.0
        %3668 = vmatpush2.msra.mxu0 0.0
        %3669 = vmatprep.subr.mxu0 0.0
        %3670 = vmatpush2.msra.mxu0 0.0
        %3671 = vmatprep.subr.mxu0 0.0
        %3672 = vmatpush2.msra.mxu0 0.0
        %3673 = vmatprep.subr.mxu0 0.0
        %3674 = vmatpush2.msra.mxu0 0.0
        %3675 = vmatprep.subr.mxu0 0.0
        %3676 = vmatpush2.msra.mxu0 0.0
        %3677 = vmatprep.subr.mxu0 0.0
        %3678 = vmatpush2.msra.mxu0 0.0
        %3679 = vmatprep.subr.mxu0 0.0
        %3680 = vmatpush2.msra.mxu0 0.0
        %3681 = vmatprep.subr.mxu0 0.0
        %3682 = vmatpush2.msra.mxu0 0.0
        %3683 = vmatprep.subr.mxu0 0.0
        %3684 = vmatpush2.msra.mxu0 0.0
        %3685 = vmatprep.subr.mxu0 0.0
        %3686 = vmatpush2.msra.mxu0 0.0
        %3687 = vmatprep.subr.mxu0 0.0
        %3688 = vmatpush2.msra.mxu0 0.0
        %3689 = vmatprep.subr.mxu0 0.0
        %3690 = vmatpush2.msra.mxu0 0.0
        %3691 = vmatprep.mubr.f32.mxu0 0.0
        %3692 = vmatmul.mubr.f32.gmra.mxu0 %v3328
        %v3693 = vpop.f32.mrf.mxu0
        %v3694 = vadd.f32 0.0, %v3693
        %v3695 = vpop.f32.mrf.mxu0
        %3696 = vdwg.mxu0
        %3697 = vst.msk [vmem:[#allocation2 + $0x4] sm:$0x1] %vm3400, %v3694
        %s3698 = scalar_lea.vmem [#allocation17], 80
        %v3699 = vld [vmem:[%s3698] sm:$0xff]
        %v3700 = vld [vmem:[%s3698 + $0x8] sm:$0xff]
        %3701 = vmatprep.subr.mxu0 0.0
        %3702 = vmatpush1.msra.mxu0 0.0
        %3703 = vmatprep.subr.mxu0 0.0
        %3704 = vmatpush1.msra.mxu0 0.0
        %3705 = vmatprep.subr.mxu0 0.0
        %3706 = vmatpush1.msra.mxu0 0.0
        %3707 = vmatprep.subr.mxu0 0.0
        %3708 = vmatpush1.msra.mxu0 0.0
        %3709 = vmatprep.subr.mxu0 0.0
        %3710 = vmatpush1.msra.mxu0 0.0
        %3711 = vmatprep.subr.mxu0 0.0
        %3712 = vmatpush1.msra.mxu0 0.0
        %3713 = vmatprep.subr.mxu0 0.0
        %3714 = vmatpush1.msra.mxu0 0.0
        %3715 = vmatprep.subr.mxu0 0.0
        %3716 = vmatpush1.msra.mxu0 0.0
        %3717 = vmatprep.subr.mxu0 0.0
        %3718 = vmatpush1.msra.mxu0 0.0
        %3719 = vmatprep.subr.mxu0 0.0
        %3720 = vmatpush1.msra.mxu0 0.0
        %3721 = vmatprep.subr.mxu0 0.0
        %3722 = vmatpush1.msra.mxu0 0.0
        %3723 = vmatprep.subr.mxu0 0.0
        %3724 = vmatpush1.msra.mxu0 0.0
        %3725 = vmatprep.subr.mxu0 0.0
        %3726 = vmatpush1.msra.mxu0 0.0
        %3727 = vmatprep.subr.mxu0 0.0
        %3728 = vmatpush1.msra.mxu0 0.0
        %3729 = vmatprep.subr.mxu0 0.0
        %3730 = vmatpush1.msra.mxu0 %v3700
        %3731 = vmatprep.subr.mxu0 0.0
        %3732 = vmatpush1.msra.mxu0 %v3699
        %3733 = vmatprep.subr.mxu0 0.0
        %3734 = vmatpush2.msra.mxu0 0.0
        %3735 = vmatprep.subr.mxu0 0.0
        %3736 = vmatpush2.msra.mxu0 0.0
        %3737 = vmatprep.subr.mxu0 0.0
        %3738 = vmatpush2.msra.mxu0 0.0
        %3739 = vmatprep.subr.mxu0 0.0
        %3740 = vmatpush2.msra.mxu0 0.0
        %3741 = vmatprep.subr.mxu0 0.0
        %3742 = vmatpush2.msra.mxu0 0.0
        %3743 = vmatprep.subr.mxu0 0.0
        %3744 = vmatpush2.msra.mxu0 0.0
        %3745 = vmatprep.subr.mxu0 0.0
        %3746 = vmatpush2.msra.mxu0 0.0
        %3747 = vmatprep.subr.mxu0 0.0
        %3748 = vmatpush2.msra.mxu0 0.0
        %3749 = vmatprep.subr.mxu0 0.0
        %3750 = vmatpush2.msra.mxu0 0.0
        %3751 = vmatprep.subr.mxu0 0.0
        %3752 = vmatpush2.msra.mxu0 0.0
        %3753 = vmatprep.subr.mxu0 0.0
        %3754 = vmatpush2.msra.mxu0 0.0
        %3755 = vmatprep.subr.mxu0 0.0
        %3756 = vmatpush2.msra.mxu0 0.0
        %3757 = vmatprep.subr.mxu0 0.0
        %3758 = vmatpush2.msra.mxu0 0.0
        %3759 = vmatprep.subr.mxu0 0.0
        %3760 = vmatpush2.msra.mxu0 0.0
        %3761 = vmatprep.subr.mxu0 0.0
        %3762 = vmatpush2.msra.mxu0 0.0
        %3763 = vmatprep.subr.mxu0 0.0
        %3764 = vmatpush2.msra.mxu0 0.0
        %3765 = vmatprep.mubr.f32.mxu0 0.0
        %3766 = vmatmul.mubr.f32.gmra.mxu0 %v3328
        %v3767 = vpop.f32.mrf.mxu0
        %v3768 = vadd.f32 0.0, %v3767
        %v3769 = vpop.f32.mrf.mxu0
        %3770 = vdwg.mxu0
        %3771 = vst.msk [vmem:[#allocation2 + $0x5] sm:$0x1] %vm3400, %v3768
        %s3772 = scalar_lea.vmem [#allocation17], 96
        %v3773 = vld [vmem:[%s3772] sm:$0xff]
        %v3774 = vld [vmem:[%s3772 + $0x8] sm:$0xff]
        %3775 = vmatprep.subr.mxu0 0.0
        %3776 = vmatpush1.msra.mxu0 0.0
        %3777 = vmatprep.subr.mxu0 0.0
        %3778 = vmatpush1.msra.mxu0 0.0
        %3779 = vmatprep.subr.mxu0 0.0
        %3780 = vmatpush1.msra.mxu0 0.0
        %3781 = vmatprep.subr.mxu0 0.0
        %3782 = vmatpush1.msra.mxu0 0.0
        %3783 = vmatprep.subr.mxu0 0.0
        %3784 = vmatpush1.msra.mxu0 0.0
        %3785 = vmatprep.subr.mxu0 0.0
        %3786 = vmatpush1.msra.mxu0 0.0
        %3787 = vmatprep.subr.mxu0 0.0
        %3788 = vmatpush1.msra.mxu0 0.0
        %3789 = vmatprep.subr.mxu0 0.0
        %3790 = vmatpush1.msra.mxu0 0.0
        %3791 = vmatprep.subr.mxu0 0.0
        %3792 = vmatpush1.msra.mxu0 0.0
        %3793 = vmatprep.subr.mxu0 0.0
        %3794 = vmatpush1.msra.mxu0 0.0
        %3795 = vmatprep.subr.mxu0 0.0
        %3796 = vmatpush1.msra.mxu0 0.0
        %3797 = vmatprep.subr.mxu0 0.0
        %3798 = vmatpush1.msra.mxu0 0.0
        %3799 = vmatprep.subr.mxu0 0.0
        %3800 = vmatpush1.msra.mxu0 0.0
        %3801 = vmatprep.subr.mxu0 0.0
        %3802 = vmatpush1.msra.mxu0 0.0
        %3803 = vmatprep.subr.mxu0 0.0
        %3804 = vmatpush1.msra.mxu0 %v3774
        %3805 = vmatprep.subr.mxu0 0.0
        %3806 = vmatpush1.msra.mxu0 %v3773
        %3807 = vmatprep.subr.mxu0 0.0
        %3808 = vmatpush2.msra.mxu0 0.0
        %3809 = vmatprep.subr.mxu0 0.0
        %3810 = vmatpush2.msra.mxu0 0.0
        %3811 = vmatprep.subr.mxu0 0.0
        %3812 = vmatpush2.msra.mxu0 0.0
        %3813 = vmatprep.subr.mxu0 0.0
        %3814 = vmatpush2.msra.mxu0 0.0
        %3815 = vmatprep.subr.mxu0 0.0
        %3816 = vmatpush2.msra.mxu0 0.0
        %3817 = vmatprep.subr.mxu0 0.0
        %3818 = vmatpush2.msra.mxu0 0.0
        %3819 = vmatprep.subr.mxu0 0.0
        %3820 = vmatpush2.msra.mxu0 0.0
        %3821 = vmatprep.subr.mxu0 0.0
        %3822 = vmatpush2.msra.mxu0 0.0
        %3823 = vmatprep.subr.mxu0 0.0
        %3824 = vmatpush2.msra.mxu0 0.0
        %3825 = vmatprep.subr.mxu0 0.0
        %3826 = vmatpush2.msra.mxu0 0.0
        %3827 = vmatprep.subr.mxu0 0.0
        %3828 = vmatpush2.msra.mxu0 0.0
        %3829 = vmatprep.subr.mxu0 0.0
        %3830 = vmatpush2.msra.mxu0 0.0
        %3831 = vmatprep.subr.mxu0 0.0
        %3832 = vmatpush2.msra.mxu0 0.0
        %3833 = vmatprep.subr.mxu0 0.0
        %3834 = vmatpush2.msra.mxu0 0.0
        %3835 = vmatprep.subr.mxu0 0.0
        %3836 = vmatpush2.msra.mxu0 0.0
        %3837 = vmatprep.subr.mxu0 0.0
        %3838 = vmatpush2.msra.mxu0 0.0
        %3839 = vmatprep.mubr.f32.mxu0 0.0
        %3840 = vmatmul.mubr.f32.gmra.mxu0 %v3328
        %v3841 = vpop.f32.mrf.mxu0
        %v3842 = vadd.f32 0.0, %v3841
        %v3843 = vpop.f32.mrf.mxu0
        %3844 = vdwg.mxu0
        %3845 = vst.msk [vmem:[#allocation2 + $0x6] sm:$0x1] %vm3400, %v3842
        %s3846 = scalar_lea.vmem [#allocation17], 112
        %v3847 = vld [vmem:[%s3846] sm:$0xff]
        %v3848 = vld [vmem:[%s3846 + $0x8] sm:$0xff]
        %3849 = vmatprep.subr.mxu0 0.0
        %3850 = vmatpush1.msra.mxu0 0.0
        %3851 = vmatprep.subr.mxu0 0.0
        %3852 = vmatpush1.msra.mxu0 0.0
        %3853 = vmatprep.subr.mxu0 0.0
        %3854 = vmatpush1.msra.mxu0 0.0
        %3855 = vmatprep.subr.mxu0 0.0
        %3856 = vmatpush1.msra.mxu0 0.0
        %3857 = vmatprep.subr.mxu0 0.0
        %3858 = vmatpush1.msra.mxu0 0.0
        %3859 = vmatprep.subr.mxu0 0.0
        %3860 = vmatpush1.msra.mxu0 0.0
        %3861 = vmatprep.subr.mxu0 0.0
        %3862 = vmatpush1.msra.mxu0 0.0
        %3863 = vmatprep.subr.mxu0 0.0
        %3864 = vmatpush1.msra.mxu0 0.0
        %3865 = vmatprep.subr.mxu0 0.0
        %3866 = vmatpush1.msra.mxu0 0.0
        %3867 = vmatprep.subr.mxu0 0.0
        %3868 = vmatpush1.msra.mxu0 0.0
        %3869 = vmatprep.subr.mxu0 0.0
        %3870 = vmatpush1.msra.mxu0 0.0
        %3871 = vmatprep.subr.mxu0 0.0
        %3872 = vmatpush1.msra.mxu0 0.0
        %3873 = vmatprep.subr.mxu0 0.0
        %3874 = vmatpush1.msra.mxu0 0.0
        %3875 = vmatprep.subr.mxu0 0.0
        %3876 = vmatpush1.msra.mxu0 0.0
        %3877 = vmatprep.subr.mxu0 0.0
        %3878 = vmatpush1.msra.mxu0 %v3848
        %3879 = vmatprep.subr.mxu0 0.0
        %3880 = vmatpush1.msra.mxu0 %v3847
        %3881 = vmatprep.subr.mxu0 0.0
        %3882 = vmatpush2.msra.mxu0 0.0
        %3883 = vmatprep.subr.mxu0 0.0
        %3884 = vmatpush2.msra.mxu0 0.0
        %3885 = vmatprep.subr.mxu0 0.0
        %3886 = vmatpush2.msra.mxu0 0.0
        %3887 = vmatprep.subr.mxu0 0.0
        %3888 = vmatpush2.msra.mxu0 0.0
        %3889 = vmatprep.subr.mxu0 0.0
        %3890 = vmatpush2.msra.mxu0 0.0
        %3891 = vmatprep.subr.mxu0 0.0
        %3892 = vmatpush2.msra.mxu0 0.0
        %3893 = vmatprep.subr.mxu0 0.0
        %3894 = vmatpush2.msra.mxu0 0.0
        %3895 = vmatprep.subr.mxu0 0.0
        %3896 = vmatpush2.msra.mxu0 0.0
        %3897 = vmatprep.subr.mxu0 0.0
        %3898 = vmatpush2.msra.mxu0 0.0
        %3899 = vmatprep.subr.mxu0 0.0
        %3900 = vmatpush2.msra.mxu0 0.0
        %3901 = vmatprep.subr.mxu0 0.0
        %3902 = vmatpush2.msra.mxu0 0.0
        %3903 = vmatprep.subr.mxu0 0.0
        %3904 = vmatpush2.msra.mxu0 0.0
        %3905 = vmatprep.subr.mxu0 0.0
        %3906 = vmatpush2.msra.mxu0 0.0
        %3907 = vmatprep.subr.mxu0 0.0
        %3908 = vmatpush2.msra.mxu0 0.0
        %3909 = vmatprep.subr.mxu0 0.0
        %3910 = vmatpush2.msra.mxu0 0.0
        %3911 = vmatprep.subr.mxu0 0.0
        %3912 = vmatpush2.msra.mxu0 0.0
        %3913 = vmatprep.mubr.f32.mxu0 0.0
        %3914 = vmatmul.mubr.f32.gmra.mxu0 %v3328
        %v3915 = vpop.f32.mrf.mxu0
        %v3916 = vadd.f32 0.0, %v3915
        %v3917 = vpop.f32.mrf.mxu0
        %3918 = vdwg.mxu0
        %3919 = vst.msk [vmem:[#allocation2 + $0x7] sm:$0x1] %vm3400, %v3916
        %s3920 = scalar_lea.vmem [#allocation17], 128
        %v3921 = vld [vmem:[%s3920] sm:$0xff]
        %v3922 = vld [vmem:[%s3920 + $0x8] sm:$0xff]
        %3923 = vmatprep.subr.mxu0 0.0
        %3924 = vmatpush1.msra.mxu0 0.0
        %3925 = vmatprep.subr.mxu0 0.0
        %3926 = vmatpush1.msra.mxu0 0.0
        %3927 = vmatprep.subr.mxu0 0.0
        %3928 = vmatpush1.msra.mxu0 0.0
        %3929 = vmatprep.subr.mxu0 0.0
        %3930 = vmatpush1.msra.mxu0 0.0
        %3931 = vmatprep.subr.mxu0 0.0
        %3932 = vmatpush1.msra.mxu0 0.0
        %3933 = vmatprep.subr.mxu0 0.0
        %3934 = vmatpush1.msra.mxu0 0.0
        %3935 = vmatprep.subr.mxu0 0.0
        %3936 = vmatpush1.msra.mxu0 0.0
        %3937 = vmatprep.subr.mxu0 0.0
        %3938 = vmatpush1.msra.mxu0 0.0
        %3939 = vmatprep.subr.mxu0 0.0
        %3940 = vmatpush1.msra.mxu0 0.0
        %3941 = vmatprep.subr.mxu0 0.0
        %3942 = vmatpush1.msra.mxu0 0.0
        %3943 = vmatprep.subr.mxu0 0.0
        %3944 = vmatpush1.msra.mxu0 0.0
        %3945 = vmatprep.subr.mxu0 0.0
        %3946 = vmatpush1.msra.mxu0 0.0
        %3947 = vmatprep.subr.mxu0 0.0
        %3948 = vmatpush1.msra.mxu0 0.0
        %3949 = vmatprep.subr.mxu0 0.0
        %3950 = vmatpush1.msra.mxu0 0.0
        %3951 = vmatprep.subr.mxu0 0.0
        %3952 = vmatpush1.msra.mxu0 %v3922
        %3953 = vmatprep.subr.mxu0 0.0
        %3954 = vmatpush1.msra.mxu0 %v3921
        %3955 = vmatprep.subr.mxu0 0.0
        %3956 = vmatpush2.msra.mxu0 0.0
        %3957 = vmatprep.subr.mxu0 0.0
        %3958 = vmatpush2.msra.mxu0 0.0
        %3959 = vmatprep.subr.mxu0 0.0
        %3960 = vmatpush2.msra.mxu0 0.0
        %3961 = vmatprep.subr.mxu0 0.0
        %3962 = vmatpush2.msra.mxu0 0.0
        %3963 = vmatprep.subr.mxu0 0.0
        %3964 = vmatpush2.msra.mxu0 0.0
        %3965 = vmatprep.subr.mxu0 0.0
        %3966 = vmatpush2.msra.mxu0 0.0
        %3967 = vmatprep.subr.mxu0 0.0
        %3968 = vmatpush2.msra.mxu0 0.0
        %3969 = vmatprep.subr.mxu0 0.0
        %3970 = vmatpush2.msra.mxu0 0.0
        %3971 = vmatprep.subr.mxu0 0.0
        %3972 = vmatpush2.msra.mxu0 0.0
        %3973 = vmatprep.subr.mxu0 0.0
        %3974 = vmatpush2.msra.mxu0 0.0
        %3975 = vmatprep.subr.mxu0 0.0
        %3976 = vmatpush2.msra.mxu0 0.0
        %3977 = vmatprep.subr.mxu0 0.0
        %3978 = vmatpush2.msra.mxu0 0.0
        %3979 = vmatprep.subr.mxu0 0.0
        %3980 = vmatpush2.msra.mxu0 0.0
        %3981 = vmatprep.subr.mxu0 0.0
        %3982 = vmatpush2.msra.mxu0 0.0
        %3983 = vmatprep.subr.mxu0 0.0
        %3984 = vmatpush2.msra.mxu0 0.0
        %3985 = vmatprep.subr.mxu0 0.0
        %3986 = vmatpush2.msra.mxu0 0.0
        %3987 = vmatprep.mubr.f32.mxu0 0.0
        %3988 = vmatmul.mubr.f32.gmra.mxu0 %v3328
        %v3989 = vpop.f32.mrf.mxu0
        %v3990 = vadd.f32 0.0, %v3989
        %v3991 = vpop.f32.mrf.mxu0
        %3992 = vdwg.mxu0
        %3993 = vst.msk [vmem:[#allocation2 + $0x8] sm:$0x1] %vm3400, %v3990
        %s3994 = scalar_lea.vmem [#allocation17], 144
        %v3995 = vld [vmem:[%s3994] sm:$0xff]
        %v3996 = vld [vmem:[%s3994 + $0x8] sm:$0xff]
        %3997 = vmatprep.subr.mxu0 0.0
        %3998 = vmatpush1.msra.mxu0 0.0
        %3999 = vmatprep.subr.mxu0 0.0
        %4000 = vmatpush1.msra.mxu0 0.0
        %4001 = vmatprep.subr.mxu0 0.0
        %4002 = vmatpush1.msra.mxu0 0.0
        %4003 = vmatprep.subr.mxu0 0.0
        %4004 = vmatpush1.msra.mxu0 0.0
        %4005 = vmatprep.subr.mxu0 0.0
        %4006 = vmatpush1.msra.mxu0 0.0
        %4007 = vmatprep.subr.mxu0 0.0
        %4008 = vmatpush1.msra.mxu0 0.0
        %4009 = vmatprep.subr.mxu0 0.0
        %4010 = vmatpush1.msra.mxu0 0.0
        %4011 = vmatprep.subr.mxu0 0.0
        %4012 = vmatpush1.msra.mxu0 0.0
        %4013 = vmatprep.subr.mxu0 0.0
        %4014 = vmatpush1.msra.mxu0 0.0
        %4015 = vmatprep.subr.mxu0 0.0
        %4016 = vmatpush1.msra.mxu0 0.0
        %4017 = vmatprep.subr.mxu0 0.0
        %4018 = vmatpush1.msra.mxu0 0.0
        %4019 = vmatprep.subr.mxu0 0.0
        %4020 = vmatpush1.msra.mxu0 0.0
        %4021 = vmatprep.subr.mxu0 0.0
        %4022 = vmatpush1.msra.mxu0 0.0
        %4023 = vmatprep.subr.mxu0 0.0
        %4024 = vmatpush1.msra.mxu0 0.0
        %4025 = vmatprep.subr.mxu0 0.0
        %4026 = vmatpush1.msra.mxu0 %v3996
        %4027 = vmatprep.subr.mxu0 0.0
        %4028 = vmatpush1.msra.mxu0 %v3995
        %4029 = vmatprep.subr.mxu0 0.0
        %4030 = vmatpush2.msra.mxu0 0.0
        %4031 = vmatprep.subr.mxu0 0.0
        %4032 = vmatpush2.msra.mxu0 0.0
        %4033 = vmatprep.subr.mxu0 0.0
        %4034 = vmatpush2.msra.mxu0 0.0
        %4035 = vmatprep.subr.mxu0 0.0
        %4036 = vmatpush2.msra.mxu0 0.0
        %4037 = vmatprep.subr.mxu0 0.0
        %4038 = vmatpush2.msra.mxu0 0.0
        %4039 = vmatprep.subr.mxu0 0.0
        %4040 = vmatpush2.msra.mxu0 0.0
        %4041 = vmatprep.subr.mxu0 0.0
        %4042 = vmatpush2.msra.mxu0 0.0
        %4043 = vmatprep.subr.mxu0 0.0
        %4044 = vmatpush2.msra.mxu0 0.0
        %4045 = vmatprep.subr.mxu0 0.0
        %4046 = vmatpush2.msra.mxu0 0.0
        %4047 = vmatprep.subr.mxu0 0.0
        %4048 = vmatpush2.msra.mxu0 0.0
        %4049 = vmatprep.subr.mxu0 0.0
        %4050 = vmatpush2.msra.mxu0 0.0
        %4051 = vmatprep.subr.mxu0 0.0
        %4052 = vmatpush2.msra.mxu0 0.0
        %4053 = vmatprep.subr.mxu0 0.0
        %4054 = vmatpush2.msra.mxu0 0.0
        %4055 = vmatprep.subr.mxu0 0.0
        %4056 = vmatpush2.msra.mxu0 0.0
        %4057 = vmatprep.subr.mxu0 0.0
        %4058 = vmatpush2.msra.mxu0 0.0
        %4059 = vmatprep.subr.mxu0 0.0
        %4060 = vmatpush2.msra.mxu0 0.0
        %4061 = vmatprep.mubr.f32.mxu0 0.0
        %4062 = vmatmul.mubr.f32.gmra.mxu0 %v3328
        %v4063 = vpop.f32.mrf.mxu0
        %v4064 = vadd.f32 0.0, %v4063
        %v4065 = vpop.f32.mrf.mxu0
        %4066 = vdwg.mxu0
        %4067 = vst.msk [vmem:[#allocation2 + $0x9] sm:$0x1] %vm3400, %v4064
        %s4068 = scalar_lea.vmem [#allocation17], 160
        %v4069 = vld [vmem:[%s4068] sm:$0xff]
        %v4070 = vld [vmem:[%s4068 + $0x8] sm:$0xff]
        %4071 = vmatprep.subr.mxu0 0.0
        %4072 = vmatpush1.msra.mxu0 0.0
        %4073 = vmatprep.subr.mxu0 0.0
        %4074 = vmatpush1.msra.mxu0 0.0
        %4075 = vmatprep.subr.mxu0 0.0
        %4076 = vmatpush1.msra.mxu0 0.0
        %4077 = vmatprep.subr.mxu0 0.0
        %4078 = vmatpush1.msra.mxu0 0.0
        %4079 = vmatprep.subr.mxu0 0.0
        %4080 = vmatpush1.msra.mxu0 0.0
        %4081 = vmatprep.subr.mxu0 0.0
        %4082 = vmatpush1.msra.mxu0 0.0
        %4083 = vmatprep.subr.mxu0 0.0
        %4084 = vmatpush1.msra.mxu0 0.0
        %4085 = vmatprep.subr.mxu0 0.0
        %4086 = vmatpush1.msra.mxu0 0.0
        %4087 = vmatprep.subr.mxu0 0.0
        %4088 = vmatpush1.msra.mxu0 0.0
        %4089 = vmatprep.subr.mxu0 0.0
        %4090 = vmatpush1.msra.mxu0 0.0
        %4091 = vmatprep.subr.mxu0 0.0
        %4092 = vmatpush1.msra.mxu0 0.0
        %4093 = vmatprep.subr.mxu0 0.0
        %4094 = vmatpush1.msra.mxu0 0.0
        %4095 = vmatprep.subr.mxu0 0.0
        %4096 = vmatpush1.msra.mxu0 0.0
        %4097 = vmatprep.subr.mxu0 0.0
        %4098 = vmatpush1.msra.mxu0 0.0
        %4099 = vmatprep.subr.mxu0 0.0
        %4100 = vmatpush1.msra.mxu0 %v4070
        %4101 = vmatprep.subr.mxu0 0.0
        %4102 = vmatpush1.msra.mxu0 %v4069
        %4103 = vmatprep.subr.mxu0 0.0
        %4104 = vmatpush2.msra.mxu0 0.0
        %4105 = vmatprep.subr.mxu0 0.0
        %4106 = vmatpush2.msra.mxu0 0.0
        %4107 = vmatprep.subr.mxu0 0.0
        %4108 = vmatpush2.msra.mxu0 0.0
        %4109 = vmatprep.subr.mxu0 0.0
        %4110 = vmatpush2.msra.mxu0 0.0
        %4111 = vmatprep.subr.mxu0 0.0
        %4112 = vmatpush2.msra.mxu0 0.0
        %4113 = vmatprep.subr.mxu0 0.0
        %4114 = vmatpush2.msra.mxu0 0.0
        %4115 = vmatprep.subr.mxu0 0.0
        %4116 = vmatpush2.msra.mxu0 0.0
        %4117 = vmatprep.subr.mxu0 0.0
        %4118 = vmatpush2.msra.mxu0 0.0
        %4119 = vmatprep.subr.mxu0 0.0
        %4120 = vmatpush2.msra.mxu0 0.0
        %4121 = vmatprep.subr.mxu0 0.0
        %4122 = vmatpush2.msra.mxu0 0.0
        %4123 = vmatprep.subr.mxu0 0.0
        %4124 = vmatpush2.msra.mxu0 0.0
        %4125 = vmatprep.subr.mxu0 0.0
        %4126 = vmatpush2.msra.mxu0 0.0
        %4127 = vmatprep.subr.mxu0 0.0
        %4128 = vmatpush2.msra.mxu0 0.0
        %4129 = vmatprep.subr.mxu0 0.0
        %4130 = vmatpush2.msra.mxu0 0.0
        %4131 = vmatprep.subr.mxu0 0.0
        %4132 = vmatpush2.msra.mxu0 0.0
        %4133 = vmatprep.subr.mxu0 0.0
        %4134 = vmatpush2.msra.mxu0 0.0
        %4135 = vmatprep.mubr.f32.mxu0 0.0
        %4136 = vmatmul.mubr.f32.gmra.mxu0 %v3328
        %v4137 = vpop.f32.mrf.mxu0
        %v4138 = vadd.f32 0.0, %v4137
        %v4139 = vpop.f32.mrf.mxu0
        %4140 = vdwg.mxu0
        %4141 = vst.msk [vmem:[#allocation2 + $0xa] sm:$0x1] %vm3400, %v4138
        %s4142 = scalar_lea.vmem [#allocation17], 176
        %v4143 = vld [vmem:[%s4142] sm:$0xff]
        %v4144 = vld [vmem:[%s4142 + $0x8] sm:$0xff]
        %4145 = vmatprep.subr.mxu0 0.0
        %4146 = vmatpush1.msra.mxu0 0.0
        %4147 = vmatprep.subr.mxu0 0.0
        %4148 = vmatpush1.msra.mxu0 0.0
        %4149 = vmatprep.subr.mxu0 0.0
        %4150 = vmatpush1.msra.mxu0 0.0
        %4151 = vmatprep.subr.mxu0 0.0
        %4152 = vmatpush1.msra.mxu0 0.0
        %4153 = vmatprep.subr.mxu0 0.0
        %4154 = vmatpush1.msra.mxu0 0.0
        %4155 = vmatprep.subr.mxu0 0.0
        %4156 = vmatpush1.msra.mxu0 0.0
        %4157 = vmatprep.subr.mxu0 0.0
        %4158 = vmatpush1.msra.mxu0 0.0
        %4159 = vmatprep.subr.mxu0 0.0
        %4160 = vmatpush1.msra.mxu0 0.0
        %4161 = vmatprep.subr.mxu0 0.0
        %4162 = vmatpush1.msra.mxu0 0.0
        %4163 = vmatprep.subr.mxu0 0.0
        %4164 = vmatpush1.msra.mxu0 0.0
        %4165 = vmatprep.subr.mxu0 0.0
        %4166 = vmatpush1.msra.mxu0 0.0
        %4167 = vmatprep.subr.mxu0 0.0
        %4168 = vmatpush1.msra.mxu0 0.0
        %4169 = vmatprep.subr.mxu0 0.0
        %4170 = vmatpush1.msra.mxu0 0.0
        %4171 = vmatprep.subr.mxu0 0.0
        %4172 = vmatpush1.msra.mxu0 0.0
        %4173 = vmatprep.subr.mxu0 0.0
        %4174 = vmatpush1.msra.mxu0 %v4144
        %4175 = vmatprep.subr.mxu0 0.0
        %4176 = vmatpush1.msra.mxu0 %v4143
        %4177 = vmatprep.subr.mxu0 0.0
        %4178 = vmatpush2.msra.mxu0 0.0
        %4179 = vmatprep.subr.mxu0 0.0
        %4180 = vmatpush2.msra.mxu0 0.0
        %4181 = vmatprep.subr.mxu0 0.0
        %4182 = vmatpush2.msra.mxu0 0.0
        %4183 = vmatprep.subr.mxu0 0.0
        %4184 = vmatpush2.msra.mxu0 0.0
        %4185 = vmatprep.subr.mxu0 0.0
        %4186 = vmatpush2.msra.mxu0 0.0
        %4187 = vmatprep.subr.mxu0 0.0
        %4188 = vmatpush2.msra.mxu0 0.0
        %4189 = vmatprep.subr.mxu0 0.0
        %4190 = vmatpush2.msra.mxu0 0.0
        %4191 = vmatprep.subr.mxu0 0.0
        %4192 = vmatpush2.msra.mxu0 0.0
        %4193 = vmatprep.subr.mxu0 0.0
        %4194 = vmatpush2.msra.mxu0 0.0
        %4195 = vmatprep.subr.mxu0 0.0
        %4196 = vmatpush2.msra.mxu0 0.0
        %4197 = vmatprep.subr.mxu0 0.0
        %4198 = vmatpush2.msra.mxu0 0.0
        %4199 = vmatprep.subr.mxu0 0.0
        %4200 = vmatpush2.msra.mxu0 0.0
        %4201 = vmatprep.subr.mxu0 0.0
        %4202 = vmatpush2.msra.mxu0 0.0
        %4203 = vmatprep.subr.mxu0 0.0
        %4204 = vmatpush2.msra.mxu0 0.0
        %4205 = vmatprep.subr.mxu0 0.0
        %4206 = vmatpush2.msra.mxu0 0.0
        %4207 = vmatprep.subr.mxu0 0.0
        %4208 = vmatpush2.msra.mxu0 0.0
        %4209 = vmatprep.mubr.f32.mxu0 0.0
        %4210 = vmatmul.mubr.f32.gmra.mxu0 %v3328
        %v4211 = vpop.f32.mrf.mxu0
        %v4212 = vadd.f32 0.0, %v4211
        %v4213 = vpop.f32.mrf.mxu0
        %4214 = vdwg.mxu0
        %4215 = vst.msk [vmem:[#allocation2 + $0xb] sm:$0x1] %vm3400, %v4212
        %s4216 = scalar_lea.vmem [#allocation17], 192
        %v4217 = vld [vmem:[%s4216] sm:$0xff]
        %v4218 = vld [vmem:[%s4216 + $0x8] sm:$0xff]
        %4219 = vmatprep.subr.mxu0 0.0
        %4220 = vmatpush1.msra.mxu0 0.0
        %4221 = vmatprep.subr.mxu0 0.0
        %4222 = vmatpush1.msra.mxu0 0.0
        %4223 = vmatprep.subr.mxu0 0.0
        %4224 = vmatpush1.msra.mxu0 0.0
        %4225 = vmatprep.subr.mxu0 0.0
        %4226 = vmatpush1.msra.mxu0 0.0
        %4227 = vmatprep.subr.mxu0 0.0
        %4228 = vmatpush1.msra.mxu0 0.0
        %4229 = vmatprep.subr.mxu0 0.0
        %4230 = vmatpush1.msra.mxu0 0.0
        %4231 = vmatprep.subr.mxu0 0.0
        %4232 = vmatpush1.msra.mxu0 0.0
        %4233 = vmatprep.subr.mxu0 0.0
        %4234 = vmatpush1.msra.mxu0 0.0
        %4235 = vmatprep.subr.mxu0 0.0
        %4236 = vmatpush1.msra.mxu0 0.0
        %4237 = vmatprep.subr.mxu0 0.0
        %4238 = vmatpush1.msra.mxu0 0.0
        %4239 = vmatprep.subr.mxu0 0.0
        %4240 = vmatpush1.msra.mxu0 0.0
        %4241 = vmatprep.subr.mxu0 0.0
        %4242 = vmatpush1.msra.mxu0 0.0
        %4243 = vmatprep.subr.mxu0 0.0
        %4244 = vmatpush1.msra.mxu0 0.0
        %4245 = vmatprep.subr.mxu0 0.0
        %4246 = vmatpush1.msra.mxu0 0.0
        %4247 = vmatprep.subr.mxu0 0.0
        %4248 = vmatpush1.msra.mxu0 %v4218
        %4249 = vmatprep.subr.mxu0 0.0
        %4250 = vmatpush1.msra.mxu0 %v4217
        %4251 = vmatprep.subr.mxu0 0.0
        %4252 = vmatpush2.msra.mxu0 0.0
        %4253 = vmatprep.subr.mxu0 0.0
        %4254 = vmatpush2.msra.mxu0 0.0
        %4255 = vmatprep.subr.mxu0 0.0
        %4256 = vmatpush2.msra.mxu0 0.0
        %4257 = vmatprep.subr.mxu0 0.0
        %4258 = vmatpush2.msra.mxu0 0.0
        %4259 = vmatprep.subr.mxu0 0.0
        %4260 = vmatpush2.msra.mxu0 0.0
        %4261 = vmatprep.subr.mxu0 0.0
        %4262 = vmatpush2.msra.mxu0 0.0
        %4263 = vmatprep.subr.mxu0 0.0
        %4264 = vmatpush2.msra.mxu0 0.0
        %4265 = vmatprep.subr.mxu0 0.0
        %4266 = vmatpush2.msra.mxu0 0.0
        %4267 = vmatprep.subr.mxu0 0.0
        %4268 = vmatpush2.msra.mxu0 0.0
        %4269 = vmatprep.subr.mxu0 0.0
        %4270 = vmatpush2.msra.mxu0 0.0
        %4271 = vmatprep.subr.mxu0 0.0
        %4272 = vmatpush2.msra.mxu0 0.0
        %4273 = vmatprep.subr.mxu0 0.0
        %4274 = vmatpush2.msra.mxu0 0.0
        %4275 = vmatprep.subr.mxu0 0.0
        %4276 = vmatpush2.msra.mxu0 0.0
        %4277 = vmatprep.subr.mxu0 0.0
        %4278 = vmatpush2.msra.mxu0 0.0
        %4279 = vmatprep.subr.mxu0 0.0
        %4280 = vmatpush2.msra.mxu0 0.0
        %4281 = vmatprep.subr.mxu0 0.0
        %4282 = vmatpush2.msra.mxu0 0.0
        %4283 = vmatprep.mubr.f32.mxu0 0.0
        %4284 = vmatmul.mubr.f32.gmra.mxu0 %v3328
        %v4285 = vpop.f32.mrf.mxu0
        %v4286 = vadd.f32 0.0, %v4285
        %v4287 = vpop.f32.mrf.mxu0
        %4288 = vdwg.mxu0
        %4289 = vst.msk [vmem:[#allocation2 + $0xc] sm:$0x1] %vm3400, %v4286
        %s4290 = scalar_lea.vmem [#allocation17], 208
        %v4291 = vld [vmem:[%s4290] sm:$0xff]
        %v4292 = vld [vmem:[%s4290 + $0x8] sm:$0xff]
        %4293 = vmatprep.subr.mxu0 0.0
        %4294 = vmatpush1.msra.mxu0 0.0
        %4295 = vmatprep.subr.mxu0 0.0
        %4296 = vmatpush1.msra.mxu0 0.0
        %4297 = vmatprep.subr.mxu0 0.0
        %4298 = vmatpush1.msra.mxu0 0.0
        %4299 = vmatprep.subr.mxu0 0.0
        %4300 = vmatpush1.msra.mxu0 0.0
        %4301 = vmatprep.subr.mxu0 0.0
        %4302 = vmatpush1.msra.mxu0 0.0
        %4303 = vmatprep.subr.mxu0 0.0
        %4304 = vmatpush1.msra.mxu0 0.0
        %4305 = vmatprep.subr.mxu0 0.0
        %4306 = vmatpush1.msra.mxu0 0.0
        %4307 = vmatprep.subr.mxu0 0.0
        %4308 = vmatpush1.msra.mxu0 0.0
        %4309 = vmatprep.subr.mxu0 0.0
        %4310 = vmatpush1.msra.mxu0 0.0
        %4311 = vmatprep.subr.mxu0 0.0
        %4312 = vmatpush1.msra.mxu0 0.0
        %4313 = vmatprep.subr.mxu0 0.0
        %4314 = vmatpush1.msra.mxu0 0.0
        %4315 = vmatprep.subr.mxu0 0.0
        %4316 = vmatpush1.msra.mxu0 0.0
        %4317 = vmatprep.subr.mxu0 0.0
        %4318 = vmatpush1.msra.mxu0 0.0
        %4319 = vmatprep.subr.mxu0 0.0
        %4320 = vmatpush1.msra.mxu0 0.0
        %4321 = vmatprep.subr.mxu0 0.0
        %4322 = vmatpush1.msra.mxu0 %v4292
        %4323 = vmatprep.subr.mxu0 0.0
        %4324 = vmatpush1.msra.mxu0 %v4291
        %4325 = vmatprep.subr.mxu0 0.0
        %4326 = vmatpush2.msra.mxu0 0.0
        %4327 = vmatprep.subr.mxu0 0.0
        %4328 = vmatpush2.msra.mxu0 0.0
        %4329 = vmatprep.subr.mxu0 0.0
        %4330 = vmatpush2.msra.mxu0 0.0
        %4331 = vmatprep.subr.mxu0 0.0
        %4332 = vmatpush2.msra.mxu0 0.0
        %4333 = vmatprep.subr.mxu0 0.0
        %4334 = vmatpush2.msra.mxu0 0.0
        %4335 = vmatprep.subr.mxu0 0.0
        %4336 = vmatpush2.msra.mxu0 0.0
        %4337 = vmatprep.subr.mxu0 0.0
        %4338 = vmatpush2.msra.mxu0 0.0
        %4339 = vmatprep.subr.mxu0 0.0
        %4340 = vmatpush2.msra.mxu0 0.0
        %4341 = vmatprep.subr.mxu0 0.0
        %4342 = vmatpush2.msra.mxu0 0.0
        %4343 = vmatprep.subr.mxu0 0.0
        %4344 = vmatpush2.msra.mxu0 0.0
        %4345 = vmatprep.subr.mxu0 0.0
        %4346 = vmatpush2.msra.mxu0 0.0
        %4347 = vmatprep.subr.mxu0 0.0
        %4348 = vmatpush2.msra.mxu0 0.0
        %4349 = vmatprep.subr.mxu0 0.0
        %4350 = vmatpush2.msra.mxu0 0.0
        %4351 = vmatprep.subr.mxu0 0.0
        %4352 = vmatpush2.msra.mxu0 0.0
        %4353 = vmatprep.subr.mxu0 0.0
        %4354 = vmatpush2.msra.mxu0 0.0
        %4355 = vmatprep.subr.mxu0 0.0
        %4356 = vmatpush2.msra.mxu0 0.0
        %4357 = vmatprep.mubr.f32.mxu0 0.0
        %4358 = vmatmul.mubr.f32.gmra.mxu0 %v3328
        %v4359 = vpop.f32.mrf.mxu0
        %v4360 = vadd.f32 0.0, %v4359
        %v4361 = vpop.f32.mrf.mxu0
        %4362 = vdwg.mxu0
        %4363 = vst.msk [vmem:[#allocation2 + $0xd] sm:$0x1] %vm3400, %v4360
        %v4364 = vld [vmem:[#allocation2] sm:$0xff]
        %v4365 = vld [vmem:[#allocation2 + $0x8] sm:$0x3f]
        %v4366 = vld [vmem:[%s12] sm:$0xff]
        %v4367 = vld [vmem:[%s12 + $0x8] sm:$0x3f]
        %v4368 = vadd.f32 %v4364, %v4366
        %v4369 = vadd.f32 %v4365, %v4367
        %v4370 = vmul.f32 %v4368, %v2171
        %v4371 = vmul.f32 %v4369, %v2172
        %v4372 = vsub.f32 %v4368, %v4370
        %v4373 = vsub.f32 %v4369, %v4371
        %v4374 = vld [vmem:[#allocation18] sm:$0xff]
        %v4375 = vld [vmem:[#allocation18 + $0x8] sm:$0xff]
        %v4376 = vld [vmem:[#allocation18 + $0x10] sm:$0xff]
        %v4377 = vld [vmem:[#allocation18 + $0x18] sm:$0xf]
        %v4378 = vld [vmem:[#allocation20] sm:$0xff]
        %v4379 = vld [vmem:[#allocation20 + $0x8] sm:$0xff]
        %v4380 = vld [vmem:[#allocation20 + $0x10] sm:$0xff]
        %v4381 = vld [vmem:[#allocation20 + $0x18] sm:$0xf]
        %vm4382 = vcmask 113664
        %v4384 = vsel %vm4382, %v4378, 0
        %v4387 = vsel %vm4382, %v4379, 0
        %v4390 = vsel %vm4382, %v4380, 0
        %v4393 = vsel %vm4382, %v4381, 0
        %v4396 = vsel %vm1077, %v4373, 0
        %4398 = vmatprep.subr.mxu0 0.0
        %4399 = vmatpush1.msra.mxu0 0.0
        %4400 = vmatprep.subr.mxu0 0.0
        %4401 = vmatpush1.msra.mxu0 0.0
        %4402 = vmatprep.subr.mxu0 0.0
        %4403 = vmatpush1.msra.mxu0 0.0
        %4404 = vmatprep.subr.mxu0 0.0
        %4405 = vmatpush1.msra.mxu0 0.0
        %4406 = vmatprep.subr.mxu0 0.0
        %4407 = vmatpush1.msra.mxu0 0.0
        %4408 = vmatprep.subr.mxu0 0.0
        %4409 = vmatpush1.msra.mxu0 0.0
        %4410 = vmatprep.subr.mxu0 0.0
        %4411 = vmatpush1.msra.mxu0 0.0
        %4412 = vmatprep.subr.mxu0 0.0
        %4413 = vmatpush1.msra.mxu0 0.0
        %4414 = vmatprep.subr.mxu0 0.0
        %4415 = vmatpush1.msra.mxu0 0.0
        %4416 = vmatprep.subr.mxu0 0.0
        %4417 = vmatpush1.msra.mxu0 0.0
        %4418 = vmatprep.subr.mxu0 0.0
        %4419 = vmatpush1.msra.mxu0 0.0
        %4420 = vmatprep.subr.mxu0 0.0
        %4421 = vmatpush1.msra.mxu0 0.0
        %4422 = vmatprep.subr.mxu0 0.0
        %4423 = vmatpush1.msra.mxu0 0.0
        %4424 = vmatprep.subr.mxu0 0.0
        %4425 = vmatpush1.msra.mxu0 0.0
        %4426 = vmatprep.subr.mxu0 0.0
        %4427 = vmatpush1.msra.mxu0 %v4396
        %4428 = vmatprep.subr.mxu0 0.0
        %4429 = vmatpush1.msra.mxu0 %v4372
        %4430 = vmatprep.subr.mxu0 0.0
        %4431 = vmatpush2.msra.mxu0 0.0
        %4432 = vmatprep.subr.mxu0 0.0
        %4433 = vmatpush2.msra.mxu0 0.0
        %4434 = vmatprep.subr.mxu0 0.0
        %4435 = vmatpush2.msra.mxu0 0.0
        %4436 = vmatprep.subr.mxu0 0.0
        %4437 = vmatpush2.msra.mxu0 0.0
        %4438 = vmatprep.subr.mxu0 0.0
        %4439 = vmatpush2.msra.mxu0 0.0
        %4440 = vmatprep.subr.mxu0 0.0
        %4441 = vmatpush2.msra.mxu0 0.0
        %4442 = vmatprep.subr.mxu0 0.0
        %4443 = vmatpush2.msra.mxu0 0.0
        %4444 = vmatprep.subr.mxu0 0.0
        %4445 = vmatpush2.msra.mxu0 0.0
        %4446 = vmatprep.subr.mxu0 0.0
        %4447 = vmatpush2.msra.mxu0 0.0
        %4448 = vmatprep.subr.mxu0 0.0
        %4449 = vmatpush2.msra.mxu0 0.0
        %4450 = vmatprep.subr.mxu0 0.0
        %4451 = vmatpush2.msra.mxu0 0.0
        %4452 = vmatprep.subr.mxu0 0.0
        %4453 = vmatpush2.msra.mxu0 0.0
        %4454 = vmatprep.subr.mxu0 0.0
        %4455 = vmatpush2.msra.mxu0 0.0
        %4456 = vmatprep.subr.mxu0 0.0
        %4457 = vmatpush2.msra.mxu0 0.0
        %4458 = vmatprep.subr.mxu0 0.0
        %4459 = vmatpush2.msra.mxu0 0.0
        %4460 = vmatprep.subr.mxu0 0.0
        %4461 = vmatpush2.msra.mxu0 0.0
        %4462 = vmatprep.mubr.f32.mxu0 0.0
        %4463 = vmatmul.mubr.f32.gmra.mxu0 %v4384
        %v4464 = vpop.f32.mrf.mxu0
        %v4465 = vadd.f32 0.0, %v4464
        %v4466 = vpop.f32.mrf.mxu0
        %4467 = vmatprep.mubr.f32.mxu0 0.0
        %4468 = vmatmul.mubr.f32.gmra.mxu0 %v4387
        %v4469 = vpop.f32.mrf.mxu0
        %v4470 = vadd.f32 0.0, %v4469
        %v4471 = vpop.f32.mrf.mxu0
        %4472 = vmatprep.mubr.f32.mxu0 0.0
        %4473 = vmatmul.mubr.f32.gmra.mxu0 %v4390
        %v4474 = vpop.f32.mrf.mxu0
        %v4475 = vadd.f32 0.0, %v4474
        %v4476 = vpop.f32.mrf.mxu0
        %4477 = vmatprep.mubr.f32.mxu0 0.0
        %4478 = vmatmul.mubr.f32.gmra.mxu0 %v4393
        %v4479 = vpop.f32.mrf.mxu0
        %v4480 = vadd.f32 0.0, %v4479
        %v4481 = vpop.f32.mrf.mxu0
        %4482 = vdwg.mxu0
        %v4484 = vsel %vm4382, %v4374, 0
        %v4487 = vsel %vm4382, %v4375, 0
        %v4490 = vsel %vm4382, %v4376, 0
        %v4493 = vsel %vm4382, %v4377, 0
        %v4496 = vsel %vm1077, %v4371, 0
        %4498 = vmatprep.subr.mxu0 0.0
        %4499 = vmatpush1.msra.mxu0 0.0
        %4500 = vmatprep.subr.mxu0 0.0
        %4501 = vmatpush1.msra.mxu0 0.0
        %4502 = vmatprep.subr.mxu0 0.0
        %4503 = vmatpush1.msra.mxu0 0.0
        %4504 = vmatprep.subr.mxu0 0.0
        %4505 = vmatpush1.msra.mxu0 0.0
        %4506 = vmatprep.subr.mxu0 0.0
        %4507 = vmatpush1.msra.mxu0 0.0
        %4508 = vmatprep.subr.mxu0 0.0
        %4509 = vmatpush1.msra.mxu0 0.0
        %4510 = vmatprep.subr.mxu0 0.0
        %4511 = vmatpush1.msra.mxu0 0.0
        %4512 = vmatprep.subr.mxu0 0.0
        %4513 = vmatpush1.msra.mxu0 0.0
        %4514 = vmatprep.subr.mxu0 0.0
        %4515 = vmatpush1.msra.mxu0 0.0
        %4516 = vmatprep.subr.mxu0 0.0
        %4517 = vmatpush1.msra.mxu0 0.0
        %4518 = vmatprep.subr.mxu0 0.0
        %4519 = vmatpush1.msra.mxu0 0.0
        %4520 = vmatprep.subr.mxu0 0.0
        %4521 = vmatpush1.msra.mxu0 0.0
        %4522 = vmatprep.subr.mxu0 0.0
        %4523 = vmatpush1.msra.mxu0 0.0
        %4524 = vmatprep.subr.mxu0 0.0
        %4525 = vmatpush1.msra.mxu0 0.0
        %4526 = vmatprep.subr.mxu0 0.0
        %4527 = vmatpush1.msra.mxu0 %v4496
        %4528 = vmatprep.subr.mxu0 0.0
        %4529 = vmatpush1.msra.mxu0 %v4370
        %4530 = vmatprep.subr.mxu0 0.0
        %4531 = vmatpush2.msra.mxu0 0.0
        %4532 = vmatprep.subr.mxu0 0.0
        %4533 = vmatpush2.msra.mxu0 0.0
        %4534 = vmatprep.subr.mxu0 0.0
        %4535 = vmatpush2.msra.mxu0 0.0
        %4536 = vmatprep.subr.mxu0 0.0
        %4537 = vmatpush2.msra.mxu0 0.0
        %4538 = vmatprep.subr.mxu0 0.0
        %4539 = vmatpush2.msra.mxu0 0.0
        %4540 = vmatprep.subr.mxu0 0.0
        %4541 = vmatpush2.msra.mxu0 0.0
        %4542 = vmatprep.subr.mxu0 0.0
        %4543 = vmatpush2.msra.mxu0 0.0
        %4544 = vmatprep.subr.mxu0 0.0
        %4545 = vmatpush2.msra.mxu0 0.0
        %4546 = vmatprep.subr.mxu0 0.0
        %4547 = vmatpush2.msra.mxu0 0.0
        %4548 = vmatprep.subr.mxu0 0.0
        %4549 = vmatpush2.msra.mxu0 0.0
        %4550 = vmatprep.subr.mxu0 0.0
        %4551 = vmatpush2.msra.mxu0 0.0
        %4552 = vmatprep.subr.mxu0 0.0
        %4553 = vmatpush2.msra.mxu0 0.0
        %4554 = vmatprep.subr.mxu0 0.0
        %4555 = vmatpush2.msra.mxu0 0.0
        %4556 = vmatprep.subr.mxu0 0.0
        %4557 = vmatpush2.msra.mxu0 0.0
        %4558 = vmatprep.subr.mxu0 0.0
        %4559 = vmatpush2.msra.mxu0 0.0
        %4560 = vmatprep.subr.mxu0 0.0
        %4561 = vmatpush2.msra.mxu0 0.0
        %4562 = vmatprep.mubr.f32.mxu0 0.0
        %4563 = vmatmul.mubr.f32.gmra.mxu0 %v4484
        %v4564 = vpop.f32.mrf.mxu0
        %v4565 = vadd.f32 %v4465, %v4564
        %v4566 = vpop.f32.mrf.mxu0
        %4567 = vmatprep.mubr.f32.mxu0 0.0
        %4568 = vmatmul.mubr.f32.gmra.mxu0 %v4487
        %v4569 = vpop.f32.mrf.mxu0
        %v4570 = vadd.f32 %v4470, %v4569
        %v4571 = vpop.f32.mrf.mxu0
        %4572 = vmatprep.mubr.f32.mxu0 0.0
        %4573 = vmatmul.mubr.f32.gmra.mxu0 %v4490
        %v4574 = vpop.f32.mrf.mxu0
        %v4575 = vadd.f32 %v4475, %v4574
        %v4576 = vpop.f32.mrf.mxu0
        %4577 = vmatprep.mubr.f32.mxu0 0.0
        %4578 = vmatmul.mubr.f32.gmra.mxu0 %v4493
        %v4579 = vpop.f32.mrf.mxu0
        %v4580 = vadd.f32 %v4480, %v4579
        %v4581 = vpop.f32.mrf.mxu0
        %4582 = vdwg.mxu0
        %vm4583 = vcmask 238592
        %4584 = vst.msk [vmem:[#allocation3] sm:$0x3] %vm4583, 0.0
        %4585 = vst.msk [vmem:[#allocation3 + $0x2] sm:$0xff] %vm2178, %v4565
        %4586 = vst.msk [vmem:[#allocation3 + $0xa] sm:$0xff] %vm2178, %v4570
        %4587 = vst.msk [vmem:[#allocation3 + $0x12] sm:$0xff] %vm2178, %v4575
        %vm4588 = vcmask 240640
        %4589 = vst.msk [vmem:[#allocation3 + $0x1a] sm:$0xf] %vm4588, %v4580
        %4590 = vst.msk [vmem:[#allocation3 + $0x1e] sm:$0x3] %vm4583, 0.0
        %v4591 = vld [vmem:[#allocation3] sm:$0xff]
        %v4592 = vld [vmem:[#allocation3 + $0x8] sm:$0xff]
        %v4593 = vld [vmem:[#allocation3 + $0x10] sm:$0xff]
        %v4594 = vld [vmem:[#allocation3 + $0x18] sm:$0x3f]
        %v4595 = vld [vmem:[%s15] sm:$0xff]
        %v4596 = vld [vmem:[%s15 + $0x8] sm:$0xff]
        %v4597 = vld [vmem:[%s15 + $0x10] sm:$0xff]
        %v4598 = vld [vmem:[%s15 + $0x18] sm:$0x3f]
        %v4599 = vld [vmem:[#allocation3 + $0x1] sm:$0xff]
        %v4600 = vld [vmem:[#allocation3 + $0x9] sm:$0xff]
        %v4601 = vld [vmem:[#allocation3 + $0x11] sm:$0xff]
        %v4602 = vld [vmem:[#allocation3 + $0x19] sm:$0x3f]
        %s4603 = scalar_lea.vmem %s15, 32
        %v4604 = vld [vmem:[%s4603] sm:$0xff]
        %v4605 = vld [vmem:[%s4603 + $0x8] sm:$0xff]
        %v4606 = vld [vmem:[%s4603 + $0x10] sm:$0xff]
        %v4607 = vld [vmem:[%s4603 + $0x18] sm:$0x3f]
        %v4609 = vsel %vm2178, %v4599, 0
        %v4612 = vsel %vm2178, %v4600, 0
        %v4615 = vsel %vm2178, %v4601, 0
        %v4618 = vsel %vm2178, %v4602, 0
        %v4621 = vsel %vm1077, %v4607, 0
        %4623 = vmatprep.subr.mxu0 0.0
        %4624 = vmatpush1.msra.mxu0 0.0
        %4625 = vmatprep.subr.mxu0 0.0
        %4626 = vmatpush1.msra.mxu0 0.0
        %4627 = vmatprep.subr.mxu0 0.0
        %4628 = vmatpush1.msra.mxu0 0.0
        %4629 = vmatprep.subr.mxu0 0.0
        %4630 = vmatpush1.msra.mxu0 0.0
        %4631 = vmatprep.subr.mxu0 0.0
        %4632 = vmatpush1.msra.mxu0 0.0
        %4633 = vmatprep.subr.mxu0 0.0
        %4634 = vmatpush1.msra.mxu0 0.0
        %4635 = vmatprep.subr.mxu0 0.0
        %4636 = vmatpush1.msra.mxu0 0.0
        %4637 = vmatprep.subr.mxu0 0.0
        %4638 = vmatpush1.msra.mxu0 0.0
        %4639 = vmatprep.subr.mxu0 0.0
        %4640 = vmatpush1.msra.mxu0 0.0
        %4641 = vmatprep.subr.mxu0 0.0
        %4642 = vmatpush1.msra.mxu0 0.0
        %4643 = vmatprep.subr.mxu0 0.0
        %4644 = vmatpush1.msra.mxu0 0.0
        %4645 = vmatprep.subr.mxu0 0.0
        %4646 = vmatpush1.msra.mxu0 0.0
        %4647 = vmatprep.subr.mxu0 0.0
        %4648 = vmatpush1.msra.mxu0 %v4621
        %4649 = vmatprep.subr.mxu0 0.0
        %4650 = vmatpush1.msra.mxu0 %v4606
        %4651 = vmatprep.subr.mxu0 0.0
        %4652 = vmatpush1.msra.mxu0 %v4605
        %4653 = vmatprep.subr.mxu0 0.0
        %4654 = vmatpush1.msra.mxu0 %v4604
        %4655 = vmatprep.subr.mxu0 0.0
        %4656 = vmatpush2.msra.mxu0 0.0
        %4657 = vmatprep.subr.mxu0 0.0
        %4658 = vmatpush2.msra.mxu0 0.0
        %4659 = vmatprep.subr.mxu0 0.0
        %4660 = vmatpush2.msra.mxu0 0.0
        %4661 = vmatprep.subr.mxu0 0.0
        %4662 = vmatpush2.msra.mxu0 0.0
        %4663 = vmatprep.subr.mxu0 0.0
        %4664 = vmatpush2.msra.mxu0 0.0
        %4665 = vmatprep.subr.mxu0 0.0
        %4666 = vmatpush2.msra.mxu0 0.0
        %4667 = vmatprep.subr.mxu0 0.0
        %4668 = vmatpush2.msra.mxu0 0.0
        %4669 = vmatprep.subr.mxu0 0.0
        %4670 = vmatpush2.msra.mxu0 0.0
        %4671 = vmatprep.subr.mxu0 0.0
        %4672 = vmatpush2.msra.mxu0 0.0
        %4673 = vmatprep.subr.mxu0 0.0
        %4674 = vmatpush2.msra.mxu0 0.0
        %4675 = vmatprep.subr.mxu0 0.0
        %4676 = vmatpush2.msra.mxu0 0.0
        %4677 = vmatprep.subr.mxu0 0.0
        %4678 = vmatpush2.msra.mxu0 0.0
        %4679 = vmatprep.subr.mxu0 0.0
        %4680 = vmatpush2.msra.mxu0 0.0
        %4681 = vmatprep.subr.mxu0 0.0
        %4682 = vmatpush2.msra.mxu0 0.0
        %4683 = vmatprep.subr.mxu0 0.0
        %4684 = vmatpush2.msra.mxu0 0.0
        %4685 = vmatprep.subr.mxu0 0.0
        %4686 = vmatpush2.msra.mxu0 0.0
        %4687 = vmatprep.mubr.f32.mxu0 0.0
        %4688 = vmatmul.mubr.f32.gmra.mxu0 %v4609
        %v4689 = vpop.f32.mrf.mxu0
        %v4690 = vadd.f32 0.0, %v4689
        %v4691 = vpop.f32.mrf.mxu0
        %4692 = vmatprep.mubr.f32.mxu0 0.0
        %4693 = vmatmul.mubr.f32.gmra.mxu0 %v4612
        %v4694 = vpop.f32.mrf.mxu0
        %v4695 = vadd.f32 0.0, %v4694
        %v4696 = vpop.f32.mrf.mxu0
        %4697 = vmatprep.mubr.f32.mxu0 0.0
        %4698 = vmatmul.mubr.f32.gmra.mxu0 %v4615
        %v4699 = vpop.f32.mrf.mxu0
        %v4700 = vadd.f32 0.0, %v4699
        %v4701 = vpop.f32.mrf.mxu0
        %4702 = vmatprep.mubr.f32.mxu0 0.0
        %4703 = vmatmul.mubr.f32.gmra.mxu0 %v4618
        %v4704 = vpop.f32.mrf.mxu0
        %v4705 = vadd.f32 0.0, %v4704
        %v4706 = vpop.f32.mrf.mxu0
        %4707 = vdwg.mxu0
        %v4709 = vsel %vm2178, %v4591, 0
        %v4712 = vsel %vm2178, %v4592, 0
        %v4715 = vsel %vm2178, %v4593, 0
        %v4718 = vsel %vm2178, %v4594, 0
        %v4721 = vsel %vm1077, %v4598, 0
        %4723 = vmatprep.subr.mxu0 0.0
        %4724 = vmatpush1.msra.mxu0 0.0
        %4725 = vmatprep.subr.mxu0 0.0
        %4726 = vmatpush1.msra.mxu0 0.0
        %4727 = vmatprep.subr.mxu0 0.0
        %4728 = vmatpush1.msra.mxu0 0.0
        %4729 = vmatprep.subr.mxu0 0.0
        %4730 = vmatpush1.msra.mxu0 0.0
        %4731 = vmatprep.subr.mxu0 0.0
        %4732 = vmatpush1.msra.mxu0 0.0
        %4733 = vmatprep.subr.mxu0 0.0
        %4734 = vmatpush1.msra.mxu0 0.0
        %4735 = vmatprep.subr.mxu0 0.0
        %4736 = vmatpush1.msra.mxu0 0.0
        %4737 = vmatprep.subr.mxu0 0.0
        %4738 = vmatpush1.msra.mxu0 0.0
        %4739 = vmatprep.subr.mxu0 0.0
        %4740 = vmatpush1.msra.mxu0 0.0
        %4741 = vmatprep.subr.mxu0 0.0
        %4742 = vmatpush1.msra.mxu0 0.0
        %4743 = vmatprep.subr.mxu0 0.0
        %4744 = vmatpush1.msra.mxu0 0.0
        %4745 = vmatprep.subr.mxu0 0.0
        %4746 = vmatpush1.msra.mxu0 0.0
        %4747 = vmatprep.subr.mxu0 0.0
        %4748 = vmatpush1.msra.mxu0 %v4721
        %4749 = vmatprep.subr.mxu0 0.0
        %4750 = vmatpush1.msra.mxu0 %v4597
        %4751 = vmatprep.subr.mxu0 0.0
        %4752 = vmatpush1.msra.mxu0 %v4596
        %4753 = vmatprep.subr.mxu0 0.0
        %4754 = vmatpush1.msra.mxu0 %v4595
        %4755 = vmatprep.subr.mxu0 0.0
        %4756 = vmatpush2.msra.mxu0 0.0
        %4757 = vmatprep.subr.mxu0 0.0
        %4758 = vmatpush2.msra.mxu0 0.0
        %4759 = vmatprep.subr.mxu0 0.0
        %4760 = vmatpush2.msra.mxu0 0.0
        %4761 = vmatprep.subr.mxu0 0.0
        %4762 = vmatpush2.msra.mxu0 0.0
        %4763 = vmatprep.subr.mxu0 0.0
        %4764 = vmatpush2.msra.mxu0 0.0
        %4765 = vmatprep.subr.mxu0 0.0
        %4766 = vmatpush2.msra.mxu0 0.0
        %4767 = vmatprep.subr.mxu0 0.0
        %4768 = vmatpush2.msra.mxu0 0.0
        %4769 = vmatprep.subr.mxu0 0.0
        %4770 = vmatpush2.msra.mxu0 0.0
        %4771 = vmatprep.subr.mxu0 0.0
        %4772 = vmatpush2.msra.mxu0 0.0
        %4773 = vmatprep.subr.mxu0 0.0
        %4774 = vmatpush2.msra.mxu0 0.0
        %4775 = vmatprep.subr.mxu0 0.0
        %4776 = vmatpush2.msra.mxu0 0.0
        %4777 = vmatprep.subr.mxu0 0.0
        %4778 = vmatpush2.msra.mxu0 0.0
        %4779 = vmatprep.subr.mxu0 0.0
        %4780 = vmatpush2.msra.mxu0 0.0
        %4781 = vmatprep.subr.mxu0 0.0
        %4782 = vmatpush2.msra.mxu0 0.0
        %4783 = vmatprep.subr.mxu0 0.0
        %4784 = vmatpush2.msra.mxu0 0.0
        %4785 = vmatprep.subr.mxu0 0.0
        %4786 = vmatpush2.msra.mxu0 0.0
        %4787 = vmatprep.mubr.f32.mxu0 0.0
        %4788 = vmatmul.mubr.f32.gmra.mxu0 %v4709
        %v4789 = vpop.f32.mrf.mxu0
        %v4790 = vadd.f32 %v4690, %v4789
        %v4791 = vpop.f32.mrf.mxu0
        %4792 = vmatprep.mubr.f32.mxu0 0.0
        %4793 = vmatmul.mubr.f32.gmra.mxu0 %v4712
        %v4794 = vpop.f32.mrf.mxu0
        %v4795 = vadd.f32 %v4695, %v4794
        %v4796 = vpop.f32.mrf.mxu0
        %4797 = vmatprep.mubr.f32.mxu0 0.0
        %4798 = vmatmul.mubr.f32.gmra.mxu0 %v4715
        %v4799 = vpop.f32.mrf.mxu0
        %v4800 = vadd.f32 %v4700, %v4799
        %v4801 = vpop.f32.mrf.mxu0
        %4802 = vmatprep.mubr.f32.mxu0 0.0
        %4803 = vmatmul.mubr.f32.gmra.mxu0 %v4718
        %v4804 = vpop.f32.mrf.mxu0
        %v4805 = vadd.f32 %v4705, %v4804
        %v4806 = vpop.f32.mrf.mxu0
        %4807 = vdwg.mxu0
        %v4808 = vld [vmem:[#allocation3 + $0x2] sm:$0xff]
        %v4809 = vld [vmem:[#allocation3 + $0xa] sm:$0xff]
        %v4810 = vld [vmem:[#allocation3 + $0x12] sm:$0xff]
        %v4811 = vld [vmem:[#allocation3 + $0x1a] sm:$0x3f]
        %s4812 = scalar_lea.vmem %s15, 64
        %v4813 = vld [vmem:[%s4812] sm:$0xff]
        %v4814 = vld [vmem:[%s4812 + $0x8] sm:$0xff]
        %v4815 = vld [vmem:[%s4812 + $0x10] sm:$0xff]
        %v4816 = vld [vmem:[%s4812 + $0x18] sm:$0x3f]
        %v4818 = vsel %vm2178, %v4808, 0
        %v4821 = vsel %vm2178, %v4809, 0
        %v4824 = vsel %vm2178, %v4810, 0
        %v4827 = vsel %vm2178, %v4811, 0
        %v4830 = vsel %vm1077, %v4816, 0
        %4832 = vmatprep.subr.mxu0 0.0
        %4833 = vmatpush1.msra.mxu0 0.0
        %4834 = vmatprep.subr.mxu0 0.0
        %4835 = vmatpush1.msra.mxu0 0.0
        %4836 = vmatprep.subr.mxu0 0.0
        %4837 = vmatpush1.msra.mxu0 0.0
        %4838 = vmatprep.subr.mxu0 0.0
        %4839 = vmatpush1.msra.mxu0 0.0
        %4840 = vmatprep.subr.mxu0 0.0
        %4841 = vmatpush1.msra.mxu0 0.0
        %4842 = vmatprep.subr.mxu0 0.0
        %4843 = vmatpush1.msra.mxu0 0.0
        %4844 = vmatprep.subr.mxu0 0.0
        %4845 = vmatpush1.msra.mxu0 0.0
        %4846 = vmatprep.subr.mxu0 0.0
        %4847 = vmatpush1.msra.mxu0 0.0
        %4848 = vmatprep.subr.mxu0 0.0
        %4849 = vmatpush1.msra.mxu0 0.0
        %4850 = vmatprep.subr.mxu0 0.0
        %4851 = vmatpush1.msra.mxu0 0.0
        %4852 = vmatprep.subr.mxu0 0.0
        %4853 = vmatpush1.msra.mxu0 0.0
        %4854 = vmatprep.subr.mxu0 0.0
        %4855 = vmatpush1.msra.mxu0 0.0
        %4856 = vmatprep.subr.mxu0 0.0
        %4857 = vmatpush1.msra.mxu0 %v4830
        %4858 = vmatprep.subr.mxu0 0.0
        %4859 = vmatpush1.msra.mxu0 %v4815
        %4860 = vmatprep.subr.mxu0 0.0
        %4861 = vmatpush1.msra.mxu0 %v4814
        %4862 = vmatprep.subr.mxu0 0.0
        %4863 = vmatpush1.msra.mxu0 %v4813
        %4864 = vmatprep.subr.mxu0 0.0
        %4865 = vmatpush2.msra.mxu0 0.0
        %4866 = vmatprep.subr.mxu0 0.0
        %4867 = vmatpush2.msra.mxu0 0.0
        %4868 = vmatprep.subr.mxu0 0.0
        %4869 = vmatpush2.msra.mxu0 0.0
        %4870 = vmatprep.subr.mxu0 0.0
        %4871 = vmatpush2.msra.mxu0 0.0
        %4872 = vmatprep.subr.mxu0 0.0
        %4873 = vmatpush2.msra.mxu0 0.0
        %4874 = vmatprep.subr.mxu0 0.0
        %4875 = vmatpush2.msra.mxu0 0.0
        %4876 = vmatprep.subr.mxu0 0.0
        %4877 = vmatpush2.msra.mxu0 0.0
        %4878 = vmatprep.subr.mxu0 0.0
        %4879 = vmatpush2.msra.mxu0 0.0
        %4880 = vmatprep.subr.mxu0 0.0
        %4881 = vmatpush2.msra.mxu0 0.0
        %4882 = vmatprep.subr.mxu0 0.0
        %4883 = vmatpush2.msra.mxu0 0.0
        %4884 = vmatprep.subr.mxu0 0.0
        %4885 = vmatpush2.msra.mxu0 0.0
        %4886 = vmatprep.subr.mxu0 0.0
        %4887 = vmatpush2.msra.mxu0 0.0
        %4888 = vmatprep.subr.mxu0 0.0
        %4889 = vmatpush2.msra.mxu0 0.0
        %4890 = vmatprep.subr.mxu0 0.0
        %4891 = vmatpush2.msra.mxu0 0.0
        %4892 = vmatprep.subr.mxu0 0.0
        %4893 = vmatpush2.msra.mxu0 0.0
        %4894 = vmatprep.subr.mxu0 0.0
        %4895 = vmatpush2.msra.mxu0 0.0
        %4896 = vmatprep.mubr.f32.mxu0 0.0
        %4897 = vmatmul.mubr.f32.gmra.mxu0 %v4818
        %v4898 = vpop.f32.mrf.mxu0
        %v4899 = vadd.f32 0.0, %v4898
        %v4900 = vpop.f32.mrf.mxu0
        %4901 = vmatprep.mubr.f32.mxu0 0.0
        %4902 = vmatmul.mubr.f32.gmra.mxu0 %v4821
        %v4903 = vpop.f32.mrf.mxu0
        %v4904 = vadd.f32 0.0, %v4903
        %v4905 = vpop.f32.mrf.mxu0
        %4906 = vmatprep.mubr.f32.mxu0 0.0
        %4907 = vmatmul.mubr.f32.gmra.mxu0 %v4824
        %v4908 = vpop.f32.mrf.mxu0
        %v4909 = vadd.f32 0.0, %v4908
        %v4910 = vpop.f32.mrf.mxu0
        %4911 = vmatprep.mubr.f32.mxu0 0.0
        %4912 = vmatmul.mubr.f32.gmra.mxu0 %v4827
        %v4913 = vpop.f32.mrf.mxu0
        %v4914 = vadd.f32 0.0, %v4913
        %v4915 = vpop.f32.mrf.mxu0
        %4916 = vdwg.mxu0
        %v4917 = vadd.f32 %v4790, %v4899
        %v4918 = vadd.f32 %v4795, %v4904
        %v4919 = vadd.f32 %v4800, %v4909
        %v4920 = vadd.f32 %v4805, %v4914
        %v4921 = vld [vmem:[%s16] sm:$0x1]
        %v4923 = vlaneseq
        %v4924 = vshrl.u32 %v4923, 7
        %v4925 = vsub.s32 0, %v4924
        %v4926 = vrot.slane %v4921, %v4925
        %v4928 = vadd.f32 %v4917, %v4926
        %v4929 = vadd.f32 %v4918, %v4926
        %v4930 = vadd.f32 %v4919, %v4926
        %v4931 = vadd.f32 %v4920, %v4926
        %v4932 = vmax.f32 %v4928, 0.0
        %v4933 = vmax.f32 %v4929, 0.0
        %v4934 = vmax.f32 %v4930, 0.0
        %v4935 = vmax.f32 %v4931, 0.0
        %vm4936 = vcmask 812032
        %4937 = vst.msk [vmem:[#allocation4] sm:$0x3] %vm4936, 0.0
        %4938 = vst.msk [vmem:[#allocation4 + $0x2] sm:$0xff] %vm1669, %v4932
        %4939 = vst.msk [vmem:[#allocation4 + $0xa] sm:$0xff] %vm1669, %v4933
        %4940 = vst.msk [vmem:[#allocation4 + $0x12] sm:$0xff] %vm1669, %v4934
        %vm4941 = vcmask 816128
        %4942 = vst.msk [vmem:[#allocation4 + $0x1a] sm:$0x3f] %vm4941, %v4935
        %4943 = vst.msk [vmem:[#allocation4 + $0x20] sm:$0x3] %vm4936, 0.0
        %v4944 = vld [vmem:[#allocation4] sm:$0xff]
        %v4945 = vld [vmem:[#allocation4 + $0x8] sm:$0xff]
        %v4946 = vld [vmem:[#allocation4 + $0x10] sm:$0xff]
        %v4947 = vld [vmem:[#allocation4 + $0x18] sm:$0xff]
        %v4948 = vld [vmem:[#allocation21] sm:$0xff]
        %v4949 = vld [vmem:[#allocation21 + $0x8] sm:$0xff]
        %v4950 = vld [vmem:[#allocation21 + $0x10] sm:$0xff]
        %v4951 = vld [vmem:[#allocation21 + $0x18] sm:$0xff]
        %v4952 = vld [vmem:[#allocation21 + $0x20] sm:$0xff]
        %v4953 = vld [vmem:[#allocation21 + $0x28] sm:$0xff]
        %v4954 = vld [vmem:[#allocation21 + $0x30] sm:$0xff]
        %v4955 = vld [vmem:[#allocation21 + $0x38] sm:$0xff]
        %v4956 = vld [vmem:[#allocation21 + $0x40] sm:$0xff]
        %v4957 = vld [vmem:[#allocation21 + $0x48] sm:$0xff]
        %v4958 = vld [vmem:[#allocation21 + $0x50] sm:$0xff]
        %v4959 = vld [vmem:[#allocation21 + $0x58] sm:$0xff]
        %v4960 = vld [vmem:[#allocation21 + $0x60] sm:$0xff]
        %v4961 = vld [vmem:[#allocation21 + $0x68] sm:$0xff]
        %v4962 = vld [vmem:[#allocation21 + $0x70] sm:$0xff]
        %v4963 = vld [vmem:[#allocation21 + $0x78] sm:$0xff]
        %v4964 = vld [vmem:[#allocation21 + $0x80] sm:$0xff]
        %v4965 = vld [vmem:[#allocation21 + $0x88] sm:$0xff]
        %v4966 = vld [vmem:[#allocation21 + $0x90] sm:$0xff]
        %v4967 = vld [vmem:[#allocation21 + $0x98] sm:$0xff]
        %v4968 = vld [vmem:[#allocation21 + $0xa0] sm:$0xff]
        %v4969 = vld [vmem:[#allocation21 + $0xa8] sm:$0xff]
        %v4970 = vld [vmem:[#allocation21 + $0xb0] sm:$0xff]
        %v4971 = vld [vmem:[#allocation21 + $0xb8] sm:$0xff]
        %v4972 = vld [vmem:[#allocation21 + $0xc0] sm:$0xf]
        %v4973 = vld [vmem:[#allocation21 + $0xc8] sm:$0xf]
        %v4974 = vld [vmem:[#allocation4 + $0x1] sm:$0xff]
        %v4975 = vld [vmem:[#allocation4 + $0x9] sm:$0xff]
        %v4976 = vld [vmem:[#allocation4 + $0x11] sm:$0xff]
        %v4977 = vld [vmem:[#allocation4 + $0x19] sm:$0xff]
        %s4978 = scalar_lea.vmem [#allocation21], 208
        %v4979 = vld [vmem:[%s4978] sm:$0xff]
        %v4980 = vld [vmem:[%s4978 + $0x8] sm:$0xff]
        %v4981 = vld [vmem:[%s4978 + $0x10] sm:$0xff]
        %v4982 = vld [vmem:[%s4978 + $0x18] sm:$0xff]
        %v4983 = vld [vmem:[%s4978 + $0x20] sm:$0xff]
        %v4984 = vld [vmem:[%s4978 + $0x28] sm:$0xff]
        %v4985 = vld [vmem:[%s4978 + $0x30] sm:$0xff]
        %v4986 = vld [vmem:[%s4978 + $0x38] sm:$0xff]
        %v4987 = vld [vmem:[%s4978 + $0x40] sm:$0xff]
        %v4988 = vld [vmem:[%s4978 + $0x48] sm:$0xff]
        %v4989 = vld [vmem:[%s4978 + $0x50] sm:$0xff]
        %v4990 = vld [vmem:[%s4978 + $0x58] sm:$0xff]
        %v4991 = vld [vmem:[%s4978 + $0x60] sm:$0xff]
        %v4992 = vld [vmem:[%s4978 + $0x68] sm:$0xff]
        %v4993 = vld [vmem:[%s4978 + $0x70] sm:$0xff]
        %v4994 = vld [vmem:[%s4978 + $0x78] sm:$0xff]
        %v4995 = vld [vmem:[%s4978 + $0x80] sm:$0xff]
        %v4996 = vld [vmem:[%s4978 + $0x88] sm:$0xff]
        %v4997 = vld [vmem:[%s4978 + $0x90] sm:$0xff]
        %v4998 = vld [vmem:[%s4978 + $0x98] sm:$0xff]
        %v4999 = vld [vmem:[%s4978 + $0xa0] sm:$0xff]
        %v5000 = vld [vmem:[%s4978 + $0xa8] sm:$0xff]
        %v5001 = vld [vmem:[%s4978 + $0xb0] sm:$0xff]
        %v5002 = vld [vmem:[%s4978 + $0xb8] sm:$0xff]
        %v5003 = vld [vmem:[%s4978 + $0xc0] sm:$0xf]
        %v5004 = vld [vmem:[%s4978 + $0xc8] sm:$0xf]
        %v5006 = vsel %vm1669, %v4974, 0
        %v5009 = vsel %vm1669, %v4975, 0
        %v5012 = vsel %vm1669, %v4976, 0
        %v5015 = vsel %vm1669, %v4977, 0
        %v5018 = vsel %vm1678, %v5003, 0
        %v5021 = vsel %vm1678, %v5004, 0
        %5023 = vmatprep.subr.mxu0 0.0
        %5024 = vmatpush1.msra.mxu0 0.0
        %5025 = vmatprep.subr.mxu0 0.0
        %5026 = vmatpush1.msra.mxu0 0.0
        %5027 = vmatprep.subr.mxu0 0.0
        %5028 = vmatpush1.msra.mxu0 0.0
        %5029 = vmatprep.subr.mxu0 %v5021
        %5030 = vmatpush1.msra.mxu0 %v5018
        %5031 = vmatprep.subr.mxu0 %v5002
        %5032 = vmatpush1.msra.mxu0 %v5001
        %5033 = vmatprep.subr.mxu0 %v5000
        %5034 = vmatpush1.msra.mxu0 %v4999
        %5035 = vmatprep.subr.mxu0 %v4998
        %5036 = vmatpush1.msra.mxu0 %v4997
        %5037 = vmatprep.subr.mxu0 %v4996
        %5038 = vmatpush1.msra.mxu0 %v4995
        %5039 = vmatprep.subr.mxu0 %v4994
        %5040 = vmatpush1.msra.mxu0 %v4993
        %5041 = vmatprep.subr.mxu0 %v4992
        %5042 = vmatpush1.msra.mxu0 %v4991
        %5043 = vmatprep.subr.mxu0 %v4990
        %5044 = vmatpush1.msra.mxu0 %v4989
        %5045 = vmatprep.subr.mxu0 %v4988
        %5046 = vmatpush1.msra.mxu0 %v4987
        %5047 = vmatprep.subr.mxu0 %v4986
        %5048 = vmatpush1.msra.mxu0 %v4985
        %5049 = vmatprep.subr.mxu0 %v4984
        %5050 = vmatpush1.msra.mxu0 %v4983
        %5051 = vmatprep.subr.mxu0 %v4982
        %5052 = vmatpush1.msra.mxu0 %v4981
        %5053 = vmatprep.subr.mxu0 %v4980
        %5054 = vmatpush1.msra.mxu0 %v4979
        %5055 = vmatprep.subr.mxu0 0.0
        %5056 = vmatpush2.msra.mxu0 0.0
        %5057 = vmatprep.subr.mxu0 0.0
        %5058 = vmatpush2.msra.mxu0 0.0
        %5059 = vmatprep.subr.mxu0 0.0
        %5060 = vmatpush2.msra.mxu0 0.0
        %5061 = vmatprep.subr.mxu0 0.0
        %5062 = vmatpush2.msra.mxu0 0.0
        %5063 = vmatprep.subr.mxu0 0.0
        %5064 = vmatpush2.msra.mxu0 0.0
        %5065 = vmatprep.subr.mxu0 0.0
        %5066 = vmatpush2.msra.mxu0 0.0
        %5067 = vmatprep.subr.mxu0 0.0
        %5068 = vmatpush2.msra.mxu0 0.0
        %5069 = vmatprep.subr.mxu0 0.0
        %5070 = vmatpush2.msra.mxu0 0.0
        %5071 = vmatprep.subr.mxu0 0.0
        %5072 = vmatpush2.msra.mxu0 0.0
        %5073 = vmatprep.subr.mxu0 0.0
        %5074 = vmatpush2.msra.mxu0 0.0
        %5075 = vmatprep.subr.mxu0 0.0
        %5076 = vmatpush2.msra.mxu0 0.0
        %5077 = vmatprep.subr.mxu0 0.0
        %5078 = vmatpush2.msra.mxu0 0.0
        %5079 = vmatprep.subr.mxu0 0.0
        %5080 = vmatpush2.msra.mxu0 0.0
        %5081 = vmatprep.subr.mxu0 0.0
        %5082 = vmatpush2.msra.mxu0 0.0
        %5083 = vmatprep.subr.mxu0 0.0
        %5084 = vmatpush2.msra.mxu0 0.0
        %5085 = vmatprep.subr.mxu0 0.0
        %5086 = vmatpush2.msra.mxu0 0.0
        %5087 = vmatprep.mubr.f32.mxu0 0.0
        %5088 = vmatmul.mubr.f32.gmra.mxu0 %v5006
        %v5089 = vpop.f32.mrf.mxu0
        %v5090 = vadd.f32 0.0, %v5089
        %v5091 = vpop.f32.mrf.mxu0
        %v5092 = vadd.f32 0.0, %v5091
        %5093 = vmatprep.mubr.f32.mxu0 0.0
        %5094 = vmatmul.mubr.f32.gmra.mxu0 %v5009
        %v5095 = vpop.f32.mrf.mxu0
        %v5096 = vadd.f32 0.0, %v5095
        %v5097 = vpop.f32.mrf.mxu0
        %v5098 = vadd.f32 0.0, %v5097
        %5099 = vmatprep.mubr.f32.mxu0 0.0
        %5100 = vmatmul.mubr.f32.gmra.mxu0 %v5012
        %v5101 = vpop.f32.mrf.mxu0
        %v5102 = vadd.f32 0.0, %v5101
        %v5103 = vpop.f32.mrf.mxu0
        %v5104 = vadd.f32 0.0, %v5103
        %5105 = vmatprep.mubr.f32.mxu0 0.0
        %5106 = vmatmul.mubr.f32.gmra.mxu0 %v5015
        %v5107 = vpop.f32.mrf.mxu0
        %v5108 = vadd.f32 0.0, %v5107
        %v5109 = vpop.f32.mrf.mxu0
        %v5110 = vadd.f32 0.0, %v5109
        %5111 = vdwg.mxu0
        %v5113 = vsel %vm1669, %v4944, 0
        %v5116 = vsel %vm1669, %v4945, 0
        %v5119 = vsel %vm1669, %v4946, 0
        %v5122 = vsel %vm1669, %v4947, 0
        %v5125 = vsel %vm1678, %v4972, 0
        %v5128 = vsel %vm1678, %v4973, 0
        %5130 = vmatprep.subr.mxu0 0.0
        %5131 = vmatpush1.msra.mxu0 0.0
        %5132 = vmatprep.subr.mxu0 0.0
        %5133 = vmatpush1.msra.mxu0 0.0
        %5134 = vmatprep.subr.mxu0 0.0
        %5135 = vmatpush1.msra.mxu0 0.0
        %5136 = vmatprep.subr.mxu0 %v5128
        %5137 = vmatpush1.msra.mxu0 %v5125
        %5138 = vmatprep.subr.mxu0 %v4971
        %5139 = vmatpush1.msra.mxu0 %v4970
        %5140 = vmatprep.subr.mxu0 %v4969
        %5141 = vmatpush1.msra.mxu0 %v4968
        %5142 = vmatprep.subr.mxu0 %v4967
        %5143 = vmatpush1.msra.mxu0 %v4966
        %5144 = vmatprep.subr.mxu0 %v4965
        %5145 = vmatpush1.msra.mxu0 %v4964
        %5146 = vmatprep.subr.mxu0 %v4963
        %5147 = vmatpush1.msra.mxu0 %v4962
        %5148 = vmatprep.subr.mxu0 %v4961
        %5149 = vmatpush1.msra.mxu0 %v4960
        %5150 = vmatprep.subr.mxu0 %v4959
        %5151 = vmatpush1.msra.mxu0 %v4958
        %5152 = vmatprep.subr.mxu0 %v4957
        %5153 = vmatpush1.msra.mxu0 %v4956
        %5154 = vmatprep.subr.mxu0 %v4955
        %5155 = vmatpush1.msra.mxu0 %v4954
        %5156 = vmatprep.subr.mxu0 %v4953
        %5157 = vmatpush1.msra.mxu0 %v4952
        %5158 = vmatprep.subr.mxu0 %v4951
        %5159 = vmatpush1.msra.mxu0 %v4950
        %5160 = vmatprep.subr.mxu0 %v4949
        %5161 = vmatpush1.msra.mxu0 %v4948
        %5162 = vmatprep.subr.mxu0 0.0
        %5163 = vmatpush2.msra.mxu0 0.0
        %5164 = vmatprep.subr.mxu0 0.0
        %5165 = vmatpush2.msra.mxu0 0.0
        %5166 = vmatprep.subr.mxu0 0.0
        %5167 = vmatpush2.msra.mxu0 0.0
        %5168 = vmatprep.subr.mxu0 0.0
        %5169 = vmatpush2.msra.mxu0 0.0
        %5170 = vmatprep.subr.mxu0 0.0
        %5171 = vmatpush2.msra.mxu0 0.0
        %5172 = vmatprep.subr.mxu0 0.0
        %5173 = vmatpush2.msra.mxu0 0.0
        %5174 = vmatprep.subr.mxu0 0.0
        %5175 = vmatpush2.msra.mxu0 0.0
        %5176 = vmatprep.subr.mxu0 0.0
        %5177 = vmatpush2.msra.mxu0 0.0
        %5178 = vmatprep.subr.mxu0 0.0
        %5179 = vmatpush2.msra.mxu0 0.0
        %5180 = vmatprep.subr.mxu0 0.0
        %5181 = vmatpush2.msra.mxu0 0.0
        %5182 = vmatprep.subr.mxu0 0.0
        %5183 = vmatpush2.msra.mxu0 0.0
        %5184 = vmatprep.subr.mxu0 0.0
        %5185 = vmatpush2.msra.mxu0 0.0
        %5186 = vmatprep.subr.mxu0 0.0
        %5187 = vmatpush2.msra.mxu0 0.0
        %5188 = vmatprep.subr.mxu0 0.0
        %5189 = vmatpush2.msra.mxu0 0.0
        %5190 = vmatprep.subr.mxu0 0.0
        %5191 = vmatpush2.msra.mxu0 0.0
        %5192 = vmatprep.subr.mxu0 0.0
        %5193 = vmatpush2.msra.mxu0 0.0
        %5194 = vmatprep.mubr.f32.mxu0 0.0
        %5195 = vmatmul.mubr.f32.gmra.mxu0 %v5113
        %v5196 = vpop.f32.mrf.mxu0
        %v5197 = vadd.f32 %v5090, %v5196
        %v5198 = vpop.f32.mrf.mxu0
        %v5199 = vadd.f32 %v5092, %v5198
        %5200 = vmatprep.mubr.f32.mxu0 0.0
        %5201 = vmatmul.mubr.f32.gmra.mxu0 %v5116
        %v5202 = vpop.f32.mrf.mxu0
        %v5203 = vadd.f32 %v5096, %v5202
        %v5204 = vpop.f32.mrf.mxu0
        %v5205 = vadd.f32 %v5098, %v5204
        %5206 = vmatprep.mubr.f32.mxu0 0.0
        %5207 = vmatmul.mubr.f32.gmra.mxu0 %v5119
        %v5208 = vpop.f32.mrf.mxu0
        %v5209 = vadd.f32 %v5102, %v5208
        %v5210 = vpop.f32.mrf.mxu0
        %v5211 = vadd.f32 %v5104, %v5210
        %5212 = vmatprep.mubr.f32.mxu0 0.0
        %5213 = vmatmul.mubr.f32.gmra.mxu0 %v5122
        %v5214 = vpop.f32.mrf.mxu0
        %v5215 = vadd.f32 %v5108, %v5214
        %v5216 = vpop.f32.mrf.mxu0
        %v5217 = vadd.f32 %v5110, %v5216
        %5218 = vdwg.mxu0
        %v5219 = vld [vmem:[#allocation4 + $0x2] sm:$0xff]
        %v5220 = vld [vmem:[#allocation4 + $0xa] sm:$0xff]
        %v5221 = vld [vmem:[#allocation4 + $0x12] sm:$0xff]
        %v5222 = vld [vmem:[#allocation4 + $0x1a] sm:$0xff]
        %s5223 = scalar_lea.vmem [#allocation21], 416
        %v5224 = vld [vmem:[%s5223] sm:$0xff]
        %v5225 = vld [vmem:[%s5223 + $0x8] sm:$0xff]
        %v5226 = vld [vmem:[%s5223 + $0x10] sm:$0xff]
        %v5227 = vld [vmem:[%s5223 + $0x18] sm:$0xff]
        %v5228 = vld [vmem:[%s5223 + $0x20] sm:$0xff]
        %v5229 = vld [vmem:[%s5223 + $0x28] sm:$0xff]
        %v5230 = vld [vmem:[%s5223 + $0x30] sm:$0xff]
        %v5231 = vld [vmem:[%s5223 + $0x38] sm:$0xff]
        %v5232 = vld [vmem:[%s5223 + $0x40] sm:$0xff]
        %v5233 = vld [vmem:[%s5223 + $0x48] sm:$0xff]
        %v5234 = vld [vmem:[%s5223 + $0x50] sm:$0xff]
        %v5235 = vld [vmem:[%s5223 + $0x58] sm:$0xff]
        %v5236 = vld [vmem:[%s5223 + $0x60] sm:$0xff]
        %v5237 = vld [vmem:[%s5223 + $0x68] sm:$0xff]
        %v5238 = vld [vmem:[%s5223 + $0x70] sm:$0xff]
        %v5239 = vld [vmem:[%s5223 + $0x78] sm:$0xff]
        %v5240 = vld [vmem:[%s5223 + $0x80] sm:$0xff]
        %v5241 = vld [vmem:[%s5223 + $0x88] sm:$0xff]
        %v5242 = vld [vmem:[%s5223 + $0x90] sm:$0xff]
        %v5243 = vld [vmem:[%s5223 + $0x98] sm:$0xff]
        %v5244 = vld [vmem:[%s5223 + $0xa0] sm:$0xff]
        %v5245 = vld [vmem:[%s5223 + $0xa8] sm:$0xff]
        %v5246 = vld [vmem:[%s5223 + $0xb0] sm:$0xff]
        %v5247 = vld [vmem:[%s5223 + $0xb8] sm:$0xff]
        %v5248 = vld [vmem:[%s5223 + $0xc0] sm:$0xf]
        %v5249 = vld [vmem:[%s5223 + $0xc8] sm:$0xf]
        %v5251 = vsel %vm1669, %v5219, 0
        %v5254 = vsel %vm1669, %v5220, 0
        %v5257 = vsel %vm1669, %v5221, 0
        %v5260 = vsel %vm1669, %v5222, 0
        %v5263 = vsel %vm1678, %v5248, 0
        %v5266 = vsel %vm1678, %v5249, 0
        %5268 = vmatprep.subr.mxu0 0.0
        %5269 = vmatpush1.msra.mxu0 0.0
        %5270 = vmatprep.subr.mxu0 0.0
        %5271 = vmatpush1.msra.mxu0 0.0
        %5272 = vmatprep.subr.mxu0 0.0
        %5273 = vmatpush1.msra.mxu0 0.0
        %5274 = vmatprep.subr.mxu0 %v5266
        %5275 = vmatpush1.msra.mxu0 %v5263
        %5276 = vmatprep.subr.mxu0 %v5247
        %5277 = vmatpush1.msra.mxu0 %v5246
        %5278 = vmatprep.subr.mxu0 %v5245
        %5279 = vmatpush1.msra.mxu0 %v5244
        %5280 = vmatprep.subr.mxu0 %v5243
        %5281 = vmatpush1.msra.mxu0 %v5242
        %5282 = vmatprep.subr.mxu0 %v5241
        %5283 = vmatpush1.msra.mxu0 %v5240
        %5284 = vmatprep.subr.mxu0 %v5239
        %5285 = vmatpush1.msra.mxu0 %v5238
        %5286 = vmatprep.subr.mxu0 %v5237
        %5287 = vmatpush1.msra.mxu0 %v5236
        %5288 = vmatprep.subr.mxu0 %v5235
        %5289 = vmatpush1.msra.mxu0 %v5234
        %5290 = vmatprep.subr.mxu0 %v5233
        %5291 = vmatpush1.msra.mxu0 %v5232
        %5292 = vmatprep.subr.mxu0 %v5231
        %5293 = vmatpush1.msra.mxu0 %v5230
        %5294 = vmatprep.subr.mxu0 %v5229
        %5295 = vmatpush1.msra.mxu0 %v5228
        %5296 = vmatprep.subr.mxu0 %v5227
        %5297 = vmatpush1.msra.mxu0 %v5226
        %5298 = vmatprep.subr.mxu0 %v5225
        %5299 = vmatpush1.msra.mxu0 %v5224
        %5300 = vmatprep.subr.mxu0 0.0
        %5301 = vmatpush2.msra.mxu0 0.0
        %5302 = vmatprep.subr.mxu0 0.0
        %5303 = vmatpush2.msra.mxu0 0.0
        %5304 = vmatprep.subr.mxu0 0.0
        %5305 = vmatpush2.msra.mxu0 0.0
        %5306 = vmatprep.subr.mxu0 0.0
        %5307 = vmatpush2.msra.mxu0 0.0
        %5308 = vmatprep.subr.mxu0 0.0
        %5309 = vmatpush2.msra.mxu0 0.0
        %5310 = vmatprep.subr.mxu0 0.0
        %5311 = vmatpush2.msra.mxu0 0.0
        %5312 = vmatprep.subr.mxu0 0.0
        %5313 = vmatpush2.msra.mxu0 0.0
        %5314 = vmatprep.subr.mxu0 0.0
        %5315 = vmatpush2.msra.mxu0 0.0
        %5316 = vmatprep.subr.mxu0 0.0
        %5317 = vmatpush2.msra.mxu0 0.0
        %5318 = vmatprep.subr.mxu0 0.0
        %5319 = vmatpush2.msra.mxu0 0.0
        %5320 = vmatprep.subr.mxu0 0.0
        %5321 = vmatpush2.msra.mxu0 0.0
        %5322 = vmatprep.subr.mxu0 0.0
        %5323 = vmatpush2.msra.mxu0 0.0
        %5324 = vmatprep.subr.mxu0 0.0
        %5325 = vmatpush2.msra.mxu0 0.0
        %5326 = vmatprep.subr.mxu0 0.0
        %5327 = vmatpush2.msra.mxu0 0.0
        %5328 = vmatprep.subr.mxu0 0.0
        %5329 = vmatpush2.msra.mxu0 0.0
        %5330 = vmatprep.subr.mxu0 0.0
        %5331 = vmatpush2.msra.mxu0 0.0
        %5332 = vmatprep.mubr.f32.mxu0 0.0
        %5333 = vmatmul.mubr.f32.gmra.mxu0 %v5251
        %v5334 = vpop.f32.mrf.mxu0
        %v5335 = vadd.f32 0.0, %v5334
        %v5336 = vpop.f32.mrf.mxu0
        %v5337 = vadd.f32 0.0, %v5336
        %5338 = vmatprep.mubr.f32.mxu0 0.0
        %5339 = vmatmul.mubr.f32.gmra.mxu0 %v5254
        %v5340 = vpop.f32.mrf.mxu0
        %v5341 = vadd.f32 0.0, %v5340
        %v5342 = vpop.f32.mrf.mxu0
        %v5343 = vadd.f32 0.0, %v5342
        %5344 = vmatprep.mubr.f32.mxu0 0.0
        %5345 = vmatmul.mubr.f32.gmra.mxu0 %v5257
        %v5346 = vpop.f32.mrf.mxu0
        %v5347 = vadd.f32 0.0, %v5346
        %v5348 = vpop.f32.mrf.mxu0
        %v5349 = vadd.f32 0.0, %v5348
        %5350 = vmatprep.mubr.f32.mxu0 0.0
        %5351 = vmatmul.mubr.f32.gmra.mxu0 %v5260
        %v5352 = vpop.f32.mrf.mxu0
        %v5353 = vadd.f32 0.0, %v5352
        %v5354 = vpop.f32.mrf.mxu0
        %v5355 = vadd.f32 0.0, %v5354
        %5356 = vdwg.mxu0
        %v5357 = vadd.f32 %v5197, %v5335
        %v5358 = vadd.f32 %v5199, %v5337
        %v5359 = vadd.f32 %v5203, %v5341
        %v5360 = vadd.f32 %v5205, %v5343
        %v5361 = vadd.f32 %v5209, %v5347
        %v5362 = vadd.f32 %v5211, %v5349
        %v5363 = vadd.f32 %v5215, %v5353
        %v5364 = vadd.f32 %v5217, %v5355
        %v5365 = vld [vmem:[%s18] sm:$0x3]
        %v5367 = vlaneseq
        %v5368 = vshrl.u32 %v5367, 7
        %v5369 = vsub.s32 0, %v5368
        %v5370 = vrot.slane %v5365, %v5369
        %v5371 = vlaneseq
        %v5372 = vshrl.u32 %v5371, 7
        %v5373 = vsub.s32 1, %v5372
        %v5374 = vrot.slane %v5365, %v5373
        %v5377 = vadd.f32 %v5357, %v5370
        %v5378 = vadd.f32 %v5358, %v5374
        %v5379 = vadd.f32 %v5359, %v5370
        %v5380 = vadd.f32 %v5360, %v5374
        %v5381 = vadd.f32 %v5361, %v5370
        %v5382 = vadd.f32 %v5362, %v5374
        %v5383 = vadd.f32 %v5363, %v5370
        %v5384 = vadd.f32 %v5364, %v5374
        %v5385 = vmax.f32 %v5377, 0.0
        %v5386 = vmax.f32 %v5378, 0.0
        %v5387 = vmax.f32 %v5379, 0.0
        %v5388 = vmax.f32 %v5380, 0.0
        %v5389 = vmax.f32 %v5381, 0.0
        %v5390 = vmax.f32 %v5382, 0.0
        %v5391 = vmax.f32 %v5383, 0.0
        %v5392 = vmax.f32 %v5384, 0.0
        %5393 = vst [vmem:[#allocation5] sm:$0x3] 0.0
        %vm5394 = vcmask 173056
        %5395 = vst.msk [vmem:[#allocation5 + $0x8] sm:$0x3] %vm5394, 0.0
        %vm5404 = vcmask 1041408
        %v5405 = vrot.slane %v5385, 6
        %v5406 = vrot.slane %v5386, 6
        %v5407 = vrot.slane %v5387, 6
        %v5408 = vsel %vm5404, %v5405, %v5407
        %v5409 = vrot.slane %v5388, 6
        %v5410 = vsel %vm5404, %v5406, %v5409
        %v5411 = vrot.slane %v5389, 6
        %v5412 = vsel %vm5404, %v5407, %v5411
        %v5413 = vrot.slane %v5390, 6
        %v5414 = vsel %vm5404, %v5409, %v5413
        %v5415 = vrot.slane %v5391, 6
        %v5416 = vsel %vm5404, %v5411, %v5415
        %v5417 = vrot.slane %v5392, 6
        %v5418 = vsel %vm5404, %v5413, %v5417
        %5429 = vst [vmem:[#allocation5] sm:$0xfc] %v5405
        %vm5430 = vcmask 179202
        %5431 = vst.msk [vmem:[#allocation5 + $0x8] sm:$0xfc] %vm5430, %v5406
        %5432 = vst [vmem:[#allocation5 + $0x10] sm:$0xff] %v5408
        %5433 = vst.msk [vmem:[#allocation5 + $0x18] sm:$0xff] %vm1285, %v5410
        %5434 = vst [vmem:[#allocation5 + $0x20] sm:$0xff] %v5412
        %5435 = vst.msk [vmem:[#allocation5 + $0x28] sm:$0xff] %vm1285, %v5414
        %5436 = vst [vmem:[#allocation5 + $0x30] sm:$0xff] %v5416
        %5437 = vst.msk [vmem:[#allocation5 + $0x38] sm:$0xff] %vm1285, %v5418
        %5438 = vst [vmem:[#allocation5 + $0x40] sm:$0x3] %v5415
        %5439 = vst.msk [vmem:[#allocation5 + $0x48] sm:$0x3] %vm5394, %v5417
        %5440 = vst [vmem:[#allocation5 + $0x40] sm:$0xc] 0.0
        %vm5441 = vcmask 175106
        %5442 = vst.msk [vmem:[#allocation5 + $0x48] sm:$0xc] %vm5441, 0.0
        %v5443 = vld [vmem:[#allocation5] sm:$0xff]
        %v5444 = vld [vmem:[#allocation5 + $0x8] sm:$0xff]
        %v5445 = vld [vmem:[#allocation5 + $0x10] sm:$0xff]
        %v5446 = vld [vmem:[#allocation5 + $0x18] sm:$0xff]
        %v5447 = vld [vmem:[#allocation5 + $0x20] sm:$0xff]
        %v5448 = vld [vmem:[#allocation5 + $0x28] sm:$0xff]
        %v5449 = vld [vmem:[#allocation5 + $0x30] sm:$0xff]
        %v5450 = vld [vmem:[#allocation5 + $0x38] sm:$0xff]
        %v5451 = vld [vmem:[#allocation5 + $0x40] sm:$0x3]
        %v5452 = vld [vmem:[#allocation5 + $0x48] sm:$0x3]
        %v5453 = vld [vmem:[#allocation23] sm:$0xff]
        %v5454 = vld [vmem:[#allocation23 + $0x8] sm:$0xff]
        %v5455 = vld [vmem:[#allocation23 + $0x10] sm:$0xff]
        %v5456 = vld [vmem:[#allocation23 + $0x18] sm:$0xff]
        %v5457 = vld [vmem:[#allocation23 + $0x20] sm:$0xff]
        %v5458 = vld [vmem:[#allocation23 + $0x28] sm:$0xff]
        %v5459 = vld [vmem:[#allocation23 + $0x30] sm:$0xff]
        %v5460 = vld [vmem:[#allocation23 + $0x38] sm:$0xff]
        %v5461 = vld [vmem:[#allocation23 + $0x40] sm:$0xff]
        %v5462 = vld [vmem:[#allocation23 + $0x48] sm:$0xff]
        %v5463 = vld [vmem:[#allocation23 + $0x50] sm:$0xff]
        %v5464 = vld [vmem:[#allocation23 + $0x58] sm:$0xff]
        %v5465 = vld [vmem:[#allocation23 + $0x60] sm:$0xff]
        %v5466 = vld [vmem:[#allocation23 + $0x68] sm:$0xff]
        %v5467 = vld [vmem:[#allocation23 + $0x70] sm:$0xff]
        %v5468 = vld [vmem:[#allocation23 + $0x78] sm:$0xff]
        %v5469 = vld [vmem:[#allocation23 + $0x80] sm:$0xff]
        %v5470 = vld [vmem:[#allocation23 + $0x88] sm:$0xff]
        %v5471 = vld [vmem:[#allocation23 + $0x90] sm:$0x3f]
        %v5472 = vld [vmem:[#allocation5] sm:$0xfe]
        %v5473 = vld [vmem:[#allocation5 + $0x8] sm:$0xfe]
        %v5474 = vld [vmem:[#allocation5 + $0x40] sm:$0x7]
        %v5475 = vld [vmem:[#allocation5 + $0x48] sm:$0x7]
        %s5476 = scalar_lea.vmem [#allocation23], 152
        %v5477 = vld [vmem:[%s5476] sm:$0xff]
        %v5478 = vld [vmem:[%s5476 + $0x8] sm:$0xff]
        %v5479 = vld [vmem:[%s5476 + $0x10] sm:$0xff]
        %v5480 = vld [vmem:[%s5476 + $0x18] sm:$0xff]
        %v5481 = vld [vmem:[%s5476 + $0x20] sm:$0xff]
        %v5482 = vld [vmem:[%s5476 + $0x28] sm:$0xff]
        %v5483 = vld [vmem:[%s5476 + $0x30] sm:$0xff]
        %v5484 = vld [vmem:[%s5476 + $0x38] sm:$0xff]
        %v5485 = vld [vmem:[%s5476 + $0x40] sm:$0xff]
        %v5486 = vld [vmem:[%s5476 + $0x48] sm:$0xff]
        %v5487 = vld [vmem:[%s5476 + $0x50] sm:$0xff]
        %v5488 = vld [vmem:[%s5476 + $0x58] sm:$0xff]
        %v5489 = vld [vmem:[%s5476 + $0x60] sm:$0xff]
        %v5490 = vld [vmem:[%s5476 + $0x68] sm:$0xff]
        %v5491 = vld [vmem:[%s5476 + $0x70] sm:$0xff]
        %v5492 = vld [vmem:[%s5476 + $0x78] sm:$0xff]
        %v5493 = vld [vmem:[%s5476 + $0x80] sm:$0xff]
        %v5494 = vld [vmem:[%s5476 + $0x88] sm:$0xff]
        %v5495 = vld [vmem:[%s5476 + $0x90] sm:$0x3f]
        %v5506 = vrot.slane %v5472, 1
        %v5507 = vrot.slane %v5445, 1
        %v5508 = vsel %vm869, %v5506, %v5507
        %v5509 = vrot.slane %v5473, 1
        %v5510 = vrot.slane %v5446, 1
        %v5511 = vsel %vm869, %v5509, %v5510
        %v5512 = vrot.slane %v5447, 1
        %v5513 = vsel %vm869, %v5507, %v5512
        %v5514 = vrot.slane %v5448, 1
        %v5515 = vsel %vm869, %v5510, %v5514
        %v5516 = vrot.slane %v5449, 1
        %v5517 = vsel %vm869, %v5512, %v5516
        %v5518 = vrot.slane %v5450, 1
        %v5519 = vsel %vm869, %v5514, %v5518
        %v5520 = vrot.slane %v5474, 1
        %v5521 = vsel %vm869, %v5516, %v5520
        %v5522 = vrot.slane %v5475, 1
        %v5523 = vsel %vm869, %v5518, %v5522
        %v5529 = vsel %vm1285, %v5511, 0
        %v5531 = vsel %vm1285, %v5515, 0
        %v5533 = vsel %vm1285, %v5519, 0
        %v5535 = vsel %vm1285, %v5523, 0
        %v5537 = vsel %vm1285, %v5522, 0
        %v5540 = vsel %vm1077, %v5495, 0
        %5542 = vmatprep.subr.mxu0 0.0
        %5543 = vmatpush1.msra.mxu0 %v5492
        %5544 = vmatprep.subr.mxu0 0.0
        %5545 = vmatpush1.msra.mxu0 %v5491
        %5546 = vmatprep.subr.mxu0 0.0
        %5547 = vmatpush1.msra.mxu0 %v5490
        %5548 = vmatprep.subr.mxu0 0.0
        %5549 = vmatpush1.msra.mxu0 %v5489
        %5550 = vmatprep.subr.mxu0 0.0
        %5551 = vmatpush1.msra.mxu0 %v5488
        %5552 = vmatprep.subr.mxu0 0.0
        %5553 = vmatpush1.msra.mxu0 %v5487
        %5554 = vmatprep.subr.mxu0 0.0
        %5555 = vmatpush1.msra.mxu0 %v5486
        %5556 = vmatprep.subr.mxu0 0.0
        %5557 = vmatpush1.msra.mxu0 %v5485
        %5558 = vmatprep.subr.mxu0 0.0
        %5559 = vmatpush1.msra.mxu0 %v5484
        %5560 = vmatprep.subr.mxu0 0.0
        %5561 = vmatpush1.msra.mxu0 %v5483
        %5562 = vmatprep.subr.mxu0 0.0
        %5563 = vmatpush1.msra.mxu0 %v5482
        %5564 = vmatprep.subr.mxu0 0.0
        %5565 = vmatpush1.msra.mxu0 %v5481
        %5566 = vmatprep.subr.mxu0 0.0
        %5567 = vmatpush1.msra.mxu0 %v5480
        %5568 = vmatprep.subr.mxu0 0.0
        %5569 = vmatpush1.msra.mxu0 %v5479
        %5570 = vmatprep.subr.mxu0 0.0
        %5571 = vmatpush1.msra.mxu0 %v5478
        %5572 = vmatprep.subr.mxu0 0.0
        %5573 = vmatpush1.msra.mxu0 %v5477
        %5574 = vmatprep.subr.mxu0 0.0
        %5575 = vmatpush2.msra.mxu0 0.0
        %5576 = vmatprep.subr.mxu0 0.0
        %5577 = vmatpush2.msra.mxu0 0.0
        %5578 = vmatprep.subr.mxu0 0.0
        %5579 = vmatpush2.msra.mxu0 0.0
        %5580 = vmatprep.subr.mxu0 0.0
        %5581 = vmatpush2.msra.mxu0 0.0
        %5582 = vmatprep.subr.mxu0 0.0
        %5583 = vmatpush2.msra.mxu0 0.0
        %5584 = vmatprep.subr.mxu0 0.0
        %5585 = vmatpush2.msra.mxu0 0.0
        %5586 = vmatprep.subr.mxu0 0.0
        %5587 = vmatpush2.msra.mxu0 0.0
        %5588 = vmatprep.subr.mxu0 0.0
        %5589 = vmatpush2.msra.mxu0 0.0
        %5590 = vmatprep.subr.mxu0 0.0
        %5591 = vmatpush2.msra.mxu0 0.0
        %5592 = vmatprep.subr.mxu0 0.0
        %5593 = vmatpush2.msra.mxu0 0.0
        %5594 = vmatprep.subr.mxu0 0.0
        %5595 = vmatpush2.msra.mxu0 0.0
        %5596 = vmatprep.subr.mxu0 0.0
        %5597 = vmatpush2.msra.mxu0 0.0
        %5598 = vmatprep.subr.mxu0 0.0
        %5599 = vmatpush2.msra.mxu0 0.0
        %5600 = vmatprep.subr.mxu0 0.0
        %5601 = vmatpush2.msra.mxu0 %v5540
        %5602 = vmatprep.subr.mxu0 0.0
        %5603 = vmatpush2.msra.mxu0 %v5494
        %5604 = vmatprep.subr.mxu0 0.0
        %5605 = vmatpush2.msra.mxu0 %v5493
        %5606 = vmatprep.mubr.f32.mxu0 %v5529
        %5607 = vmatmul.mubr.f32.gmra.mxu0 %v5508
        %v5608 = vpop.f32.mrf.mxu0
        %v5609 = vadd.f32 0.0, %v5608
        %v5610 = vpop.f32.mrf.mxu0
        %5611 = vmatprep.mubr.f32.mxu0 %v5531
        %5612 = vmatmul.mubr.f32.gmra.mxu0 %v5513
        %v5613 = vpop.f32.mrf.mxu0
        %v5614 = vadd.f32 0.0, %v5613
        %v5615 = vpop.f32.mrf.mxu0
        %5616 = vmatprep.mubr.f32.mxu0 %v5533
        %5617 = vmatmul.mubr.f32.gmra.mxu0 %v5517
        %v5618 = vpop.f32.mrf.mxu0
        %v5619 = vadd.f32 0.0, %v5618
        %v5620 = vpop.f32.mrf.mxu0
        %5621 = vmatprep.mubr.f32.mxu0 %v5535
        %5622 = vmatmul.mubr.f32.gmra.mxu0 %v5521
        %v5623 = vpop.f32.mrf.mxu0
        %v5624 = vadd.f32 0.0, %v5623
        %v5625 = vpop.f32.mrf.mxu0
        %5626 = vmatprep.mubr.f32.mxu0 %v5537
        %5627 = vmatmul.mubr.f32.gmra.mxu0 %v5520
        %v5628 = vpop.f32.mrf.mxu0
        %v5629 = vadd.f32 0.0, %v5628
        %v5630 = vpop.f32.mrf.mxu0
        %5631 = vdwg.mxu0
        %v5633 = vsel %vm1285, %v5444, 0
        %v5635 = vsel %vm1285, %v5446, 0
        %v5637 = vsel %vm1285, %v5448, 0
        %v5639 = vsel %vm1285, %v5450, 0
        %v5642 = vsel %vm1285, %v5452, 0
        %v5645 = vsel %vm1077, %v5471, 0
        %5647 = vmatprep.subr.mxu0 0.0
        %5648 = vmatpush1.msra.mxu0 %v5468
        %5649 = vmatprep.subr.mxu0 0.0
        %5650 = vmatpush1.msra.mxu0 %v5467
        %5651 = vmatprep.subr.mxu0 0.0
        %5652 = vmatpush1.msra.mxu0 %v5466
        %5653 = vmatprep.subr.mxu0 0.0
        %5654 = vmatpush1.msra.mxu0 %v5465
        %5655 = vmatprep.subr.mxu0 0.0
        %5656 = vmatpush1.msra.mxu0 %v5464
        %5657 = vmatprep.subr.mxu0 0.0
        %5658 = vmatpush1.msra.mxu0 %v5463
        %5659 = vmatprep.subr.mxu0 0.0
        %5660 = vmatpush1.msra.mxu0 %v5462
        %5661 = vmatprep.subr.mxu0 0.0
        %5662 = vmatpush1.msra.mxu0 %v5461
        %5663 = vmatprep.subr.mxu0 0.0
        %5664 = vmatpush1.msra.mxu0 %v5460
        %5665 = vmatprep.subr.mxu0 0.0
        %5666 = vmatpush1.msra.mxu0 %v5459
        %5667 = vmatprep.subr.mxu0 0.0
        %5668 = vmatpush1.msra.mxu0 %v5458
        %5669 = vmatprep.subr.mxu0 0.0
        %5670 = vmatpush1.msra.mxu0 %v5457
        %5671 = vmatprep.subr.mxu0 0.0
        %5672 = vmatpush1.msra.mxu0 %v5456
        %5673 = vmatprep.subr.mxu0 0.0
        %5674 = vmatpush1.msra.mxu0 %v5455
        %5675 = vmatprep.subr.mxu0 0.0
        %5676 = vmatpush1.msra.mxu0 %v5454
        %5677 = vmatprep.subr.mxu0 0.0
        %5678 = vmatpush1.msra.mxu0 %v5453
        %5679 = vmatprep.subr.mxu0 0.0
        %5680 = vmatpush2.msra.mxu0 0.0
        %5681 = vmatprep.subr.mxu0 0.0
        %5682 = vmatpush2.msra.mxu0 0.0
        %5683 = vmatprep.subr.mxu0 0.0
        %5684 = vmatpush2.msra.mxu0 0.0
        %5685 = vmatprep.subr.mxu0 0.0
        %5686 = vmatpush2.msra.mxu0 0.0
        %5687 = vmatprep.subr.mxu0 0.0
        %5688 = vmatpush2.msra.mxu0 0.0
        %5689 = vmatprep.subr.mxu0 0.0
        %5690 = vmatpush2.msra.mxu0 0.0
        %5691 = vmatprep.subr.mxu0 0.0
        %5692 = vmatpush2.msra.mxu0 0.0
        %5693 = vmatprep.subr.mxu0 0.0
        %5694 = vmatpush2.msra.mxu0 0.0
        %5695 = vmatprep.subr.mxu0 0.0
        %5696 = vmatpush2.msra.mxu0 0.0
        %5697 = vmatprep.subr.mxu0 0.0
        %5698 = vmatpush2.msra.mxu0 0.0
        %5699 = vmatprep.subr.mxu0 0.0
        %5700 = vmatpush2.msra.mxu0 0.0
        %5701 = vmatprep.subr.mxu0 0.0
        %5702 = vmatpush2.msra.mxu0 0.0
        %5703 = vmatprep.subr.mxu0 0.0
        %5704 = vmatpush2.msra.mxu0 0.0
        %5705 = vmatprep.subr.mxu0 0.0
        %5706 = vmatpush2.msra.mxu0 %v5645
        %5707 = vmatprep.subr.mxu0 0.0
        %5708 = vmatpush2.msra.mxu0 %v5470
        %5709 = vmatprep.subr.mxu0 0.0
        %5710 = vmatpush2.msra.mxu0 %v5469
        %5711 = vmatprep.mubr.f32.mxu0 %v5633
        %5712 = vmatmul.mubr.f32.gmra.mxu0 %v5443
        %v5713 = vpop.f32.mrf.mxu0
        %v5714 = vadd.f32 %v5609, %v5713
        %v5715 = vpop.f32.mrf.mxu0
        %5716 = vmatprep.mubr.f32.mxu0 %v5635
        %5717 = vmatmul.mubr.f32.gmra.mxu0 %v5445
        %v5718 = vpop.f32.mrf.mxu0
        %v5719 = vadd.f32 %v5614, %v5718
        %v5720 = vpop.f32.mrf.mxu0
        %5721 = vmatprep.mubr.f32.mxu0 %v5637
        %5722 = vmatmul.mubr.f32.gmra.mxu0 %v5447
        %v5723 = vpop.f32.mrf.mxu0
        %v5724 = vadd.f32 %v5619, %v5723
        %v5725 = vpop.f32.mrf.mxu0
        %5726 = vmatprep.mubr.f32.mxu0 %v5639
        %5727 = vmatmul.mubr.f32.gmra.mxu0 %v5449
        %v5728 = vpop.f32.mrf.mxu0
        %v5729 = vadd.f32 %v5624, %v5728
        %v5730 = vpop.f32.mrf.mxu0
        %5731 = vmatprep.mubr.f32.mxu0 %v5642
        %5732 = vmatmul.mubr.f32.gmra.mxu0 %v5451
        %v5733 = vpop.f32.mrf.mxu0
        %v5734 = vadd.f32 %v5629, %v5733
        %v5735 = vpop.f32.mrf.mxu0
        %5736 = vdwg.mxu0
        %v5737 = vld [vmem:[#allocation5] sm:$0xfc]
        %v5738 = vld [vmem:[#allocation5 + $0x8] sm:$0xfc]
        %v5739 = vld [vmem:[#allocation5 + $0x40] sm:$0xf]
        %v5740 = vld [vmem:[#allocation5 + $0x48] sm:$0xf]
        %s5741 = scalar_lea.vmem [#allocation23], 304
        %v5742 = vld [vmem:[%s5741] sm:$0xff]
        %v5743 = vld [vmem:[%s5741 + $0x8] sm:$0xff]
        %v5744 = vld [vmem:[%s5741 + $0x10] sm:$0xff]
        %v5745 = vld [vmem:[%s5741 + $0x18] sm:$0xff]
        %v5746 = vld [vmem:[%s5741 + $0x20] sm:$0xff]
        %v5747 = vld [vmem:[%s5741 + $0x28] sm:$0xff]
        %v5748 = vld [vmem:[%s5741 + $0x30] sm:$0xff]
        %v5749 = vld [vmem:[%s5741 + $0x38] sm:$0xff]
        %v5750 = vld [vmem:[%s5741 + $0x40] sm:$0xff]
        %v5751 = vld [vmem:[%s5741 + $0x48] sm:$0xff]
        %v5752 = vld [vmem:[%s5741 + $0x50] sm:$0xff]
        %v5753 = vld [vmem:[%s5741 + $0x58] sm:$0xff]
        %v5754 = vld [vmem:[%s5741 + $0x60] sm:$0xff]
        %v5755 = vld [vmem:[%s5741 + $0x68] sm:$0xff]
        %v5756 = vld [vmem:[%s5741 + $0x70] sm:$0xff]
        %v5757 = vld [vmem:[%s5741 + $0x78] sm:$0xff]
        %v5758 = vld [vmem:[%s5741 + $0x80] sm:$0xff]
        %v5759 = vld [vmem:[%s5741 + $0x88] sm:$0xff]
        %v5760 = vld [vmem:[%s5741 + $0x90] sm:$0x3f]
        %v5765 = vrot.slane %v5737, 2
        %v5766 = vrot.slane %v5445, 2
        %v5767 = vsel %vm1077, %v5765, %v5766
        %v5768 = vrot.slane %v5738, 2
        %v5769 = vrot.slane %v5446, 2
        %v5770 = vsel %vm1077, %v5768, %v5769
        %v5771 = vrot.slane %v5447, 2
        %v5772 = vsel %vm1077, %v5766, %v5771
        %v5773 = vrot.slane %v5448, 2
        %v5774 = vsel %vm1077, %v5769, %v5773
        %v5775 = vrot.slane %v5449, 2
        %v5776 = vsel %vm1077, %v5771, %v5775
        %v5777 = vrot.slane %v5450, 2
        %v5778 = vsel %vm1077, %v5773, %v5777
        %v5779 = vrot.slane %v5739, 2
        %v5780 = vsel %vm1077, %v5775, %v5779
        %v5781 = vrot.slane %v5740, 2
        %v5782 = vsel %vm1077, %v5777, %v5781
        %v5788 = vsel %vm1285, %v5770, 0
        %v5790 = vsel %vm1285, %v5774, 0
        %v5792 = vsel %vm1285, %v5778, 0
        %v5794 = vsel %vm1285, %v5782, 0
        %v5796 = vsel %vm1285, %v5781, 0
        %v5799 = vsel %vm1077, %v5760, 0
        %5801 = vmatprep.subr.mxu0 0.0
        %5802 = vmatpush1.msra.mxu0 %v5757
        %5803 = vmatprep.subr.mxu0 0.0
        %5804 = vmatpush1.msra.mxu0 %v5756
        %5805 = vmatprep.subr.mxu0 0.0
        %5806 = vmatpush1.msra.mxu0 %v5755
        %5807 = vmatprep.subr.mxu0 0.0
        %5808 = vmatpush1.msra.mxu0 %v5754
        %5809 = vmatprep.subr.mxu0 0.0
        %5810 = vmatpush1.msra.mxu0 %v5753
        %5811 = vmatprep.subr.mxu0 0.0
        %5812 = vmatpush1.msra.mxu0 %v5752
        %5813 = vmatprep.subr.mxu0 0.0
        %5814 = vmatpush1.msra.mxu0 %v5751
        %5815 = vmatprep.subr.mxu0 0.0
        %5816 = vmatpush1.msra.mxu0 %v5750
        %5817 = vmatprep.subr.mxu0 0.0
        %5818 = vmatpush1.msra.mxu0 %v5749
        %5819 = vmatprep.subr.mxu0 0.0
        %5820 = vmatpush1.msra.mxu0 %v5748
        %5821 = vmatprep.subr.mxu0 0.0
        %5822 = vmatpush1.msra.mxu0 %v5747
        %5823 = vmatprep.subr.mxu0 0.0
        %5824 = vmatpush1.msra.mxu0 %v5746
        %5825 = vmatprep.subr.mxu0 0.0
        %5826 = vmatpush1.msra.mxu0 %v5745
        %5827 = vmatprep.subr.mxu0 0.0
        %5828 = vmatpush1.msra.mxu0 %v5744
        %5829 = vmatprep.subr.mxu0 0.0
        %5830 = vmatpush1.msra.mxu0 %v5743
        %5831 = vmatprep.subr.mxu0 0.0
        %5832 = vmatpush1.msra.mxu0 %v5742
        %5833 = vmatprep.subr.mxu0 0.0
        %5834 = vmatpush2.msra.mxu0 0.0
        %5835 = vmatprep.subr.mxu0 0.0
        %5836 = vmatpush2.msra.mxu0 0.0
        %5837 = vmatprep.subr.mxu0 0.0
        %5838 = vmatpush2.msra.mxu0 0.0
        %5839 = vmatprep.subr.mxu0 0.0
        %5840 = vmatpush2.msra.mxu0 0.0
        %5841 = vmatprep.subr.mxu0 0.0
        %5842 = vmatpush2.msra.mxu0 0.0
        %5843 = vmatprep.subr.mxu0 0.0
        %5844 = vmatpush2.msra.mxu0 0.0
        %5845 = vmatprep.subr.mxu0 0.0
        %5846 = vmatpush2.msra.mxu0 0.0
        %5847 = vmatprep.subr.mxu0 0.0
        %5848 = vmatpush2.msra.mxu0 0.0
        %5849 = vmatprep.subr.mxu0 0.0
        %5850 = vmatpush2.msra.mxu0 0.0
        %5851 = vmatprep.subr.mxu0 0.0
        %5852 = vmatpush2.msra.mxu0 0.0
        %5853 = vmatprep.subr.mxu0 0.0
        %5854 = vmatpush2.msra.mxu0 0.0
        %5855 = vmatprep.subr.mxu0 0.0
        %5856 = vmatpush2.msra.mxu0 0.0
        %5857 = vmatprep.subr.mxu0 0.0
        %5858 = vmatpush2.msra.mxu0 0.0
        %5859 = vmatprep.subr.mxu0 0.0
        %5860 = vmatpush2.msra.mxu0 %v5799
        %5861 = vmatprep.subr.mxu0 0.0
        %5862 = vmatpush2.msra.mxu0 %v5759
        %5863 = vmatprep.subr.mxu0 0.0
        %5864 = vmatpush2.msra.mxu0 %v5758
        %5865 = vmatprep.mubr.f32.mxu0 %v5788
        %5866 = vmatmul.mubr.f32.gmra.mxu0 %v5767
        %v5867 = vpop.f32.mrf.mxu0
        %v5868 = vadd.f32 0.0, %v5867
        %v5869 = vpop.f32.mrf.mxu0
        %5870 = vmatprep.mubr.f32.mxu0 %v5790
        %5871 = vmatmul.mubr.f32.gmra.mxu0 %v5772
        %v5872 = vpop.f32.mrf.mxu0
        %v5873 = vadd.f32 0.0, %v5872
        %v5874 = vpop.f32.mrf.mxu0
        %5875 = vmatprep.mubr.f32.mxu0 %v5792
        %5876 = vmatmul.mubr.f32.gmra.mxu0 %v5776
        %v5877 = vpop.f32.mrf.mxu0
        %v5878 = vadd.f32 0.0, %v5877
        %v5879 = vpop.f32.mrf.mxu0
        %5880 = vmatprep.mubr.f32.mxu0 %v5794
        %5881 = vmatmul.mubr.f32.gmra.mxu0 %v5780
        %v5882 = vpop.f32.mrf.mxu0
        %v5883 = vadd.f32 0.0, %v5882
        %v5884 = vpop.f32.mrf.mxu0
        %5885 = vmatprep.mubr.f32.mxu0 %v5796
        %5886 = vmatmul.mubr.f32.gmra.mxu0 %v5779
        %v5887 = vpop.f32.mrf.mxu0
        %v5888 = vadd.f32 0.0, %v5887
        %v5889 = vpop.f32.mrf.mxu0
        %5890 = vdwg.mxu0
        %v5891 = vadd.f32 %v5714, %v5868
        %v5892 = vadd.f32 %v5719, %v5873
        %v5893 = vadd.f32 %v5724, %v5878
        %v5894 = vadd.f32 %v5729, %v5883
        %v5895 = vadd.f32 %v5734, %v5888
        %v5896 = vld [vmem:[%s20] sm:$0x1]
        %v5898 = vlaneseq
        %v5899 = vshrl.u32 %v5898, 7
        %v5900 = vsub.s32 0, %v5899
        %v5901 = vrot.slane %v5896, %v5900
        %v5903 = vadd.f32 %v5891, %v5901
        %v5904 = vadd.f32 %v5892, %v5901
        %v5905 = vadd.f32 %v5893, %v5901
        %v5906 = vadd.f32 %v5894, %v5901
        %v5907 = vadd.f32 %v5895, %v5901
        %5908 = vst.msk [vmem:[%s853] sm:$0xff] %vm879, %v5903
        %5909 = vst.msk [vmem:[%s853 + $0x8] sm:$0xff] %vm879, %v5904
        %5910 = vst.msk [vmem:[%s853 + $0x10] sm:$0xff] %vm879, %v5905
        %5911 = vst.msk [vmem:[%s853 + $0x18] sm:$0xff] %vm879, %v5906
        %vm5912 = vcmask 58368
        %5913 = vst.msk [vmem:[%s853 + $0x20] sm:$0x3] %vm5912, %v5907
        %p5914 = scmp.lt.s32.totalorder %s43, 1
        %s5915 = scalar_select %p5914, %s43, 1
        %s5916 = smul.addr %s5915, 5
        %s5917 = smul.addr %s5916, 8
        %s5918 = scalar_lea.vmem %s21, %s5917
        %s5919 = sand.u32 %s523, 1
        %s5920 = scalar_lea.sflag [#allocation8], %s5919
        %s5921 = sand.u32 %s523, 1
        %s5922 = scalar_lea.vmem [#allocation24], %s5921
        // Predicated region
        $region149: #{ladder_forward.1} parent=103 // pred_check
          %p5923 = pneg %p507
        $region150: #{ladder_forward.1} parent=103 // pred_check_branch
          %5925 = sbr.rel (%p5923) target = $region152
        $region151: #{ladder_forward.1} parent=103 // pred_region
          _
        $region152: #{ladder_forward.1} parent=103 // pred_fallthru
          _
        // Predicated region
        $region153: #{ladder_forward.1} parent=103 // pred_check
          %p5926 = pneg %p533
        $region154: #{ladder_forward.1} parent=103 // pred_check_branch
          %5928 = sbr.rel (%p5926) target = $region156
        $region155: #{ladder_forward.1} parent=103 // pred_region
          %s5930 = ssub.s32 16, 16
          %5931 = vsyncadd %s5920, %s5930
          %s5932 = smul.addr %s43, 16
          %s5933 = scalar_lea.hbm %s22, %s5932
          %s5935 = sshll.u32 %s5922, 4
          %s5936 = int_to_ptr.vmem [resolvable:$true] %s5935
          %5938 = dma.vmem_to_hbm [thread:$0]  %s5936, 16, %s5933, %s5920
        $region156: #{ladder_forward.1} parent=103 // pred_fallthru
          _
      $region104: #{ladder_forward.1} parent=5 // pred_fallthru
        _
      %p5939 = scmp.le.s32.totalorder 2, %s38
      // Predicated region
      $region157: #{ladder_forward.1} parent=5 // pred_check
        %p5940 = pneg %p5939
      $region158: #{ladder_forward.1} parent=5 // pred_check_branch
        %5942 = sbr.rel (%p5940) target = $region160
      $region159: #{ladder_forward.1} parent=5 // pred_region
        %s5943 = ssub.s32 %s38, 2
        // Predicated region
        $region161: #{ladder_forward.1} parent=159 // pred_check
          %p5944 = pneg %p513
        $region162: #{ladder_forward.1} parent=159 // pred_check_branch
          %5946 = sbr.rel (%p5944) target = $region164
        $region163: #{ladder_forward.1} parent=159 // pred_region
          %p5947 = scmp.lt.s32.totalorder %s44, 1
          %s5948 = scalar_select %p5947, %s44, 1
          %s5949 = smul.addr %s5948, 5
          %s5950 = smul.addr %s5949, 8
          %s5951 = scalar_lea.vmem %s21, %s5950
        $region164: #{ladder_forward.1} parent=159 // pred_fallthru
          _
        // Predicated region
        $region165: #{ladder_forward.1} parent=159 // pred_check
          %p5952 = pneg %p539
        $region166: #{ladder_forward.1} parent=159 // pred_check_branch
          %5954 = sbr.rel (%p5952) target = $region168
        $region167: #{ladder_forward.1} parent=159 // pred_region
          %s5955 = sand.u32 %s524, 1
          %s5956 = scalar_lea.sflag [#allocation8], %s5955
          %s5957 = sand.u32 %s524, 1
          %s5958 = scalar_lea.vmem [#allocation24], %s5957
          %5959 = dma.done %s5956, 16
        $region168: #{ladder_forward.1} parent=159 // pred_fallthru
          _
      $region160: #{ladder_forward.1} parent=5 // pred_fallthru
        _
    $region6: #{ladder_forward.1} parent=1 // loop_footer
      %s42 = sadd.s32 1, %s38
    $region7: #{ladder_forward.1} parent=1 // loop_footer_branch
      %37 = sbr.rel target = $region3
    $region8: #{ladder_forward.1} parent=1 // loop_exit
      _
    %5960 = vsyncpa [#allocation7], 1
    %s5961 = scalar_lea.sflag [#allocation7], 1
    %5962 = vsyncpa %s5961, 1
    %5963 = vsyncpa [#allocation10], 1
    %5964 = vsyncpa [#allocation13], 1
    %5965 = vsyncpa [#allocation16], 1
    %5966 = vsyncpa [#allocation19], 1
    %5967 = vsyncpa [#allocation22], 1
    %5968 = vsyncpa [#allocation8], 1
    %s5969 = scalar_lea.sflag [#allocation8], 1
    %5970 = vsyncpa %s5969, 1

</llo_original>
